<compile_context>
chip_gen: v7x
topology: tpu7x:2x2x1
jax: 0.10.0
libtpu: 0.0.40
codegen_flags: <defaults>
</compile_context>

<pallas_src>
import math

import jax
import jax.numpy as jnp
from jax import lax
from jax.experimental import pallas as pl
from jax.experimental.pallas import tpu as pltpu


def _round_up(n, m):
    return ((n + m - 1) // m) * m


# ----------------------------- batched matmul -----------------------------

def _bmm_kernel(x_ref, w_ref, o_ref):
    o_ref[...] = jnp.dot(
        x_ref[...], w_ref[...], preferred_element_type=jnp.float32
    ).astype(o_ref.dtype)


def bmm(x, w, tm=512, out_dtype=jnp.float32, keep_pad=False):
    """Batched matmul (K, M, C) @ (K, C, N) -> (K, M, N[padded to 128]).

    M is tiled (double-buffered pipeline), both grid axes "parallel" (megacore),
    operands fed to the MXU in bf16 with f32 accumulation.  The output column count
    is padded to a multiple of 128 so the per-tile stores are unmasked / lane-dense;
    with keep_pad=True the padded array is returned and the caller slices the columns
    it needs (avoids an extra HBM pass for the slice-back).
    """
    K, M, C = x.shape
    _, _, N = w.shape
    Np = _round_up(N, 128)
    if Np != N:
        w = jnp.pad(w, ((0, 0), (0, 0), (0, Np - N)))
    tm = min(tm, _round_up(M, 8))
    Mp = _round_up(M, tm)
    if Mp != M:
        x = jnp.pad(x, ((0, 0), (0, Mp - M), (0, 0)))
    xb = x.astype(jnp.bfloat16)
    wb = w.astype(jnp.bfloat16)
    out = pl.pallas_call(
        _bmm_kernel,
        out_shape=jax.ShapeDtypeStruct((K, Mp, Np), out_dtype),
        grid=(K, Mp // tm),
        in_specs=[
            pl.BlockSpec((None, tm, C), lambda k, m: (k, m, 0)),
            pl.BlockSpec((None, C, Np), lambda k, m: (k, 0, 0)),
        ],
        out_specs=pl.BlockSpec((None, tm, Np), lambda k, m: (k, m, 0)),
        compiler_params=pltpu.CompilerParams(
            dimension_semantics=("parallel", "parallel")),
    )(xb, wb)
    if Mp != M:
        out = out[:, :M]
    if (not keep_pad) and Np != N:
        out = out[..., :N]
    return out


# ----------------------------- depthwise conv + SiLU -----------------------------

def _dwconv_silu_kernel(x_ref, w_ref, b_ref, o_ref):
    # x_ref: (H+2, W+2, D) padded input, w_ref: (3,3,D), b_ref: (1,D), o_ref: (H,W,D)
    H, W, D = o_ref.shape
    xt = x_ref[...]
    wt = w_ref[...]
    # Materialize each W (sublane) shift only once; reuse it for the three H taps
    # (H slices are along the leading, untiled dim -> cheap).
    # TODO(synk): replace the W-shift slice copies with pltpu.roll (XLU slot is idle here)
    # and optionally feed the input as bf16 on v6e/v7x; add an H-row tile with a 2-row
    # halo for very large images / v7x's second TensorCore.
    xw = [xt[:, j:j + W, :] for j in range(3)]
    acc = jnp.zeros((H, W, D), jnp.float32)
    for i in range(3):
        for j in range(3):
            acc = acc + xw[j][i:i + H] * wt[i, j, :]
    acc = acc + b_ref[0, :]
    o_ref[...] = acc * jax.nn.sigmoid(acc)  # fused SiLU


def dwconv_silu(x_pad, w, b):
    """x_pad: (B, H+2, W+2, D) NHWC, w: (3,3,D), b: (1,D) -> (B, H, W, D)."""
    B, Hp, Wp, D = x_pad.shape
    H, W = Hp - 2, Wp - 2
    return pl.pallas_call(
        _dwconv_silu_kernel,
        out_shape=jax.ShapeDtypeStruct((B, H, W, D), jnp.float32),
        grid=(B,),
        in_specs=[
            pl.BlockSpec((None, Hp, Wp, D), lambda b_: (b_, 0, 0, 0)),
            pl.BlockSpec((3, 3, D), lambda b_: (0, 0, 0)),
            pl.BlockSpec((1, D), lambda b_: (0, 0)),
        ],
        out_specs=pl.BlockSpec((None, H, W, D), lambda b_: (b_, 0, 0, 0)),
        compiler_params=pltpu.CompilerParams(dimension_semantics=("parallel",)),
    )(x_pad, w, b)


# ----------------------------- selective scan -----------------------------

def _selective_scan_kernel(u_ref, dt_ref, bc_ref, A_ref, D_ref, bias_ref, E_ref,
                           o_ref, h_ref, dA_ref, dBu_ref, cb_ref):
    # Per (batch, L-chunk) block:
    #   u/dt/o : (Lc, KD)          bc : (Lc*N, 2K) rows=(l, n) n-fastest, cols=[B_k | C_k]
    #   A      : (N, KD)           D/bias : (1, KD)
    #   E      : (2K, 2*KD) 0/1 block-diagonal group-expansion matrix
    # Scratch (persistent across chunks):
    #   h : (N, KD) carried state;  dA/dBu/cb : (Lc, N, KD) block precompute.
    # NOTE: h-reset correctness relies on the chunk axis being the innermost grid axis
    # (iterated fastest) and per-core scratch isolation under the "parallel" B axis.
    c = pl.program_id(1)

    @pl.when(c == 0)
    def _():
        h_ref[...] = jnp.zeros_like(h_ref)  # new batch -> fresh state

    Lc, KD = o_ref.shape
    N = h_ref.shape[0]

    # ---- block-wide (vectorized) precompute, off the serial critical path ----
    # TODO(synk): double-buffer dA/dBu/cb and pipeline this precompute (EUP exp + MXU
    # expansion) of chunk c+1 against the serial recurrence of chunk c; on v7x store
    # dBu/cb in bf16 to halve the vld pressure of the serial loop.
    raw = dt_ref[...] + bias_ref[...]                             # (Lc, KD)
    # softplus (torch threshold=20); clamp before exp so no inf intermediate is produced.
    dt = jnp.where(raw > 20.0, raw,
                   jnp.log1p(jnp.exp(jnp.minimum(raw, 20.0))))
    dtu = dt * u_ref[...]                                         # (Lc, KD)

    A = A_ref[...]                                                # (N, KD)
    dA_ref[...] = jnp.exp(dt[:, None, :] * A[None, :, :])         # (Lc, N, KD)

    # Per-direction B/C -> per-channel expansion: one lane-dense MXU matmul per half
    # against the 0/1 block-diagonal expansion matrix (channel kd uses group kd // D).
    E = E_ref[...]                                                # (2K, 2KD)
    bc = bc_ref[...]                                              # (Lc*N, 2K)
    bfull = jnp.dot(bc, E[:, :KD],
                    preferred_element_type=jnp.float32).reshape(Lc, N, KD)
    dBu_ref[...] = dtu[:, None, :] * bfull
    cb_ref[...] = jnp.dot(bc, E[:, KD:],
                          preferred_element_type=jnp.float32).reshape(Lc, N, KD)

    Dv = D_ref[...]                                               # (1, KD)

    # ---- sequential recurrence: unrolled groups of 8 timesteps, dense (8, KD) stores.
    # The cross-sublane reduction over N is batched 4 steps at a time (one larger XLU
    # reduce instead of 8 small ones) while keeping vreg pressure bounded.
    GROUP = 8
    SUB = 4

    def group_step(g, h):
        base = pl.multiple_of(g * GROUP, GROUP)
        parts = []
        prods = []
        for r in range(GROUP):
            t = base + r
            h = dA_ref[t] * h + dBu_ref[t]
            prods.append(cb_ref[t] * h)
            if len(prods) == SUB:
                parts.append(jnp.sum(jnp.stack(prods, axis=0), axis=1))  # (SUB, KD)
                prods = []
        y = jnp.concatenate(parts, axis=0)                               # (GROUP, KD)
        o_ref[pl.ds(base, GROUP), :] = y + Dv * u_ref[pl.ds(base, GROUP), :]
        return h

    h_final = lax.fori_loop(0, Lc // GROUP, group_step, h_ref[...])
    h_ref[...] = h_final                                           # carry to next chunk


def _scan_vmem_bytes(lc, N, KD):
    f = 4
    scratch = (N * KD + 3 * lc * N * KD) * f
    io = (3 * 2 * lc * KD + 2 * lc * N * 128) * f        # u/dt/out double-buffered + bc pad
    temps = (2 * lc * N * KD + 6 * lc * KD) * f          # expansion temp + elementwise temps
    small = (N * KD + 4 * KD + 32 * KD) * f
    return scratch + io + temps + small


def _pick_scan_chunk(L, N, KD):
    """Pick the L-chunk and VMEM limit from the chip's VMEM capacity.

    v5e/v6e (128 MiB) get lc=256+ for fewer grid steps / h carries; v7x (64 MiB)
    falls back to lc=128 (or less for very wide channels).
    """
    Lr = _round_up(max(L, 8), 8)
    try:
        info = pltpu.get_tpu_info()
        cap = int(getattr(info, "vmem_capacity_bytes", 64 * 1024 * 1024))
    except Exception:
        cap = 64 * 1024 * 1024
    budget = int(cap * 0.6)
    lc = 8
    for cand in (512, 256, 128, 64, 32, 16, 8):
        c = min(cand, Lr)
        if _scan_vmem_bytes(c, N, KD) <= budget:
            lc = c
            break
    need = _scan_vmem_bytes(lc, N, KD)
    limit = min(int(cap * 0.85), max(2 * need, 48 * 1024 * 1024))
    limit = max(limit, need + 8 * 1024 * 1024)
    limit = min(limit, int(cap * 0.9))
    return lc, limit


def selective_scan(u, delta, bc, A_T, Dvec, dbias, E2):
    """u/delta: (B, L, KD); bc: (B, L*N, 2K); A_T: (N, KD); Dvec/dbias: (1, KD);
    E2: (2K, 2*KD) block-diagonal 0/1 expansion matrix."""
    B, L, KD = u.shape
    N = A_T.shape[0]
    K2 = E2.shape[0]
    lc, vmem_limit = _pick_scan_chunk(L, N, KD)
    Lp = _round_up(L, lc)
    if Lp != L:                            # zero-pad tail (padded steps' outputs dropped)
        pad3 = ((0, 0), (0, Lp - L), (0, 0))
        u = jnp.pad(u, pad3)
        delta = jnp.pad(delta, pad3)
        bc = jnp.pad(bc, ((0, 0), (0, (Lp - L) * N), (0, 0)))
    # TODO(synk): add a channel-tile grid axis (multiple of D) marked "parallel" so
    # v7x's second TensorCore gets work when B is small, and run the k=2,3 reversed
    # directions backwards inside the kernel instead of materializing flipped inputs.
    out = pl.pallas_call(
        _selective_scan_kernel,
        out_shape=jax.ShapeDtypeStruct((B, Lp, KD), jnp.float32),
        grid=(B, Lp // lc),
        in_specs=[
            pl.BlockSpec((None, lc, KD), lambda b, c: (b, c, 0)),      # u
            pl.BlockSpec((None, lc, KD), lambda b, c: (b, c, 0)),      # delta (raw)
            pl.BlockSpec((None, lc * N, K2), lambda b, c: (b, c, 0)),  # B/C combined
            pl.BlockSpec((N, KD), lambda b, c: (0, 0)),                # A_T
            pl.BlockSpec((1, KD), lambda b, c: (0, 0)),                # D skip
            pl.BlockSpec((1, KD), lambda b, c: (0, 0)),                # dt bias
            pl.BlockSpec((K2, 2 * KD), lambda b, c: (0, 0)),           # expansion matrix
        ],
        out_specs=pl.BlockSpec((None, lc, KD), lambda b, c: (b, c, 0)),
        scratch_shapes=[
            pltpu.VMEM((N, KD), jnp.float32),       # h state (carried across chunks)
            pltpu.VMEM((lc, N, KD), jnp.float32),   # exp(dt*A)
            pltpu.VMEM((lc, N, KD), jnp.float32),   # dt*u*B
            pltpu.VMEM((lc, N, KD), jnp.float32),   # C (expanded)
        ],
        compiler_params=pltpu.CompilerParams(
            dimension_semantics=("parallel", "arbitrary"),
            vmem_limit_bytes=vmem_limit),
    )(u, delta, bc, A_T, Dvec, dbias, E2)
    return out[:, :L] if Lp != L else out


# ----------------------------- LayerNorm * SiLU(z) gate fused with out_proj -----------------------------

def _ln_gate_proj_kernel(y_ref, z_ref, g_ref, b_ref, w_ref, o_ref):
    y = y_ref[...]
    mu = jnp.mean(y, axis=-1, keepdims=True)
    var = jnp.mean((y - mu) ** 2, axis=-1, keepdims=True)
    yn = (y - mu) * lax.rsqrt(var + 1e-5)
    yn = yn * g_ref[...] + b_ref[...]
    z = z_ref[...]
    gated = yn * (z * jax.nn.sigmoid(z))           # LayerNorm(y) * SiLU(z)
    o_ref[...] = jnp.dot(gated.astype(w_ref.dtype), w_ref[...],
                         preferred_element_type=jnp.float32).astype(o_ref.dtype)


def ln_gate_proj(y, z, gamma, beta, w, tm=512):
    """(LayerNorm(y) * SiLU(z)) @ w, row-tiled; y, z: (M, D); w: (D, C) bf16."""
    M, D = y.shape
    C = w.shape[1]
    tm = min(tm, _round_up(M, 8))
    Mp = _round_up(M, tm)
    if Mp != M:
        y = jnp.pad(y, ((0, Mp - M), (0, 0)))
        z = jnp.pad(z, ((0, Mp - M), (0, 0)))
    out = pl.pallas_call(
        _ln_gate_proj_kernel,
        out_shape=jax.ShapeDtypeStruct((Mp, C), jnp.float32),
        grid=(Mp // tm,),
        in_specs=[
            pl.BlockSpec((tm, D), lambda m: (m, 0)),
            pl.BlockSpec((tm, D), lambda m: (m, 0)),
            pl.BlockSpec((1, D), lambda m: (0, 0)),
            pl.BlockSpec((1, D), lambda m: (0, 0)),
            pl.BlockSpec((D, C), lambda m: (0, 0)),
        ],
        out_specs=pl.BlockSpec((tm, C), lambda m: (m, 0)),
        compiler_params=pltpu.CompilerParams(dimension_semantics=("parallel",)),
    )(y, z, gamma, beta, w)
    return out[:M] if Mp != M else out


# ----------------------------- SS2D forward -----------------------------

def ss2d_forward(x, p, *, tm_mm=512, tm_ln=512):
    """x: (B, H, W, d_model) float32 -> (B, H, W, d_model)."""
    B, H, W, C = x.shape
    D = p["W_in"].shape[0] // 2          # d_inner
    N = p["A_logs"].shape[1]             # d_state
    R = p["dt_w"].shape[2]               # dt_rank
    K = 4
    KD = K * D
    L = H * W

    # ---- in_proj (Linear d_model -> 2*d_inner, no bias); padded output kept, sliced here ----
    xz = bmm(x.reshape(1, B * H * W, C), p["W_in"].T[None], tm=tm_mm, keep_pad=True)[0]
    xc = xz[:, :D].reshape(B, H, W, D)
    z = xz[:, D:2 * D]

    # ---- depthwise 3x3 conv (padding 1) + SiLU ----
    x_pad = jnp.pad(xc, ((0, 0), (1, 1), (1, 1), (0, 0)))
    xconv = dwconv_silu(x_pad, p["conv_w"], p["conv_b"][None, :])  # (B, H, W, D)

    # ---- cross scan: diagonal / antidiagonal gathers (flattened l = w*H + h) ----
    ls = jnp.arange(L)
    w_idx = ls // H
    h_idx = ls % H
    diag_col = (h_idx + w_idx) % W
    anti_col = (w_idx - h_idx) % W
    xs0 = xconv[:, h_idx, diag_col, :]   # (B, L, D)
    xs1 = xconv[:, h_idx, anti_col, :]
    xs2 = xs0[:, ::-1, :]
    xs3 = xs1[:, ::-1, :]
    # Per-direction stack for the projection matmul, and the channel-interleaved u for the
    # scan built directly from the gathers (no extra wrapper transpose pass).
    xs_k = jnp.stack([xs0, xs1, xs2, xs3], axis=0).reshape(K, B * L, D)
    u = jnp.stack([xs0, xs1, xs2, xs3], axis=2).reshape(B, L, KD)

    # ---- fused x_proj + dt_proj: fold the rank-R dt_proj into the projection weight ----
    #   dts = xs @ (dt_w[k] @ x_proj_w[k][:R]).T ;  B/C = xs @ x_proj_w[k][R:].T
    Mk = jnp.einsum('kdr,krc->kdc', p["dt_w"], p["x_proj_w"][:, :R, :])    # (K, D, C)
    W_comb = jnp.concatenate(
        [jnp.swapaxes(Mk, 1, 2), jnp.swapaxes(p["x_proj_w"][:, R:, :], 1, 2)],
        axis=2)                                                            # (K, C, D+2N)
    # lane-dense (128-padded) output, sliced lazily below
    x_dbl = bmm(xs_k, W_comb, tm=tm_mm, keep_pad=True)                     # (K, B*L, Cp)
    dts = x_dbl[:, :, :D]
    Bs = x_dbl[:, :, D:D + N]
    Cs = x_dbl[:, :, D + N:D + 2 * N]

    # TODO(synk): fold this transpose into the projection kernel's out index_map once
    # per-direction output blocks narrower than 128 lanes are supported.
    delta = jnp.transpose(dts.reshape(K, B, L, D), (1, 2, 0, 3)).reshape(B, L, KD)

    # Single lane-dense B/C array for the scan: (B, L*N, 2K) with rows (l, n) n-fastest
    # and columns [B_0..B_{K-1}, C_0..C_{K-1}]  (replaces two (B, L, N, 4) ragged arrays).
    bc = jnp.concatenate([Bs, Cs], axis=0)                 # (2K, B*L, N)
    bc = jnp.transpose(bc, (1, 2, 0)).reshape(B, L * N, 2 * K)

    A_T = (-jnp.exp(p["A_logs"])).T        # (N, KD)
    Dvec = p["Ds"][None, :]                # (1, KD)
    dbias = p["dt_b"].reshape(1, KD)       # (1, KD)
    Eexp = jnp.repeat(jnp.eye(K, dtype=jnp.float32), D, axis=1)    # (K, KD)
    E2 = jnp.kron(jnp.eye(2, dtype=jnp.float32), Eexp)             # (2K, 2KD) block-diag

    ys = selective_scan(u, delta, bc, A_T, Dvec, dbias, E2)        # (B, L, KD)
    ys = ys.reshape(B, L, K, D)

    # ---- cross merge: add flipped reverse scans, scatter diag/antidiag back ----
    y0 = ys[:, :, 0, :] + ys[:, ::-1, 2, :]
    y1 = ys[:, :, 1, :] + ys[:, ::-1, 3, :]
    hh = jnp.arange(H)[:, None]
    ww = jnp.arange(W)[None, :]
    diag_src = ((ww - hh) % W) * H + hh    # inverse of diagonal gather
    anti_src = ((ww + hh) % W) * H + hh    # inverse of antidiagonal gather
    y_merged = y0[:, diag_src, :] + y1[:, anti_src, :]  # (B, H, W, D)

    # ---- out_norm (LayerNorm over d_inner) * SiLU(z) fused with out_proj; dropout=0.0 ----
    out = ln_gate_proj(
        y_merged.reshape(B * H * W, D),
        z,
        p["ln_g"][None, :],
        p["ln_b"][None, :],
        p["W_out"].T.astype(jnp.bfloat16),
        tm=tm_ln,
    )
    return out.reshape(B, H, W, C)


# ----------------------------- parameter init -----------------------------

def init_params(key, d_model, d_state=16, d_conv=3, expand=2,
                dt_min=0.001, dt_max=0.1, dt_init_floor=1e-4):
    # Deterministic synthetic init following the shapes (and dt/A/D formulas) of SS2D.__init__.
    d_inner = int(expand * d_model)
    dt_rank = math.ceil(d_model / 16)
    K = 4
    ks = jax.random.split(key, 8)

    W_in = jax.random.normal(ks[0], (2 * d_inner, d_model), jnp.float32) * 0.02
    conv_w = jax.random.normal(ks[1], (d_conv, d_conv, d_inner), jnp.float32) * 0.1
    conv_b = jax.random.normal(ks[2], (d_inner,), jnp.float32) * 0.01
    x_proj_w = jax.random.normal(
        ks[3], (K, dt_rank + 2 * d_state, d_inner), jnp.float32) * (d_inner ** -0.5)

    dt_std = dt_rank ** -0.5
    dt_w = jax.random.uniform(ks[4], (K, d_inner, dt_rank), jnp.float32, -dt_std, dt_std)
    dt = jnp.exp(jax.random.uniform(ks[5], (K, d_inner), jnp.float32)
                 * (math.log(dt_max) - math.log(dt_min)) + math.log(dt_min))
    dt = jnp.maximum(dt, dt_init_floor)
    dt_b = dt + jnp.log(-jnp.expm1(-dt))          # inverse-softplus init of dt bias

    A_logs = jnp.tile(
        jnp.log(jnp.arange(1, d_state + 1, dtype=jnp.float32))[None, :],
        (K * d_inner, 1))
    Ds = jnp.ones((K * d_inner,), jnp.float32)
    ln_g = jnp.ones((d_inner,), jnp.float32)
    ln_b = jnp.zeros((d_inner,), jnp.float32)
    W_out = jax.random.normal(ks[6], (d_model, d_inner), jnp.float32) * 0.02

    return dict(W_in=W_in, conv_w=conv_w, conv_b=conv_b, x_proj_w=x_proj_w,
                dt_w=dt_w, dt_b=dt_b, A_logs=A_logs, Ds=Ds,
                ln_g=ln_g, ln_b=ln_b, W_out=W_out)


# ----------------------------- main -----------------------------

if __name__ == "__main__":
    key = jax.random.PRNGKey(0)
    d_model = 32           # -> d_inner=64, dt_rank=2, d_state=16, K=4, KD=256
    B, H, W = 2, 8, 8      # L = 64
    pkey, xkey = jax.random.split(key)
    params = init_params(pkey, d_model)
    x = jax.random.normal(xkey, (B, H, W, d_model), jnp.float32)

    fwd = jax.jit(lambda xx: ss2d_forward(xx, params))
    out = fwd(x)
    jax.block_until_ready(out)
    assert out.shape == (B, H, W, d_model)
    assert jnp.all(jnp.isfinite(out))
    print("KERNEL_OK")
</pallas_src>

<mosaic_0001>
module attributes {stable_mosaic.version = 11 : i64} {
  func.func @_bmm_kernel(%arg0: i32, %arg1: i32, %arg2: memref<1x128x32xbf16, #tpu.memory_space<vmem>>, %arg3: memref<1x32x128xbf16, #tpu.memory_space<vmem>>, %arg4: memref<1x128x128xf32, #tpu.memory_space<vmem>>) attributes {dimension_semantics = [#tpu.dimension_semantics<parallel>, #tpu.dimension_semantics<parallel>], iteration_bounds = array<i64: 1, 1>, scalar_prefetch = 0 : i64, scratch_operands = 0 : i64, tpu.core_type = #tpu.core_type<tc>, window_params = [{transform_indices = @transform_0, window_bounds = array<i64: 1, 128, 32>}, {transform_indices = @transform_1, window_bounds = array<i64: 1, 32, 128>}, {transform_indices = @transform_2, window_bounds = array<i64: 1, 128, 128>}]} {
    %c0 = arith.constant 0 : index
    %c0_0 = arith.constant 0 : index
    %c0_1 = arith.constant 0 : index
    %0 = vector.load %arg2[%c0, %c0_0, %c0_1] : memref<1x128x32xbf16, #tpu.memory_space<vmem>>, vector<1x128x32xbf16>
    %1 = vector.shape_cast %0 : vector<1x128x32xbf16> to vector<128x32xbf16>
    %c0_2 = arith.constant 0 : index
    %c0_3 = arith.constant 0 : index
    %c0_4 = arith.constant 0 : index
    %2 = vector.load %arg3[%c0_2, %c0_3, %c0_4] : memref<1x32x128xbf16, #tpu.memory_space<vmem>>, vector<1x32x128xbf16>
    %3 = vector.shape_cast %2 : vector<1x32x128xbf16> to vector<32x128xbf16>
    %cst = arith.constant dense<0.000000e+00> : vector<128x128xf32>
    %4 = tpu.matmul %1, %3, %cst {dimension_numbers = #tpu.dot_dimension_numbers<[1], [0], [0], [1], [0, 0, 1, 1], [], []>} : vector<128x32xbf16>, vector<32x128xbf16>, vector<128x128xf32> -> vector<128x128xf32>
    %c0_5 = arith.constant 0 : index
    %c0_6 = arith.constant 0 : index
    %c0_7 = arith.constant 0 : index
    %5 = vector.load %arg4[%c0_5, %c0_6, %c0_7] : memref<1x128x128xf32, #tpu.memory_space<vmem>>, vector<1x128x128xf32>
    %6 = vector.shape_cast %5 : vector<1x128x128xf32> to vector<128x128xf32>
    %7 = vector.shape_cast %4 : vector<128x128xf32> to vector<1x128x128xf32>
    tpu.vector_store %arg4[%c0_5, %c0_6, %c0_7], %7 {strides = array<i32>} : memref<1x128x128xf32, #tpu.memory_space<vmem>>, vector<1x128x128xf32>,
    return
  }
  func.func @transform_0(%arg0: i32, %arg1: i32) -> (i32, i32, i32) {
    %c0_i32 = arith.constant 0 : i32
    %c0_i32_0 = arith.constant 0 : i32
    return %arg0, %arg1, %c0_i32 : i32, i32, i32
  }
  func.func @transform_1(%arg0: i32, %arg1: i32) -> (i32, i32, i32) {
    %c0_i32 = arith.constant 0 : i32
    %c0_i32_0 = arith.constant 0 : i32
    %c0_i32_1 = arith.constant 0 : i32
    return %arg0, %c0_i32, %c0_i32_0 : i32, i32, i32
  }
  func.func @transform_2(%arg0: i32, %arg1: i32) -> (i32, i32, i32) {
    %c0_i32 = arith.constant 0 : i32
    %c0_i32_0 = arith.constant 0 : i32
    return %arg0, %arg1, %c0_i32 : i32, i32, i32
  }
}

module attributes {stable_mosaic.version = 11 : i64} {
  func.func @_dwconv_silu_kernel(%arg0: i32, %arg1: memref<1x10x10x64xf32, #tpu.memory_space<vmem>>, %arg2: memref<3x3x64xf32, #tpu.memory_space<vmem>>, %arg3: memref<1x64xf32, #tpu.memory_space<vmem>>, %arg4: memref<1x8x8x64xf32, #tpu.memory_space<vmem>>) attributes {dimension_semantics = [#tpu.dimension_semantics<parallel>], iteration_bounds = array<i64: 2>, scalar_prefetch = 0 : i64, scratch_operands = 0 : i64, tpu.core_type = #tpu.core_type<tc>, window_params = [{transform_indices = @transform_0, window_bounds = array<i64: 1, 10, 10, 64>}, {pipeline_mode = #tpu.pipeline_mode<synchronous>, transform_indices = @transform_1, window_bounds = array<i64: 3, 3, 64>}, {pipeline_mode = #tpu.pipeline_mode<synchronous>, transform_indices = @transform_2, window_bounds = array<i64: 1, 64>}, {transform_indices = @transform_3, window_bounds = array<i64: 1, 8, 8, 64>}]} {
    %c0 = arith.constant 0 : index
    %c0_0 = arith.constant 0 : index
    %c0_1 = arith.constant 0 : index
    %c0_2 = arith.constant 0 : index
    %0 = vector.load %arg1[%c0, %c0_0, %c0_1, %c0_2] : memref<1x10x10x64xf32, #tpu.memory_space<vmem>>, vector<1x10x10x64xf32>
    %1 = vector.shape_cast %0 : vector<1x10x10x64xf32> to vector<10x10x64xf32>
    %c0_3 = arith.constant 0 : index
    %c0_4 = arith.constant 0 : index
    %c0_5 = arith.constant 0 : index
    %2 = vector.load %arg2[%c0_3, %c0_4, %c0_5] : memref<3x3x64xf32, #tpu.memory_space<vmem>>, vector<3x3x64xf32>
    %3 = vector.extract_strided_slice %1 {offsets = [0, 0, 0], sizes = [10, 8, 64], strides = [1, 1, 1]} : vector<10x10x64xf32> to vector<10x8x64xf32>
    %4 = vector.extract_strided_slice %1 {offsets = [0, 1, 0], sizes = [10, 8, 64], strides = [1, 1, 1]} : vector<10x10x64xf32> to vector<10x8x64xf32>
    %5 = vector.extract_strided_slice %1 {offsets = [0, 2, 0], sizes = [10, 8, 64], strides = [1, 1, 1]} : vector<10x10x64xf32> to vector<10x8x64xf32>
    %cst = arith.constant 0.000000e+00 : f32
    %6 = vector.broadcast %cst : f32 to vector<8x8x64xf32>
    %7 = vector.extract_strided_slice %3 {offsets = [0, 0, 0], sizes = [8, 8, 64], strides = [1, 1, 1]} : vector<10x8x64xf32> to vector<8x8x64xf32>
    %8 = vector.extract_strided_slice %2 {offsets = [0, 0, 0], sizes = [1, 1, 64], strides = [1, 1, 1]} : vector<3x3x64xf32> to vector<1x1x64xf32>
    %9 = vector.shape_cast %8 : vector<1x1x64xf32> to vector<64xf32>
    %10 = vector.shape_cast %9 : vector<64xf32> to vector<1x1x64xf32>
    %11 = vector.broadcast %10 : vector<1x1x64xf32> to vector<8x8x64xf32>
    %12 = arith.mulf %7, %11 : vector<8x8x64xf32>
    %13 = arith.addf %6, %12 : vector<8x8x64xf32>
    %14 = vector.extract_strided_slice %4 {offsets = [0, 0, 0], sizes = [8, 8, 64], strides = [1, 1, 1]} : vector<10x8x64xf32> to vector<8x8x64xf32>
    %15 = vector.extract_strided_slice %2 {offsets = [0, 1, 0], sizes = [1, 1, 64], strides = [1, 1, 1]} : vector<3x3x64xf32> to vector<1x1x64xf32>
    %16 = vector.shape_cast %15 : vector<1x1x64xf32> to vector<64xf32>
    %17 = vector.shape_cast %16 : vector<64xf32> to vector<1x1x64xf32>
    %18 = vector.broadcast %17 : vector<1x1x64xf32> to vector<8x8x64xf32>
    %19 = arith.mulf %14, %18 : vector<8x8x64xf32>
    %20 = arith.addf %13, %19 : vector<8x8x64xf32>
    %21 = vector.extract_strided_slice %5 {offsets = [0, 0, 0], sizes = [8, 8, 64], strides = [1, 1, 1]} : vector<10x8x64xf32> to vector<8x8x64xf32>
    %22 = vector.extract_strided_slice %2 {offsets = [0, 2, 0], sizes = [1, 1, 64], strides = [1, 1, 1]} : vector<3x3x64xf32> to vector<1x1x64xf32>
    %23 = vector.shape_cast %22 : vector<1x1x64xf32> to vector<64xf32>
    %24 = vector.shape_cast %23 : vector<64xf32> to vector<1x1x64xf32>
    %25 = vector.broadcast %24 : vector<1x1x64xf32> to vector<8x8x64xf32>
    %26 = arith.mulf %21, %25 : vector<8x8x64xf32>
    %27 = arith.addf %20, %26 : vector<8x8x64xf32>
    %28 = vector.extract_strided_slice %3 {offsets = [1, 0, 0], sizes = [8, 8, 64], strides = [1, 1, 1]} : vector<10x8x64xf32> to vector<8x8x64xf32>
    %29 = vector.extract_strided_slice %2 {offsets = [1, 0, 0], sizes = [1, 1, 64], strides = [1, 1, 1]} : vector<3x3x64xf32> to vector<1x1x64xf32>
    %30 = vector.shape_cast %29 : vector<1x1x64xf32> to vector<64xf32>
    %31 = vector.shape_cast %30 : vector<64xf32> to vector<1x1x64xf32>
    %32 = vector.broadcast %31 : vector<1x1x64xf32> to vector<8x8x64xf32>
    %33 = arith.mulf %28, %32 : vector<8x8x64xf32>
    %34 = arith.addf %27, %33 : vector<8x8x64xf32>
    %35 = vector.extract_strided_slice %4 {offsets = [1, 0, 0], sizes = [8, 8, 64], strides = [1, 1, 1]} : vector<10x8x64xf32> to vector<8x8x64xf32>
    %36 = vector.extract_strided_slice %2 {offsets = [1, 1, 0], sizes = [1, 1, 64], strides = [1, 1, 1]} : vector<3x3x64xf32> to vector<1x1x64xf32>
    %37 = vector.shape_cast %36 : vector<1x1x64xf32> to vector<64xf32>
    %38 = vector.shape_cast %37 : vector<64xf32> to vector<1x1x64xf32>
    %39 = vector.broadcast %38 : vector<1x1x64xf32> to vector<8x8x64xf32>
    %40 = arith.mulf %35, %39 : vector<8x8x64xf32>
    %41 = arith.addf %34, %40 : vector<8x8x64xf32>
    %42 = vector.extract_strided_slice %5 {offsets = [1, 0, 0], sizes = [8, 8, 64], strides = [1, 1, 1]} : vector<10x8x64xf32> to vector<8x8x64xf32>
    %43 = vector.extract_strided_slice %2 {offsets = [1, 2, 0], sizes = [1, 1, 64], strides = [1, 1, 1]} : vector<3x3x64xf32> to vector<1x1x64xf32>
    %44 = vector.shape_cast %43 : vector<1x1x64xf32> to vector<64xf32>
    %45 = vector.shape_cast %44 : vector<64xf32> to vector<1x1x64xf32>
    %46 = vector.broadcast %45 : vector<1x1x64xf32> to vector<8x8x64xf32>
    %47 = arith.mulf %42, %46 : vector<8x8x64xf32>
    %48 = arith.addf %41, %47 : vector<8x8x64xf32>
    %49 = vector.extract_strided_slice %3 {offsets = [2, 0, 0], sizes = [8, 8, 64], strides = [1, 1, 1]} : vector<10x8x64xf32> to vector<8x8x64xf32>
    %50 = vector.extract_strided_slice %2 {offsets = [2, 0, 0], sizes = [1, 1, 64], strides = [1, 1, 1]} : vector<3x3x64xf32> to vector<1x1x64xf32>
    %51 = vector.shape_cast %50 : vector<1x1x64xf32> to vector<64xf32>
    %52 = vector.shape_cast %51 : vector<64xf32> to vector<1x1x64xf32>
    %53 = vector.broadcast %52 : vector<1x1x64xf32> to vector<8x8x64xf32>
    %54 = arith.mulf %49, %53 : vector<8x8x64xf32>
    %55 = arith.addf %48, %54 : vector<8x8x64xf32>
    %56 = vector.extract_strided_slice %4 {offsets = [2, 0, 0], sizes = [8, 8, 64], strides = [1, 1, 1]} : vector<10x8x64xf32> to vector<8x8x64xf32>
    %57 = vector.extract_strided_slice %2 {offsets = [2, 1, 0], sizes = [1, 1, 64], strides = [1, 1, 1]} : vector<3x3x64xf32> to vector<1x1x64xf32>
    %58 = vector.shape_cast %57 : vector<1x1x64xf32> to vector<64xf32>
    %59 = vector.shape_cast %58 : vector<64xf32> to vector<1x1x64xf32>
    %60 = vector.broadcast %59 : vector<1x1x64xf32> to vector<8x8x64xf32>
    %61 = arith.mulf %56, %60 : vector<8x8x64xf32>
    %62 = arith.addf %55, %61 : vector<8x8x64xf32>
    %63 = vector.extract_strided_slice %5 {offsets = [2, 0, 0], sizes = [8, 8, 64], strides = [1, 1, 1]} : vector<10x8x64xf32> to vector<8x8x64xf32>
    %64 = vector.extract_strided_slice %2 {offsets = [2, 2, 0], sizes = [1, 1, 64], strides = [1, 1, 1]} : vector<3x3x64xf32> to vector<1x1x64xf32>
    %65 = vector.shape_cast %64 : vector<1x1x64xf32> to vector<64xf32>
    %66 = vector.shape_cast %65 : vector<64xf32> to vector<1x1x64xf32>
    %67 = vector.broadcast %66 : vector<1x1x64xf32> to vector<8x8x64xf32>
    %68 = arith.mulf %63, %67 : vector<8x8x64xf32>
    %69 = arith.addf %62, %68 : vector<8x8x64xf32>
    %c0_6 = arith.constant 0 : index
    %c0_7 = arith.constant 0 : index
    %70 = vector.load %arg3[%c0_6, %c0_7] : memref<1x64xf32, #tpu.memory_space<vmem>>, vector<1x64xf32>
    %71 = vector.shape_cast %70 : vector<1x64xf32> to vector<64xf32>
    %72 = vector.shape_cast %71 : vector<64xf32> to vector<1x1x64xf32>
    %73 = vector.broadcast %72 : vector<1x1x64xf32> to vector<8x8x64xf32>
    %74 = arith.addf %69, %73 : vector<8x8x64xf32>
    %75 = arith.negf %74 : vector<8x8x64xf32>
    %76 = math.exp %75 : vector<8x8x64xf32>
    %cst_8 = arith.constant 1.000000e+00 : f32
    %77 = vector.broadcast %cst_8 : f32 to vector<8x8x64xf32>
    %78 = arith.addf %77, %76 : vector<8x8x64xf32>
    %79 = arith.divf %77, %78 : vector<8x8x64xf32>
    %80 = arith.mulf %74, %79 : vector<8x8x64xf32>
    %c0_9 = arith.constant 0 : index
    %c0_10 = arith.constant 0 : index
    %c0_11 = arith.constant 0 : index
    %c0_12 = arith.constant 0 : index
    %81 = vector.load %arg4[%c0_9, %c0_10, %c0_11, %c0_12] : memref<1x8x8x64xf32, #tpu.memory_space<vmem>>, vector<1x8x8x64xf32>
    %82 = vector.shape_cast %81 : vector<1x8x8x64xf32> to vector<8x8x64xf32>
    %83 = vector.shape_cast %80 : vector<8x8x64xf32> to vector<1x8x8x64xf32>
    tpu.vector_store %arg4[%c0_9, %c0_10, %c0_11, %c0_12], %83 {strides = array<i32>} : memref<1x8x8x64xf32, #tpu.memory_space<vmem>>, vector<1x8x8x64xf32>,
    return
  }
  func.func @transform_0(%arg0: i32) -> (i32, i32, i32, i32) {
    %c0_i32 = arith.constant 0 : i32
    %c0_i32_0 = arith.constant 0 : i32
    %c0_i32_1 = arith.constant 0 : i32
    %c0_i32_2 = arith.constant 0 : i32
    return %arg0, %c0_i32, %c0_i32_0, %c0_i32_1 : i32, i32, i32, i32
  }
  func.func @transform_1(%arg0: i32) -> (i32, i32, i32) {
    %c0_i32 = arith.constant 0 : i32
    %c0_i32_0 = arith.constant 0 : i32
    %c0_i32_1 = arith.constant 0 : i32
    %c0_i32_2 = arith.constant 0 : i32
    return %c0_i32, %c0_i32_0, %c0_i32_1 : i32, i32, i32
  }
  func.func @transform_2(%arg0: i32) -> (i32, i32) {
    %c0_i32 = arith.constant 0 : i32
    %c0_i32_0 = arith.constant 0 : i32
    %c0_i32_1 = arith.constant 0 : i32
    return %c0_i32, %c0_i32_0 : i32, i32
  }
  func.func @transform_3(%arg0: i32) -> (i32, i32, i32, i32) {
    %c0_i32 = arith.constant 0 : i32
    %c0_i32_0 = arith.constant 0 : i32
    %c0_i32_1 = arith.constant 0 : i32
    %c0_i32_2 = arith.constant 0 : i32
    return %arg0, %c0_i32, %c0_i32_0, %c0_i32_1 : i32, i32, i32, i32
  }
}

module attributes {stable_mosaic.version = 11 : i64} {
  func.func @_bmm_kernel(%arg0: i32, %arg1: i32, %arg2: memref<1x128x64xbf16, #tpu.memory_space<vmem>>, %arg3: memref<1x64x128xbf16, #tpu.memory_space<vmem>>, %arg4: memref<1x128x128xf32, #tpu.memory_space<vmem>>) attributes {dimension_semantics = [#tpu.dimension_semantics<parallel>, #tpu.dimension_semantics<parallel>], iteration_bounds = array<i64: 4, 1>, scalar_prefetch = 0 : i64, scratch_operands = 0 : i64, tpu.core_type = #tpu.core_type<tc>, window_params = [{transform_indices = @transform_0, window_bounds = array<i64: 1, 128, 64>}, {transform_indices = @transform_1, window_bounds = array<i64: 1, 64, 128>}, {transform_indices = @transform_2, window_bounds = array<i64: 1, 128, 128>}]} {
    %c0 = arith.constant 0 : index
    %c0_0 = arith.constant 0 : index
    %c0_1 = arith.constant 0 : index
    %0 = vector.load %arg2[%c0, %c0_0, %c0_1] : memref<1x128x64xbf16, #tpu.memory_space<vmem>>, vector<1x128x64xbf16>
    %1 = vector.shape_cast %0 : vector<1x128x64xbf16> to vector<128x64xbf16>
    %c0_2 = arith.constant 0 : index
    %c0_3 = arith.constant 0 : index
    %c0_4 = arith.constant 0 : index
    %2 = vector.load %arg3[%c0_2, %c0_3, %c0_4] : memref<1x64x128xbf16, #tpu.memory_space<vmem>>, vector<1x64x128xbf16>
    %3 = vector.shape_cast %2 : vector<1x64x128xbf16> to vector<64x128xbf16>
    %cst = arith.constant dense<0.000000e+00> : vector<128x128xf32>
    %4 = tpu.matmul %1, %3, %cst {dimension_numbers = #tpu.dot_dimension_numbers<[1], [0], [0], [1], [0, 0, 1, 1], [], []>} : vector<128x64xbf16>, vector<64x128xbf16>, vector<128x128xf32> -> vector<128x128xf32>
    %c0_5 = arith.constant 0 : index
    %c0_6 = arith.constant 0 : index
    %c0_7 = arith.constant 0 : index
    %5 = vector.load %arg4[%c0_5, %c0_6, %c0_7] : memref<1x128x128xf32, #tpu.memory_space<vmem>>, vector<1x128x128xf32>
    %6 = vector.shape_cast %5 : vector<1x128x128xf32> to vector<128x128xf32>
    %7 = vector.shape_cast %4 : vector<128x128xf32> to vector<1x128x128xf32>
    tpu.vector_store %arg4[%c0_5, %c0_6, %c0_7], %7 {strides = array<i32>} : memref<1x128x128xf32, #tpu.memory_space<vmem>>, vector<1x128x128xf32>,
    return
  }
  func.func @transform_0(%arg0: i32, %arg1: i32) -> (i32, i32, i32) {
    %c0_i32 = arith.constant 0 : i32
    %c0_i32_0 = arith.constant 0 : i32
    return %arg0, %arg1, %c0_i32 : i32, i32, i32
  }
  func.func @transform_1(%arg0: i32, %arg1: i32) -> (i32, i32, i32) {
    %c0_i32 = arith.constant 0 : i32
    %c0_i32_0 = arith.constant 0 : i32
    %c0_i32_1 = arith.constant 0 : i32
    return %arg0, %c0_i32, %c0_i32_0 : i32, i32, i32
  }
  func.func @transform_2(%arg0: i32, %arg1: i32) -> (i32, i32, i32) {
    %c0_i32 = arith.constant 0 : i32
    %c0_i32_0 = arith.constant 0 : i32
    return %arg0, %arg1, %c0_i32 : i32, i32, i32
  }
}

module attributes {stable_mosaic.version = 11 : i64} {
  func.func @_selective_scan_kernel(%arg0: i32, %arg1: i32, %arg2: memref<1x64x256xf32, #tpu.memory_space<vmem>>, %arg3: memref<1x64x256xf32, #tpu.memory_space<vmem>>, %arg4: memref<1x1024x8xf32, #tpu.memory_space<vmem>>, %arg5: memref<16x256xf32, #tpu.memory_space<vmem>>, %arg6: memref<1x256xf32, #tpu.memory_space<vmem>>, %arg7: memref<1x256xf32, #tpu.memory_space<vmem>>, %arg8: memref<8x512xf32, #tpu.memory_space<vmem>>, %arg9: memref<1x64x256xf32, #tpu.memory_space<vmem>>, %arg10: memref<16x256xf32, #tpu.memory_space<vmem>>, %arg11: memref<64x16x256xf32, #tpu.memory_space<vmem>>, %arg12: memref<64x16x256xf32, #tpu.memory_space<vmem>>, %arg13: memref<64x16x256xf32, #tpu.memory_space<vmem>>) attributes {dimension_semantics = [#tpu.dimension_semantics<parallel>, #tpu.dimension_semantics<arbitrary>], iteration_bounds = array<i64: 2, 1>, scalar_prefetch = 0 : i64, scratch_operands = 4 : i64, tpu.core_type = #tpu.core_type<tc>, window_params = [{transform_indices = @transform_0, window_bounds = array<i64: 1, 64, 256>}, {transform_indices = @transform_1, window_bounds = array<i64: 1, 64, 256>}, {transform_indices = @transform_2, window_bounds = array<i64: 1, 1024, 8>}, {pipeline_mode = #tpu.pipeline_mode<synchronous>, transform_indices = @transform_3, window_bounds = array<i64: 16, 256>}, {pipeline_mode = #tpu.pipeline_mode<synchronous>, transform_indices = @transform_4, window_bounds = array<i64: 1, 256>}, {pipeline_mode = #tpu.pipeline_mode<synchronous>, transform_indices = @transform_5, window_bounds = array<i64: 1, 256>}, {pipeline_mode = #tpu.pipeline_mode<synchronous>, transform_indices = @transform_6, window_bounds = array<i64: 8, 512>}, {transform_indices = @transform_7, window_bounds = array<i64: 1, 64, 256>}]} {
    %c0_i32 = arith.constant 0 : i32
    %0 = arith.cmpi eq, %arg1, %c0_i32 : i32
    %1 = arith.extui %0 : i1 to i32
    %c0_i32_0 = arith.constant 0 : i32
    %2 = arith.cmpi ne, %1, %c0_i32_0 : i32
    scf.if %2 {
      %cst_35 = arith.constant 0.000000e+00 : f32
      %45 = vector.broadcast %cst_35 : f32 to vector<16x256xf32>
      %c0_36 = arith.constant 0 : index
      %c0_37 = arith.constant 0 : index
      %46 = vector.load %arg10[%c0_36, %c0_37] : memref<16x256xf32, #tpu.memory_space<vmem>>, vector<16x256xf32>
      tpu.vector_store %arg10[%c0_36, %c0_37], %45 {strides = array<i32>} : memref<16x256xf32, #tpu.memory_space<vmem>>, vector<16x256xf32>,
    } else {
    }
    %c0 = arith.constant 0 : index
    %c0_1 = arith.constant 0 : index
    %c0_2 = arith.constant 0 : index
    %3 = vector.load %arg3[%c0, %c0_1, %c0_2] : memref<1x64x256xf32, #tpu.memory_space<vmem>>, vector<1x64x256xf32>
    %4 = vector.shape_cast %3 : vector<1x64x256xf32> to vector<64x256xf32>
    %c0_3 = arith.constant 0 : index
    %c0_4 = arith.constant 0 : index
    %5 = vector.load %arg7[%c0_3, %c0_4] : memref<1x256xf32, #tpu.memory_space<vmem>>, vector<1x256xf32>
    %6 = vector.broadcast %5 : vector<1x256xf32> to vector<64x256xf32>
    %7 = arith.addf %4, %6 : vector<64x256xf32>
    %cst = arith.constant 2.000000e+01 : f32
    %8 = vector.broadcast %cst : f32 to vector<64x256xf32>
    %9 = arith.cmpf ogt, %7, %8 : vector<64x256xf32>
    %cst_5 = arith.constant 2.000000e+01 : f32
    %10 = vector.broadcast %cst_5 : f32 to vector<64x256xf32>
    %11 = arith.minimumf %7, %10 : vector<64x256xf32>
    %12 = math.exp %11 : vector<64x256xf32>
    %13 = math.log1p %12 : vector<64x256xf32>
    %14 = arith.select %9, %7, %13 : vector<64x256xi1>, vector<64x256xf32>
    %c0_6 = arith.constant 0 : index
    %c0_7 = arith.constant 0 : index
    %c0_8 = arith.constant 0 : index
    %15 = vector.load %arg2[%c0_6, %c0_7, %c0_8] : memref<1x64x256xf32, #tpu.memory_space<vmem>>, vector<1x64x256xf32>
    %16 = vector.shape_cast %15 : vector<1x64x256xf32> to vector<64x256xf32>
    %17 = arith.mulf %14, %16 : vector<64x256xf32>
    %c0_9 = arith.constant 0 : index
    %c0_10 = arith.constant 0 : index
    %18 = vector.load %arg5[%c0_9, %c0_10] : memref<16x256xf32, #tpu.memory_space<vmem>>, vector<16x256xf32>
    %19 = vector.shape_cast %14 : vector<64x256xf32> to vector<64x1x256xf32>
    %20 = vector.shape_cast %18 : vector<16x256xf32> to vector<1x16x256xf32>
    %21 = vector.broadcast %19 : vector<64x1x256xf32> to vector<64x16x256xf32>
    %22 = vector.broadcast %20 : vector<1x16x256xf32> to vector<64x16x256xf32>
    %23 = arith.mulf %21, %22 : vector<64x16x256xf32>
    %24 = math.exp %23 : vector<64x16x256xf32>
    %c0_11 = arith.constant 0 : index
    %c0_12 = arith.constant 0 : index
    %c0_13 = arith.constant 0 : index
    %25 = vector.load %arg11[%c0_11, %c0_12, %c0_13] : memref<64x16x256xf32, #tpu.memory_space<vmem>>, vector<64x16x256xf32>
    tpu.vector_store %arg11[%c0_11, %c0_12, %c0_13], %24 {strides = array<i32>} : memref<64x16x256xf32, #tpu.memory_space<vmem>>, vector<64x16x256xf32>,
    %c0_14 = arith.constant 0 : index
    %c0_15 = arith.constant 0 : index
    %26 = vector.load %arg8[%c0_14, %c0_15] : memref<8x512xf32, #tpu.memory_space<vmem>>, vector<8x512xf32>
    %c0_16 = arith.constant 0 : index
    %c0_17 = arith.constant 0 : index
    %c0_18 = arith.constant 0 : index
    %27 = vector.load %arg4[%c0_16, %c0_17, %c0_18] : memref<1x1024x8xf32, #tpu.memory_space<vmem>>, vector<1x1024x8xf32>
    %28 = vector.shape_cast %27 : vector<1x1024x8xf32> to vector<1024x8xf32>
    %29 = vector.extract_strided_slice %26 {offsets = [0, 0], sizes = [8, 256], strides = [1, 1]} : vector<8x512xf32> to vector<8x256xf32>
    %cst_19 = arith.constant dense<0.000000e+00> : vector<1024x256xf32>
    %30 = tpu.matmul %28, %29, %cst_19 {dimension_numbers = #tpu.dot_dimension_numbers<[1], [0], [0], [1], [0, 0, 1, 1], [], []>} : vector<1024x8xf32>, vector<8x256xf32>, vector<1024x256xf32> -> vector<1024x256xf32>
    %31 = vector.shape_cast %30 : vector<1024x256xf32> to vector<64x16x256xf32>
    %32 = vector.shape_cast %17 : vector<64x256xf32> to vector<64x1x256xf32>
    %33 = vector.broadcast %32 : vector<64x1x256xf32> to vector<64x16x256xf32>
    %34 = arith.mulf %33, %31 : vector<64x16x256xf32>
    %c0_20 = arith.constant 0 : index
    %c0_21 = arith.constant 0 : index
    %c0_22 = arith.constant 0 : index
    %35 = vector.load %arg12[%c0_20, %c0_21, %c0_22] : memref<64x16x256xf32, #tpu.memory_space<vmem>>, vector<64x16x256xf32>
    tpu.vector_store %arg12[%c0_20, %c0_21, %c0_22], %34 {strides = array<i32>} : memref<64x16x256xf32, #tpu.memory_space<vmem>>, vector<64x16x256xf32>,
    %36 = vector.extract_strided_slice %26 {offsets = [0, 256], sizes = [8, 256], strides = [1, 1]} : vector<8x512xf32> to vector<8x256xf32>
    %cst_23 = arith.constant dense<0.000000e+00> : vector<1024x256xf32>
    %37 = tpu.matmul %28, %36, %cst_23 {dimension_numbers = #tpu.dot_dimension_numbers<[1], [0], [0], [1], [0, 0, 1, 1], [], []>} : vector<1024x8xf32>, vector<8x256xf32>, vector<1024x256xf32> -> vector<1024x256xf32>
    %38 = vector.shape_cast %37 : vector<1024x256xf32> to vector<64x16x256xf32>
    %c0_24 = arith.constant 0 : index
    %c0_25 = arith.constant 0 : index
    %c0_26 = arith.constant 0 : index
    %39 = vector.load %arg13[%c0_24, %c0_25, %c0_26] : memref<64x16x256xf32, #tpu.memory_space<vmem>>, vector<64x16x256xf32>
    tpu.vector_store %arg13[%c0_24, %c0_25, %c0_26], %38 {strides = array<i32>} : memref<64x16x256xf32, #tpu.memory_space<vmem>>, vector<64x16x256xf32>,
    %c0_27 = arith.constant 0 : index
    %c0_28 = arith.constant 0 : index
    %40 = vector.load %arg6[%c0_27, %c0_28] : memref<1x256xf32, #tpu.memory_space<vmem>>, vector<1x256xf32>
    %c0_29 = arith.constant 0 : index
    %c0_30 = arith.constant 0 : index
    %41 = vector.load %arg10[%c0_29, %c0_30] : memref<16x256xf32, #tpu.memory_space<vmem>>, vector<16x256xf32>
    %c0_i32_31 = arith.constant 0 : i32
    %c8_i32 = arith.constant 8 : i32
    %42 = arith.addi %c0_i32_31, %c8_i32 : i32
    %c1_i32 = arith.constant 1 : i32
    %43 = scf.for %arg14 = %c0_i32_31 to %42 step %c1_i32 iter_args(%arg15 = %41) -> (vector<16x256xf32>)  : i32 {
      %c8_i32_35 = arith.constant 8 : i32
      %45 = arith.muli %arg14, %c8_i32_35 : i32
      %46 = tpu.assume_multiple %45, 8 : i32
      %c0_i32_36 = arith.constant 0 : i32
      %47 = arith.addi %46, %c0_i32_36 : i32
      %48 = arith.index_cast %47 : i32 to index
      %c0_37 = arith.constant 0 : index
      %c0_38 = arith.constant 0 : index
      %49 = vector.load %arg11[%48, %c0_37, %c0_38] : memref<64x16x256xf32, #tpu.memory_space<vmem>>, vector<1x16x256xf32>
      %50 = vector.shape_cast %49 : vector<1x16x256xf32> to vector<16x256xf32>
      %51 = arith.mulf %50, %arg15 : vector<16x256xf32>
      %52 = arith.index_cast %47 : i32 to index
      %c0_39 = arith.constant 0 : index
      %c0_40 = arith.constant 0 : index
      %53 = vector.load %arg12[%52, %c0_39, %c0_40] : memref<64x16x256xf32, #tpu.memory_space<vmem>>, vector<1x16x256xf32>
      %54 = vector.shape_cast %53 : vector<1x16x256xf32> to vector<16x256xf32>
      %55 = arith.addf %51, %54 : vector<16x256xf32>
      %56 = arith.index_cast %47 : i32 to index
      %c0_41 = arith.constant 0 : index
      %c0_42 = arith.constant 0 : index
      %57 = vector.load %arg13[%56, %c0_41, %c0_42] : memref<64x16x256xf32, #tpu.memory_space<vmem>>, vector<1x16x256xf32>
      %58 = vector.shape_cast %57 : vector<1x16x256xf32> to vector<16x256xf32>
      %59 = arith.mulf %58, %55 : vector<16x256xf32>
      %c1_i32_43 = arith.constant 1 : i32
      %60 = arith.addi %46, %c1_i32_43 : i32
      %61 = arith.index_cast %60 : i32 to index
      %c0_44 = arith.constant 0 : index
      %c0_45 = arith.constant 0 : index
      %62 = vector.load %arg11[%61, %c0_44, %c0_45] : memref<64x16x256xf32, #tpu.memory_space<vmem>>, vector<1x16x256xf32>
      %63 = vector.shape_cast %62 : vector<1x16x256xf32> to vector<16x256xf32>
      %64 = arith.mulf %63, %55 : vector<16x256xf32>
      %65 = arith.index_cast %60 : i32 to index
      %c0_46 = arith.constant 0 : index
      %c0_47 = arith.constant 0 : index
      %66 = vector.load %arg12[%65, %c0_46, %c0_47] : memref<64x16x256xf32, #tpu.memory_space<vmem>>, vector<1x16x256xf32>
      %67 = vector.shape_cast %66 : vector<1x16x256xf32> to vector<16x256xf32>
      %68 = arith.addf %64, %67 : vector<16x256xf32>
      %69 = arith.index_cast %60 : i32 to index
      %c0_48 = arith.constant 0 : index
      %c0_49 = arith.constant 0 : index
      %70 = vector.load %arg13[%69, %c0_48, %c0_49] : memref<64x16x256xf32, #tpu.memory_space<vmem>>, vector<1x16x256xf32>
      %71 = vector.shape_cast %70 : vector<1x16x256xf32> to vector<16x256xf32>
      %72 = arith.mulf %71, %68 : vector<16x256xf32>
      %c2_i32 = arith.constant 2 : i32
      %73 = arith.addi %46, %c2_i32 : i32
      %74 = arith.index_cast %73 : i32 to index
      %c0_50 = arith.constant 0 : index
      %c0_51 = arith.constant 0 : index
      %75 = vector.load %arg11[%74, %c0_50, %c0_51] : memref<64x16x256xf32, #tpu.memory_space<vmem>>, vector<1x16x256xf32>
      %76 = vector.shape_cast %75 : vector<1x16x256xf32> to vector<16x256xf32>
      %77 = arith.mulf %76, %68 : vector<16x256xf32>
      %78 = arith.index_cast %73 : i32 to index
      %c0_52 = arith.constant 0 : index
      %c0_53 = arith.constant 0 : index
      %79 = vector.load %arg12[%78, %c0_52, %c0_53] : memref<64x16x256xf32, #tpu.memory_space<vmem>>, vector<1x16x256xf32>
      %80 = vector.shape_cast %79 : vector<1x16x256xf32> to vector<16x256xf32>
      %81 = arith.addf %77, %80 : vector<16x256xf32>
      %82 = arith.index_cast %73 : i32 to index
      %c0_54 = arith.constant 0 : index
      %c0_55 = arith.constant 0 : index
      %83 = vector.load %arg13[%82, %c0_54, %c0_55] : memref<64x16x256xf32, #tpu.memory_space<vmem>>, vector<1x16x256xf32>
      %84 = vector.shape_cast %83 : vector<1x16x256xf32> to vector<16x256xf32>
      %85 = arith.mulf %84, %81 : vector<16x256xf32>
      %c3_i32 = arith.constant 3 : i32
      %86 = arith.addi %46, %c3_i32 : i32
      %87 = arith.index_cast %86 : i32 to index
      %c0_56 = arith.constant 0 : index
      %c0_57 = arith.constant 0 : index
      %88 = vector.load %arg11[%87, %c0_56, %c0_57] : memref<64x16x256xf32, #tpu.memory_space<vmem>>, vector<1x16x256xf32>
      %89 = vector.shape_cast %88 : vector<1x16x256xf32> to vector<16x256xf32>
      %90 = arith.mulf %89, %81 : vector<16x256xf32>
      %91 = arith.index_cast %86 : i32 to index
      %c0_58 = arith.constant 0 : index
      %c0_59 = arith.constant 0 : index
      %92 = vector.load %arg12[%91, %c0_58, %c0_59] : memref<64x16x256xf32, #tpu.memory_space<vmem>>, vector<1x16x256xf32>
      %93 = vector.shape_cast %92 : vector<1x16x256xf32> to vector<16x256xf32>
      %94 = arith.addf %90, %93 : vector<16x256xf32>
      %95 = arith.index_cast %86 : i32 to index
      %c0_60 = arith.constant 0 : index
      %c0_61 = arith.constant 0 : index
      %96 = vector.load %arg13[%95, %c0_60, %c0_61] : memref<64x16x256xf32, #tpu.memory_space<vmem>>, vector<1x16x256xf32>
      %97 = vector.shape_cast %96 : vector<1x16x256xf32> to vector<16x256xf32>
      %98 = arith.mulf %97, %94 : vector<16x256xf32>
      %99 = vector.shape_cast %59 : vector<16x256xf32> to vector<1x16x256xf32>
      %100 = vector.shape_cast %72 : vector<16x256xf32> to vector<1x16x256xf32>
      %101 = vector.shape_cast %85 : vector<16x256xf32> to vector<1x16x256xf32>
      %102 = vector.shape_cast %98 : vector<16x256xf32> to vector<1x16x256xf32>
      %103 = tpu.concatenate %99, %100, %101, %102 in 0 : vector<1x16x256xf32>, vector<1x16x256xf32>, vector<1x16x256xf32>, vector<1x16x256xf32> -> vector<4x16x256xf32>
      %cst_62 = arith.constant dense<0.000000e+00> : vector<4x256xf32>
      %104 = vector.multi_reduction <add>, %103, %cst_62 [1] : vector<4x16x256xf32> to vector<4x256xf32>
      %c4_i32 = arith.constant 4 : i32
      %105 = arith.addi %46, %c4_i32 : i32
      %106 = arith.index_cast %105 : i32 to index
      %c0_63 = arith.constant 0 : index
      %c0_64 = arith.constant 0 : index
      %107 = vector.load %arg11[%106, %c0_63, %c0_64] : memref<64x16x256xf32, #tpu.memory_space<vmem>>, vector<1x16x256xf32>
      %108 = vector.shape_cast %107 : vector<1x16x256xf32> to vector<16x256xf32>
      %109 = arith.mulf %108, %94 : vector<16x256xf32>
      %110 = arith.index_cast %105 : i32 to index
      %c0_65 = arith.constant 0 : index
      %c0_66 = arith.constant 0 : index
      %111 = vector.load %arg12[%110, %c0_65, %c0_66] : memref<64x16x256xf32, #tpu.memory_space<vmem>>, vector<1x16x256xf32>
      %112 = vector.shape_cast %111 : vector<1x16x256xf32> to vector<16x256xf32>
      %113 = arith.addf %109, %112 : vector<16x256xf32>
      %114 = arith.index_cast %105 : i32 to index
      %c0_67 = arith.constant 0 : index
      %c0_68 = arith.constant 0 : index
      %115 = vector.load %arg13[%114, %c0_67, %c0_68] : memref<64x16x256xf32, #tpu.memory_space<vmem>>, vector<1x16x256xf32>
      %116 = vector.shape_cast %115 : vector<1x16x256xf32> to vector<16x256xf32>
      %117 = arith.mulf %116, %113 : vector<16x256xf32>
      %c5_i32 = arith.constant 5 : i32
      %118 = arith.addi %46, %c5_i32 : i32
      %119 = arith.index_cast %118 : i32 to index
      %c0_69 = arith.constant 0 : index
      %c0_70 = arith.constant 0 : index
      %120 = vector.load %arg11[%119, %c0_69, %c0_70] : memref<64x16x256xf32, #tpu.memory_space<vmem>>, vector<1x16x256xf32>
      %121 = vector.shape_cast %120 : vector<1x16x256xf32> to vector<16x256xf32>
      %122 = arith.mulf %121, %113 : vector<16x256xf32>
      %123 = arith.index_cast %118 : i32 to index
      %c0_71 = arith.constant 0 : index
      %c0_72 = arith.constant 0 : index
      %124 = vector.load %arg12[%123, %c0_71, %c0_72] : memref<64x16x256xf32, #tpu.memory_space<vmem>>, vector<1x16x256xf32>
      %125 = vector.shape_cast %124 : vector<1x16x256xf32> to vector<16x256xf32>
      %126 = arith.addf %122, %125 : vector<16x256xf32>
      %127 = arith.index_cast %118 : i32 to index
      %c0_73 = arith.constant 0 : index
      %c0_74 = arith.constant 0 : index
      %128 = vector.load %arg13[%127, %c0_73, %c0_74] : memref<64x16x256xf32, #tpu.memory_space<vmem>>, vector<1x16x256xf32>
      %129 = vector.shape_cast %128 : vector<1x16x256xf32> to vector<16x256xf32>
      %130 = arith.mulf %129, %126 : vector<16x256xf32>
      %c6_i32 = arith.constant 6 : i32
      %131 = arith.addi %46, %c6_i32 : i32
      %132 = arith.index_cast %131 : i32 to index
      %c0_75 = arith.constant 0 : index
      %c0_76 = arith.constant 0 : index
      %133 = vector.load %arg11[%132, %c0_75, %c0_76] : memref<64x16x256xf32, #tpu.memory_space<vmem>>, vector<1x16x256xf32>
      %134 = vector.shape_cast %133 : vector<1x16x256xf32> to vector<16x256xf32>
      %135 = arith.mulf %134, %126 : vector<16x256xf32>
      %136 = arith.index_cast %131 : i32 to index
      %c0_77 = arith.constant 0 : index
      %c0_78 = arith.constant 0 : index
      %137 = vector.load %arg12[%136, %c0_77, %c0_78] : memref<64x16x256xf32, #tpu.memory_space<vmem>>, vector<1x16x256xf32>
      %138 = vector.shape_cast %137 : vector<1x16x256xf32> to vector<16x256xf32>
      %139 = arith.addf %135, %138 : vector<16x256xf32>
      %140 = arith.index_cast %131 : i32 to index
      %c0_79 = arith.constant 0 : index
      %c0_80 = arith.constant 0 : index
      %141 = vector.load %arg13[%140, %c0_79, %c0_80] : memref<64x16x256xf32, #tpu.memory_space<vmem>>, vector<1x16x256xf32>
      %142 = vector.shape_cast %141 : vector<1x16x256xf32> to vector<16x256xf32>
      %143 = arith.mulf %142, %139 : vector<16x256xf32>
      %c7_i32 = arith.constant 7 : i32
      %144 = arith.addi %46, %c7_i32 : i32
      %145 = arith.index_cast %144 : i32 to index
      %c0_81 = arith.constant 0 : index
      %c0_82 = arith.constant 0 : index
      %146 = vector.load %arg11[%145, %c0_81, %c0_82] : memref<64x16x256xf32, #tpu.memory_space<vmem>>, vector<1x16x256xf32>
      %147 = vector.shape_cast %146 : vector<1x16x256xf32> to vector<16x256xf32>
      %148 = arith.mulf %147, %139 : vector<16x256xf32>
      %149 = arith.index_cast %144 : i32 to index
      %c0_83 = arith.constant 0 : index
      %c0_84 = arith.constant 0 : index
      %150 = vector.load %arg12[%149, %c0_83, %c0_84] : memref<64x16x256xf32, #tpu.memory_space<vmem>>, vector<1x16x256xf32>
      %151 = vector.shape_cast %150 : vector<1x16x256xf32> to vector<16x256xf32>
      %152 = arith.addf %148, %151 : vector<16x256xf32>
      %153 = arith.index_cast %144 : i32 to index
      %c0_85 = arith.constant 0 : index
      %c0_86 = arith.constant 0 : index
      %154 = vector.load %arg13[%153, %c0_85, %c0_86] : memref<64x16x256xf32, #tpu.memory_space<vmem>>, vector<1x16x256xf32>
      %155 = vector.shape_cast %154 : vector<1x16x256xf32> to vector<16x256xf32>
      %156 = arith.mulf %155, %152 : vector<16x256xf32>
      %157 = vector.shape_cast %117 : vector<16x256xf32> to vector<1x16x256xf32>
      %158 = vector.shape_cast %130 : vector<16x256xf32> to vector<1x16x256xf32>
      %159 = vector.shape_cast %143 : vector<16x256xf32> to vector<1x16x256xf32>
      %160 = vector.shape_cast %156 : vector<16x256xf32> to vector<1x16x256xf32>
      %161 = tpu.concatenate %157, %158, %159, %160 in 0 : vector<1x16x256xf32>, vector<1x16x256xf32>, vector<1x16x256xf32>, vector<1x16x256xf32> -> vector<4x16x256xf32>
      %cst_87 = arith.constant dense<0.000000e+00> : vector<4x256xf32>
      %162 = vector.multi_reduction <add>, %161, %cst_87 [1] : vector<4x16x256xf32> to vector<4x256xf32>
      %163 = tpu.concatenate %104, %162 in 0 : vector<4x256xf32>, vector<4x256xf32> -> vector<8x256xf32>
      %c0_88 = arith.constant 0 : index
      %164 = arith.index_cast %46 : i32 to index
      %c0_89 = arith.constant 0 : index
      %165 = vector.load %arg2[%c0_88, %164, %c0_89] : memref<1x64x256xf32, #tpu.memory_space<vmem>>, vector<1x8x256xf32>
      %166 = vector.shape_cast %165 : vector<1x8x256xf32> to vector<8x256xf32>
      %167 = vector.broadcast %40 : vector<1x256xf32> to vector<8x256xf32>
      %168 = arith.mulf %167, %166 : vector<8x256xf32>
      %169 = arith.addf %163, %168 : vector<8x256xf32>
      %c0_90 = arith.constant 0 : index
      %170 = arith.index_cast %46 : i32 to index
      %c0_91 = arith.constant 0 : index
      %171 = vector.load %arg9[%c0_90, %170, %c0_91] : memref<1x64x256xf32, #tpu.memory_space<vmem>>, vector<1x8x256xf32>
      %172 = vector.shape_cast %171 : vector<1x8x256xf32> to vector<8x256xf32>
      %173 = vector.shape_cast %169 : vector<8x256xf32> to vector<1x8x256xf32>
      tpu.vector_store %arg9[%c0_90, %170, %c0_91], %173 {strides = array<i32>} : memref<1x64x256xf32, #tpu.memory_space<vmem>>, vector<1x8x256xf32>,
      scf.yield %152 : vector<16x256xf32>
    }
    %c8_i32_32 = arith.constant 8 : i32
    %c0_33 = arith.constant 0 : index
    %c0_34 = arith.constant 0 : index
    %44 = vector.load %arg10[%c0_33, %c0_34] : memref<16x256xf32, #tpu.memory_space<vmem>>, vector<16x256xf32>
    tpu.vector_store %arg10[%c0_33, %c0_34], %43 {strides = array<i32>} : memref<16x256xf32, #tpu.memory_space<vmem>>, vector<16x256xf32>,
    return
  }
  func.func @transform_0(%arg0: i32, %arg1: i32) -> (i32, i32, i32) {
    %c0_i32 = arith.constant 0 : i32
    %c0_i32_0 = arith.constant 0 : i32
    return %arg0, %arg1, %c0_i32 : i32, i32, i32
  }
  func.func @transform_1(%arg0: i32, %arg1: i32) -> (i32, i32, i32) {
    %c0_i32 = arith.constant 0 : i32
    %c0_i32_0 = arith.constant 0 : i32
    return %arg0, %arg1, %c0_i32 : i32, i32, i32
  }
  func.func @transform_2(%arg0: i32, %arg1: i32) -> (i32, i32, i32) {
    %c0_i32 = arith.constant 0 : i32
    %c0_i32_0 = arith.constant 0 : i32
    return %arg0, %arg1, %c0_i32 : i32, i32, i32
  }
  func.func @transform_3(%arg0: i32, %arg1: i32) -> (i32, i32) {
    %c0_i32 = arith.constant 0 : i32
    %c0_i32_0 = arith.constant 0 : i32
    %c0_i32_1 = arith.constant 0 : i32
    return %c0_i32, %c0_i32_0 : i32, i32
  }
  func.func @transform_4(%arg0: i32, %arg1: i32) -> (i32, i32) {
    %c0_i32 = arith.constant 0 : i32
    %c0_i32_0 = arith.constant 0 : i32
    %c0_i32_1 = arith.constant 0 : i32
    return %c0_i32, %c0_i32_0 : i32, i32
  }
  func.func @transform_5(%arg0: i32, %arg1: i32) -> (i32, i32) {
    %c0_i32 = arith.constant 0 : i32
    %c0_i32_0 = arith.constant 0 : i32
    %c0_i32_1 = arith.constant 0 : i32
    return %c0_i32, %c0_i32_0 : i32, i32
  }
  func.func @transform_6(%arg0: i32, %arg1: i32) -> (i32, i32) {
    %c0_i32 = arith.constant 0 : i32
    %c0_i32_0 = arith.constant 0 : i32
    %c0_i32_1 = arith.constant 0 : i32
    return %c0_i32, %c0_i32_0 : i32, i32
  }
  func.func @transform_7(%arg0: i32, %arg1: i32) -> (i32, i32, i32) {
    %c0_i32 = arith.constant 0 : i32
    %c0_i32_0 = arith.constant 0 : i32
    return %arg0, %arg1, %c0_i32 : i32, i32, i32
  }
}

module attributes {stable_mosaic.version = 11 : i64} {
  func.func @_ln_gate_proj_kernel(%arg0: i32, %arg1: memref<128x64xf32, #tpu.memory_space<vmem>>, %arg2: memref<128x64xf32, #tpu.memory_space<vmem>>, %arg3: memref<1x64xf32, #tpu.memory_space<vmem>>, %arg4: memref<1x64xf32, #tpu.memory_space<vmem>>, %arg5: memref<64x32xbf16, #tpu.memory_space<vmem>>, %arg6: memref<128x32xf32, #tpu.memory_space<vmem>>) attributes {dimension_semantics = [#tpu.dimension_semantics<parallel>], iteration_bounds = array<i64: 1>, scalar_prefetch = 0 : i64, scratch_operands = 0 : i64, tpu.core_type = #tpu.core_type<tc>, window_params = [{transform_indices = @transform_0, window_bounds = array<i64: 128, 64>}, {transform_indices = @transform_1, window_bounds = array<i64: 128, 64>}, {pipeline_mode = #tpu.pipeline_mode<synchronous>, transform_indices = @transform_2, window_bounds = array<i64: 1, 64>}, {pipeline_mode = #tpu.pipeline_mode<synchronous>, transform_indices = @transform_3, window_bounds = array<i64: 1, 64>}, {pipeline_mode = #tpu.pipeline_mode<synchronous>, transform_indices = @transform_4, window_bounds = array<i64: 64, 32>}, {transform_indices = @transform_5, window_bounds = array<i64: 128, 32>}]} {
    %c0 = arith.constant 0 : index
    %c0_0 = arith.constant 0 : index
    %0 = vector.load %arg1[%c0, %c0_0] : memref<128x64xf32, #tpu.memory_space<vmem>>, vector<128x64xf32>
    %cst = arith.constant dense<0.000000e+00> : vector<128xf32>
    %1 = vector.multi_reduction <add>, %0, %cst [1] : vector<128x64xf32> to vector<128xf32>
    %2 = vector.shape_cast %1 : vector<128xf32> to vector<128x1xf32>
    %cst_1 = arith.constant 6.400000e+01 : f32
    %3 = vector.broadcast %cst_1 : f32 to vector<128x1xf32>
    %4 = arith.divf %2, %3 : vector<128x1xf32>
    %5 = vector.broadcast %4 : vector<128x1xf32> to vector<128x64xf32>
    %6 = arith.subf %0, %5 : vector<128x64xf32>
    %7 = arith.mulf %6, %6 : vector<128x64xf32>
    %cst_2 = arith.constant dense<0.000000e+00> : vector<128xf32>
    %8 = vector.multi_reduction <add>, %7, %cst_2 [1] : vector<128x64xf32> to vector<128xf32>
    %9 = vector.shape_cast %8 : vector<128xf32> to vector<128x1xf32>
    %cst_3 = arith.constant 6.400000e+01 : f32
    %10 = vector.broadcast %cst_3 : f32 to vector<128x1xf32>
    %11 = arith.divf %9, %10 : vector<128x1xf32>
    %12 = vector.broadcast %4 : vector<128x1xf32> to vector<128x64xf32>
    %13 = arith.subf %0, %12 : vector<128x64xf32>
    %cst_4 = arith.constant 9.99999974E-6 : f32
    %14 = vector.broadcast %cst_4 : f32 to vector<128x1xf32>
    %15 = arith.addf %11, %14 : vector<128x1xf32>
    %16 = math.rsqrt %15 : vector<128x1xf32>
    %17 = vector.broadcast %16 : vector<128x1xf32> to vector<128x64xf32>
    %18 = arith.mulf %13, %17 : vector<128x64xf32>
    %c0_5 = arith.constant 0 : index
    %c0_6 = arith.constant 0 : index
    %19 = vector.load %arg3[%c0_5, %c0_6] : memref<1x64xf32, #tpu.memory_space<vmem>>, vector<1x64xf32>
    %20 = vector.broadcast %19 : vector<1x64xf32> to vector<128x64xf32>
    %21 = arith.mulf %18, %20 : vector<128x64xf32>
    %c0_7 = arith.constant 0 : index
    %c0_8 = arith.constant 0 : index
    %22 = vector.load %arg4[%c0_7, %c0_8] : memref<1x64xf32, #tpu.memory_space<vmem>>, vector<1x64xf32>
    %23 = vector.broadcast %22 : vector<1x64xf32> to vector<128x64xf32>
    %24 = arith.addf %21, %23 : vector<128x64xf32>
    %c0_9 = arith.constant 0 : index
    %c0_10 = arith.constant 0 : index
    %25 = vector.load %arg2[%c0_9, %c0_10] : memref<128x64xf32, #tpu.memory_space<vmem>>, vector<128x64xf32>
    %26 = arith.negf %25 : vector<128x64xf32>
    %27 = math.exp %26 : vector<128x64xf32>
    %cst_11 = arith.constant 1.000000e+00 : f32
    %28 = vector.broadcast %cst_11 : f32 to vector<128x64xf32>
    %29 = arith.addf %28, %27 : vector<128x64xf32>
    %30 = arith.divf %28, %29 : vector<128x64xf32>
    %31 = arith.mulf %25, %30 : vector<128x64xf32>
    %32 = arith.mulf %24, %31 : vector<128x64xf32>
    %33 = arith.truncf %32 : vector<128x64xf32> to vector<128x64xbf16>
    %c0_12 = arith.constant 0 : index
    %c0_13 = arith.constant 0 : index
    %34 = vector.load %arg5[%c0_12, %c0_13] : memref<64x32xbf16, #tpu.memory_space<vmem>>, vector<64x32xbf16>
    %cst_14 = arith.constant dense<0.000000e+00> : vector<128x32xf32>
    %35 = tpu.matmul %33, %34, %cst_14 {dimension_numbers = #tpu.dot_dimension_numbers<[1], [0], [0], [1], [0, 0, 1, 1], [], []>} : vector<128x64xbf16>, vector<64x32xbf16>, vector<128x32xf32> -> vector<128x32xf32>
    %c0_15 = arith.constant 0 : index
    %c0_16 = arith.constant 0 : index
    %36 = vector.load %arg6[%c0_15, %c0_16] : memref<128x32xf32, #tpu.memory_space<vmem>>, vector<128x32xf32>
    tpu.vector_store %arg6[%c0_15, %c0_16], %35 {strides = array<i32>} : memref<128x32xf32, #tpu.memory_space<vmem>>, vector<128x32xf32>,
    return
  }
  func.func @transform_0(%arg0: i32) -> (i32, i32) {
    %c0_i32 = arith.constant 0 : i32
    %c0_i32_0 = arith.constant 0 : i32
    return %arg0, %c0_i32 : i32, i32
  }
  func.func @transform_1(%arg0: i32) -> (i32, i32) {
    %c0_i32 = arith.constant 0 : i32
    %c0_i32_0 = arith.constant 0 : i32
    return %arg0, %c0_i32 : i32, i32
  }
  func.func @transform_2(%arg0: i32) -> (i32, i32) {
    %c0_i32 = arith.constant 0 : i32
    %c0_i32_0 = arith.constant 0 : i32
    %c0_i32_1 = arith.constant 0 : i32
    return %c0_i32, %c0_i32_0 : i32, i32
  }
  func.func @transform_3(%arg0: i32) -> (i32, i32) {
    %c0_i32 = arith.constant 0 : i32
    %c0_i32_0 = arith.constant 0 : i32
    %c0_i32_1 = arith.constant 0 : i32
    return %c0_i32, %c0_i32_0 : i32, i32
  }
  func.func @transform_4(%arg0: i32) -> (i32, i32) {
    %c0_i32 = arith.constant 0 : i32
    %c0_i32_0 = arith.constant 0 : i32
    %c0_i32_1 = arith.constant 0 : i32
    return %c0_i32, %c0_i32_0 : i32, i32
  }
  func.func @transform_5(%arg0: i32) -> (i32, i32) {
    %c0_i32 = arith.constant 0 : i32
    %c0_i32_0 = arith.constant 0 : i32
    return %arg0, %c0_i32 : i32, i32
  }
}

</mosaic_0001>

<llo_original>
// kernel: _lambda_.5
$region0: #{_lambda_.5}
  #allocation0 [shape = 'u32[]', space=smem, size = 0x4, offset = 0x4, fixed_abs, tag = 'smem constant byte address 0x4 - core index']
  #allocation1 [shape = 'u32[144,128]{1,0:T(1,128)}', space=vmem, size = 0x12000, scoped, tag = 'internal scratch']
  %s0 = inlined_call_operand.vmem [shape: bf16[1,128,32], index: 0, kind: input, shape index: {}]
  %s1 = inlined_call_operand.vmem [shape: bf16[1,32,128], index: 1, kind: input, shape index: {}]
  %s2 = inlined_call_operand.vmem [shape: f32[1,128,128], index: 2, kind: output, shape index: {}]
  %s3 = sld [smem:[#allocation0]]
  $region18: #{_lambda_.5} parent=0
    _
  %s5 = ssub.s32 1, %s3
  %s6 = scalar_select 0, %s5, %s3
  // Predicated region
  $region2: #{_lambda_.5} parent=0 // pred_check
    _
  $region3: #{_lambda_.5} parent=0 // pred_check_branch
    %8 = sbr.rel (0) target = $region5
  $region4: #{_lambda_.5} parent=0 // pred_region
    _
  $region5: #{_lambda_.5} parent=0 // pred_fallthru
    _
  // Predicated region
  $region6: #{_lambda_.5} parent=0 // pred_check
    _
  $region7: #{_lambda_.5} parent=0 // pred_check_branch
    %10 = sbr.rel (0) target = $region9
  $region8: #{_lambda_.5} parent=0 // pred_region
    _
  $region9: #{_lambda_.5} parent=0 // pred_fallthru
    _
  %v12 = vld [vmem:[%s0] sm:$0xf]
  %v13 = vld [vmem:[%s0 + $0x4] sm:$0xf]
  %v14 = vld [vmem:[%s0 + $0x8] sm:$0xf]
  %v15 = vld [vmem:[%s0 + $0xc] sm:$0xf]
  %v16 = vld [vmem:[%s0 + $0x10] sm:$0xf]
  %v17 = vld [vmem:[%s0 + $0x14] sm:$0xf]
  %v18 = vld [vmem:[%s0 + $0x18] sm:$0xf]
  %v19 = vld [vmem:[%s0 + $0x1c] sm:$0xf]
  %v20 = vld [vmem:[%s0 + $0x20] sm:$0xf]
  %v21 = vld [vmem:[%s0 + $0x24] sm:$0xf]
  %v22 = vld [vmem:[%s0 + $0x28] sm:$0xf]
  %v23 = vld [vmem:[%s0 + $0x2c] sm:$0xf]
  %v24 = vld [vmem:[%s0 + $0x30] sm:$0xf]
  %v25 = vld [vmem:[%s0 + $0x34] sm:$0xf]
  %v26 = vld [vmem:[%s0 + $0x38] sm:$0xf]
  %v27 = vld [vmem:[%s0 + $0x3c] sm:$0xf]
  %v28 = vld [vmem:[%s1] sm:$0xf]
  %v29 = vld [vmem:[%s1 + $0x4] sm:$0xf]
  %v30 = vld [vmem:[%s1 + $0x8] sm:$0xf]
  %v31 = vld [vmem:[%s1 + $0xc] sm:$0xf]
  %v48 = vunpack.c.l.b16 %v12
  %v49 = vunpack.c.l.b16 %v13
  %v50 = vunpack.c.l.b16 %v14
  %v51 = vunpack.c.l.b16 %v15
  %v52 = vunpack.c.l.b16 %v16
  %v53 = vunpack.c.l.b16 %v17
  %v54 = vunpack.c.l.b16 %v18
  %v55 = vunpack.c.l.b16 %v19
  %v56 = vunpack.c.l.b16 %v20
  %v57 = vunpack.c.l.b16 %v21
  %v58 = vunpack.c.l.b16 %v22
  %v59 = vunpack.c.l.b16 %v23
  %v60 = vunpack.c.l.b16 %v24
  %v61 = vunpack.c.l.b16 %v25
  %v62 = vunpack.c.l.b16 %v26
  %v63 = vunpack.c.l.b16 %v27
  %v64 = vpack.c.b16 %v49, %v48
  %v65 = vpack.c.b16 %v51, %v50
  %v66 = vpack.c.b16 %v53, %v52
  %v67 = vpack.c.b16 %v55, %v54
  %v68 = vpack.c.b16 %v57, %v56
  %v69 = vpack.c.b16 %v59, %v58
  %v70 = vpack.c.b16 %v61, %v60
  %v71 = vpack.c.b16 %v63, %v62
  %v76 = vunpack.c.l.b16 %v28
  %v77 = vunpack.c.l.b16 %v29
  %v78 = vunpack.c.l.b16 %v30
  %v79 = vunpack.c.l.b16 %v31
  %v80 = vpack.c.b16 %v77, %v76
  %v81 = vpack.c.b16 %v79, %v78
  %vm84 = vcmask 261120
  %v86 = vsel %vm84, %v64, 0
  %v89 = vsel %vm84, %v65, 0
  %v92 = vsel %vm84, %v66, 0
  %v95 = vsel %vm84, %v67, 0
  %v98 = vsel %vm84, %v68, 0
  %v101 = vsel %vm84, %v69, 0
  %v104 = vsel %vm84, %v70, 0
  %v107 = vsel %vm84, %v71, 0
  %109 = vmatprep.subr.bf16.mxu0 0
  %110 = vmatpush1.bf16.msra.mxu0 %v80
  %111 = vmatprep.subr.bf16.mxu0 0
  %112 = vmatpush1.bf16.msra.mxu0 %v81
  %113 = vmatprep.subr.bf16.mxu0 0
  %114 = vmatpush1.bf16.msra.mxu0 0
  %115 = vmatprep.subr.bf16.mxu0 0
  %116 = vmatpush1.bf16.msra.mxu0 0
  %117 = vmatprep.subr.bf16.mxu0 0
  %118 = vmatpush1.bf16.msra.mxu0 0
  %119 = vmatprep.subr.bf16.mxu0 0
  %120 = vmatpush1.bf16.msra.mxu0 0
  %121 = vmatprep.subr.bf16.mxu0 0
  %122 = vmatpush1.bf16.msra.mxu0 0
  %123 = vmatprep.subr.bf16.mxu0 0
  %124 = vmatpush1.bf16.msra.mxu0 0
  %125 = vmatprep.subr.bf16.mxu0 0
  %126 = vmatpush1.bf16.msra.mxu0 0
  %127 = vmatprep.subr.bf16.mxu0 0
  %128 = vmatpush1.bf16.msra.mxu0 0
  %129 = vmatprep.subr.bf16.mxu0 0
  %130 = vmatpush1.bf16.msra.mxu0 0
  %131 = vmatprep.subr.bf16.mxu0 0
  %132 = vmatpush1.bf16.msra.mxu0 0
  %133 = vmatprep.subr.bf16.mxu0 0
  %134 = vmatpush1.bf16.msra.mxu0 0
  %135 = vmatprep.subr.bf16.mxu0 0
  %136 = vmatpush1.bf16.msra.mxu0 0
  %137 = vmatprep.subr.bf16.mxu0 0
  %138 = vmatpush1.bf16.msra.mxu0 0
  %139 = vmatprep.subr.bf16.mxu0 0
  %140 = vmatpush1.bf16.msra.mxu0 0
  %141 = vmatprep.mubr.bf16.mxu0 0
  %142 = vmatmul.mubr.bf16.gmra.mrb[0].mxu0 %v86
  %v143 = vpop.f32.mrb[0].mxu0
  %v144 = vadd.f32 0.0, %v143
  %v145 = vpop.f32.mrb[0].mxu0
  %v146 = vpop.f32.mrb[0].mxu0
  %v147 = vadd.f32 0.0, %v146
  %v148 = vpop.f32.mrb[0].mxu0
  %149 = vmatprep.mubr.bf16.mxu0 0
  %150 = vmatmul.mubr.bf16.gmra.mrb[0].mxu0 %v89
  %v151 = vpop.f32.mrb[0].mxu0
  %v152 = vadd.f32 0.0, %v151
  %v153 = vpop.f32.mrb[0].mxu0
  %v154 = vpop.f32.mrb[0].mxu0
  %v155 = vadd.f32 0.0, %v154
  %v156 = vpop.f32.mrb[0].mxu0
  %157 = vmatprep.mubr.bf16.mxu0 0
  %158 = vmatmul.mubr.bf16.gmra.mrb[0].mxu0 %v92
  %v159 = vpop.f32.mrb[0].mxu0
  %v160 = vadd.f32 0.0, %v159
  %v161 = vpop.f32.mrb[0].mxu0
  %v162 = vpop.f32.mrb[0].mxu0
  %v163 = vadd.f32 0.0, %v162
  %v164 = vpop.f32.mrb[0].mxu0
  %165 = vmatprep.mubr.bf16.mxu0 0
  %166 = vmatmul.mubr.bf16.gmra.mrb[0].mxu0 %v95
  %v167 = vpop.f32.mrb[0].mxu0
  %v168 = vadd.f32 0.0, %v167
  %v169 = vpop.f32.mrb[0].mxu0
  %v170 = vpop.f32.mrb[0].mxu0
  %v171 = vadd.f32 0.0, %v170
  %v172 = vpop.f32.mrb[0].mxu0
  %173 = vmatprep.mubr.bf16.mxu0 0
  %174 = vmatmul.mubr.bf16.gmra.mrb[0].mxu0 %v98
  %v175 = vpop.f32.mrb[0].mxu0
  %v176 = vadd.f32 0.0, %v175
  %v177 = vpop.f32.mrb[0].mxu0
  %v178 = vpop.f32.mrb[0].mxu0
  %v179 = vadd.f32 0.0, %v178
  %v180 = vpop.f32.mrb[0].mxu0
  %181 = vmatprep.mubr.bf16.mxu0 0
  %182 = vmatmul.mubr.bf16.gmra.mrb[0].mxu0 %v101
  %v183 = vpop.f32.mrb[0].mxu0
  %v184 = vadd.f32 0.0, %v183
  %v185 = vpop.f32.mrb[0].mxu0
  %v186 = vpop.f32.mrb[0].mxu0
  %v187 = vadd.f32 0.0, %v186
  %v188 = vpop.f32.mrb[0].mxu0
  %189 = vmatprep.mubr.bf16.mxu0 0
  %190 = vmatmul.mubr.bf16.gmra.mrb[0].mxu0 %v104
  %v191 = vpop.f32.mrb[0].mxu0
  %v192 = vadd.f32 0.0, %v191
  %v193 = vpop.f32.mrb[0].mxu0
  %v194 = vpop.f32.mrb[0].mxu0
  %v195 = vadd.f32 0.0, %v194
  %v196 = vpop.f32.mrb[0].mxu0
  %197 = vmatprep.mubr.bf16.mxu0 0
  %198 = vmatmul.mubr.bf16.gmra.mrb[0].mxu0 %v107
  %v199 = vpop.f32.mrb[0].mxu0
  %v200 = vadd.f32 0.0, %v199
  %v201 = vpop.f32.mrb[0].mxu0
  %v202 = vpop.f32.mrb[0].mxu0
  %v203 = vadd.f32 0.0, %v202
  %v204 = vpop.f32.mrb[0].mxu0
  %205 = vdwg.mxu0
  %206 = vst [vmem:[%s2] sm:$0xff] %v144
  %207 = vst [vmem:[%s2 + $0x8] sm:$0xff] %v147
  %208 = vst [vmem:[%s2 + $0x10] sm:$0xff] %v152
  %209 = vst [vmem:[%s2 + $0x18] sm:$0xff] %v155
  %210 = vst [vmem:[%s2 + $0x20] sm:$0xff] %v160
  %211 = vst [vmem:[%s2 + $0x28] sm:$0xff] %v163
  %212 = vst [vmem:[%s2 + $0x30] sm:$0xff] %v168
  %213 = vst [vmem:[%s2 + $0x38] sm:$0xff] %v171
  %214 = vst [vmem:[%s2 + $0x40] sm:$0xff] %v176
  %215 = vst [vmem:[%s2 + $0x48] sm:$0xff] %v179
  %216 = vst [vmem:[%s2 + $0x50] sm:$0xff] %v184
  %217 = vst [vmem:[%s2 + $0x58] sm:$0xff] %v187
  %218 = vst [vmem:[%s2 + $0x60] sm:$0xff] %v192
  %219 = vst [vmem:[%s2 + $0x68] sm:$0xff] %v195
  %220 = vst [vmem:[%s2 + $0x70] sm:$0xff] %v200
  %221 = vst [vmem:[%s2 + $0x78] sm:$0xff] %v203
  // Predicated region
  $region10: #{_lambda_.5} parent=0 // pred_check
    _
  $region11: #{_lambda_.5} parent=0 // pred_check_branch
    %223 = sbr.rel (0) target = $region13
  $region12: #{_lambda_.5} parent=0 // pred_region
    _
  $region13: #{_lambda_.5} parent=0 // pred_fallthru
    _
  // Predicated region
  $region14: #{_lambda_.5} parent=0 // pred_check
    _
  $region15: #{_lambda_.5} parent=0 // pred_check_branch
    %225 = sbr.rel (0) target = $region17
  $region16: #{_lambda_.5} parent=0 // pred_region
    _
  $region17: #{_lambda_.5} parent=0 // pred_fallthru
    _

// kernel: _lambda_.6
$region0: #{_lambda_.6}
  #allocation0 [shape = 'u32[]', space=smem, size = 0x4, offset = 0x4, fixed_abs, tag = 'smem constant byte address 0x4 - core index']
  #allocation1 [shape = 'u32[144,128]{1,0:T(1,128)}', space=vmem, size = 0x12000, scoped, tag = 'internal scratch']
  %s0 = inlined_call_operand.vmem [shape: f32[2,10,10,64], index: 0, kind: input, shape index: {}]
  %s1 = inlined_call_operand.vmem [shape: f32[3,3,64], index: 1, kind: input, shape index: {}]
  %s2 = inlined_call_operand.vmem [shape: f32[1,64], index: 2, kind: input, shape index: {}]
  %s3 = inlined_call_operand.vmem [shape: f32[2,8,8,64], index: 3, kind: output, shape index: {}]
  %s4 = sld [smem:[#allocation0]]
  $region45: #{_lambda_.6} parent=0
    _
  %s6 = ssub.s32 1, %s4
  %s7 = scalar_select 0, %s6, %s4
  loop: start=0, step=1, limit=4
  $region2: #{_lambda_.6} parent=0 // loop_pre_header
    _
  $region3: #{_lambda_.6} parent=0 // loop_header
    %s9 = sphi 0, %s13
    %p10 = scmp.ge.s32.totalorder %s9, 4
    %s19 = sphi 0, %s21
    %s22 = sphi 0, %s19
    %s23 = sphi 0, %s22
    %s39 = sphi 0, %s23
    %s43 = sphi 0, %s43
    %s45 = sphi 0, %s43
    %s46 = sphi 0, %s45
    %s60 = sphi 0, %s46
    %s64 = sphi 0, %s64
    %s66 = sphi 0, %s64
    %s67 = sphi 0, %s66
    %s81 = sphi 0, %s67
    %s87 = sphi 0, %s89
    %s90 = sphi 0, %s87
    %s91 = sphi 0, %s90
    %s107 = sphi 0, %s91
  $region4: #{_lambda_.6} parent=0 // loop_header_branch
    %12 = sbr.rel (%p10) target = $region8
  $region5: #{_lambda_.6} parent=0 // loop_body
    %s14 = ssub.s32 %s9, 1
    %s15 = ssub.s32 %s9, 2
    %s16 = sadd.s32 %s9, 1
    %s17 = ssub.s32 %s9, %s16
    %p18 = scmp.eq.s32.totalorder %s17, 0
    %s20 = sadd.s32 %s19, 1
    %s21 = scalar_select %p18, %s19, %s20
    %p24 = pneg %p18
    %p25 = scmp.eq.s32.totalorder %s9, 1
    %p26 = por %p24, %p25
    %p27 = scmp.ne.s32.totalorder %s19, %s22
    %p28 = scmp.eq.s32.totalorder %s9, 0
    %p29 = por %p27, %p28
    %p30 = scmp.ne.s32.totalorder %s19, %s22
    %p31 = scmp.eq.s32.totalorder %s14, 1
    %p32 = por %p30, %p31
    %p33 = scmp.ne.s32.totalorder %s22, %s23
    %p34 = scmp.eq.s32.totalorder %s14, 0
    %p35 = por %p33, %p34
    %p36 = scmp.ne.s32.totalorder %s22, %s23
    %p37 = scmp.eq.s32.totalorder %s15, 1
    %p38 = por %p36, %p37
    %p40 = scmp.ne.s32.totalorder %s23, %s39
    %p41 = scmp.eq.s32.totalorder %s15, 0
    %p42 = por %p40, %p41
    %s44 = sadd.s32 %s43, 1
    %p47 = scmp.eq.s32.totalorder %s9, 1
    %p48 = scmp.ne.s32.totalorder %s43, %s45
    %p49 = scmp.eq.s32.totalorder %s9, 0
    %p50 = por %p48, %p49
    %p51 = scmp.ne.s32.totalorder %s43, %s45
    %p52 = scmp.eq.s32.totalorder %s14, 1
    %p53 = por %p51, %p52
    %p54 = scmp.ne.s32.totalorder %s45, %s46
    %p55 = scmp.eq.s32.totalorder %s14, 0
    %p56 = por %p54, %p55
    %p57 = scmp.ne.s32.totalorder %s45, %s46
    %p58 = scmp.eq.s32.totalorder %s15, 1
    %p59 = por %p57, %p58
    %p61 = scmp.ne.s32.totalorder %s46, %s60
    %p62 = scmp.eq.s32.totalorder %s15, 0
    %p63 = por %p61, %p62
    %s65 = sadd.s32 %s64, 1
    %p68 = scmp.eq.s32.totalorder %s9, 1
    %p69 = scmp.ne.s32.totalorder %s64, %s66
    %p70 = scmp.eq.s32.totalorder %s9, 0
    %p71 = por %p69, %p70
    %p72 = scmp.ne.s32.totalorder %s64, %s66
    %p73 = scmp.eq.s32.totalorder %s14, 1
    %p74 = por %p72, %p73
    %p75 = scmp.ne.s32.totalorder %s66, %s67
    %p76 = scmp.eq.s32.totalorder %s14, 0
    %p77 = por %p75, %p76
    %p78 = scmp.ne.s32.totalorder %s66, %s67
    %p79 = scmp.eq.s32.totalorder %s15, 1
    %p80 = por %p78, %p79
    %p82 = scmp.ne.s32.totalorder %s67, %s81
    %p83 = scmp.eq.s32.totalorder %s15, 0
    %p84 = por %p82, %p83
    %s85 = ssub.s32 %s9, %s16
    %p86 = scmp.eq.s32.totalorder %s85, 0
    %s88 = sadd.s32 %s87, 1
    %s89 = scalar_select %p86, %s87, %s88
    %p92 = pneg %p86
    %p93 = scmp.eq.s32.totalorder %s9, 1
    %p94 = por %p92, %p93
    %p95 = scmp.ne.s32.totalorder %s87, %s90
    %p96 = scmp.eq.s32.totalorder %s9, 0
    %p97 = por %p95, %p96
    %p98 = scmp.ne.s32.totalorder %s87, %s90
    %p99 = scmp.eq.s32.totalorder %s14, 1
    %p100 = por %p98, %p99
    %p101 = scmp.ne.s32.totalorder %s90, %s91
    %p102 = scmp.eq.s32.totalorder %s14, 0
    %p103 = por %p101, %p102
    %p104 = scmp.ne.s32.totalorder %s90, %s91
    %p105 = scmp.eq.s32.totalorder %s15, 1
    %p106 = por %p104, %p105
    %p108 = scmp.ne.s32.totalorder %s91, %s107
    %p109 = scmp.eq.s32.totalorder %s15, 0
    %p110 = por %p108, %p109
    %p111 = scmp.le.s32.totalorder 1, %s9
    %p112 = scmp.lt.s32.totalorder %s9, 3
    %p113 = pnand %p111, %p112
    %p114 = pneg %p113
    // Predicated region
    $region9: #{_lambda_.6} parent=5 // pred_check
      _
    $region10: #{_lambda_.6} parent=5 // pred_check_branch
      %116 = sbr.rel (%p113) target = $region12
    $region11: #{_lambda_.6} parent=5 // pred_region
      %s117 = ssub.s32 %s9, 1
      // Predicated region
      $region13: #{_lambda_.6} parent=11 // pred_check
        %p118 = pneg %p56
      $region14: #{_lambda_.6} parent=11 // pred_check_branch
        %120 = sbr.rel (%p118) target = $region16
      $region15: #{_lambda_.6} parent=11 // pred_region
        _
      $region16: #{_lambda_.6} parent=11 // pred_fallthru
        _
      // Predicated region
      $region17: #{_lambda_.6} parent=11 // pred_check
        %p121 = pneg %p77
      $region18: #{_lambda_.6} parent=11 // pred_check_branch
        %123 = sbr.rel (%p121) target = $region20
      $region19: #{_lambda_.6} parent=11 // pred_region
        _
      $region20: #{_lambda_.6} parent=11 // pred_fallthru
        _
    $region12: #{_lambda_.6} parent=5 // pred_fallthru
      _
    %p124 = scmp.lt.s32.totalorder %s9, 2
    // Predicated region
    $region21: #{_lambda_.6} parent=5 // pred_check
      %p125 = pneg %p124
    $region22: #{_lambda_.6} parent=5 // pred_check_branch
      %127 = sbr.rel (%p125) target = $region24
    $region23: #{_lambda_.6} parent=5 // pred_region
      // Predicated region
      $region25: #{_lambda_.6} parent=23 // pred_check
        %p128 = pneg %p29
      $region26: #{_lambda_.6} parent=23 // pred_check_branch
        %130 = sbr.rel (%p128) target = $region28
      $region27: #{_lambda_.6} parent=23 // pred_region
        %p131 = scmp.lt.s32.totalorder %s9, 1
        %s132 = scalar_select %p131, %s9, 1
        %s133 = smul.addr %s132, 20
        %s134 = smul.addr %s133, 8
        %s135 = scalar_lea.vmem %s0, %s134
      $region28: #{_lambda_.6} parent=23 // pred_fallthru
        _
    $region24: #{_lambda_.6} parent=5 // pred_fallthru
      _
    %p136 = scmp.le.s32.totalorder 1, %s9
    %p137 = scmp.lt.s32.totalorder %s9, 3
    %p138 = pnand %p136, %p137
    %p139 = pneg %p138
    // Predicated region
    $region29: #{_lambda_.6} parent=5 // pred_check
      _
    $region30: #{_lambda_.6} parent=5 // pred_check_branch
      %141 = sbr.rel (%p138) target = $region32
    $region31: #{_lambda_.6} parent=5 // pred_region
      %s142 = ssub.s32 %s9, 1
      %p143 = scmp.lt.s32.totalorder %s14, 1
      %s144 = scalar_select %p143, %s14, 1
      %s145 = smul.addr %s144, 20
      %s146 = smul.addr %s145, 8
      %s147 = scalar_lea.vmem %s0, %s146
      %p148 = pneg %p35
      %p149 = pneg %p32
      %p150 = pneg %p56
      %p151 = pneg %p53
      %p152 = pneg %p77
      %p153 = pneg %p74
      %p154 = pneg %p103
      %p155 = pneg %p100
      %p156 = scmp.lt.s32.totalorder %s14, 1
      %s157 = scalar_select %p156, %s14, 1
      %s158 = smul.addr %s157, 8
      %s159 = smul.addr %s158, 8
      %s160 = scalar_lea.vmem %s3, %s159
      %p161 = scmp.lt.s32.totalorder %s14, 1
      %s162 = scalar_select %p161, %s14, 1
      %s163 = smul.addr %s162, 20
      %s164 = smul.addr %s163, 8
      %s165 = scalar_lea.vmem %s0, %s164
      %p166 = scmp.lt.s32.totalorder %s14, 1
      %s167 = scalar_select %p166, %s14, 1
      %s168 = smul.addr %s167, 8
      %s169 = smul.addr %s168, 8
      %s170 = scalar_lea.vmem %s3, %s169
      %v171 = vld [vmem:[%s165] sm:$0xff]
      %v172 = vld [vmem:[%s165 + $0x8] sm:$0x3]
      %v173 = vld [vmem:[%s165 + $0x10] sm:$0xff]
      %v174 = vld [vmem:[%s165 + $0x18] sm:$0x3]
      %v175 = vld [vmem:[%s165 + $0x20] sm:$0xff]
      %v176 = vld [vmem:[%s165 + $0x28] sm:$0x3]
      %v177 = vld [vmem:[%s165 + $0x30] sm:$0xff]
      %v178 = vld [vmem:[%s165 + $0x38] sm:$0x3]
      %v179 = vld [vmem:[%s165 + $0x40] sm:$0xff]
      %v180 = vld [vmem:[%s165 + $0x48] sm:$0x3]
      %v181 = vld [vmem:[%s165 + $0x50] sm:$0xff]
      %v182 = vld [vmem:[%s165 + $0x58] sm:$0x3]
      %v183 = vld [vmem:[%s165 + $0x60] sm:$0xff]
      %v184 = vld [vmem:[%s165 + $0x68] sm:$0x3]
      %v185 = vld [vmem:[%s165 + $0x70] sm:$0xff]
      %v186 = vld [vmem:[%s165 + $0x78] sm:$0x3]
      %v187 = vld [vmem:[%s165 + $0x80] sm:$0xff]
      %v188 = vld [vmem:[%s165 + $0x88] sm:$0x3]
      %v189 = vld [vmem:[%s165 + $0x90] sm:$0xff]
      %v190 = vld [vmem:[%s165 + $0x98] sm:$0x3]
      %v191 = vld [vmem:[%s1] sm:$0x7]
      %v192 = vld [vmem:[%s1 + $0x4] sm:$0x7]
      %v193 = vld [vmem:[%s1 + $0x8] sm:$0x7]
      %v194 = vlaneseq
      %v195 = vshrl.u32 %v194, 7
      %v196 = vsub.s32 0, %v195
      %v197 = vrot.slane %v191, %v196
      %v198 = vmul.f32 %v171, %v197
      %v199 = vmul.f32 %v173, %v197
      %v200 = vmul.f32 %v175, %v197
      %v201 = vmul.f32 %v177, %v197
      %v202 = vmul.f32 %v179, %v197
      %v203 = vmul.f32 %v181, %v197
      %v204 = vmul.f32 %v183, %v197
      %v205 = vmul.f32 %v185, %v197
      %v206 = vadd.f32 %v198, 0.0
      %v207 = vadd.f32 %v199, 0.0
      %v208 = vadd.f32 %v200, 0.0
      %v209 = vadd.f32 %v201, 0.0
      %v210 = vadd.f32 %v202, 0.0
      %v211 = vadd.f32 %v203, 0.0
      %v212 = vadd.f32 %v204, 0.0
      %v213 = vadd.f32 %v205, 0.0
      %v214 = vlaneseq
      %v215 = vshrl.u32 %v214, 7
      %v216 = vsub.s32 1, %v215
      %v217 = vrot.slane %v191, %v216
      %v218 = vmul.f32 %v171, %v217
      %v219 = vmul.f32 %v172, %v217
      %v220 = vmul.f32 %v173, %v217
      %v221 = vmul.f32 %v174, %v217
      %v222 = vmul.f32 %v175, %v217
      %v223 = vmul.f32 %v176, %v217
      %v224 = vmul.f32 %v177, %v217
      %v225 = vmul.f32 %v178, %v217
      %v226 = vmul.f32 %v179, %v217
      %v227 = vmul.f32 %v180, %v217
      %v228 = vmul.f32 %v181, %v217
      %v229 = vmul.f32 %v182, %v217
      %v230 = vmul.f32 %v183, %v217
      %v231 = vmul.f32 %v184, %v217
      %v232 = vmul.f32 %v185, %v217
      %v233 = vmul.f32 %v186, %v217
      %vm250 = vcmask 1046528
      %v251 = vrot.slane %v218, 1
      %v252 = vrot.slane %v219, 1
      %v253 = vsel %vm250, %v251, %v252
      %v254 = vrot.slane %v220, 1
      %v255 = vrot.slane %v221, 1
      %v256 = vsel %vm250, %v254, %v255
      %v257 = vrot.slane %v222, 1
      %v258 = vrot.slane %v223, 1
      %v259 = vsel %vm250, %v257, %v258
      %v260 = vrot.slane %v224, 1
      %v261 = vrot.slane %v225, 1
      %v262 = vsel %vm250, %v260, %v261
      %v263 = vrot.slane %v226, 1
      %v264 = vrot.slane %v227, 1
      %v265 = vsel %vm250, %v263, %v264
      %v266 = vrot.slane %v228, 1
      %v267 = vrot.slane %v229, 1
      %v268 = vsel %vm250, %v266, %v267
      %v269 = vrot.slane %v230, 1
      %v270 = vrot.slane %v231, 1
      %v271 = vsel %vm250, %v269, %v270
      %v272 = vrot.slane %v232, 1
      %v273 = vrot.slane %v233, 1
      %v274 = vsel %vm250, %v272, %v273
      %v283 = vadd.f32 %v206, %v253
      %v284 = vadd.f32 %v207, %v256
      %v285 = vadd.f32 %v208, %v259
      %v286 = vadd.f32 %v209, %v262
      %v287 = vadd.f32 %v210, %v265
      %v288 = vadd.f32 %v211, %v268
      %v289 = vadd.f32 %v212, %v271
      %v290 = vadd.f32 %v213, %v274
      %v291 = vlaneseq
      %v292 = vshrl.u32 %v291, 7
      %v293 = vsub.s32 2, %v292
      %v294 = vrot.slane %v191, %v293
      %v295 = vmul.f32 %v171, %v294
      %v296 = vmul.f32 %v172, %v294
      %v297 = vmul.f32 %v173, %v294
      %v298 = vmul.f32 %v174, %v294
      %v299 = vmul.f32 %v175, %v294
      %v300 = vmul.f32 %v176, %v294
      %v301 = vmul.f32 %v177, %v294
      %v302 = vmul.f32 %v178, %v294
      %v303 = vmul.f32 %v179, %v294
      %v304 = vmul.f32 %v180, %v294
      %v305 = vmul.f32 %v181, %v294
      %v306 = vmul.f32 %v182, %v294
      %v307 = vmul.f32 %v183, %v294
      %v308 = vmul.f32 %v184, %v294
      %v309 = vmul.f32 %v185, %v294
      %v310 = vmul.f32 %v186, %v294
      %vm327 = vcmask 1045504
      %v328 = vrot.slane %v295, 2
      %v329 = vrot.slane %v296, 2
      %v330 = vsel %vm327, %v328, %v329
      %v331 = vrot.slane %v297, 2
      %v332 = vrot.slane %v298, 2
      %v333 = vsel %vm327, %v331, %v332
      %v334 = vrot.slane %v299, 2
      %v335 = vrot.slane %v300, 2
      %v336 = vsel %vm327, %v334, %v335
      %v337 = vrot.slane %v301, 2
      %v338 = vrot.slane %v302, 2
      %v339 = vsel %vm327, %v337, %v338
      %v340 = vrot.slane %v303, 2
      %v341 = vrot.slane %v304, 2
      %v342 = vsel %vm327, %v340, %v341
      %v343 = vrot.slane %v305, 2
      %v344 = vrot.slane %v306, 2
      %v345 = vsel %vm327, %v343, %v344
      %v346 = vrot.slane %v307, 2
      %v347 = vrot.slane %v308, 2
      %v348 = vsel %vm327, %v346, %v347
      %v349 = vrot.slane %v309, 2
      %v350 = vrot.slane %v310, 2
      %v351 = vsel %vm327, %v349, %v350
      %v360 = vadd.f32 %v283, %v330
      %v361 = vadd.f32 %v284, %v333
      %v362 = vadd.f32 %v285, %v336
      %v363 = vadd.f32 %v286, %v339
      %v364 = vadd.f32 %v287, %v342
      %v365 = vadd.f32 %v288, %v345
      %v366 = vadd.f32 %v289, %v348
      %v367 = vadd.f32 %v290, %v351
      %v368 = vlaneseq
      %v369 = vshrl.u32 %v368, 7
      %v370 = vsub.s32 0, %v369
      %v371 = vrot.slane %v192, %v370
      %v372 = vmul.f32 %v173, %v371
      %v373 = vmul.f32 %v175, %v371
      %v374 = vmul.f32 %v177, %v371
      %v375 = vmul.f32 %v179, %v371
      %v376 = vmul.f32 %v181, %v371
      %v377 = vmul.f32 %v183, %v371
      %v378 = vmul.f32 %v185, %v371
      %v379 = vmul.f32 %v187, %v371
      %v380 = vadd.f32 %v360, %v372
      %v381 = vadd.f32 %v361, %v373
      %v382 = vadd.f32 %v362, %v374
      %v383 = vadd.f32 %v363, %v375
      %v384 = vadd.f32 %v364, %v376
      %v385 = vadd.f32 %v365, %v377
      %v386 = vadd.f32 %v366, %v378
      %v387 = vadd.f32 %v367, %v379
      %v388 = vlaneseq
      %v389 = vshrl.u32 %v388, 7
      %v390 = vsub.s32 1, %v389
      %v391 = vrot.slane %v192, %v390
      %v392 = vmul.f32 %v173, %v391
      %v393 = vmul.f32 %v174, %v391
      %v394 = vmul.f32 %v175, %v391
      %v395 = vmul.f32 %v176, %v391
      %v396 = vmul.f32 %v177, %v391
      %v397 = vmul.f32 %v178, %v391
      %v398 = vmul.f32 %v179, %v391
      %v399 = vmul.f32 %v180, %v391
      %v400 = vmul.f32 %v181, %v391
      %v401 = vmul.f32 %v182, %v391
      %v402 = vmul.f32 %v183, %v391
      %v403 = vmul.f32 %v184, %v391
      %v404 = vmul.f32 %v185, %v391
      %v405 = vmul.f32 %v186, %v391
      %v406 = vmul.f32 %v187, %v391
      %v407 = vmul.f32 %v188, %v391
      %v424 = vrot.slane %v392, 1
      %v425 = vrot.slane %v393, 1
      %v426 = vsel %vm250, %v424, %v425
      %v427 = vrot.slane %v394, 1
      %v428 = vrot.slane %v395, 1
      %v429 = vsel %vm250, %v427, %v428
      %v430 = vrot.slane %v396, 1
      %v431 = vrot.slane %v397, 1
      %v432 = vsel %vm250, %v430, %v431
      %v433 = vrot.slane %v398, 1
      %v434 = vrot.slane %v399, 1
      %v435 = vsel %vm250, %v433, %v434
      %v436 = vrot.slane %v400, 1
      %v437 = vrot.slane %v401, 1
      %v438 = vsel %vm250, %v436, %v437
      %v439 = vrot.slane %v402, 1
      %v440 = vrot.slane %v403, 1
      %v441 = vsel %vm250, %v439, %v440
      %v442 = vrot.slane %v404, 1
      %v443 = vrot.slane %v405, 1
      %v444 = vsel %vm250, %v442, %v443
      %v445 = vrot.slane %v406, 1
      %v446 = vrot.slane %v407, 1
      %v447 = vsel %vm250, %v445, %v446
      %v456 = vadd.f32 %v380, %v426
      %v457 = vadd.f32 %v381, %v429
      %v458 = vadd.f32 %v382, %v432
      %v459 = vadd.f32 %v383, %v435
      %v460 = vadd.f32 %v384, %v438
      %v461 = vadd.f32 %v385, %v441
      %v462 = vadd.f32 %v386, %v444
      %v463 = vadd.f32 %v387, %v447
      %v464 = vlaneseq
      %v465 = vshrl.u32 %v464, 7
      %v466 = vsub.s32 2, %v465
      %v467 = vrot.slane %v192, %v466
      %v468 = vmul.f32 %v173, %v467
      %v469 = vmul.f32 %v174, %v467
      %v470 = vmul.f32 %v175, %v467
      %v471 = vmul.f32 %v176, %v467
      %v472 = vmul.f32 %v177, %v467
      %v473 = vmul.f32 %v178, %v467
      %v474 = vmul.f32 %v179, %v467
      %v475 = vmul.f32 %v180, %v467
      %v476 = vmul.f32 %v181, %v467
      %v477 = vmul.f32 %v182, %v467
      %v478 = vmul.f32 %v183, %v467
      %v479 = vmul.f32 %v184, %v467
      %v480 = vmul.f32 %v185, %v467
      %v481 = vmul.f32 %v186, %v467
      %v482 = vmul.f32 %v187, %v467
      %v483 = vmul.f32 %v188, %v467
      %v500 = vrot.slane %v468, 2
      %v501 = vrot.slane %v469, 2
      %v502 = vsel %vm327, %v500, %v501
      %v503 = vrot.slane %v470, 2
      %v504 = vrot.slane %v471, 2
      %v505 = vsel %vm327, %v503, %v504
      %v506 = vrot.slane %v472, 2
      %v507 = vrot.slane %v473, 2
      %v508 = vsel %vm327, %v506, %v507
      %v509 = vrot.slane %v474, 2
      %v510 = vrot.slane %v475, 2
      %v511 = vsel %vm327, %v509, %v510
      %v512 = vrot.slane %v476, 2
      %v513 = vrot.slane %v477, 2
      %v514 = vsel %vm327, %v512, %v513
      %v515 = vrot.slane %v478, 2
      %v516 = vrot.slane %v479, 2
      %v517 = vsel %vm327, %v515, %v516
      %v518 = vrot.slane %v480, 2
      %v519 = vrot.slane %v481, 2
      %v520 = vsel %vm327, %v518, %v519
      %v521 = vrot.slane %v482, 2
      %v522 = vrot.slane %v483, 2
      %v523 = vsel %vm327, %v521, %v522
      %v532 = vadd.f32 %v456, %v502
      %v533 = vadd.f32 %v457, %v505
      %v534 = vadd.f32 %v458, %v508
      %v535 = vadd.f32 %v459, %v511
      %v536 = vadd.f32 %v460, %v514
      %v537 = vadd.f32 %v461, %v517
      %v538 = vadd.f32 %v462, %v520
      %v539 = vadd.f32 %v463, %v523
      %v540 = vlaneseq
      %v541 = vshrl.u32 %v540, 7
      %v542 = vsub.s32 0, %v541
      %v543 = vrot.slane %v193, %v542
      %v544 = vmul.f32 %v175, %v543
      %v545 = vmul.f32 %v177, %v543
      %v546 = vmul.f32 %v179, %v543
      %v547 = vmul.f32 %v181, %v543
      %v548 = vmul.f32 %v183, %v543
      %v549 = vmul.f32 %v185, %v543
      %v550 = vmul.f32 %v187, %v543
      %v551 = vmul.f32 %v189, %v543
      %v552 = vadd.f32 %v532, %v544
      %v553 = vadd.f32 %v533, %v545
      %v554 = vadd.f32 %v534, %v546
      %v555 = vadd.f32 %v535, %v547
      %v556 = vadd.f32 %v536, %v548
      %v557 = vadd.f32 %v537, %v549
      %v558 = vadd.f32 %v538, %v550
      %v559 = vadd.f32 %v539, %v551
      %v560 = vlaneseq
      %v561 = vshrl.u32 %v560, 7
      %v562 = vsub.s32 1, %v561
      %v563 = vrot.slane %v193, %v562
      %v564 = vmul.f32 %v175, %v563
      %v565 = vmul.f32 %v176, %v563
      %v566 = vmul.f32 %v177, %v563
      %v567 = vmul.f32 %v178, %v563
      %v568 = vmul.f32 %v179, %v563
      %v569 = vmul.f32 %v180, %v563
      %v570 = vmul.f32 %v181, %v563
      %v571 = vmul.f32 %v182, %v563
      %v572 = vmul.f32 %v183, %v563
      %v573 = vmul.f32 %v184, %v563
      %v574 = vmul.f32 %v185, %v563
      %v575 = vmul.f32 %v186, %v563
      %v576 = vmul.f32 %v187, %v563
      %v577 = vmul.f32 %v188, %v563
      %v578 = vmul.f32 %v189, %v563
      %v579 = vmul.f32 %v190, %v563
      %v596 = vrot.slane %v564, 1
      %v597 = vrot.slane %v565, 1
      %v598 = vsel %vm250, %v596, %v597
      %v599 = vrot.slane %v566, 1
      %v600 = vrot.slane %v567, 1
      %v601 = vsel %vm250, %v599, %v600
      %v602 = vrot.slane %v568, 1
      %v603 = vrot.slane %v569, 1
      %v604 = vsel %vm250, %v602, %v603
      %v605 = vrot.slane %v570, 1
      %v606 = vrot.slane %v571, 1
      %v607 = vsel %vm250, %v605, %v606
      %v608 = vrot.slane %v572, 1
      %v609 = vrot.slane %v573, 1
      %v610 = vsel %vm250, %v608, %v609
      %v611 = vrot.slane %v574, 1
      %v612 = vrot.slane %v575, 1
      %v613 = vsel %vm250, %v611, %v612
      %v614 = vrot.slane %v576, 1
      %v615 = vrot.slane %v577, 1
      %v616 = vsel %vm250, %v614, %v615
      %v617 = vrot.slane %v578, 1
      %v618 = vrot.slane %v579, 1
      %v619 = vsel %vm250, %v617, %v618
      %v628 = vadd.f32 %v552, %v598
      %v629 = vadd.f32 %v553, %v601
      %v630 = vadd.f32 %v554, %v604
      %v631 = vadd.f32 %v555, %v607
      %v632 = vadd.f32 %v556, %v610
      %v633 = vadd.f32 %v557, %v613
      %v634 = vadd.f32 %v558, %v616
      %v635 = vadd.f32 %v559, %v619
      %v636 = vlaneseq
      %v637 = vshrl.u32 %v636, 7
      %v638 = vsub.s32 2, %v637
      %v639 = vrot.slane %v193, %v638
      %v640 = vmul.f32 %v175, %v639
      %v641 = vmul.f32 %v176, %v639
      %v642 = vmul.f32 %v177, %v639
      %v643 = vmul.f32 %v178, %v639
      %v644 = vmul.f32 %v179, %v639
      %v645 = vmul.f32 %v180, %v639
      %v646 = vmul.f32 %v181, %v639
      %v647 = vmul.f32 %v182, %v639
      %v648 = vmul.f32 %v183, %v639
      %v649 = vmul.f32 %v184, %v639
      %v650 = vmul.f32 %v185, %v639
      %v651 = vmul.f32 %v186, %v639
      %v652 = vmul.f32 %v187, %v639
      %v653 = vmul.f32 %v188, %v639
      %v654 = vmul.f32 %v189, %v639
      %v655 = vmul.f32 %v190, %v639
      %v672 = vrot.slane %v640, 2
      %v673 = vrot.slane %v641, 2
      %v674 = vsel %vm327, %v672, %v673
      %v675 = vrot.slane %v642, 2
      %v676 = vrot.slane %v643, 2
      %v677 = vsel %vm327, %v675, %v676
      %v678 = vrot.slane %v644, 2
      %v679 = vrot.slane %v645, 2
      %v680 = vsel %vm327, %v678, %v679
      %v681 = vrot.slane %v646, 2
      %v682 = vrot.slane %v647, 2
      %v683 = vsel %vm327, %v681, %v682
      %v684 = vrot.slane %v648, 2
      %v685 = vrot.slane %v649, 2
      %v686 = vsel %vm327, %v684, %v685
      %v687 = vrot.slane %v650, 2
      %v688 = vrot.slane %v651, 2
      %v689 = vsel %vm327, %v687, %v688
      %v690 = vrot.slane %v652, 2
      %v691 = vrot.slane %v653, 2
      %v692 = vsel %vm327, %v690, %v691
      %v693 = vrot.slane %v654, 2
      %v694 = vrot.slane %v655, 2
      %v695 = vsel %vm327, %v693, %v694
      %v704 = vadd.f32 %v628, %v674
      %v705 = vadd.f32 %v629, %v677
      %v706 = vadd.f32 %v630, %v680
      %v707 = vadd.f32 %v631, %v683
      %v708 = vadd.f32 %v632, %v686
      %v709 = vadd.f32 %v633, %v689
      %v710 = vadd.f32 %v634, %v692
      %v711 = vadd.f32 %v635, %v695
      %v712 = vld [vmem:[%s2] sm:$0x1]
      %v714 = vlaneseq
      %v715 = vshrl.u32 %v714, 7
      %v716 = vsub.s32 0, %v715
      %v717 = vrot.slane %v712, %v716
      %v719 = vadd.f32 %v704, %v717
      %v720 = vadd.f32 %v705, %v717
      %v721 = vadd.f32 %v706, %v717
      %v722 = vadd.f32 %v707, %v717
      %v723 = vadd.f32 %v708, %v717
      %v724 = vadd.f32 %v709, %v717
      %v725 = vadd.f32 %v710, %v717
      %v726 = vadd.f32 %v711, %v717
      %v727 = vxor.u32 %v719, 2147483648
      %v728 = vxor.u32 %v720, 2147483648
      %v729 = vxor.u32 %v721, 2147483648
      %v730 = vxor.u32 %v722, 2147483648
      %v731 = vxor.u32 %v723, 2147483648
      %v732 = vxor.u32 %v724, 2147483648
      %v733 = vxor.u32 %v725, 2147483648
      %v734 = vxor.u32 %v726, 2147483648
      %v735 = vmul.f32 %v727, 1.442695
      %v736 = vpow.pop %v735
      %v737 = vmul.f32 %v728, 1.442695
      %v738 = vpow.pop %v737
      %v739 = vmul.f32 %v729, 1.442695
      %v740 = vpow.pop %v739
      %v741 = vmul.f32 %v730, 1.442695
      %v742 = vpow.pop %v741
      %v743 = vmul.f32 %v731, 1.442695
      %v744 = vpow.pop %v743
      %v745 = vmul.f32 %v732, 1.442695
      %v746 = vpow.pop %v745
      %v747 = vmul.f32 %v733, 1.442695
      %v748 = vpow.pop %v747
      %v749 = vmul.f32 %v734, 1.442695
      %v750 = vpow.pop %v749
      %v751 = vadd.f32 %v736, 1.0
      %v752 = vadd.f32 %v738, 1.0
      %v753 = vadd.f32 %v740, 1.0
      %v754 = vadd.f32 %v742, 1.0
      %v755 = vadd.f32 %v744, 1.0
      %v756 = vadd.f32 %v746, 1.0
      %v757 = vadd.f32 %v748, 1.0
      %v758 = vadd.f32 %v750, 1.0
      %v759 = vrcp.pop %v751
      %v760 = vmul.f32 1.0, %v759
      %v761 = vrcp.pop %v752
      %v762 = vmul.f32 1.0, %v761
      %v763 = vrcp.pop %v753
      %v764 = vmul.f32 1.0, %v763
      %v765 = vrcp.pop %v754
      %v766 = vmul.f32 1.0, %v765
      %v767 = vrcp.pop %v755
      %v768 = vmul.f32 1.0, %v767
      %v769 = vrcp.pop %v756
      %v770 = vmul.f32 1.0, %v769
      %v771 = vrcp.pop %v757
      %v772 = vmul.f32 1.0, %v771
      %v773 = vrcp.pop %v758
      %v774 = vmul.f32 1.0, %v773
      %v775 = vmul.f32 %v719, %v760
      %v776 = vmul.f32 %v720, %v762
      %v777 = vmul.f32 %v721, %v764
      %v778 = vmul.f32 %v722, %v766
      %v779 = vmul.f32 %v723, %v768
      %v780 = vmul.f32 %v724, %v770
      %v781 = vmul.f32 %v725, %v772
      %v782 = vmul.f32 %v726, %v774
      %vm783 = vcmask 523264
      %784 = vst.msk [vmem:[%s170] sm:$0xff] %vm783, %v775
      %785 = vst.msk [vmem:[%s170 + $0x8] sm:$0xff] %vm783, %v776
      %786 = vst.msk [vmem:[%s170 + $0x10] sm:$0xff] %vm783, %v777
      %787 = vst.msk [vmem:[%s170 + $0x18] sm:$0xff] %vm783, %v778
      %788 = vst.msk [vmem:[%s170 + $0x20] sm:$0xff] %vm783, %v779
      %789 = vst.msk [vmem:[%s170 + $0x28] sm:$0xff] %vm783, %v780
      %790 = vst.msk [vmem:[%s170 + $0x30] sm:$0xff] %vm783, %v781
      %791 = vst.msk [vmem:[%s170 + $0x38] sm:$0xff] %vm783, %v782
      %p792 = scmp.lt.s32.totalorder %s14, 1
      %s793 = scalar_select %p792, %s14, 1
      %s794 = smul.addr %s793, 8
      %s795 = smul.addr %s794, 8
      %s796 = scalar_lea.vmem %s3, %s795
      // Predicated region
      $region33: #{_lambda_.6} parent=31 // pred_check
        %p797 = pneg %p100
      $region34: #{_lambda_.6} parent=31 // pred_check_branch
        %799 = sbr.rel (%p797) target = $region36
      $region35: #{_lambda_.6} parent=31 // pred_region
        _
      $region36: #{_lambda_.6} parent=31 // pred_fallthru
        _
    $region32: #{_lambda_.6} parent=5 // pred_fallthru
      _
    %p800 = scmp.le.s32.totalorder 2, %s9
    // Predicated region
    $region37: #{_lambda_.6} parent=5 // pred_check
      %p801 = pneg %p800
    $region38: #{_lambda_.6} parent=5 // pred_check_branch
      %803 = sbr.rel (%p801) target = $region40
    $region39: #{_lambda_.6} parent=5 // pred_region
      %s804 = ssub.s32 %s9, 2
      // Predicated region
      $region41: #{_lambda_.6} parent=39 // pred_check
        %p805 = pneg %p106
      $region42: #{_lambda_.6} parent=39 // pred_check_branch
        %807 = sbr.rel (%p805) target = $region44
      $region43: #{_lambda_.6} parent=39 // pred_region
        %p808 = scmp.lt.s32.totalorder %s15, 1
        %s809 = scalar_select %p808, %s15, 1
        %s810 = smul.addr %s809, 8
        %s811 = smul.addr %s810, 8
        %s812 = scalar_lea.vmem %s3, %s811
      $region44: #{_lambda_.6} parent=39 // pred_fallthru
        _
    $region40: #{_lambda_.6} parent=5 // pred_fallthru
      _
  $region6: #{_lambda_.6} parent=0 // loop_footer
    %s13 = sadd.s32 1, %s9
  $region7: #{_lambda_.6} parent=0 // loop_footer_branch
    %8 = sbr.rel target = $region3
  $region8: #{_lambda_.6} parent=0 // loop_exit
    _

// kernel: _lambda_.7
$region0: #{_lambda_.7}
  #allocation0 [shape = 'u32[]', space=smem, size = 0x4, offset = 0x4, fixed_abs, tag = 'smem constant byte address 0x4 - core index']
  #allocation1 [shape = 'u32[144,128]{1,0:T(1,128)}', space=vmem, size = 0x12000, scoped, tag = 'internal scratch']
  %s0 = inlined_call_operand.vmem [shape: bf16[4,128,64], index: 0, kind: input, shape index: {}]
  %s1 = inlined_call_operand.vmem [shape: bf16[4,64,128], index: 1, kind: input, shape index: {}]
  %s2 = inlined_call_operand.vmem [shape: f32[4,128,128], index: 2, kind: output, shape index: {}]
  %s3 = sld [smem:[#allocation0]]
  $region41: #{_lambda_.7} parent=0
    _
  %s5 = ssub.s32 1, %s3
  %s6 = scalar_select 0, %s5, %s3
  loop: start=0, step=1, limit=6
  $region2: #{_lambda_.7} parent=0 // loop_pre_header
    _
  $region3: #{_lambda_.7} parent=0 // loop_header
    %s8 = sphi 0, %s12
    %p9 = scmp.ge.s32.totalorder %s8, 6
    %s15 = sphi 0, %s27
    %s16 = sphi 0, %s23
    %s17 = sphi 0, %s15
    %s18 = sphi 0, %s16
    %s19 = sphi 0, %s17
    %s20 = sphi 0, %s18
    %s32 = sphi 0, %s34
    %s35 = sphi 0, %s32
    %s36 = sphi 0, %s35
    %s52 = sphi 0, %s36
    %s58 = sphi 0, %s60
    %s61 = sphi 0, %s58
    %s62 = sphi 0, %s61
    %s78 = sphi 0, %s62
    %s86 = sphi 0, %s88
    %s89 = sphi 0, %s86
    %s90 = sphi 0, %s89
    %s106 = sphi 0, %s90
  $region4: #{_lambda_.7} parent=0 // loop_header_branch
    %11 = sbr.rel (%p9) target = $region8
  $region5: #{_lambda_.7} parent=0 // loop_body
    %s13 = ssub.s32 %s8, 1
    %s14 = ssub.s32 %s8, 2
    %s21 = sadd.s32 1, %s16
    %p22 = scmp.ge.s32.totalorder %s21, 1
    %s23 = scalar_select %p22, 0, %s21
    %s24 = sadd.s32 1, %s15
    %s25 = scalar_select %p22, %s24, %s15
    %p26 = scmp.ge.s32.totalorder %s25, 4
    %s27 = scalar_select %p26, 0, %s25
    %s28 = ssub.s32 %s15, %s27
    %s29 = ssub.s32 %s16, %s23
    %s30 = sor.u32 %s28, %s29
    %p31 = scmp.eq.s32.totalorder %s30, 0
    %s33 = sadd.s32 %s32, 1
    %s34 = scalar_select %p31, %s32, %s33
    %p37 = pneg %p31
    %p38 = scmp.eq.s32.totalorder %s8, 3
    %p39 = por %p37, %p38
    %p40 = scmp.ne.s32.totalorder %s32, %s35
    %p41 = scmp.eq.s32.totalorder %s8, 0
    %p42 = por %p40, %p41
    %p43 = scmp.ne.s32.totalorder %s32, %s35
    %p44 = scmp.eq.s32.totalorder %s13, 3
    %p45 = por %p43, %p44
    %p46 = scmp.ne.s32.totalorder %s35, %s36
    %p47 = scmp.eq.s32.totalorder %s13, 0
    %p48 = por %p46, %p47
    %p49 = scmp.ne.s32.totalorder %s35, %s36
    %p50 = scmp.eq.s32.totalorder %s14, 3
    %p51 = por %p49, %p50
    %p53 = scmp.ne.s32.totalorder %s36, %s52
    %p54 = scmp.eq.s32.totalorder %s14, 0
    %p55 = por %p53, %p54
    %s56 = ssub.s32 %s15, %s27
    %p57 = scmp.eq.s32.totalorder %s56, 0
    %s59 = sadd.s32 %s58, 1
    %s60 = scalar_select %p57, %s58, %s59
    %p63 = pneg %p57
    %p64 = scmp.eq.s32.totalorder %s8, 3
    %p65 = por %p63, %p64
    %p66 = scmp.ne.s32.totalorder %s58, %s61
    %p67 = scmp.eq.s32.totalorder %s8, 0
    %p68 = por %p66, %p67
    %p69 = scmp.ne.s32.totalorder %s58, %s61
    %p70 = scmp.eq.s32.totalorder %s13, 3
    %p71 = por %p69, %p70
    %p72 = scmp.ne.s32.totalorder %s61, %s62
    %p73 = scmp.eq.s32.totalorder %s13, 0
    %p74 = por %p72, %p73
    %p75 = scmp.ne.s32.totalorder %s61, %s62
    %p76 = scmp.eq.s32.totalorder %s14, 3
    %p77 = por %p75, %p76
    %p79 = scmp.ne.s32.totalorder %s62, %s78
    %p80 = scmp.eq.s32.totalorder %s14, 0
    %p81 = por %p79, %p80
    %s82 = ssub.s32 %s15, %s27
    %s83 = ssub.s32 %s16, %s23
    %s84 = sor.u32 %s82, %s83
    %p85 = scmp.eq.s32.totalorder %s84, 0
    %s87 = sadd.s32 %s86, 1
    %s88 = scalar_select %p85, %s86, %s87
    %p91 = pneg %p85
    %p92 = scmp.eq.s32.totalorder %s8, 3
    %p93 = por %p91, %p92
    %p94 = scmp.ne.s32.totalorder %s86, %s89
    %p95 = scmp.eq.s32.totalorder %s8, 0
    %p96 = por %p94, %p95
    %p97 = scmp.ne.s32.totalorder %s86, %s89
    %p98 = scmp.eq.s32.totalorder %s13, 3
    %p99 = por %p97, %p98
    %p100 = scmp.ne.s32.totalorder %s89, %s90
    %p101 = scmp.eq.s32.totalorder %s13, 0
    %p102 = por %p100, %p101
    %p103 = scmp.ne.s32.totalorder %s89, %s90
    %p104 = scmp.eq.s32.totalorder %s14, 3
    %p105 = por %p103, %p104
    %p107 = scmp.ne.s32.totalorder %s90, %s106
    %p108 = scmp.eq.s32.totalorder %s14, 0
    %p109 = por %p107, %p108
    %p110 = scmp.le.s32.totalorder 1, %s8
    %p111 = scmp.lt.s32.totalorder %s8, 5
    %p112 = pnand %p110, %p111
    %p113 = pneg %p112
    // Predicated region
    $region9: #{_lambda_.7} parent=5 // pred_check
      _
    $region10: #{_lambda_.7} parent=5 // pred_check_branch
      %115 = sbr.rel (%p112) target = $region12
    $region11: #{_lambda_.7} parent=5 // pred_region
      %s116 = ssub.s32 %s8, 1
    $region12: #{_lambda_.7} parent=5 // pred_fallthru
      _
    %p117 = scmp.lt.s32.totalorder %s8, 4
    // Predicated region
    $region13: #{_lambda_.7} parent=5 // pred_check
      %p118 = pneg %p117
    $region14: #{_lambda_.7} parent=5 // pred_check_branch
      %120 = sbr.rel (%p118) target = $region16
    $region15: #{_lambda_.7} parent=5 // pred_region
      // Predicated region
      $region17: #{_lambda_.7} parent=15 // pred_check
        %p121 = pneg %p42
      $region18: #{_lambda_.7} parent=15 // pred_check_branch
        %123 = sbr.rel (%p121) target = $region20
      $region19: #{_lambda_.7} parent=15 // pred_region
        %s124 = smul.u32 16, %s16
        %p125 = scmp.lt.s32.totalorder %s15, 3
        %s126 = scalar_select %p125, %s15, 3
        %p127 = scmp.lt.s32.totalorder %s124, 15
        %s128 = scalar_select %p127, %s124, 15
        %s129 = smul.addr %s126, 16
        %s130 = sadd.s32 %s128, %s129
        %s131 = smul.addr %s130, 4
        %s132 = scalar_lea.vmem %s0, %s131
        %s133 = smul.u32 16, %s16
      $region20: #{_lambda_.7} parent=15 // pred_fallthru
        _
      // Predicated region
      $region21: #{_lambda_.7} parent=15 // pred_check
        %p134 = pneg %p68
      $region22: #{_lambda_.7} parent=15 // pred_check_branch
        %136 = sbr.rel (%p134) target = $region24
      $region23: #{_lambda_.7} parent=15 // pred_region
        %p137 = scmp.lt.s32.totalorder %s15, 3
        %s138 = scalar_select %p137, %s15, 3
        %s139 = smul.addr %s138, 8
        %s140 = smul.addr %s139, 4
        %s141 = scalar_lea.vmem %s1, %s140
      $region24: #{_lambda_.7} parent=15 // pred_fallthru
        _
    $region16: #{_lambda_.7} parent=5 // pred_fallthru
      _
    %p142 = scmp.le.s32.totalorder 1, %s8
    %p143 = scmp.lt.s32.totalorder %s8, 5
    %p144 = pnand %p142, %p143
    %p145 = pneg %p144
    // Predicated region
    $region25: #{_lambda_.7} parent=5 // pred_check
      _
    $region26: #{_lambda_.7} parent=5 // pred_check_branch
      %147 = sbr.rel (%p144) target = $region28
    $region27: #{_lambda_.7} parent=5 // pred_region
      %s148 = ssub.s32 %s8, 1
      %s149 = smul.u32 16, %s18
      %p150 = scmp.lt.s32.totalorder %s17, 3
      %s151 = scalar_select %p150, %s17, 3
      %p152 = scmp.lt.s32.totalorder %s149, 15
      %s153 = scalar_select %p152, %s149, 15
      %s154 = smul.addr %s151, 16
      %s155 = sadd.s32 %s153, %s154
      %s156 = smul.addr %s155, 4
      %s157 = scalar_lea.vmem %s0, %s156
      %p158 = pneg %p48
      %p159 = pneg %p45
      %p160 = scmp.lt.s32.totalorder %s17, 3
      %s161 = scalar_select %p160, %s17, 3
      %s162 = smul.addr %s161, 8
      %s163 = smul.addr %s162, 4
      %s164 = scalar_lea.vmem %s1, %s163
      %p165 = pneg %p74
      %p166 = pneg %p71
      %p167 = pneg %p102
      %p168 = pneg %p99
      %s169 = smul.u32 16, %s18
      %p170 = scmp.lt.s32.totalorder %s17, 3
      %s171 = scalar_select %p170, %s17, 3
      %p172 = scmp.lt.s32.totalorder %s169, 15
      %s173 = scalar_select %p172, %s169, 15
      %s174 = smul.addr %s171, 16
      %s175 = sadd.s32 %s173, %s174
      %s176 = smul.addr %s175, 8
      %s177 = scalar_lea.vmem %s2, %s176
      %s178 = smul.u32 16, %s18
      %p179 = scmp.lt.s32.totalorder %s17, 3
      %s180 = scalar_select %p179, %s17, 3
      %p181 = scmp.lt.s32.totalorder %s178, 15
      %s182 = scalar_select %p181, %s178, 15
      %s183 = smul.addr %s180, 16
      %s184 = sadd.s32 %s182, %s183
      %s185 = smul.addr %s184, 4
      %s186 = scalar_lea.vmem %s0, %s185
      %s187 = smul.u32 16, %s18
      %p188 = scmp.lt.s32.totalorder %s17, 3
      %s189 = scalar_select %p188, %s17, 3
      %s190 = smul.addr %s189, 8
      %s191 = smul.addr %s190, 4
      %s192 = scalar_lea.vmem %s1, %s191
      %s193 = smul.u32 16, %s18
      %p194 = scmp.lt.s32.totalorder %s17, 3
      %s195 = scalar_select %p194, %s17, 3
      %p196 = scmp.lt.s32.totalorder %s193, 15
      %s197 = scalar_select %p196, %s193, 15
      %s198 = smul.addr %s195, 16
      %s199 = sadd.s32 %s197, %s198
      %s200 = smul.addr %s199, 8
      %s201 = scalar_lea.vmem %s2, %s200
      %s202 = smul.u32 16, %s18
      %v204 = vld [vmem:[%s186] sm:$0xf]
      %v205 = vld [vmem:[%s186 + $0x4] sm:$0xf]
      %v206 = vld [vmem:[%s186 + $0x8] sm:$0xf]
      %v207 = vld [vmem:[%s186 + $0xc] sm:$0xf]
      %v208 = vld [vmem:[%s186 + $0x10] sm:$0xf]
      %v209 = vld [vmem:[%s186 + $0x14] sm:$0xf]
      %v210 = vld [vmem:[%s186 + $0x18] sm:$0xf]
      %v211 = vld [vmem:[%s186 + $0x1c] sm:$0xf]
      %v212 = vld [vmem:[%s186 + $0x20] sm:$0xf]
      %v213 = vld [vmem:[%s186 + $0x24] sm:$0xf]
      %v214 = vld [vmem:[%s186 + $0x28] sm:$0xf]
      %v215 = vld [vmem:[%s186 + $0x2c] sm:$0xf]
      %v216 = vld [vmem:[%s186 + $0x30] sm:$0xf]
      %v217 = vld [vmem:[%s186 + $0x34] sm:$0xf]
      %v218 = vld [vmem:[%s186 + $0x38] sm:$0xf]
      %v219 = vld [vmem:[%s186 + $0x3c] sm:$0xf]
      %v220 = vld [vmem:[%s192] sm:$0xf]
      %v221 = vld [vmem:[%s192 + $0x4] sm:$0xf]
      %v222 = vld [vmem:[%s192 + $0x8] sm:$0xf]
      %v223 = vld [vmem:[%s192 + $0xc] sm:$0xf]
      %v224 = vld [vmem:[%s192 + $0x10] sm:$0xf]
      %v225 = vld [vmem:[%s192 + $0x14] sm:$0xf]
      %v226 = vld [vmem:[%s192 + $0x18] sm:$0xf]
      %v227 = vld [vmem:[%s192 + $0x1c] sm:$0xf]
      %v244 = vunpack.c.l.b16 %v204
      %v245 = vunpack.c.l.b16 %v205
      %v246 = vunpack.c.l.b16 %v206
      %v247 = vunpack.c.l.b16 %v207
      %v248 = vunpack.c.l.b16 %v208
      %v249 = vunpack.c.l.b16 %v209
      %v250 = vunpack.c.l.b16 %v210
      %v251 = vunpack.c.l.b16 %v211
      %v252 = vunpack.c.l.b16 %v212
      %v253 = vunpack.c.l.b16 %v213
      %v254 = vunpack.c.l.b16 %v214
      %v255 = vunpack.c.l.b16 %v215
      %v256 = vunpack.c.l.b16 %v216
      %v257 = vunpack.c.l.b16 %v217
      %v258 = vunpack.c.l.b16 %v218
      %v259 = vunpack.c.l.b16 %v219
      %v260 = vpack.c.b16 %v245, %v244
      %v261 = vpack.c.b16 %v247, %v246
      %v262 = vpack.c.b16 %v249, %v248
      %v263 = vpack.c.b16 %v251, %v250
      %v264 = vpack.c.b16 %v253, %v252
      %v265 = vpack.c.b16 %v255, %v254
      %v266 = vpack.c.b16 %v257, %v256
      %v267 = vpack.c.b16 %v259, %v258
      %v276 = vunpack.c.l.b16 %v220
      %v277 = vunpack.c.l.b16 %v221
      %v278 = vunpack.c.l.b16 %v222
      %v279 = vunpack.c.l.b16 %v223
      %v280 = vunpack.c.l.b16 %v224
      %v281 = vunpack.c.l.b16 %v225
      %v282 = vunpack.c.l.b16 %v226
      %v283 = vunpack.c.l.b16 %v227
      %v284 = vpack.c.b16 %v277, %v276
      %v285 = vpack.c.b16 %v279, %v278
      %v286 = vpack.c.b16 %v281, %v280
      %v287 = vpack.c.b16 %v283, %v282
      %vm292 = vcmask 523264
      %v294 = vsel %vm292, %v260, 0
      %v297 = vsel %vm292, %v261, 0
      %v300 = vsel %vm292, %v262, 0
      %v303 = vsel %vm292, %v263, 0
      %v306 = vsel %vm292, %v264, 0
      %v309 = vsel %vm292, %v265, 0
      %v312 = vsel %vm292, %v266, 0
      %v315 = vsel %vm292, %v267, 0
      %317 = vmatprep.subr.bf16.mxu0 0
      %318 = vmatpush1.bf16.msra.mxu0 %v284
      %319 = vmatprep.subr.bf16.mxu0 0
      %320 = vmatpush1.bf16.msra.mxu0 %v285
      %321 = vmatprep.subr.bf16.mxu0 0
      %322 = vmatpush1.bf16.msra.mxu0 %v286
      %323 = vmatprep.subr.bf16.mxu0 0
      %324 = vmatpush1.bf16.msra.mxu0 %v287
      %325 = vmatprep.subr.bf16.mxu0 0
      %326 = vmatpush1.bf16.msra.mxu0 0
      %327 = vmatprep.subr.bf16.mxu0 0
      %328 = vmatpush1.bf16.msra.mxu0 0
      %329 = vmatprep.subr.bf16.mxu0 0
      %330 = vmatpush1.bf16.msra.mxu0 0
      %331 = vmatprep.subr.bf16.mxu0 0
      %332 = vmatpush1.bf16.msra.mxu0 0
      %333 = vmatprep.subr.bf16.mxu0 0
      %334 = vmatpush1.bf16.msra.mxu0 0
      %335 = vmatprep.subr.bf16.mxu0 0
      %336 = vmatpush1.bf16.msra.mxu0 0
      %337 = vmatprep.subr.bf16.mxu0 0
      %338 = vmatpush1.bf16.msra.mxu0 0
      %339 = vmatprep.subr.bf16.mxu0 0
      %340 = vmatpush1.bf16.msra.mxu0 0
      %341 = vmatprep.subr.bf16.mxu0 0
      %342 = vmatpush1.bf16.msra.mxu0 0
      %343 = vmatprep.subr.bf16.mxu0 0
      %344 = vmatpush1.bf16.msra.mxu0 0
      %345 = vmatprep.subr.bf16.mxu0 0
      %346 = vmatpush1.bf16.msra.mxu0 0
      %347 = vmatprep.subr.bf16.mxu0 0
      %348 = vmatpush1.bf16.msra.mxu0 0
      %349 = vmatprep.mubr.bf16.mxu0 0
      %350 = vmatmul.mubr.bf16.gmra.mrb[0].mxu0 %v294
      %v351 = vpop.f32.mrb[0].mxu0
      %v352 = vadd.f32 0.0, %v351
      %v353 = vpop.f32.mrb[0].mxu0
      %v354 = vpop.f32.mrb[0].mxu0
      %v355 = vadd.f32 0.0, %v354
      %v356 = vpop.f32.mrb[0].mxu0
      %357 = vmatprep.mubr.bf16.mxu0 0
      %358 = vmatmul.mubr.bf16.gmra.mrb[0].mxu0 %v297
      %v359 = vpop.f32.mrb[0].mxu0
      %v360 = vadd.f32 0.0, %v359
      %v361 = vpop.f32.mrb[0].mxu0
      %v362 = vpop.f32.mrb[0].mxu0
      %v363 = vadd.f32 0.0, %v362
      %v364 = vpop.f32.mrb[0].mxu0
      %365 = vmatprep.mubr.bf16.mxu0 0
      %366 = vmatmul.mubr.bf16.gmra.mrb[0].mxu0 %v300
      %v367 = vpop.f32.mrb[0].mxu0
      %v368 = vadd.f32 0.0, %v367
      %v369 = vpop.f32.mrb[0].mxu0
      %v370 = vpop.f32.mrb[0].mxu0
      %v371 = vadd.f32 0.0, %v370
      %v372 = vpop.f32.mrb[0].mxu0
      %373 = vmatprep.mubr.bf16.mxu0 0
      %374 = vmatmul.mubr.bf16.gmra.mrb[0].mxu0 %v303
      %v375 = vpop.f32.mrb[0].mxu0
      %v376 = vadd.f32 0.0, %v375
      %v377 = vpop.f32.mrb[0].mxu0
      %v378 = vpop.f32.mrb[0].mxu0
      %v379 = vadd.f32 0.0, %v378
      %v380 = vpop.f32.mrb[0].mxu0
      %381 = vmatprep.mubr.bf16.mxu0 0
      %382 = vmatmul.mubr.bf16.gmra.mrb[0].mxu0 %v306
      %v383 = vpop.f32.mrb[0].mxu0
      %v384 = vadd.f32 0.0, %v383
      %v385 = vpop.f32.mrb[0].mxu0
      %v386 = vpop.f32.mrb[0].mxu0
      %v387 = vadd.f32 0.0, %v386
      %v388 = vpop.f32.mrb[0].mxu0
      %389 = vmatprep.mubr.bf16.mxu0 0
      %390 = vmatmul.mubr.bf16.gmra.mrb[0].mxu0 %v309
      %v391 = vpop.f32.mrb[0].mxu0
      %v392 = vadd.f32 0.0, %v391
      %v393 = vpop.f32.mrb[0].mxu0
      %v394 = vpop.f32.mrb[0].mxu0
      %v395 = vadd.f32 0.0, %v394
      %v396 = vpop.f32.mrb[0].mxu0
      %397 = vmatprep.mubr.bf16.mxu0 0
      %398 = vmatmul.mubr.bf16.gmra.mrb[0].mxu0 %v312
      %v399 = vpop.f32.mrb[0].mxu0
      %v400 = vadd.f32 0.0, %v399
      %v401 = vpop.f32.mrb[0].mxu0
      %v402 = vpop.f32.mrb[0].mxu0
      %v403 = vadd.f32 0.0, %v402
      %v404 = vpop.f32.mrb[0].mxu0
      %405 = vmatprep.mubr.bf16.mxu0 0
      %406 = vmatmul.mubr.bf16.gmra.mrb[0].mxu0 %v315
      %v407 = vpop.f32.mrb[0].mxu0
      %v408 = vadd.f32 0.0, %v407
      %v409 = vpop.f32.mrb[0].mxu0
      %v410 = vpop.f32.mrb[0].mxu0
      %v411 = vadd.f32 0.0, %v410
      %v412 = vpop.f32.mrb[0].mxu0
      %413 = vdwg.mxu0
      %414 = vst [vmem:[%s201] sm:$0xff] %v352
      %415 = vst [vmem:[%s201 + $0x8] sm:$0xff] %v355
      %416 = vst [vmem:[%s201 + $0x10] sm:$0xff] %v360
      %417 = vst [vmem:[%s201 + $0x18] sm:$0xff] %v363
      %418 = vst [vmem:[%s201 + $0x20] sm:$0xff] %v368
      %419 = vst [vmem:[%s201 + $0x28] sm:$0xff] %v371
      %420 = vst [vmem:[%s201 + $0x30] sm:$0xff] %v376
      %421 = vst [vmem:[%s201 + $0x38] sm:$0xff] %v379
      %422 = vst [vmem:[%s201 + $0x40] sm:$0xff] %v384
      %423 = vst [vmem:[%s201 + $0x48] sm:$0xff] %v387
      %424 = vst [vmem:[%s201 + $0x50] sm:$0xff] %v392
      %425 = vst [vmem:[%s201 + $0x58] sm:$0xff] %v395
      %426 = vst [vmem:[%s201 + $0x60] sm:$0xff] %v400
      %427 = vst [vmem:[%s201 + $0x68] sm:$0xff] %v403
      %428 = vst [vmem:[%s201 + $0x70] sm:$0xff] %v408
      %429 = vst [vmem:[%s201 + $0x78] sm:$0xff] %v411
      %s430 = smul.u32 16, %s18
      %p431 = scmp.lt.s32.totalorder %s17, 3
      %s432 = scalar_select %p431, %s17, 3
      %p433 = scmp.lt.s32.totalorder %s430, 15
      %s434 = scalar_select %p433, %s430, 15
      %s435 = smul.addr %s432, 16
      %s436 = sadd.s32 %s434, %s435
      %s437 = smul.addr %s436, 8
      %s438 = scalar_lea.vmem %s2, %s437
      // Predicated region
      $region29: #{_lambda_.7} parent=27 // pred_check
        %p439 = pneg %p99
      $region30: #{_lambda_.7} parent=27 // pred_check_branch
        %441 = sbr.rel (%p439) target = $region32
      $region31: #{_lambda_.7} parent=27 // pred_region
        %s442 = smul.u32 16, %s18
      $region32: #{_lambda_.7} parent=27 // pred_fallthru
        _
    $region28: #{_lambda_.7} parent=5 // pred_fallthru
      _
    %p443 = scmp.le.s32.totalorder 2, %s8
    // Predicated region
    $region33: #{_lambda_.7} parent=5 // pred_check
      %p444 = pneg %p443
    $region34: #{_lambda_.7} parent=5 // pred_check_branch
      %446 = sbr.rel (%p444) target = $region36
    $region35: #{_lambda_.7} parent=5 // pred_region
      %s447 = ssub.s32 %s8, 2
      // Predicated region
      $region37: #{_lambda_.7} parent=35 // pred_check
        %p448 = pneg %p105
      $region38: #{_lambda_.7} parent=35 // pred_check_branch
        %450 = sbr.rel (%p448) target = $region40
      $region39: #{_lambda_.7} parent=35 // pred_region
        %s451 = smul.u32 16, %s20
        %p452 = scmp.lt.s32.totalorder %s19, 3
        %s453 = scalar_select %p452, %s19, 3
        %p454 = scmp.lt.s32.totalorder %s451, 15
        %s455 = scalar_select %p454, %s451, 15
        %s456 = smul.addr %s453, 16
        %s457 = sadd.s32 %s455, %s456
        %s458 = smul.addr %s457, 8
        %s459 = scalar_lea.vmem %s2, %s458
      $region40: #{_lambda_.7} parent=35 // pred_fallthru
        _
    $region36: #{_lambda_.7} parent=5 // pred_fallthru
      _
  $region6: #{_lambda_.7} parent=0 // loop_footer
    %s12 = sadd.s32 1, %s8
  $region7: #{_lambda_.7} parent=0 // loop_footer_branch
    %7 = sbr.rel target = $region3
  $region8: #{_lambda_.7} parent=0 // loop_exit
    _

// kernel: mul.4
$region0: #{mul.4}
  %s0 = inlined_call_operand.vmem [shape: f32[4,4,64], index: 0, kind: input, shape index: {}]
  %s1 = inlined_call_operand.vmem [shape: f32[4,256], index: 1, kind: output, shape index: {}]
  $region1: #{mul.4} parent=0
    #allocation0 [shape = 'u8[8192]{0}', space=vmem, size = 0x2000, scoped, tag = 'scoped mem for output reshape']
    #allocation1 [shape = 'u8[16384]{0}', space=vmem, size = 0x4000, scoped, tag = 'scoped mem for input reshape']
    %s3 = sshllo.u32 0, 4
    %s4 = smul.addr 4, 3
    %s5 = scalar_lea.vmem %s0, %s4
    %v6 = vld [vmem:[%s5] sm:%s3]
    %s7 = scalar_lea.vmem [#allocation1], 24
    %8 = vst [vmem:[%s7] sm:%s3] %v6
    %s9 = smul.addr 4, 2
    %s10 = scalar_lea.vmem %s0, %s9
    %v11 = vld [vmem:[%s10] sm:%s3]
    %s12 = scalar_lea.vmem [#allocation1], 16
    %13 = vst [vmem:[%s12] sm:%s3] %v11
    %s14 = scalar_lea.vmem %s0, 4
    %v15 = vld [vmem:[%s14] sm:%s3]
    %s16 = scalar_lea.vmem [#allocation1], 8
    %17 = vst [vmem:[%s16] sm:%s3] %v15
    %v18 = vld [vmem:[%s0] sm:%s3]
    %19 = vst [vmem:[#allocation1] sm:%s3] %v18
    %s20 = smov 3
    %v21 = vld [vmem:[#allocation1] ss:$2 sm:%s20]
    %vm22 = vcmask 523264
    %23 = vst.msk [vmem:[#allocation0] ss:$8 sm:$0x3] %vm22, %v21
    %s24 = scalar_lea.vmem [#allocation1], 8
    %s25 = smov 3
    %v26 = vld [vmem:[%s24] ss:$2 sm:%s25]
    %vm27 = vcmask 523264
    %s28 = scalar_lea.vmem [#allocation0], 1
    %29 = vst.msk [vmem:[%s28] ss:$8 sm:$0x3] %vm27, %v26
    %s30 = scalar_lea.vmem [#allocation1], 16
    %s31 = smov 3
    %v32 = vld [vmem:[%s30] ss:$2 sm:%s31]
    %vm33 = vcmask 523264
    %s34 = scalar_lea.vmem [#allocation0], 2
    %35 = vst.msk [vmem:[%s34] ss:$8 sm:$0x3] %vm33, %v32
    %s36 = scalar_lea.vmem [#allocation1], 24
    %s37 = smov 3
    %v38 = vld [vmem:[%s36] ss:$2 sm:%s37]
    %vm39 = vcmask 523264
    %s40 = scalar_lea.vmem [#allocation0], 3
    %41 = vst.msk [vmem:[%s40] ss:$8 sm:$0x3] %vm39, %v38
    %s42 = scalar_lea.vmem [#allocation1], 1
    %v43 = vld [vmem:[%s42] ss:$8 sm:$0xf]
    %s44 = scalar_lea.vmem [#allocation1], 4294967267
    %v45 = vld [vmem:[%s44] ss:$8 sm:$0xf0]
    %vm46 = vcmask 1047556
    %v47 = vsel %vm46, %v45, %v43
    %48 = vrot.lane.b32.xlu0 %v47, 64
    %v49 = vpop.permute.xlu0 %48
    %vm50 = vcmask 1048064
    %51 = vst.msk [vmem:[#allocation0] sm:$0xf] %vm50, %v49
    %s52 = scalar_lea.vmem [#allocation0], 4
    %53 = vst.msk [vmem:[%s52] sm:$0xf0] %vm50, %v49
    %s55 = sshllo.u32 0, 4
    %v57 = vld [vmem:[#allocation0] sm:%s55]
    %s58 = sshllo.u32 0, 4
    %59 = vst [vmem:[%s1] sm:%s58] %v57
    %s60 = scalar_lea.vmem [#allocation0], 8
    %v61 = vld [vmem:[%s60] sm:%s55]
    %s62 = sshllo.u32 0, 4
    %s63 = scalar_lea.vmem %s1, 4
    %64 = vst [vmem:[%s63] sm:%s62] %v61

// kernel: _lambda_.9
$region0: #{_lambda_.9}
  #allocation0 [shape = 'u32[]', space=smem, size = 0x4, offset = 0x4, fixed_abs, tag = 'smem constant byte address 0x4 - core index']
  #allocation1 [shape = 'u32[144,128]{1,0:T(1,128)}', space=vmem, size = 0x12000, scoped, tag = 'internal scratch']
  %s0 = inlined_call_operand.vmem [shape: f32[128,64], index: 0, kind: input, shape index: {}]
  %s1 = inlined_call_operand.vmem [shape: f32[128,64], index: 1, kind: input, shape index: {}]
  %s2 = inlined_call_operand.vmem [shape: f32[1,64], index: 2, kind: input, shape index: {}]
  %s3 = inlined_call_operand.vmem [shape: f32[1,64], index: 3, kind: input, shape index: {}]
  %s4 = inlined_call_operand.vmem [shape: bf16[64,32], index: 4, kind: input, shape index: {}]
  %s5 = inlined_call_operand.hbm [shape: f32[128,32], index: 5, kind: output, shape index: {}]
  %s6 = sld [smem:[#allocation0]]
  $region30: #{_lambda_.9} parent=0
    _
  %s8 = ssub.s32 1, %s6
  %s9 = scalar_select 0, %s8, %s6
  $region1: #{_lambda_.9} parent=0
    #allocation2 [shape = 'u8[65536]{0}', space=vmem, size = 0x10000, scoped, tag = 'output window, operand 0, single buffered']
    #allocation3 [shape = 's32[1]{0}', space=sflag, size = 0x4, scoped, tag = 'scoped memory for _lambda_.9']
    %10 = vsyncpa [#allocation3], 0
    // Predicated region
    $region2: #{_lambda_.9} parent=1 // pred_check
      _
    $region3: #{_lambda_.9} parent=1 // pred_check_branch
      %12 = sbr.rel (0) target = $region5
    $region4: #{_lambda_.9} parent=1 // pred_region
      _
    $region5: #{_lambda_.9} parent=1 // pred_fallthru
      _
    // Predicated region
    $region6: #{_lambda_.9} parent=1 // pred_check
      _
    $region7: #{_lambda_.9} parent=1 // pred_check_branch
      %14 = sbr.rel (0) target = $region9
    $region8: #{_lambda_.9} parent=1 // pred_region
      _
    $region9: #{_lambda_.9} parent=1 // pred_fallthru
      _
    // Predicated region
    $region10: #{_lambda_.9} parent=1 // pred_check
      _
    $region11: #{_lambda_.9} parent=1 // pred_check_branch
      %16 = sbr.rel (0) target = $region13
    $region12: #{_lambda_.9} parent=1 // pred_region
      _
    $region13: #{_lambda_.9} parent=1 // pred_fallthru
      _
    // Predicated region
    $region14: #{_lambda_.9} parent=1 // pred_check
      _
    $region15: #{_lambda_.9} parent=1 // pred_check_branch
      %18 = sbr.rel (0) target = $region17
    $region16: #{_lambda_.9} parent=1 // pred_region
      _
    $region17: #{_lambda_.9} parent=1 // pred_fallthru
      _
    // Predicated region
    $region18: #{_lambda_.9} parent=1 // pred_check
      _
    $region19: #{_lambda_.9} parent=1 // pred_check_branch
      %20 = sbr.rel (0) target = $region21
    $region20: #{_lambda_.9} parent=1 // pred_region
      _
    $region21: #{_lambda_.9} parent=1 // pred_fallthru
      _
    %v22 = vld [vmem:[%s0] sm:$0xff]
    %v23 = vld [vmem:[%s0 + $0x8] sm:$0xff]
    %v24 = vld [vmem:[%s0 + $0x10] sm:$0xff]
    %v25 = vld [vmem:[%s0 + $0x18] sm:$0xff]
    %v26 = vld [vmem:[%s0 + $0x20] sm:$0xff]
    %v27 = vld [vmem:[%s0 + $0x28] sm:$0xff]
    %v28 = vld [vmem:[%s0 + $0x30] sm:$0xff]
    %v29 = vld [vmem:[%s0 + $0x38] sm:$0xff]
    %v30 = vld [vmem:[%s0 + $0x40] sm:$0xff]
    %v31 = vld [vmem:[%s0 + $0x48] sm:$0xff]
    %v32 = vld [vmem:[%s0 + $0x50] sm:$0xff]
    %v33 = vld [vmem:[%s0 + $0x58] sm:$0xff]
    %v34 = vld [vmem:[%s0 + $0x60] sm:$0xff]
    %v35 = vld [vmem:[%s0 + $0x68] sm:$0xff]
    %v36 = vld [vmem:[%s0 + $0x70] sm:$0xff]
    %v37 = vld [vmem:[%s0 + $0x78] sm:$0xff]
    %vm38 = vcmask 523264
    %v39 = vsel %vm38, %v22, 0.0
    %40 = vadd.xlane.f32.xlu0 %v39
    %v41 = vpop.xlane.xlu0 %40
    %v42 = vsel %vm38, %v23, 0.0
    %43 = vadd.xlane.f32.xlu0 %v42
    %v44 = vpop.xlane.xlu0 %43
    %v45 = vsel %vm38, %v24, 0.0
    %46 = vadd.xlane.f32.xlu0 %v45
    %v47 = vpop.xlane.xlu0 %46
    %v48 = vsel %vm38, %v25, 0.0
    %49 = vadd.xlane.f32.xlu0 %v48
    %v50 = vpop.xlane.xlu0 %49
    %v51 = vsel %vm38, %v26, 0.0
    %52 = vadd.xlane.f32.xlu0 %v51
    %v53 = vpop.xlane.xlu0 %52
    %v54 = vsel %vm38, %v27, 0.0
    %55 = vadd.xlane.f32.xlu0 %v54
    %v56 = vpop.xlane.xlu0 %55
    %v57 = vsel %vm38, %v28, 0.0
    %58 = vadd.xlane.f32.xlu0 %v57
    %v59 = vpop.xlane.xlu0 %58
    %v60 = vsel %vm38, %v29, 0.0
    %61 = vadd.xlane.f32.xlu0 %v60
    %v62 = vpop.xlane.xlu0 %61
    %v63 = vsel %vm38, %v30, 0.0
    %64 = vadd.xlane.f32.xlu0 %v63
    %v65 = vpop.xlane.xlu0 %64
    %v66 = vsel %vm38, %v31, 0.0
    %67 = vadd.xlane.f32.xlu0 %v66
    %v68 = vpop.xlane.xlu0 %67
    %v69 = vsel %vm38, %v32, 0.0
    %70 = vadd.xlane.f32.xlu0 %v69
    %v71 = vpop.xlane.xlu0 %70
    %v72 = vsel %vm38, %v33, 0.0
    %73 = vadd.xlane.f32.xlu0 %v72
    %v74 = vpop.xlane.xlu0 %73
    %v75 = vsel %vm38, %v34, 0.0
    %76 = vadd.xlane.f32.xlu0 %v75
    %v77 = vpop.xlane.xlu0 %76
    %v78 = vsel %vm38, %v35, 0.0
    %79 = vadd.xlane.f32.xlu0 %v78
    %v80 = vpop.xlane.xlu0 %79
    %v81 = vsel %vm38, %v36, 0.0
    %82 = vadd.xlane.f32.xlu0 %v81
    %v83 = vpop.xlane.xlu0 %82
    %v84 = vsel %vm38, %v37, 0.0
    %85 = vadd.xlane.f32.xlu0 %v84
    %v86 = vpop.xlane.xlu0 %85
    %v87 = vrcp.pop 64.0
    %v88 = vmul.f32 %v41, %v87
    %v89 = vmul.f32 %v44, %v87
    %v90 = vmul.f32 %v47, %v87
    %v91 = vmul.f32 %v50, %v87
    %v92 = vmul.f32 %v53, %v87
    %v93 = vmul.f32 %v56, %v87
    %v94 = vmul.f32 %v59, %v87
    %v95 = vmul.f32 %v62, %v87
    %v96 = vmul.f32 %v65, %v87
    %v97 = vmul.f32 %v68, %v87
    %v98 = vmul.f32 %v71, %v87
    %v99 = vmul.f32 %v74, %v87
    %v100 = vmul.f32 %v77, %v87
    %v101 = vmul.f32 %v80, %v87
    %v102 = vmul.f32 %v83, %v87
    %v103 = vmul.f32 %v86, %v87
    %v104 = vsub.f32 %v22, %v88
    %v105 = vsub.f32 %v23, %v89
    %v106 = vsub.f32 %v24, %v90
    %v107 = vsub.f32 %v25, %v91
    %v108 = vsub.f32 %v26, %v92
    %v109 = vsub.f32 %v27, %v93
    %v110 = vsub.f32 %v28, %v94
    %v111 = vsub.f32 %v29, %v95
    %v112 = vsub.f32 %v30, %v96
    %v113 = vsub.f32 %v31, %v97
    %v114 = vsub.f32 %v32, %v98
    %v115 = vsub.f32 %v33, %v99
    %v116 = vsub.f32 %v34, %v100
    %v117 = vsub.f32 %v35, %v101
    %v118 = vsub.f32 %v36, %v102
    %v119 = vsub.f32 %v37, %v103
    %v120 = vmul.f32 %v104, %v104
    %v121 = vmul.f32 %v105, %v105
    %v122 = vmul.f32 %v106, %v106
    %v123 = vmul.f32 %v107, %v107
    %v124 = vmul.f32 %v108, %v108
    %v125 = vmul.f32 %v109, %v109
    %v126 = vmul.f32 %v110, %v110
    %v127 = vmul.f32 %v111, %v111
    %v128 = vmul.f32 %v112, %v112
    %v129 = vmul.f32 %v113, %v113
    %v130 = vmul.f32 %v114, %v114
    %v131 = vmul.f32 %v115, %v115
    %v132 = vmul.f32 %v116, %v116
    %v133 = vmul.f32 %v117, %v117
    %v134 = vmul.f32 %v118, %v118
    %v135 = vmul.f32 %v119, %v119
    %v136 = vsel %vm38, %v120, 0.0
    %137 = vadd.xlane.f32.xlu0 %v136
    %v138 = vpop.xlane.xlu0 %137
    %v139 = vsel %vm38, %v121, 0.0
    %140 = vadd.xlane.f32.xlu0 %v139
    %v141 = vpop.xlane.xlu0 %140
    %v142 = vsel %vm38, %v122, 0.0
    %143 = vadd.xlane.f32.xlu0 %v142
    %v144 = vpop.xlane.xlu0 %143
    %v145 = vsel %vm38, %v123, 0.0
    %146 = vadd.xlane.f32.xlu0 %v145
    %v147 = vpop.xlane.xlu0 %146
    %v148 = vsel %vm38, %v124, 0.0
    %149 = vadd.xlane.f32.xlu0 %v148
    %v150 = vpop.xlane.xlu0 %149
    %v151 = vsel %vm38, %v125, 0.0
    %152 = vadd.xlane.f32.xlu0 %v151
    %v153 = vpop.xlane.xlu0 %152
    %v154 = vsel %vm38, %v126, 0.0
    %155 = vadd.xlane.f32.xlu0 %v154
    %v156 = vpop.xlane.xlu0 %155
    %v157 = vsel %vm38, %v127, 0.0
    %158 = vadd.xlane.f32.xlu0 %v157
    %v159 = vpop.xlane.xlu0 %158
    %v160 = vsel %vm38, %v128, 0.0
    %161 = vadd.xlane.f32.xlu0 %v160
    %v162 = vpop.xlane.xlu0 %161
    %v163 = vsel %vm38, %v129, 0.0
    %164 = vadd.xlane.f32.xlu0 %v163
    %v165 = vpop.xlane.xlu0 %164
    %v166 = vsel %vm38, %v130, 0.0
    %167 = vadd.xlane.f32.xlu0 %v166
    %v168 = vpop.xlane.xlu0 %167
    %v169 = vsel %vm38, %v131, 0.0
    %170 = vadd.xlane.f32.xlu0 %v169
    %v171 = vpop.xlane.xlu0 %170
    %v172 = vsel %vm38, %v132, 0.0
    %173 = vadd.xlane.f32.xlu0 %v172
    %v174 = vpop.xlane.xlu0 %173
    %v175 = vsel %vm38, %v133, 0.0
    %176 = vadd.xlane.f32.xlu0 %v175
    %v177 = vpop.xlane.xlu0 %176
    %v178 = vsel %vm38, %v134, 0.0
    %179 = vadd.xlane.f32.xlu0 %v178
    %v180 = vpop.xlane.xlu0 %179
    %v181 = vsel %vm38, %v135, 0.0
    %182 = vadd.xlane.f32.xlu0 %v181
    %v183 = vpop.xlane.xlu0 %182
    %v184 = vmul.f32 %v138, %v87
    %v185 = vmul.f32 %v141, %v87
    %v186 = vmul.f32 %v144, %v87
    %v187 = vmul.f32 %v147, %v87
    %v188 = vmul.f32 %v150, %v87
    %v189 = vmul.f32 %v153, %v87
    %v190 = vmul.f32 %v156, %v87
    %v191 = vmul.f32 %v159, %v87
    %v192 = vmul.f32 %v162, %v87
    %v193 = vmul.f32 %v165, %v87
    %v194 = vmul.f32 %v168, %v87
    %v195 = vmul.f32 %v171, %v87
    %v196 = vmul.f32 %v174, %v87
    %v197 = vmul.f32 %v177, %v87
    %v198 = vmul.f32 %v180, %v87
    %v199 = vmul.f32 %v183, %v87
    %v200 = vadd.f32 %v184, 1e-05
    %v201 = vadd.f32 %v185, 1e-05
    %v202 = vadd.f32 %v186, 1e-05
    %v203 = vadd.f32 %v187, 1e-05
    %v204 = vadd.f32 %v188, 1e-05
    %v205 = vadd.f32 %v189, 1e-05
    %v206 = vadd.f32 %v190, 1e-05
    %v207 = vadd.f32 %v191, 1e-05
    %v208 = vadd.f32 %v192, 1e-05
    %v209 = vadd.f32 %v193, 1e-05
    %v210 = vadd.f32 %v194, 1e-05
    %v211 = vadd.f32 %v195, 1e-05
    %v212 = vadd.f32 %v196, 1e-05
    %v213 = vadd.f32 %v197, 1e-05
    %v214 = vadd.f32 %v198, 1e-05
    %v215 = vadd.f32 %v199, 1e-05
    %v216 = vrsqrt.pop %v200
    %v217 = vrsqrt.pop %v201
    %v218 = vrsqrt.pop %v202
    %v219 = vrsqrt.pop %v203
    %v220 = vrsqrt.pop %v204
    %v221 = vrsqrt.pop %v205
    %v222 = vrsqrt.pop %v206
    %v223 = vrsqrt.pop %v207
    %v224 = vrsqrt.pop %v208
    %v225 = vrsqrt.pop %v209
    %v226 = vrsqrt.pop %v210
    %v227 = vrsqrt.pop %v211
    %v228 = vrsqrt.pop %v212
    %v229 = vrsqrt.pop %v213
    %v230 = vrsqrt.pop %v214
    %v231 = vrsqrt.pop %v215
    %v232 = vmul.f32 %v104, %v216
    %v233 = vmul.f32 %v105, %v217
    %v234 = vmul.f32 %v106, %v218
    %v235 = vmul.f32 %v107, %v219
    %v236 = vmul.f32 %v108, %v220
    %v237 = vmul.f32 %v109, %v221
    %v238 = vmul.f32 %v110, %v222
    %v239 = vmul.f32 %v111, %v223
    %v240 = vmul.f32 %v112, %v224
    %v241 = vmul.f32 %v113, %v225
    %v242 = vmul.f32 %v114, %v226
    %v243 = vmul.f32 %v115, %v227
    %v244 = vmul.f32 %v116, %v228
    %v245 = vmul.f32 %v117, %v229
    %v246 = vmul.f32 %v118, %v230
    %v247 = vmul.f32 %v119, %v231
    %v248 = vld [vmem:[%s2] sm:$0x1]
    %v250 = vlaneseq
    %v251 = vshrl.u32 %v250, 7
    %v252 = vsub.s32 0, %v251
    %v253 = vrot.slane %v248, %v252
    %v255 = vmul.f32 %v232, %v253
    %v256 = vmul.f32 %v233, %v253
    %v257 = vmul.f32 %v234, %v253
    %v258 = vmul.f32 %v235, %v253
    %v259 = vmul.f32 %v236, %v253
    %v260 = vmul.f32 %v237, %v253
    %v261 = vmul.f32 %v238, %v253
    %v262 = vmul.f32 %v239, %v253
    %v263 = vmul.f32 %v240, %v253
    %v264 = vmul.f32 %v241, %v253
    %v265 = vmul.f32 %v242, %v253
    %v266 = vmul.f32 %v243, %v253
    %v267 = vmul.f32 %v244, %v253
    %v268 = vmul.f32 %v245, %v253
    %v269 = vmul.f32 %v246, %v253
    %v270 = vmul.f32 %v247, %v253
    %v271 = vld [vmem:[%s3] sm:$0x1]
    %v273 = vlaneseq
    %v274 = vshrl.u32 %v273, 7
    %v275 = vsub.s32 0, %v274
    %v276 = vrot.slane %v271, %v275
    %v278 = vadd.f32 %v255, %v276
    %v279 = vadd.f32 %v256, %v276
    %v280 = vadd.f32 %v257, %v276
    %v281 = vadd.f32 %v258, %v276
    %v282 = vadd.f32 %v259, %v276
    %v283 = vadd.f32 %v260, %v276
    %v284 = vadd.f32 %v261, %v276
    %v285 = vadd.f32 %v262, %v276
    %v286 = vadd.f32 %v263, %v276
    %v287 = vadd.f32 %v264, %v276
    %v288 = vadd.f32 %v265, %v276
    %v289 = vadd.f32 %v266, %v276
    %v290 = vadd.f32 %v267, %v276
    %v291 = vadd.f32 %v268, %v276
    %v292 = vadd.f32 %v269, %v276
    %v293 = vadd.f32 %v270, %v276
    %v294 = vld [vmem:[%s1] sm:$0xff]
    %v295 = vld [vmem:[%s1 + $0x8] sm:$0xff]
    %v296 = vld [vmem:[%s1 + $0x10] sm:$0xff]
    %v297 = vld [vmem:[%s1 + $0x18] sm:$0xff]
    %v298 = vld [vmem:[%s1 + $0x20] sm:$0xff]
    %v299 = vld [vmem:[%s1 + $0x28] sm:$0xff]
    %v300 = vld [vmem:[%s1 + $0x30] sm:$0xff]
    %v301 = vld [vmem:[%s1 + $0x38] sm:$0xff]
    %v302 = vld [vmem:[%s1 + $0x40] sm:$0xff]
    %v303 = vld [vmem:[%s1 + $0x48] sm:$0xff]
    %v304 = vld [vmem:[%s1 + $0x50] sm:$0xff]
    %v305 = vld [vmem:[%s1 + $0x58] sm:$0xff]
    %v306 = vld [vmem:[%s1 + $0x60] sm:$0xff]
    %v307 = vld [vmem:[%s1 + $0x68] sm:$0xff]
    %v308 = vld [vmem:[%s1 + $0x70] sm:$0xff]
    %v309 = vld [vmem:[%s1 + $0x78] sm:$0xff]
    %v310 = vxor.u32 %v294, 2147483648
    %v311 = vxor.u32 %v295, 2147483648
    %v312 = vxor.u32 %v296, 2147483648
    %v313 = vxor.u32 %v297, 2147483648
    %v314 = vxor.u32 %v298, 2147483648
    %v315 = vxor.u32 %v299, 2147483648
    %v316 = vxor.u32 %v300, 2147483648
    %v317 = vxor.u32 %v301, 2147483648
    %v318 = vxor.u32 %v302, 2147483648
    %v319 = vxor.u32 %v303, 2147483648
    %v320 = vxor.u32 %v304, 2147483648
    %v321 = vxor.u32 %v305, 2147483648
    %v322 = vxor.u32 %v306, 2147483648
    %v323 = vxor.u32 %v307, 2147483648
    %v324 = vxor.u32 %v308, 2147483648
    %v325 = vxor.u32 %v309, 2147483648
    %v326 = vmul.f32 %v310, 1.442695
    %v327 = vpow.pop %v326
    %v328 = vmul.f32 %v311, 1.442695
    %v329 = vpow.pop %v328
    %v330 = vmul.f32 %v312, 1.442695
    %v331 = vpow.pop %v330
    %v332 = vmul.f32 %v313, 1.442695
    %v333 = vpow.pop %v332
    %v334 = vmul.f32 %v314, 1.442695
    %v335 = vpow.pop %v334
    %v336 = vmul.f32 %v315, 1.442695
    %v337 = vpow.pop %v336
    %v338 = vmul.f32 %v316, 1.442695
    %v339 = vpow.pop %v338
    %v340 = vmul.f32 %v317, 1.442695
    %v341 = vpow.pop %v340
    %v342 = vmul.f32 %v318, 1.442695
    %v343 = vpow.pop %v342
    %v344 = vmul.f32 %v319, 1.442695
    %v345 = vpow.pop %v344
    %v346 = vmul.f32 %v320, 1.442695
    %v347 = vpow.pop %v346
    %v348 = vmul.f32 %v321, 1.442695
    %v349 = vpow.pop %v348
    %v350 = vmul.f32 %v322, 1.442695
    %v351 = vpow.pop %v350
    %v352 = vmul.f32 %v323, 1.442695
    %v353 = vpow.pop %v352
    %v354 = vmul.f32 %v324, 1.442695
    %v355 = vpow.pop %v354
    %v356 = vmul.f32 %v325, 1.442695
    %v357 = vpow.pop %v356
    %v358 = vadd.f32 %v327, 1.0
    %v359 = vadd.f32 %v329, 1.0
    %v360 = vadd.f32 %v331, 1.0
    %v361 = vadd.f32 %v333, 1.0
    %v362 = vadd.f32 %v335, 1.0
    %v363 = vadd.f32 %v337, 1.0
    %v364 = vadd.f32 %v339, 1.0
    %v365 = vadd.f32 %v341, 1.0
    %v366 = vadd.f32 %v343, 1.0
    %v367 = vadd.f32 %v345, 1.0
    %v368 = vadd.f32 %v347, 1.0
    %v369 = vadd.f32 %v349, 1.0
    %v370 = vadd.f32 %v351, 1.0
    %v371 = vadd.f32 %v353, 1.0
    %v372 = vadd.f32 %v355, 1.0
    %v373 = vadd.f32 %v357, 1.0
    %v374 = vrcp.pop %v358
    %v375 = vmul.f32 1.0, %v374
    %v376 = vrcp.pop %v359
    %v377 = vmul.f32 1.0, %v376
    %v378 = vrcp.pop %v360
    %v379 = vmul.f32 1.0, %v378
    %v380 = vrcp.pop %v361
    %v381 = vmul.f32 1.0, %v380
    %v382 = vrcp.pop %v362
    %v383 = vmul.f32 1.0, %v382
    %v384 = vrcp.pop %v363
    %v385 = vmul.f32 1.0, %v384
    %v386 = vrcp.pop %v364
    %v387 = vmul.f32 1.0, %v386
    %v388 = vrcp.pop %v365
    %v389 = vmul.f32 1.0, %v388
    %v390 = vrcp.pop %v366
    %v391 = vmul.f32 1.0, %v390
    %v392 = vrcp.pop %v367
    %v393 = vmul.f32 1.0, %v392
    %v394 = vrcp.pop %v368
    %v395 = vmul.f32 1.0, %v394
    %v396 = vrcp.pop %v369
    %v397 = vmul.f32 1.0, %v396
    %v398 = vrcp.pop %v370
    %v399 = vmul.f32 1.0, %v398
    %v400 = vrcp.pop %v371
    %v401 = vmul.f32 1.0, %v400
    %v402 = vrcp.pop %v372
    %v403 = vmul.f32 1.0, %v402
    %v404 = vrcp.pop %v373
    %v405 = vmul.f32 1.0, %v404
    %v406 = vmul.f32 %v294, %v375
    %v407 = vmul.f32 %v295, %v377
    %v408 = vmul.f32 %v296, %v379
    %v409 = vmul.f32 %v297, %v381
    %v410 = vmul.f32 %v298, %v383
    %v411 = vmul.f32 %v299, %v385
    %v412 = vmul.f32 %v300, %v387
    %v413 = vmul.f32 %v301, %v389
    %v414 = vmul.f32 %v302, %v391
    %v415 = vmul.f32 %v303, %v393
    %v416 = vmul.f32 %v304, %v395
    %v417 = vmul.f32 %v305, %v397
    %v418 = vmul.f32 %v306, %v399
    %v419 = vmul.f32 %v307, %v401
    %v420 = vmul.f32 %v308, %v403
    %v421 = vmul.f32 %v309, %v405
    %v422 = vmul.f32 %v278, %v406
    %v423 = vmul.f32 %v279, %v407
    %v424 = vmul.f32 %v280, %v408
    %v425 = vmul.f32 %v281, %v409
    %v426 = vmul.f32 %v282, %v410
    %v427 = vmul.f32 %v283, %v411
    %v428 = vmul.f32 %v284, %v412
    %v429 = vmul.f32 %v285, %v413
    %v430 = vmul.f32 %v286, %v414
    %v431 = vmul.f32 %v287, %v415
    %v432 = vmul.f32 %v288, %v416
    %v433 = vmul.f32 %v289, %v417
    %v434 = vmul.f32 %v290, %v418
    %v435 = vmul.f32 %v291, %v419
    %v436 = vmul.f32 %v292, %v420
    %v437 = vmul.f32 %v293, %v421
    %v438 = vpack.c.bf16 %v423, %v422
    %v439 = vpack.c.bf16 %v425, %v424
    %v440 = vpack.c.bf16 %v427, %v426
    %v441 = vpack.c.bf16 %v429, %v428
    %v442 = vpack.c.bf16 %v431, %v430
    %v443 = vpack.c.bf16 %v433, %v432
    %v444 = vpack.c.bf16 %v435, %v434
    %v445 = vpack.c.bf16 %v437, %v436
    %v446 = vld [vmem:[%s4] sm:$0xf]
    %v447 = vld [vmem:[%s4 + $0x4] sm:$0xf]
    %v448 = vld [vmem:[%s4 + $0x8] sm:$0xf]
    %v449 = vld [vmem:[%s4 + $0xc] sm:$0xf]
    %v450 = vld [vmem:[%s4 + $0x10] sm:$0xf]
    %v451 = vld [vmem:[%s4 + $0x14] sm:$0xf]
    %v452 = vld [vmem:[%s4 + $0x18] sm:$0xf]
    %v453 = vld [vmem:[%s4 + $0x1c] sm:$0xf]
    %v462 = vunpack.c.l.b16 %v446
    %v463 = vunpack.c.l.b16 %v447
    %v464 = vunpack.c.l.b16 %v448
    %v465 = vunpack.c.l.b16 %v449
    %v466 = vunpack.c.l.b16 %v450
    %v467 = vunpack.c.l.b16 %v451
    %v468 = vunpack.c.l.b16 %v452
    %v469 = vunpack.c.l.b16 %v453
    %v470 = vpack.c.b16 %v463, %v462
    %v471 = vpack.c.b16 %v465, %v464
    %v472 = vpack.c.b16 %v467, %v466
    %v473 = vpack.c.b16 %v469, %v468
    %v479 = vsel %vm38, %v438, 0
    %v482 = vsel %vm38, %v439, 0
    %v485 = vsel %vm38, %v440, 0
    %v488 = vsel %vm38, %v441, 0
    %v491 = vsel %vm38, %v442, 0
    %v494 = vsel %vm38, %v443, 0
    %v497 = vsel %vm38, %v444, 0
    %v500 = vsel %vm38, %v445, 0
    %502 = vmatprep.subr.bf16.mxu0 0
    %503 = vmatpush1.bf16.msra.mxu0 %v470
    %504 = vmatprep.subr.bf16.mxu0 0
    %505 = vmatpush1.bf16.msra.mxu0 %v471
    %506 = vmatprep.subr.bf16.mxu0 0
    %507 = vmatpush1.bf16.msra.mxu0 %v472
    %508 = vmatprep.subr.bf16.mxu0 0
    %509 = vmatpush1.bf16.msra.mxu0 %v473
    %510 = vmatprep.subr.bf16.mxu0 0
    %511 = vmatpush1.bf16.msra.mxu0 0
    %512 = vmatprep.subr.bf16.mxu0 0
    %513 = vmatpush1.bf16.msra.mxu0 0
    %514 = vmatprep.subr.bf16.mxu0 0
    %515 = vmatpush1.bf16.msra.mxu0 0
    %516 = vmatprep.subr.bf16.mxu0 0
    %517 = vmatpush1.bf16.msra.mxu0 0
    %518 = vmatprep.subr.bf16.mxu0 0
    %519 = vmatpush1.bf16.msra.mxu0 0
    %520 = vmatprep.subr.bf16.mxu0 0
    %521 = vmatpush1.bf16.msra.mxu0 0
    %522 = vmatprep.subr.bf16.mxu0 0
    %523 = vmatpush1.bf16.msra.mxu0 0
    %524 = vmatprep.subr.bf16.mxu0 0
    %525 = vmatpush1.bf16.msra.mxu0 0
    %526 = vmatprep.subr.bf16.mxu0 0
    %527 = vmatpush1.bf16.msra.mxu0 0
    %528 = vmatprep.subr.bf16.mxu0 0
    %529 = vmatpush1.bf16.msra.mxu0 0
    %530 = vmatprep.subr.bf16.mxu0 0
    %531 = vmatpush1.bf16.msra.mxu0 0
    %532 = vmatprep.subr.bf16.mxu0 0
    %533 = vmatpush1.bf16.msra.mxu0 0
    %534 = vmatprep.mubr.bf16.mxu0 0
    %535 = vmatmul.mubr.bf16.gmra.mrb[0].mxu0 %v479
    %v536 = vpop.f32.mrb[0].mxu0
    %v537 = vadd.f32 0.0, %v536
    %v538 = vpop.f32.mrb[0].mxu0
    %v539 = vpop.f32.mrb[0].mxu0
    %v540 = vadd.f32 0.0, %v539
    %v541 = vpop.f32.mrb[0].mxu0
    %542 = vmatprep.mubr.bf16.mxu0 0
    %543 = vmatmul.mubr.bf16.gmra.mrb[0].mxu0 %v482
    %v544 = vpop.f32.mrb[0].mxu0
    %v545 = vadd.f32 0.0, %v544
    %v546 = vpop.f32.mrb[0].mxu0
    %v547 = vpop.f32.mrb[0].mxu0
    %v548 = vadd.f32 0.0, %v547
    %v549 = vpop.f32.mrb[0].mxu0
    %550 = vmatprep.mubr.bf16.mxu0 0
    %551 = vmatmul.mubr.bf16.gmra.mrb[0].mxu0 %v485
    %v552 = vpop.f32.mrb[0].mxu0
    %v553 = vadd.f32 0.0, %v552
    %v554 = vpop.f32.mrb[0].mxu0
    %v555 = vpop.f32.mrb[0].mxu0
    %v556 = vadd.f32 0.0, %v555
    %v557 = vpop.f32.mrb[0].mxu0
    %558 = vmatprep.mubr.bf16.mxu0 0
    %559 = vmatmul.mubr.bf16.gmra.mrb[0].mxu0 %v488
    %v560 = vpop.f32.mrb[0].mxu0
    %v561 = vadd.f32 0.0, %v560
    %v562 = vpop.f32.mrb[0].mxu0
    %v563 = vpop.f32.mrb[0].mxu0
    %v564 = vadd.f32 0.0, %v563
    %v565 = vpop.f32.mrb[0].mxu0
    %566 = vmatprep.mubr.bf16.mxu0 0
    %567 = vmatmul.mubr.bf16.gmra.mrb[0].mxu0 %v491
    %v568 = vpop.f32.mrb[0].mxu0
    %v569 = vadd.f32 0.0, %v568
    %v570 = vpop.f32.mrb[0].mxu0
    %v571 = vpop.f32.mrb[0].mxu0
    %v572 = vadd.f32 0.0, %v571
    %v573 = vpop.f32.mrb[0].mxu0
    %574 = vmatprep.mubr.bf16.mxu0 0
    %575 = vmatmul.mubr.bf16.gmra.mrb[0].mxu0 %v494
    %v576 = vpop.f32.mrb[0].mxu0
    %v577 = vadd.f32 0.0, %v576
    %v578 = vpop.f32.mrb[0].mxu0
    %v579 = vpop.f32.mrb[0].mxu0
    %v580 = vadd.f32 0.0, %v579
    %v581 = vpop.f32.mrb[0].mxu0
    %582 = vmatprep.mubr.bf16.mxu0 0
    %583 = vmatmul.mubr.bf16.gmra.mrb[0].mxu0 %v497
    %v584 = vpop.f32.mrb[0].mxu0
    %v585 = vadd.f32 0.0, %v584
    %v586 = vpop.f32.mrb[0].mxu0
    %v587 = vpop.f32.mrb[0].mxu0
    %v588 = vadd.f32 0.0, %v587
    %v589 = vpop.f32.mrb[0].mxu0
    %590 = vmatprep.mubr.bf16.mxu0 0
    %591 = vmatmul.mubr.bf16.gmra.mrb[0].mxu0 %v500
    %v592 = vpop.f32.mrb[0].mxu0
    %v593 = vadd.f32 0.0, %v592
    %v594 = vpop.f32.mrb[0].mxu0
    %v595 = vpop.f32.mrb[0].mxu0
    %v596 = vadd.f32 0.0, %v595
    %v597 = vpop.f32.mrb[0].mxu0
    %598 = vdwg.mxu0
    %vm599 = vcmask 261120
    %600 = vst.msk [vmem:[#allocation2] sm:$0xff] %vm599, %v537
    %601 = vst.msk [vmem:[#allocation2 + $0x8] sm:$0xff] %vm599, %v540
    %602 = vst.msk [vmem:[#allocation2 + $0x10] sm:$0xff] %vm599, %v545
    %603 = vst.msk [vmem:[#allocation2 + $0x18] sm:$0xff] %vm599, %v548
    %604 = vst.msk [vmem:[#allocation2 + $0x20] sm:$0xff] %vm599, %v553
    %605 = vst.msk [vmem:[#allocation2 + $0x28] sm:$0xff] %vm599, %v556
    %606 = vst.msk [vmem:[#allocation2 + $0x30] sm:$0xff] %vm599, %v561
    %607 = vst.msk [vmem:[#allocation2 + $0x38] sm:$0xff] %vm599, %v564
    %608 = vst.msk [vmem:[#allocation2 + $0x40] sm:$0xff] %vm599, %v569
    %609 = vst.msk [vmem:[#allocation2 + $0x48] sm:$0xff] %vm599, %v572
    %610 = vst.msk [vmem:[#allocation2 + $0x50] sm:$0xff] %vm599, %v577
    %611 = vst.msk [vmem:[#allocation2 + $0x58] sm:$0xff] %vm599, %v580
    %612 = vst.msk [vmem:[#allocation2 + $0x60] sm:$0xff] %vm599, %v585
    %613 = vst.msk [vmem:[#allocation2 + $0x68] sm:$0xff] %vm599, %v588
    %614 = vst.msk [vmem:[#allocation2 + $0x70] sm:$0xff] %vm599, %v593
    %615 = vst.msk [vmem:[#allocation2 + $0x78] sm:$0xff] %vm599, %v596
    // Predicated region
    $region22: #{_lambda_.9} parent=1 // pred_check
      _
    $region23: #{_lambda_.9} parent=1 // pred_check_branch
      %617 = sbr.rel (0) target = $region25
    $region24: #{_lambda_.9} parent=1 // pred_region
      %s619 = ssub.s32 2048, 2048
      %620 = vsyncadd [#allocation3], %s619
      %s621 = sshll.u32 [#allocation2], 4
      %s622 = int_to_ptr.vmem [resolvable:$true] %s621
      %627 = dma.vmem_to_hbm [thread:$0]  %s622, 2048, %s5, [#allocation3], 128, 128, 8
    $region25: #{_lambda_.9} parent=1 // pred_fallthru
      _
    // Predicated region
    $region26: #{_lambda_.9} parent=1 // pred_check
      _
    $region27: #{_lambda_.9} parent=1 // pred_check_branch
      %629 = sbr.rel (0) target = $region29
    $region28: #{_lambda_.9} parent=1 // pred_region
      %630 = dma.done [#allocation3], 2048
    $region29: #{_lambda_.9} parent=1 // pred_fallthru
      _
    %631 = vsyncpa [#allocation3], 1

// kernel: _lambda_.8
$region0: #{_lambda_.8}
  #allocation0 [shape = 'u32[]', space=smem, size = 0x4, offset = 0x4, fixed_abs, tag = 'smem constant byte address 0x4 - core index']
  #allocation1 [shape = 'u32[144,128]{1,0:T(1,128)}', space=vmem, size = 0x12000, scoped, tag = 'internal scratch']
  #allocation2 [shape = 'f32[16,256]{1,0:T(8,128)}', space=vmem, size = 0x4000, scoped, tag = 'scratch operand']
  #allocation3 [shape = 'f32[64,16,256]{2,1,0:T(8,128)}', space=vmem, size = 0x100000, scoped, tag = 'scratch operand']
  #allocation4 [shape = 'f32[64,16,256]{2,1,0:T(8,128)}', space=vmem, size = 0x100000, scoped, tag = 'scratch operand']
  #allocation5 [shape = 'f32[64,16,256]{2,1,0:T(8,128)}', space=vmem, size = 0x100000, scoped, tag = 'scratch operand']
  %s0 = inlined_call_operand.vmem [shape: f32[2,64,256], index: 0, kind: input, shape index: {}]
  %s1 = inlined_call_operand.vmem [shape: f32[2,64,256], index: 1, kind: input, shape index: {}]
  %s2 = inlined_call_operand.vmem [shape: f32[2,1024,8], index: 2, kind: input, shape index: {}]
  %s3 = inlined_call_operand.vmem [shape: f32[16,256], index: 3, kind: input, shape index: {}]
  %s4 = inlined_call_operand.vmem [shape: f32[1,256], index: 4, kind: input, shape index: {}]
  %s5 = inlined_call_operand.vmem [shape: f32[1,256], index: 5, kind: input, shape index: {}]
  %s6 = inlined_call_operand.vmem [shape: f32[8,512], index: 6, kind: input, shape index: {}]
  %s7 = inlined_call_operand.vmem [shape: f32[2,64,256], index: 7, kind: output, shape index: {}]
  %s8 = sld [smem:[#allocation0]]
  $region72: #{_lambda_.8} parent=0
    _
  %s10 = ssub.s32 1, %s8
  %s11 = scalar_select 0, %s10, %s8
  loop: start=0, step=1, limit=4
  $region2: #{_lambda_.8} parent=0 // loop_pre_header
    _
  $region3: #{_lambda_.8} parent=0 // loop_header
    %s13 = sphi 0, %s17
    %p14 = scmp.ge.s32.totalorder %s13, 4
    %s20 = sphi 0, %s32
    %s21 = sphi 0, %s28
    %s22 = sphi 0, %s20
    %s23 = sphi 0, %s21
    %s24 = sphi 0, %s22
    %s25 = sphi 0, %s23
    %s37 = sphi 0, %s39
    %s40 = sphi 0, %s37
    %s41 = sphi 0, %s40
    %s57 = sphi 0, %s41
    %s65 = sphi 0, %s67
    %s68 = sphi 0, %s65
    %s69 = sphi 0, %s68
    %s85 = sphi 0, %s69
    %s93 = sphi 0, %s95
    %s96 = sphi 0, %s93
    %s97 = sphi 0, %s96
    %s113 = sphi 0, %s97
    %s117 = sphi 0, %s117
    %s119 = sphi 0, %s117
    %s120 = sphi 0, %s119
    %s134 = sphi 0, %s120
    %s138 = sphi 0, %s138
    %s140 = sphi 0, %s138
    %s141 = sphi 0, %s140
    %s155 = sphi 0, %s141
    %s159 = sphi 0, %s159
    %s161 = sphi 0, %s159
    %s162 = sphi 0, %s161
    %s176 = sphi 0, %s162
    %s180 = sphi 0, %s180
    %s182 = sphi 0, %s180
    %s183 = sphi 0, %s182
    %s197 = sphi 0, %s183
    %s205 = sphi 0, %s207
    %s208 = sphi 0, %s205
    %s209 = sphi 0, %s208
    %s225 = sphi 0, %s209
  $region4: #{_lambda_.8} parent=0 // loop_header_branch
    %16 = sbr.rel (%p14) target = $region8
  $region5: #{_lambda_.8} parent=0 // loop_body
    %s18 = ssub.s32 %s13, 1
    %s19 = ssub.s32 %s13, 2
    %s26 = sadd.s32 1, %s21
    %p27 = scmp.ge.s32.totalorder %s26, 1
    %s28 = scalar_select %p27, 0, %s26
    %s29 = sadd.s32 1, %s20
    %s30 = scalar_select %p27, %s29, %s20
    %p31 = scmp.ge.s32.totalorder %s30, 2
    %s32 = scalar_select %p31, 0, %s30
    %s33 = ssub.s32 %s20, %s32
    %s34 = ssub.s32 %s21, %s28
    %s35 = sor.u32 %s33, %s34
    %p36 = scmp.eq.s32.totalorder %s35, 0
    %s38 = sadd.s32 %s37, 1
    %s39 = scalar_select %p36, %s37, %s38
    %p42 = pneg %p36
    %p43 = scmp.eq.s32.totalorder %s13, 1
    %p44 = por %p42, %p43
    %p45 = scmp.ne.s32.totalorder %s37, %s40
    %p46 = scmp.eq.s32.totalorder %s13, 0
    %p47 = por %p45, %p46
    %p48 = scmp.ne.s32.totalorder %s37, %s40
    %p49 = scmp.eq.s32.totalorder %s18, 1
    %p50 = por %p48, %p49
    %p51 = scmp.ne.s32.totalorder %s40, %s41
    %p52 = scmp.eq.s32.totalorder %s18, 0
    %p53 = por %p51, %p52
    %p54 = scmp.ne.s32.totalorder %s40, %s41
    %p55 = scmp.eq.s32.totalorder %s19, 1
    %p56 = por %p54, %p55
    %p58 = scmp.ne.s32.totalorder %s41, %s57
    %p59 = scmp.eq.s32.totalorder %s19, 0
    %p60 = por %p58, %p59
    %s61 = ssub.s32 %s20, %s32
    %s62 = ssub.s32 %s21, %s28
    %s63 = sor.u32 %s61, %s62
    %p64 = scmp.eq.s32.totalorder %s63, 0
    %s66 = sadd.s32 %s65, 1
    %s67 = scalar_select %p64, %s65, %s66
    %p70 = pneg %p64
    %p71 = scmp.eq.s32.totalorder %s13, 1
    %p72 = por %p70, %p71
    %p73 = scmp.ne.s32.totalorder %s65, %s68
    %p74 = scmp.eq.s32.totalorder %s13, 0
    %p75 = por %p73, %p74
    %p76 = scmp.ne.s32.totalorder %s65, %s68
    %p77 = scmp.eq.s32.totalorder %s18, 1
    %p78 = por %p76, %p77
    %p79 = scmp.ne.s32.totalorder %s68, %s69
    %p80 = scmp.eq.s32.totalorder %s18, 0
    %p81 = por %p79, %p80
    %p82 = scmp.ne.s32.totalorder %s68, %s69
    %p83 = scmp.eq.s32.totalorder %s19, 1
    %p84 = por %p82, %p83
    %p86 = scmp.ne.s32.totalorder %s69, %s85
    %p87 = scmp.eq.s32.totalorder %s19, 0
    %p88 = por %p86, %p87
    %s89 = ssub.s32 %s20, %s32
    %s90 = ssub.s32 %s21, %s28
    %s91 = sor.u32 %s89, %s90
    %p92 = scmp.eq.s32.totalorder %s91, 0
    %s94 = sadd.s32 %s93, 1
    %s95 = scalar_select %p92, %s93, %s94
    %p98 = pneg %p92
    %p99 = scmp.eq.s32.totalorder %s13, 1
    %p100 = por %p98, %p99
    %p101 = scmp.ne.s32.totalorder %s93, %s96
    %p102 = scmp.eq.s32.totalorder %s13, 0
    %p103 = por %p101, %p102
    %p104 = scmp.ne.s32.totalorder %s93, %s96
    %p105 = scmp.eq.s32.totalorder %s18, 1
    %p106 = por %p104, %p105
    %p107 = scmp.ne.s32.totalorder %s96, %s97
    %p108 = scmp.eq.s32.totalorder %s18, 0
    %p109 = por %p107, %p108
    %p110 = scmp.ne.s32.totalorder %s96, %s97
    %p111 = scmp.eq.s32.totalorder %s19, 1
    %p112 = por %p110, %p111
    %p114 = scmp.ne.s32.totalorder %s97, %s113
    %p115 = scmp.eq.s32.totalorder %s19, 0
    %p116 = por %p114, %p115
    %s118 = sadd.s32 %s117, 1
    %p121 = scmp.eq.s32.totalorder %s13, 1
    %p122 = scmp.ne.s32.totalorder %s117, %s119
    %p123 = scmp.eq.s32.totalorder %s13, 0
    %p124 = por %p122, %p123
    %p125 = scmp.ne.s32.totalorder %s117, %s119
    %p126 = scmp.eq.s32.totalorder %s18, 1
    %p127 = por %p125, %p126
    %p128 = scmp.ne.s32.totalorder %s119, %s120
    %p129 = scmp.eq.s32.totalorder %s18, 0
    %p130 = por %p128, %p129
    %p131 = scmp.ne.s32.totalorder %s119, %s120
    %p132 = scmp.eq.s32.totalorder %s19, 1
    %p133 = por %p131, %p132
    %p135 = scmp.ne.s32.totalorder %s120, %s134
    %p136 = scmp.eq.s32.totalorder %s19, 0
    %p137 = por %p135, %p136
    %s139 = sadd.s32 %s138, 1
    %p142 = scmp.eq.s32.totalorder %s13, 1
    %p143 = scmp.ne.s32.totalorder %s138, %s140
    %p144 = scmp.eq.s32.totalorder %s13, 0
    %p145 = por %p143, %p144
    %p146 = scmp.ne.s32.totalorder %s138, %s140
    %p147 = scmp.eq.s32.totalorder %s18, 1
    %p148 = por %p146, %p147
    %p149 = scmp.ne.s32.totalorder %s140, %s141
    %p150 = scmp.eq.s32.totalorder %s18, 0
    %p151 = por %p149, %p150
    %p152 = scmp.ne.s32.totalorder %s140, %s141
    %p153 = scmp.eq.s32.totalorder %s19, 1
    %p154 = por %p152, %p153
    %p156 = scmp.ne.s32.totalorder %s141, %s155
    %p157 = scmp.eq.s32.totalorder %s19, 0
    %p158 = por %p156, %p157
    %s160 = sadd.s32 %s159, 1
    %p163 = scmp.eq.s32.totalorder %s13, 1
    %p164 = scmp.ne.s32.totalorder %s159, %s161
    %p165 = scmp.eq.s32.totalorder %s13, 0
    %p166 = por %p164, %p165
    %p167 = scmp.ne.s32.totalorder %s159, %s161
    %p168 = scmp.eq.s32.totalorder %s18, 1
    %p169 = por %p167, %p168
    %p170 = scmp.ne.s32.totalorder %s161, %s162
    %p171 = scmp.eq.s32.totalorder %s18, 0
    %p172 = por %p170, %p171
    %p173 = scmp.ne.s32.totalorder %s161, %s162
    %p174 = scmp.eq.s32.totalorder %s19, 1
    %p175 = por %p173, %p174
    %p177 = scmp.ne.s32.totalorder %s162, %s176
    %p178 = scmp.eq.s32.totalorder %s19, 0
    %p179 = por %p177, %p178
    %s181 = sadd.s32 %s180, 1
    %p184 = scmp.eq.s32.totalorder %s13, 1
    %p185 = scmp.ne.s32.totalorder %s180, %s182
    %p186 = scmp.eq.s32.totalorder %s13, 0
    %p187 = por %p185, %p186
    %p188 = scmp.ne.s32.totalorder %s180, %s182
    %p189 = scmp.eq.s32.totalorder %s18, 1
    %p190 = por %p188, %p189
    %p191 = scmp.ne.s32.totalorder %s182, %s183
    %p192 = scmp.eq.s32.totalorder %s18, 0
    %p193 = por %p191, %p192
    %p194 = scmp.ne.s32.totalorder %s182, %s183
    %p195 = scmp.eq.s32.totalorder %s19, 1
    %p196 = por %p194, %p195
    %p198 = scmp.ne.s32.totalorder %s183, %s197
    %p199 = scmp.eq.s32.totalorder %s19, 0
    %p200 = por %p198, %p199
    %s201 = ssub.s32 %s20, %s32
    %s202 = ssub.s32 %s21, %s28
    %s203 = sor.u32 %s201, %s202
    %p204 = scmp.eq.s32.totalorder %s203, 0
    %s206 = sadd.s32 %s205, 1
    %s207 = scalar_select %p204, %s205, %s206
    %p210 = pneg %p204
    %p211 = scmp.eq.s32.totalorder %s13, 1
    %p212 = por %p210, %p211
    %p213 = scmp.ne.s32.totalorder %s205, %s208
    %p214 = scmp.eq.s32.totalorder %s13, 0
    %p215 = por %p213, %p214
    %p216 = scmp.ne.s32.totalorder %s205, %s208
    %p217 = scmp.eq.s32.totalorder %s18, 1
    %p218 = por %p216, %p217
    %p219 = scmp.ne.s32.totalorder %s208, %s209
    %p220 = scmp.eq.s32.totalorder %s18, 0
    %p221 = por %p219, %p220
    %p222 = scmp.ne.s32.totalorder %s208, %s209
    %p223 = scmp.eq.s32.totalorder %s19, 1
    %p224 = por %p222, %p223
    %p226 = scmp.ne.s32.totalorder %s209, %s225
    %p227 = scmp.eq.s32.totalorder %s19, 0
    %p228 = por %p226, %p227
    %p229 = scmp.le.s32.totalorder 1, %s13
    %p230 = scmp.lt.s32.totalorder %s13, 3
    %p231 = pnand %p229, %p230
    %p232 = pneg %p231
    // Predicated region
    $region9: #{_lambda_.8} parent=5 // pred_check
      _
    $region10: #{_lambda_.8} parent=5 // pred_check_branch
      %234 = sbr.rel (%p231) target = $region12
    $region11: #{_lambda_.8} parent=5 // pred_region
      %s235 = ssub.s32 %s13, 1
      // Predicated region
      $region13: #{_lambda_.8} parent=11 // pred_check
        %p236 = pneg %p130
      $region14: #{_lambda_.8} parent=11 // pred_check_branch
        %238 = sbr.rel (%p236) target = $region16
      $region15: #{_lambda_.8} parent=11 // pred_region
        _
      $region16: #{_lambda_.8} parent=11 // pred_fallthru
        _
      // Predicated region
      $region17: #{_lambda_.8} parent=11 // pred_check
        %p239 = pneg %p151
      $region18: #{_lambda_.8} parent=11 // pred_check_branch
        %241 = sbr.rel (%p239) target = $region20
      $region19: #{_lambda_.8} parent=11 // pred_region
        _
      $region20: #{_lambda_.8} parent=11 // pred_fallthru
        _
      // Predicated region
      $region21: #{_lambda_.8} parent=11 // pred_check
        %p242 = pneg %p172
      $region22: #{_lambda_.8} parent=11 // pred_check_branch
        %244 = sbr.rel (%p242) target = $region24
      $region23: #{_lambda_.8} parent=11 // pred_region
        _
      $region24: #{_lambda_.8} parent=11 // pred_fallthru
        _
      // Predicated region
      $region25: #{_lambda_.8} parent=11 // pred_check
        %p245 = pneg %p193
      $region26: #{_lambda_.8} parent=11 // pred_check_branch
        %247 = sbr.rel (%p245) target = $region28
      $region27: #{_lambda_.8} parent=11 // pred_region
        _
      $region28: #{_lambda_.8} parent=11 // pred_fallthru
        _
    $region12: #{_lambda_.8} parent=5 // pred_fallthru
      _
    %p248 = scmp.lt.s32.totalorder %s13, 2
    // Predicated region
    $region29: #{_lambda_.8} parent=5 // pred_check
      %p249 = pneg %p248
    $region30: #{_lambda_.8} parent=5 // pred_check_branch
      %251 = sbr.rel (%p249) target = $region32
    $region31: #{_lambda_.8} parent=5 // pred_region
      // Predicated region
      $region33: #{_lambda_.8} parent=31 // pred_check
        %p252 = pneg %p47
      $region34: #{_lambda_.8} parent=31 // pred_check_branch
        %254 = sbr.rel (%p252) target = $region36
      $region35: #{_lambda_.8} parent=31 // pred_region
        %s255 = smul.u32 8, %s21
        %p256 = scmp.lt.s32.totalorder %s20, 1
        %s257 = scalar_select %p256, %s20, 1
        %p258 = scmp.lt.s32.totalorder %s255, 7
        %s259 = scalar_select %p258, %s255, 7
        %s260 = smul.addr %s259, 2
        %s261 = smul.addr %s257, 16
        %s262 = sadd.s32 %s260, %s261
        %s263 = smul.addr %s262, 8
        %s264 = scalar_lea.vmem %s0, %s263
        %s265 = smul.u32 8, %s21
      $region36: #{_lambda_.8} parent=31 // pred_fallthru
        _
      // Predicated region
      $region37: #{_lambda_.8} parent=31 // pred_check
        %p266 = pneg %p75
      $region38: #{_lambda_.8} parent=31 // pred_check_branch
        %268 = sbr.rel (%p266) target = $region40
      $region39: #{_lambda_.8} parent=31 // pred_region
        %s269 = smul.u32 8, %s21
        %p270 = scmp.lt.s32.totalorder %s20, 1
        %s271 = scalar_select %p270, %s20, 1
        %p272 = scmp.lt.s32.totalorder %s269, 7
        %s273 = scalar_select %p272, %s269, 7
        %s274 = smul.addr %s273, 2
        %s275 = smul.addr %s271, 16
        %s276 = sadd.s32 %s274, %s275
        %s277 = smul.addr %s276, 8
        %s278 = scalar_lea.vmem %s1, %s277
        %s279 = smul.u32 8, %s21
      $region40: #{_lambda_.8} parent=31 // pred_fallthru
        _
      // Predicated region
      $region41: #{_lambda_.8} parent=31 // pred_check
        %p280 = pneg %p103
      $region42: #{_lambda_.8} parent=31 // pred_check_branch
        %282 = sbr.rel (%p280) target = $region44
      $region43: #{_lambda_.8} parent=31 // pred_region
        %s283 = smul.u32 128, %s21
        %p284 = scmp.lt.s32.totalorder %s20, 1
        %s285 = scalar_select %p284, %s20, 1
        %p286 = scmp.lt.s32.totalorder %s283, 127
        %s287 = scalar_select %p286, %s283, 127
        %s288 = smul.addr %s285, 128
        %s289 = sadd.s32 %s287, %s288
        %s290 = smul.addr %s289, 8
        %s291 = scalar_lea.vmem %s2, %s290
        %s292 = smul.u32 128, %s21
      $region44: #{_lambda_.8} parent=31 // pred_fallthru
        _
    $region32: #{_lambda_.8} parent=5 // pred_fallthru
      _
    %p293 = scmp.le.s32.totalorder 1, %s13
    %p294 = scmp.lt.s32.totalorder %s13, 3
    %p295 = pnand %p293, %p294
    %p296 = pneg %p295
    // Predicated region
    $region45: #{_lambda_.8} parent=5 // pred_check
      _
    $region46: #{_lambda_.8} parent=5 // pred_check_branch
      %298 = sbr.rel (%p295) target = $region48
    $region47: #{_lambda_.8} parent=5 // pred_region
      %s299 = ssub.s32 %s13, 1
      %s300 = smul.u32 8, %s23
      %p301 = scmp.lt.s32.totalorder %s22, 1
      %s302 = scalar_select %p301, %s22, 1
      %p303 = scmp.lt.s32.totalorder %s300, 7
      %s304 = scalar_select %p303, %s300, 7
      %s305 = smul.addr %s304, 2
      %s306 = smul.addr %s302, 16
      %s307 = sadd.s32 %s305, %s306
      %s308 = smul.addr %s307, 8
      %s309 = scalar_lea.vmem %s0, %s308
      %p310 = pneg %p53
      %p311 = pneg %p50
      %s312 = smul.u32 8, %s23
      %p313 = scmp.lt.s32.totalorder %s22, 1
      %s314 = scalar_select %p313, %s22, 1
      %p315 = scmp.lt.s32.totalorder %s312, 7
      %s316 = scalar_select %p315, %s312, 7
      %s317 = smul.addr %s316, 2
      %s318 = smul.addr %s314, 16
      %s319 = sadd.s32 %s317, %s318
      %s320 = smul.addr %s319, 8
      %s321 = scalar_lea.vmem %s1, %s320
      %p322 = pneg %p81
      %p323 = pneg %p78
      %s324 = smul.u32 128, %s23
      %p325 = scmp.lt.s32.totalorder %s22, 1
      %s326 = scalar_select %p325, %s22, 1
      %p327 = scmp.lt.s32.totalorder %s324, 127
      %s328 = scalar_select %p327, %s324, 127
      %s329 = smul.addr %s326, 128
      %s330 = sadd.s32 %s328, %s329
      %s331 = smul.addr %s330, 8
      %s332 = scalar_lea.vmem %s2, %s331
      %p333 = pneg %p109
      %p334 = pneg %p106
      %p335 = pneg %p130
      %p336 = pneg %p127
      %p337 = pneg %p151
      %p338 = pneg %p148
      %p339 = pneg %p172
      %p340 = pneg %p169
      %p341 = pneg %p193
      %p342 = pneg %p190
      %p343 = pneg %p221
      %p344 = pneg %p218
      %s345 = smul.u32 8, %s23
      %p346 = scmp.lt.s32.totalorder %s22, 1
      %s347 = scalar_select %p346, %s22, 1
      %p348 = scmp.lt.s32.totalorder %s345, 7
      %s349 = scalar_select %p348, %s345, 7
      %s350 = smul.addr %s349, 2
      %s351 = smul.addr %s347, 16
      %s352 = sadd.s32 %s350, %s351
      %s353 = smul.addr %s352, 8
      %s354 = scalar_lea.vmem %s7, %s353
      %s355 = smul.u32 8, %s23
      %p356 = scmp.lt.s32.totalorder %s22, 1
      %s357 = scalar_select %p356, %s22, 1
      %p358 = scmp.lt.s32.totalorder %s355, 7
      %s359 = scalar_select %p358, %s355, 7
      %s360 = smul.addr %s359, 2
      %s361 = smul.addr %s357, 16
      %s362 = sadd.s32 %s360, %s361
      %s363 = smul.addr %s362, 8
      %s364 = scalar_lea.vmem %s0, %s363
      %s365 = smul.u32 8, %s23
      %s366 = smul.u32 8, %s23
      %p367 = scmp.lt.s32.totalorder %s22, 1
      %s368 = scalar_select %p367, %s22, 1
      %p369 = scmp.lt.s32.totalorder %s366, 7
      %s370 = scalar_select %p369, %s366, 7
      %s371 = smul.addr %s370, 2
      %s372 = smul.addr %s368, 16
      %s373 = sadd.s32 %s371, %s372
      %s374 = smul.addr %s373, 8
      %s375 = scalar_lea.vmem %s1, %s374
      %s376 = smul.u32 8, %s23
      %s377 = smul.u32 128, %s23
      %p378 = scmp.lt.s32.totalorder %s22, 1
      %s379 = scalar_select %p378, %s22, 1
      %p380 = scmp.lt.s32.totalorder %s377, 127
      %s381 = scalar_select %p380, %s377, 127
      %s382 = smul.addr %s379, 128
      %s383 = sadd.s32 %s381, %s382
      %s384 = smul.addr %s383, 8
      %s385 = scalar_lea.vmem %s2, %s384
      %s386 = smul.u32 128, %s23
      %s387 = smul.u32 8, %s23
      %p388 = scmp.lt.s32.totalorder %s22, 1
      %s389 = scalar_select %p388, %s22, 1
      %p390 = scmp.lt.s32.totalorder %s387, 7
      %s391 = scalar_select %p390, %s387, 7
      %s392 = smul.addr %s391, 2
      %s393 = smul.addr %s389, 16
      %s394 = sadd.s32 %s392, %s393
      %s395 = smul.addr %s394, 8
      %s396 = scalar_lea.vmem %s7, %s395
      %s397 = smul.u32 8, %s23
      %p398 = scmp.eq.s32.totalorder %s23, 0
      // Predicated region
      $region49: #{_lambda_.8} parent=47 // pred_check
        %p399 = pneg %p398
      $region50: #{_lambda_.8} parent=47 // pred_check_branch
        %401 = sbr.rel (%p399) target = $region52
      $region51: #{_lambda_.8} parent=47 // pred_region
        %402 = vst [vmem:[#allocation2] sm:$0xff] 0.0
        %403 = vst [vmem:[#allocation2 + $0x8] sm:$0xff] 0.0
        %404 = vst [vmem:[#allocation2 + $0x10] sm:$0xff] 0.0
        %405 = vst [vmem:[#allocation2 + $0x18] sm:$0xff] 0.0
      $region52: #{_lambda_.8} parent=47 // pred_fallthru
        _
      %v406 = vld [vmem:[%s375] sm:$0xff]
      %v407 = vld [vmem:[%s375 + $0x8] sm:$0xff]
      %v408 = vld [vmem:[%s375 + $0x10] sm:$0xff]
      %v409 = vld [vmem:[%s375 + $0x18] sm:$0xff]
      %v410 = vld [vmem:[%s375 + $0x20] sm:$0xff]
      %v411 = vld [vmem:[%s375 + $0x28] sm:$0xff]
      %v412 = vld [vmem:[%s375 + $0x30] sm:$0xff]
      %v413 = vld [vmem:[%s375 + $0x38] sm:$0xff]
      %v414 = vld [vmem:[%s375 + $0x40] sm:$0xff]
      %v415 = vld [vmem:[%s375 + $0x48] sm:$0xff]
      %v416 = vld [vmem:[%s375 + $0x50] sm:$0xff]
      %v417 = vld [vmem:[%s375 + $0x58] sm:$0xff]
      %v418 = vld [vmem:[%s375 + $0x60] sm:$0xff]
      %v419 = vld [vmem:[%s375 + $0x68] sm:$0xff]
      %v420 = vld [vmem:[%s375 + $0x70] sm:$0xff]
      %v421 = vld [vmem:[%s375 + $0x78] sm:$0xff]
      %v422 = vld [vmem:[%s5] sm:$0x3]
      %v424 = vlaneseq
      %v425 = vshrl.u32 %v424, 7
      %v426 = vsub.s32 0, %v425
      %v427 = vrot.slane %v422, %v426
      %v428 = vlaneseq
      %v429 = vshrl.u32 %v428, 7
      %v430 = vsub.s32 1, %v429
      %v431 = vrot.slane %v422, %v430
      %v434 = vadd.f32 %v406, %v427
      %v435 = vadd.f32 %v407, %v431
      %v436 = vadd.f32 %v408, %v427
      %v437 = vadd.f32 %v409, %v431
      %v438 = vadd.f32 %v410, %v427
      %v439 = vadd.f32 %v411, %v431
      %v440 = vadd.f32 %v412, %v427
      %v441 = vadd.f32 %v413, %v431
      %v442 = vadd.f32 %v414, %v427
      %v443 = vadd.f32 %v415, %v431
      %v444 = vadd.f32 %v416, %v427
      %v445 = vadd.f32 %v417, %v431
      %v446 = vadd.f32 %v418, %v427
      %v447 = vadd.f32 %v419, %v431
      %v448 = vadd.f32 %v420, %v427
      %v449 = vadd.f32 %v421, %v431
      %vm450 = vcmp.gt.f32.partialorder %v434, 20.0
      %vm451 = vcmp.gt.f32.partialorder %v435, 20.0
      %vm452 = vcmp.gt.f32.partialorder %v436, 20.0
      %vm453 = vcmp.gt.f32.partialorder %v437, 20.0
      %vm454 = vcmp.gt.f32.partialorder %v438, 20.0
      %vm455 = vcmp.gt.f32.partialorder %v439, 20.0
      %vm456 = vcmp.gt.f32.partialorder %v440, 20.0
      %vm457 = vcmp.gt.f32.partialorder %v441, 20.0
      %vm458 = vcmp.gt.f32.partialorder %v442, 20.0
      %vm459 = vcmp.gt.f32.partialorder %v443, 20.0
      %vm460 = vcmp.gt.f32.partialorder %v444, 20.0
      %vm461 = vcmp.gt.f32.partialorder %v445, 20.0
      %vm462 = vcmp.gt.f32.partialorder %v446, 20.0
      %vm463 = vcmp.gt.f32.partialorder %v447, 20.0
      %vm464 = vcmp.gt.f32.partialorder %v448, 20.0
      %vm465 = vcmp.gt.f32.partialorder %v449, 20.0
      %v466 = vmin.f32 %v434, 20.0
      %v467 = vmin.f32 %v435, 20.0
      %v468 = vmin.f32 %v436, 20.0
      %v469 = vmin.f32 %v437, 20.0
      %v470 = vmin.f32 %v438, 20.0
      %v471 = vmin.f32 %v439, 20.0
      %v472 = vmin.f32 %v440, 20.0
      %v473 = vmin.f32 %v441, 20.0
      %v474 = vmin.f32 %v442, 20.0
      %v475 = vmin.f32 %v443, 20.0
      %v476 = vmin.f32 %v444, 20.0
      %v477 = vmin.f32 %v445, 20.0
      %v478 = vmin.f32 %v446, 20.0
      %v479 = vmin.f32 %v447, 20.0
      %v480 = vmin.f32 %v448, 20.0
      %v481 = vmin.f32 %v449, 20.0
      %v482 = vmul.f32 %v466, 1.442695
      %v483 = vpow.pop %v482
      %v484 = vmul.f32 %v467, 1.442695
      %v485 = vpow.pop %v484
      %v486 = vmul.f32 %v468, 1.442695
      %v487 = vpow.pop %v486
      %v488 = vmul.f32 %v469, 1.442695
      %v489 = vpow.pop %v488
      %v490 = vmul.f32 %v470, 1.442695
      %v491 = vpow.pop %v490
      %v492 = vmul.f32 %v471, 1.442695
      %v493 = vpow.pop %v492
      %v494 = vmul.f32 %v472, 1.442695
      %v495 = vpow.pop %v494
      %v496 = vmul.f32 %v473, 1.442695
      %v497 = vpow.pop %v496
      %v498 = vmul.f32 %v474, 1.442695
      %v499 = vpow.pop %v498
      %v500 = vmul.f32 %v475, 1.442695
      %v501 = vpow.pop %v500
      %v502 = vmul.f32 %v476, 1.442695
      %v503 = vpow.pop %v502
      %v504 = vmul.f32 %v477, 1.442695
      %v505 = vpow.pop %v504
      %v506 = vmul.f32 %v478, 1.442695
      %v507 = vpow.pop %v506
      %v508 = vmul.f32 %v479, 1.442695
      %v509 = vpow.pop %v508
      %v510 = vmul.f32 %v480, 1.442695
      %v511 = vpow.pop %v510
      %v512 = vmul.f32 %v481, 1.442695
      %v513 = vpow.pop %v512
      %v514 = vadd.f32 %v483, 1.0
      %v515 = vlog2.pop %v514
      %v516 = vmul.f32 %v515, 0.6931472
      %v517 = vmul.f32 -0.5, %v483
      %v518 = vadd.f32 %v517, 1.0
      %v519 = vmul.f32 %v518, %v483
      %v520 = vand.u32 2147483647, %v483
      %vm521 = vcmp.lt.f32.partialorder %v520, 0.0004427343
      %v522 = vsel %vm521, %v519, %v516
      %v523 = vadd.f32 %v485, 1.0
      %v524 = vlog2.pop %v523
      %v525 = vmul.f32 %v524, 0.6931472
      %v526 = vmul.f32 -0.5, %v485
      %v527 = vadd.f32 %v526, 1.0
      %v528 = vmul.f32 %v527, %v485
      %v529 = vand.u32 2147483647, %v485
      %vm530 = vcmp.lt.f32.partialorder %v529, 0.0004427343
      %v531 = vsel %vm530, %v528, %v525
      %v532 = vadd.f32 %v487, 1.0
      %v533 = vlog2.pop %v532
      %v534 = vmul.f32 %v533, 0.6931472
      %v535 = vmul.f32 -0.5, %v487
      %v536 = vadd.f32 %v535, 1.0
      %v537 = vmul.f32 %v536, %v487
      %v538 = vand.u32 2147483647, %v487
      %vm539 = vcmp.lt.f32.partialorder %v538, 0.0004427343
      %v540 = vsel %vm539, %v537, %v534
      %v541 = vadd.f32 %v489, 1.0
      %v542 = vlog2.pop %v541
      %v543 = vmul.f32 %v542, 0.6931472
      %v544 = vmul.f32 -0.5, %v489
      %v545 = vadd.f32 %v544, 1.0
      %v546 = vmul.f32 %v545, %v489
      %v547 = vand.u32 2147483647, %v489
      %vm548 = vcmp.lt.f32.partialorder %v547, 0.0004427343
      %v549 = vsel %vm548, %v546, %v543
      %v550 = vadd.f32 %v491, 1.0
      %v551 = vlog2.pop %v550
      %v552 = vmul.f32 %v551, 0.6931472
      %v553 = vmul.f32 -0.5, %v491
      %v554 = vadd.f32 %v553, 1.0
      %v555 = vmul.f32 %v554, %v491
      %v556 = vand.u32 2147483647, %v491
      %vm557 = vcmp.lt.f32.partialorder %v556, 0.0004427343
      %v558 = vsel %vm557, %v555, %v552
      %v559 = vadd.f32 %v493, 1.0
      %v560 = vlog2.pop %v559
      %v561 = vmul.f32 %v560, 0.6931472
      %v562 = vmul.f32 -0.5, %v493
      %v563 = vadd.f32 %v562, 1.0
      %v564 = vmul.f32 %v563, %v493
      %v565 = vand.u32 2147483647, %v493
      %vm566 = vcmp.lt.f32.partialorder %v565, 0.0004427343
      %v567 = vsel %vm566, %v564, %v561
      %v568 = vadd.f32 %v495, 1.0
      %v569 = vlog2.pop %v568
      %v570 = vmul.f32 %v569, 0.6931472
      %v571 = vmul.f32 -0.5, %v495
      %v572 = vadd.f32 %v571, 1.0
      %v573 = vmul.f32 %v572, %v495
      %v574 = vand.u32 2147483647, %v495
      %vm575 = vcmp.lt.f32.partialorder %v574, 0.0004427343
      %v576 = vsel %vm575, %v573, %v570
      %v577 = vadd.f32 %v497, 1.0
      %v578 = vlog2.pop %v577
      %v579 = vmul.f32 %v578, 0.6931472
      %v580 = vmul.f32 -0.5, %v497
      %v581 = vadd.f32 %v580, 1.0
      %v582 = vmul.f32 %v581, %v497
      %v583 = vand.u32 2147483647, %v497
      %vm584 = vcmp.lt.f32.partialorder %v583, 0.0004427343
      %v585 = vsel %vm584, %v582, %v579
      %v586 = vadd.f32 %v499, 1.0
      %v587 = vlog2.pop %v586
      %v588 = vmul.f32 %v587, 0.6931472
      %v589 = vmul.f32 -0.5, %v499
      %v590 = vadd.f32 %v589, 1.0
      %v591 = vmul.f32 %v590, %v499
      %v592 = vand.u32 2147483647, %v499
      %vm593 = vcmp.lt.f32.partialorder %v592, 0.0004427343
      %v594 = vsel %vm593, %v591, %v588
      %v595 = vadd.f32 %v501, 1.0
      %v596 = vlog2.pop %v595
      %v597 = vmul.f32 %v596, 0.6931472
      %v598 = vmul.f32 -0.5, %v501
      %v599 = vadd.f32 %v598, 1.0
      %v600 = vmul.f32 %v599, %v501
      %v601 = vand.u32 2147483647, %v501
      %vm602 = vcmp.lt.f32.partialorder %v601, 0.0004427343
      %v603 = vsel %vm602, %v600, %v597
      %v604 = vadd.f32 %v503, 1.0
      %v605 = vlog2.pop %v604
      %v606 = vmul.f32 %v605, 0.6931472
      %v607 = vmul.f32 -0.5, %v503
      %v608 = vadd.f32 %v607, 1.0
      %v609 = vmul.f32 %v608, %v503
      %v610 = vand.u32 2147483647, %v503
      %vm611 = vcmp.lt.f32.partialorder %v610, 0.0004427343
      %v612 = vsel %vm611, %v609, %v606
      %v613 = vadd.f32 %v505, 1.0
      %v614 = vlog2.pop %v613
      %v615 = vmul.f32 %v614, 0.6931472
      %v616 = vmul.f32 -0.5, %v505
      %v617 = vadd.f32 %v616, 1.0
      %v618 = vmul.f32 %v617, %v505
      %v619 = vand.u32 2147483647, %v505
      %vm620 = vcmp.lt.f32.partialorder %v619, 0.0004427343
      %v621 = vsel %vm620, %v618, %v615
      %v622 = vadd.f32 %v507, 1.0
      %v623 = vlog2.pop %v622
      %v624 = vmul.f32 %v623, 0.6931472
      %v625 = vmul.f32 -0.5, %v507
      %v626 = vadd.f32 %v625, 1.0
      %v627 = vmul.f32 %v626, %v507
      %v628 = vand.u32 2147483647, %v507
      %vm629 = vcmp.lt.f32.partialorder %v628, 0.0004427343
      %v630 = vsel %vm629, %v627, %v624
      %v631 = vadd.f32 %v509, 1.0
      %v632 = vlog2.pop %v631
      %v633 = vmul.f32 %v632, 0.6931472
      %v634 = vmul.f32 -0.5, %v509
      %v635 = vadd.f32 %v634, 1.0
      %v636 = vmul.f32 %v635, %v509
      %v637 = vand.u32 2147483647, %v509
      %vm638 = vcmp.lt.f32.partialorder %v637, 0.0004427343
      %v639 = vsel %vm638, %v636, %v633
      %v640 = vadd.f32 %v511, 1.0
      %v641 = vlog2.pop %v640
      %v642 = vmul.f32 %v641, 0.6931472
      %v643 = vmul.f32 -0.5, %v511
      %v644 = vadd.f32 %v643, 1.0
      %v645 = vmul.f32 %v644, %v511
      %v646 = vand.u32 2147483647, %v511
      %vm647 = vcmp.lt.f32.partialorder %v646, 0.0004427343
      %v648 = vsel %vm647, %v645, %v642
      %v649 = vadd.f32 %v513, 1.0
      %v650 = vlog2.pop %v649
      %v651 = vmul.f32 %v650, 0.6931472
      %v652 = vmul.f32 -0.5, %v513
      %v653 = vadd.f32 %v652, 1.0
      %v654 = vmul.f32 %v653, %v513
      %v655 = vand.u32 2147483647, %v513
      %vm656 = vcmp.lt.f32.partialorder %v655, 0.0004427343
      %v657 = vsel %vm656, %v654, %v651
      %v658 = vsel %vm450, %v434, %v522
      %v659 = vsel %vm451, %v435, %v531
      %v660 = vsel %vm452, %v436, %v540
      %v661 = vsel %vm453, %v437, %v549
      %v662 = vsel %vm454, %v438, %v558
      %v663 = vsel %vm455, %v439, %v567
      %v664 = vsel %vm456, %v440, %v576
      %v665 = vsel %vm457, %v441, %v585
      %v666 = vsel %vm458, %v442, %v594
      %v667 = vsel %vm459, %v443, %v603
      %v668 = vsel %vm460, %v444, %v612
      %v669 = vsel %vm461, %v445, %v621
      %v670 = vsel %vm462, %v446, %v630
      %v671 = vsel %vm463, %v447, %v639
      %v672 = vsel %vm464, %v448, %v648
      %v673 = vsel %vm465, %v449, %v657
      %v674 = vld [vmem:[%s364] sm:$0xff]
      %v675 = vld [vmem:[%s364 + $0x8] sm:$0xff]
      %v676 = vld [vmem:[%s364 + $0x10] sm:$0xff]
      %v677 = vld [vmem:[%s364 + $0x18] sm:$0xff]
      %v678 = vld [vmem:[%s364 + $0x20] sm:$0xff]
      %v679 = vld [vmem:[%s364 + $0x28] sm:$0xff]
      %v680 = vld [vmem:[%s364 + $0x30] sm:$0xff]
      %v681 = vld [vmem:[%s364 + $0x38] sm:$0xff]
      %v682 = vld [vmem:[%s364 + $0x40] sm:$0xff]
      %v683 = vld [vmem:[%s364 + $0x48] sm:$0xff]
      %v684 = vld [vmem:[%s364 + $0x50] sm:$0xff]
      %v685 = vld [vmem:[%s364 + $0x58] sm:$0xff]
      %v686 = vld [vmem:[%s364 + $0x60] sm:$0xff]
      %v687 = vld [vmem:[%s364 + $0x68] sm:$0xff]
      %v688 = vld [vmem:[%s364 + $0x70] sm:$0xff]
      %v689 = vld [vmem:[%s364 + $0x78] sm:$0xff]
      %v690 = vmul.f32 %v658, %v674
      %v691 = vmul.f32 %v659, %v675
      %v692 = vmul.f32 %v660, %v676
      %v693 = vmul.f32 %v661, %v677
      %v694 = vmul.f32 %v662, %v678
      %v695 = vmul.f32 %v663, %v679
      %v696 = vmul.f32 %v664, %v680
      %v697 = vmul.f32 %v665, %v681
      %v698 = vmul.f32 %v666, %v682
      %v699 = vmul.f32 %v667, %v683
      %v700 = vmul.f32 %v668, %v684
      %v701 = vmul.f32 %v669, %v685
      %v702 = vmul.f32 %v670, %v686
      %v703 = vmul.f32 %v671, %v687
      %v704 = vmul.f32 %v672, %v688
      %v705 = vmul.f32 %v673, %v689
      %v706 = vld [vmem:[%s3] sm:$0xff]
      %v707 = vld [vmem:[%s3 + $0x8] sm:$0xff]
      %v708 = vld [vmem:[%s3 + $0x10] sm:$0xff]
      %v709 = vld [vmem:[%s3 + $0x18] sm:$0xff]
      %v726 = vcombine.low %v658, %v659
      %v727 = vcombine.high %v658, %v659
      %v729 = vunpack.c.l.s4 1966171168
      %v730 = vunpack.c.0.s8 %v729
      %v731 = vlaneseq
      %v732 = vshrl.u32 %v731, 7
      %v733 = vsub.s32 %v730, %v732
      %v734 = vrot.slane %v726, %v733
      %v736 = vunpack.c.l.s4 1966171168
      %v737 = vunpack.c.0.s8 %v736
      %v738 = vlaneseq
      %v739 = vshrl.u32 %v738, 7
      %v740 = vsub.s32 %v737, %v739
      %v741 = vrot.slane %v727, %v740
      %v742 = vcombine.high %v734, %v734
      %v743 = vcombine.high %v741, %v741
      %v745 = vunpack.c.l.s4 1966171168
      %v746 = vunpack.c.0.s8 %v745
      %v747 = vlaneseq
      %v748 = vshrl.u32 %v747, 7
      %v749 = vsub.s32 %v746, %v748
      %v750 = vrot.slane %v734, %v749
      %v752 = vunpack.c.l.s4 1966171168
      %v753 = vunpack.c.0.s8 %v752
      %v754 = vlaneseq
      %v755 = vshrl.u32 %v754, 7
      %v756 = vsub.s32 %v753, %v755
      %v757 = vrot.slane %v741, %v756
      %v759 = vunpack.c.l.s4 1966171168
      %v760 = vunpack.c.0.s8 %v759
      %v761 = vlaneseq
      %v762 = vshrl.u32 %v761, 7
      %v763 = vsub.s32 %v760, %v762
      %v764 = vrot.slane %v742, %v763
      %v766 = vunpack.c.l.s4 1966171168
      %v767 = vunpack.c.0.s8 %v766
      %v768 = vlaneseq
      %v769 = vshrl.u32 %v768, 7
      %v770 = vsub.s32 %v767, %v769
      %v771 = vrot.slane %v743, %v770
      %v772 = vcombine.high %v750, %v750
      %v773 = vcombine.high %v757, %v757
      %v774 = vcombine.high %v764, %v764
      %v775 = vcombine.high %v771, %v771
      %v776 = vcombine.low %v660, %v661
      %v777 = vcombine.high %v660, %v661
      %v779 = vunpack.c.l.s4 1966171168
      %v780 = vunpack.c.0.s8 %v779
      %v781 = vlaneseq
      %v782 = vshrl.u32 %v781, 7
      %v783 = vsub.s32 %v780, %v782
      %v784 = vrot.slane %v776, %v783
      %v786 = vunpack.c.l.s4 1966171168
      %v787 = vunpack.c.0.s8 %v786
      %v788 = vlaneseq
      %v789 = vshrl.u32 %v788, 7
      %v790 = vsub.s32 %v787, %v789
      %v791 = vrot.slane %v777, %v790
      %v792 = vcombine.high %v784, %v784
      %v793 = vcombine.high %v791, %v791
      %v795 = vunpack.c.l.s4 1966171168
      %v796 = vunpack.c.0.s8 %v795
      %v797 = vlaneseq
      %v798 = vshrl.u32 %v797, 7
      %v799 = vsub.s32 %v796, %v798
      %v800 = vrot.slane %v784, %v799
      %v802 = vunpack.c.l.s4 1966171168
      %v803 = vunpack.c.0.s8 %v802
      %v804 = vlaneseq
      %v805 = vshrl.u32 %v804, 7
      %v806 = vsub.s32 %v803, %v805
      %v807 = vrot.slane %v791, %v806
      %v809 = vunpack.c.l.s4 1966171168
      %v810 = vunpack.c.0.s8 %v809
      %v811 = vlaneseq
      %v812 = vshrl.u32 %v811, 7
      %v813 = vsub.s32 %v810, %v812
      %v814 = vrot.slane %v792, %v813
      %v816 = vunpack.c.l.s4 1966171168
      %v817 = vunpack.c.0.s8 %v816
      %v818 = vlaneseq
      %v819 = vshrl.u32 %v818, 7
      %v820 = vsub.s32 %v817, %v819
      %v821 = vrot.slane %v793, %v820
      %v822 = vcombine.high %v800, %v800
      %v823 = vcombine.high %v807, %v807
      %v824 = vcombine.high %v814, %v814
      %v825 = vcombine.high %v821, %v821
      %v826 = vcombine.low %v662, %v663
      %v827 = vcombine.high %v662, %v663
      %v829 = vunpack.c.l.s4 1966171168
      %v830 = vunpack.c.0.s8 %v829
      %v831 = vlaneseq
      %v832 = vshrl.u32 %v831, 7
      %v833 = vsub.s32 %v830, %v832
      %v834 = vrot.slane %v826, %v833
      %v836 = vunpack.c.l.s4 1966171168
      %v837 = vunpack.c.0.s8 %v836
      %v838 = vlaneseq
      %v839 = vshrl.u32 %v838, 7
      %v840 = vsub.s32 %v837, %v839
      %v841 = vrot.slane %v827, %v840
      %v842 = vcombine.high %v834, %v834
      %v843 = vcombine.high %v841, %v841
      %v845 = vunpack.c.l.s4 1966171168
      %v846 = vunpack.c.0.s8 %v845
      %v847 = vlaneseq
      %v848 = vshrl.u32 %v847, 7
      %v849 = vsub.s32 %v846, %v848
      %v850 = vrot.slane %v834, %v849
      %v852 = vunpack.c.l.s4 1966171168
      %v853 = vunpack.c.0.s8 %v852
      %v854 = vlaneseq
      %v855 = vshrl.u32 %v854, 7
      %v856 = vsub.s32 %v853, %v855
      %v857 = vrot.slane %v841, %v856
      %v859 = vunpack.c.l.s4 1966171168
      %v860 = vunpack.c.0.s8 %v859
      %v861 = vlaneseq
      %v862 = vshrl.u32 %v861, 7
      %v863 = vsub.s32 %v860, %v862
      %v864 = vrot.slane %v842, %v863
      %v866 = vunpack.c.l.s4 1966171168
      %v867 = vunpack.c.0.s8 %v866
      %v868 = vlaneseq
      %v869 = vshrl.u32 %v868, 7
      %v870 = vsub.s32 %v867, %v869
      %v871 = vrot.slane %v843, %v870
      %v872 = vcombine.high %v850, %v850
      %v873 = vcombine.high %v857, %v857
      %v874 = vcombine.high %v864, %v864
      %v875 = vcombine.high %v871, %v871
      %v876 = vcombine.low %v664, %v665
      %v877 = vcombine.high %v664, %v665
      %v879 = vunpack.c.l.s4 1966171168
      %v880 = vunpack.c.0.s8 %v879
      %v881 = vlaneseq
      %v882 = vshrl.u32 %v881, 7
      %v883 = vsub.s32 %v880, %v882
      %v884 = vrot.slane %v876, %v883
      %v886 = vunpack.c.l.s4 1966171168
      %v887 = vunpack.c.0.s8 %v886
      %v888 = vlaneseq
      %v889 = vshrl.u32 %v888, 7
      %v890 = vsub.s32 %v887, %v889
      %v891 = vrot.slane %v877, %v890
      %v892 = vcombine.high %v884, %v884
      %v893 = vcombine.high %v891, %v891
      %v895 = vunpack.c.l.s4 1966171168
      %v896 = vunpack.c.0.s8 %v895
      %v897 = vlaneseq
      %v898 = vshrl.u32 %v897, 7
      %v899 = vsub.s32 %v896, %v898
      %v900 = vrot.slane %v884, %v899
      %v902 = vunpack.c.l.s4 1966171168
      %v903 = vunpack.c.0.s8 %v902
      %v904 = vlaneseq
      %v905 = vshrl.u32 %v904, 7
      %v906 = vsub.s32 %v903, %v905
      %v907 = vrot.slane %v891, %v906
      %v909 = vunpack.c.l.s4 1966171168
      %v910 = vunpack.c.0.s8 %v909
      %v911 = vlaneseq
      %v912 = vshrl.u32 %v911, 7
      %v913 = vsub.s32 %v910, %v912
      %v914 = vrot.slane %v892, %v913
      %v916 = vunpack.c.l.s4 1966171168
      %v917 = vunpack.c.0.s8 %v916
      %v918 = vlaneseq
      %v919 = vshrl.u32 %v918, 7
      %v920 = vsub.s32 %v917, %v919
      %v921 = vrot.slane %v893, %v920
      %v922 = vcombine.high %v900, %v900
      %v923 = vcombine.high %v907, %v907
      %v924 = vcombine.high %v914, %v914
      %v925 = vcombine.high %v921, %v921
      %v926 = vcombine.low %v666, %v667
      %v927 = vcombine.high %v666, %v667
      %v929 = vunpack.c.l.s4 1966171168
      %v930 = vunpack.c.0.s8 %v929
      %v931 = vlaneseq
      %v932 = vshrl.u32 %v931, 7
      %v933 = vsub.s32 %v930, %v932
      %v934 = vrot.slane %v926, %v933
      %v936 = vunpack.c.l.s4 1966171168
      %v937 = vunpack.c.0.s8 %v936
      %v938 = vlaneseq
      %v939 = vshrl.u32 %v938, 7
      %v940 = vsub.s32 %v937, %v939
      %v941 = vrot.slane %v927, %v940
      %v942 = vcombine.high %v934, %v934
      %v943 = vcombine.high %v941, %v941
      %v945 = vunpack.c.l.s4 1966171168
      %v946 = vunpack.c.0.s8 %v945
      %v947 = vlaneseq
      %v948 = vshrl.u32 %v947, 7
      %v949 = vsub.s32 %v946, %v948
      %v950 = vrot.slane %v934, %v949
      %v952 = vunpack.c.l.s4 1966171168
      %v953 = vunpack.c.0.s8 %v952
      %v954 = vlaneseq
      %v955 = vshrl.u32 %v954, 7
      %v956 = vsub.s32 %v953, %v955
      %v957 = vrot.slane %v941, %v956
      %v959 = vunpack.c.l.s4 1966171168
      %v960 = vunpack.c.0.s8 %v959
      %v961 = vlaneseq
      %v962 = vshrl.u32 %v961, 7
      %v963 = vsub.s32 %v960, %v962
      %v964 = vrot.slane %v942, %v963
      %v966 = vunpack.c.l.s4 1966171168
      %v967 = vunpack.c.0.s8 %v966
      %v968 = vlaneseq
      %v969 = vshrl.u32 %v968, 7
      %v970 = vsub.s32 %v967, %v969
      %v971 = vrot.slane %v943, %v970
      %v972 = vcombine.high %v950, %v950
      %v973 = vcombine.high %v957, %v957
      %v974 = vcombine.high %v964, %v964
      %v975 = vcombine.high %v971, %v971
      %v976 = vcombine.low %v668, %v669
      %v977 = vcombine.high %v668, %v669
      %v979 = vunpack.c.l.s4 1966171168
      %v980 = vunpack.c.0.s8 %v979
      %v981 = vlaneseq
      %v982 = vshrl.u32 %v981, 7
      %v983 = vsub.s32 %v980, %v982
      %v984 = vrot.slane %v976, %v983
      %v986 = vunpack.c.l.s4 1966171168
      %v987 = vunpack.c.0.s8 %v986
      %v988 = vlaneseq
      %v989 = vshrl.u32 %v988, 7
      %v990 = vsub.s32 %v987, %v989
      %v991 = vrot.slane %v977, %v990
      %v992 = vcombine.high %v984, %v984
      %v993 = vcombine.high %v991, %v991
      %v995 = vunpack.c.l.s4 1966171168
      %v996 = vunpack.c.0.s8 %v995
      %v997 = vlaneseq
      %v998 = vshrl.u32 %v997, 7
      %v999 = vsub.s32 %v996, %v998
      %v1000 = vrot.slane %v984, %v999
      %v1002 = vunpack.c.l.s4 1966171168
      %v1003 = vunpack.c.0.s8 %v1002
      %v1004 = vlaneseq
      %v1005 = vshrl.u32 %v1004, 7
      %v1006 = vsub.s32 %v1003, %v1005
      %v1007 = vrot.slane %v991, %v1006
      %v1009 = vunpack.c.l.s4 1966171168
      %v1010 = vunpack.c.0.s8 %v1009
      %v1011 = vlaneseq
      %v1012 = vshrl.u32 %v1011, 7
      %v1013 = vsub.s32 %v1010, %v1012
      %v1014 = vrot.slane %v992, %v1013
      %v1016 = vunpack.c.l.s4 1966171168
      %v1017 = vunpack.c.0.s8 %v1016
      %v1018 = vlaneseq
      %v1019 = vshrl.u32 %v1018, 7
      %v1020 = vsub.s32 %v1017, %v1019
      %v1021 = vrot.slane %v993, %v1020
      %v1022 = vcombine.high %v1000, %v1000
      %v1023 = vcombine.high %v1007, %v1007
      %v1024 = vcombine.high %v1014, %v1014
      %v1025 = vcombine.high %v1021, %v1021
      %v1026 = vcombine.low %v670, %v671
      %v1027 = vcombine.high %v670, %v671
      %v1029 = vunpack.c.l.s4 1966171168
      %v1030 = vunpack.c.0.s8 %v1029
      %v1031 = vlaneseq
      %v1032 = vshrl.u32 %v1031, 7
      %v1033 = vsub.s32 %v1030, %v1032
      %v1034 = vrot.slane %v1026, %v1033
      %v1036 = vunpack.c.l.s4 1966171168
      %v1037 = vunpack.c.0.s8 %v1036
      %v1038 = vlaneseq
      %v1039 = vshrl.u32 %v1038, 7
      %v1040 = vsub.s32 %v1037, %v1039
      %v1041 = vrot.slane %v1027, %v1040
      %v1042 = vcombine.high %v1034, %v1034
      %v1043 = vcombine.high %v1041, %v1041
      %v1045 = vunpack.c.l.s4 1966171168
      %v1046 = vunpack.c.0.s8 %v1045
      %v1047 = vlaneseq
      %v1048 = vshrl.u32 %v1047, 7
      %v1049 = vsub.s32 %v1046, %v1048
      %v1050 = vrot.slane %v1034, %v1049
      %v1052 = vunpack.c.l.s4 1966171168
      %v1053 = vunpack.c.0.s8 %v1052
      %v1054 = vlaneseq
      %v1055 = vshrl.u32 %v1054, 7
      %v1056 = vsub.s32 %v1053, %v1055
      %v1057 = vrot.slane %v1041, %v1056
      %v1059 = vunpack.c.l.s4 1966171168
      %v1060 = vunpack.c.0.s8 %v1059
      %v1061 = vlaneseq
      %v1062 = vshrl.u32 %v1061, 7
      %v1063 = vsub.s32 %v1060, %v1062
      %v1064 = vrot.slane %v1042, %v1063
      %v1066 = vunpack.c.l.s4 1966171168
      %v1067 = vunpack.c.0.s8 %v1066
      %v1068 = vlaneseq
      %v1069 = vshrl.u32 %v1068, 7
      %v1070 = vsub.s32 %v1067, %v1069
      %v1071 = vrot.slane %v1043, %v1070
      %v1072 = vcombine.high %v1050, %v1050
      %v1073 = vcombine.high %v1057, %v1057
      %v1074 = vcombine.high %v1064, %v1064
      %v1075 = vcombine.high %v1071, %v1071
      %v1076 = vcombine.low %v672, %v673
      %v1077 = vcombine.high %v672, %v673
      %v1079 = vunpack.c.l.s4 1966171168
      %v1080 = vunpack.c.0.s8 %v1079
      %v1081 = vlaneseq
      %v1082 = vshrl.u32 %v1081, 7
      %v1083 = vsub.s32 %v1080, %v1082
      %v1084 = vrot.slane %v1076, %v1083
      %v1086 = vunpack.c.l.s4 1966171168
      %v1087 = vunpack.c.0.s8 %v1086
      %v1088 = vlaneseq
      %v1089 = vshrl.u32 %v1088, 7
      %v1090 = vsub.s32 %v1087, %v1089
      %v1091 = vrot.slane %v1077, %v1090
      %v1092 = vcombine.high %v1084, %v1084
      %v1093 = vcombine.high %v1091, %v1091
      %v1095 = vunpack.c.l.s4 1966171168
      %v1096 = vunpack.c.0.s8 %v1095
      %v1097 = vlaneseq
      %v1098 = vshrl.u32 %v1097, 7
      %v1099 = vsub.s32 %v1096, %v1098
      %v1100 = vrot.slane %v1084, %v1099
      %v1102 = vunpack.c.l.s4 1966171168
      %v1103 = vunpack.c.0.s8 %v1102
      %v1104 = vlaneseq
      %v1105 = vshrl.u32 %v1104, 7
      %v1106 = vsub.s32 %v1103, %v1105
      %v1107 = vrot.slane %v1091, %v1106
      %v1109 = vunpack.c.l.s4 1966171168
      %v1110 = vunpack.c.0.s8 %v1109
      %v1111 = vlaneseq
      %v1112 = vshrl.u32 %v1111, 7
      %v1113 = vsub.s32 %v1110, %v1112
      %v1114 = vrot.slane %v1092, %v1113
      %v1116 = vunpack.c.l.s4 1966171168
      %v1117 = vunpack.c.0.s8 %v1116
      %v1118 = vlaneseq
      %v1119 = vshrl.u32 %v1118, 7
      %v1120 = vsub.s32 %v1117, %v1119
      %v1121 = vrot.slane %v1093, %v1120
      %v1122 = vcombine.high %v1100, %v1100
      %v1123 = vcombine.high %v1107, %v1107
      %v1124 = vcombine.high %v1114, %v1114
      %v1125 = vcombine.high %v1121, %v1121
      %v1126 = vlaneseq
      %v1127 = vshrl.u32 %v1126, 7
      %v1128 = vsub.s32 0, %v1127
      %v1129 = vrot.slane %v750, %v1128
      %v1130 = vlaneseq
      %v1131 = vshrl.u32 %v1130, 7
      %v1132 = vsub.s32 1, %v1131
      %v1133 = vrot.slane %v750, %v1132
      %v1134 = vlaneseq
      %v1135 = vshrl.u32 %v1134, 7
      %v1136 = vsub.s32 0, %v1135
      %v1137 = vrot.slane %v764, %v1136
      %v1138 = vlaneseq
      %v1139 = vshrl.u32 %v1138, 7
      %v1140 = vsub.s32 1, %v1139
      %v1141 = vrot.slane %v764, %v1140
      %v1142 = vlaneseq
      %v1143 = vshrl.u32 %v1142, 7
      %v1144 = vsub.s32 0, %v1143
      %v1145 = vrot.slane %v772, %v1144
      %v1146 = vlaneseq
      %v1147 = vshrl.u32 %v1146, 7
      %v1148 = vsub.s32 1, %v1147
      %v1149 = vrot.slane %v772, %v1148
      %v1150 = vlaneseq
      %v1151 = vshrl.u32 %v1150, 7
      %v1152 = vsub.s32 0, %v1151
      %v1153 = vrot.slane %v774, %v1152
      %v1154 = vlaneseq
      %v1155 = vshrl.u32 %v1154, 7
      %v1156 = vsub.s32 1, %v1155
      %v1157 = vrot.slane %v774, %v1156
      %v1158 = vlaneseq
      %v1159 = vshrl.u32 %v1158, 7
      %v1160 = vsub.s32 0, %v1159
      %v1161 = vrot.slane %v757, %v1160
      %v1162 = vlaneseq
      %v1163 = vshrl.u32 %v1162, 7
      %v1164 = vsub.s32 1, %v1163
      %v1165 = vrot.slane %v757, %v1164
      %v1166 = vlaneseq
      %v1167 = vshrl.u32 %v1166, 7
      %v1168 = vsub.s32 0, %v1167
      %v1169 = vrot.slane %v771, %v1168
      %v1170 = vlaneseq
      %v1171 = vshrl.u32 %v1170, 7
      %v1172 = vsub.s32 1, %v1171
      %v1173 = vrot.slane %v771, %v1172
      %v1174 = vlaneseq
      %v1175 = vshrl.u32 %v1174, 7
      %v1176 = vsub.s32 0, %v1175
      %v1177 = vrot.slane %v773, %v1176
      %v1178 = vlaneseq
      %v1179 = vshrl.u32 %v1178, 7
      %v1180 = vsub.s32 1, %v1179
      %v1181 = vrot.slane %v773, %v1180
      %v1182 = vlaneseq
      %v1183 = vshrl.u32 %v1182, 7
      %v1184 = vsub.s32 0, %v1183
      %v1185 = vrot.slane %v775, %v1184
      %v1186 = vlaneseq
      %v1187 = vshrl.u32 %v1186, 7
      %v1188 = vsub.s32 1, %v1187
      %v1189 = vrot.slane %v775, %v1188
      %v1190 = vlaneseq
      %v1191 = vshrl.u32 %v1190, 7
      %v1192 = vsub.s32 0, %v1191
      %v1193 = vrot.slane %v800, %v1192
      %v1194 = vlaneseq
      %v1195 = vshrl.u32 %v1194, 7
      %v1196 = vsub.s32 1, %v1195
      %v1197 = vrot.slane %v800, %v1196
      %v1198 = vlaneseq
      %v1199 = vshrl.u32 %v1198, 7
      %v1200 = vsub.s32 0, %v1199
      %v1201 = vrot.slane %v814, %v1200
      %v1202 = vlaneseq
      %v1203 = vshrl.u32 %v1202, 7
      %v1204 = vsub.s32 1, %v1203
      %v1205 = vrot.slane %v814, %v1204
      %v1206 = vlaneseq
      %v1207 = vshrl.u32 %v1206, 7
      %v1208 = vsub.s32 0, %v1207
      %v1209 = vrot.slane %v822, %v1208
      %v1210 = vlaneseq
      %v1211 = vshrl.u32 %v1210, 7
      %v1212 = vsub.s32 1, %v1211
      %v1213 = vrot.slane %v822, %v1212
      %v1214 = vlaneseq
      %v1215 = vshrl.u32 %v1214, 7
      %v1216 = vsub.s32 0, %v1215
      %v1217 = vrot.slane %v824, %v1216
      %v1218 = vlaneseq
      %v1219 = vshrl.u32 %v1218, 7
      %v1220 = vsub.s32 1, %v1219
      %v1221 = vrot.slane %v824, %v1220
      %v1222 = vlaneseq
      %v1223 = vshrl.u32 %v1222, 7
      %v1224 = vsub.s32 0, %v1223
      %v1225 = vrot.slane %v807, %v1224
      %v1226 = vlaneseq
      %v1227 = vshrl.u32 %v1226, 7
      %v1228 = vsub.s32 1, %v1227
      %v1229 = vrot.slane %v807, %v1228
      %v1230 = vlaneseq
      %v1231 = vshrl.u32 %v1230, 7
      %v1232 = vsub.s32 0, %v1231
      %v1233 = vrot.slane %v821, %v1232
      %v1234 = vlaneseq
      %v1235 = vshrl.u32 %v1234, 7
      %v1236 = vsub.s32 1, %v1235
      %v1237 = vrot.slane %v821, %v1236
      %v1238 = vlaneseq
      %v1239 = vshrl.u32 %v1238, 7
      %v1240 = vsub.s32 0, %v1239
      %v1241 = vrot.slane %v823, %v1240
      %v1242 = vlaneseq
      %v1243 = vshrl.u32 %v1242, 7
      %v1244 = vsub.s32 1, %v1243
      %v1245 = vrot.slane %v823, %v1244
      %v1246 = vlaneseq
      %v1247 = vshrl.u32 %v1246, 7
      %v1248 = vsub.s32 0, %v1247
      %v1249 = vrot.slane %v825, %v1248
      %v1250 = vlaneseq
      %v1251 = vshrl.u32 %v1250, 7
      %v1252 = vsub.s32 1, %v1251
      %v1253 = vrot.slane %v825, %v1252
      %v1254 = vlaneseq
      %v1255 = vshrl.u32 %v1254, 7
      %v1256 = vsub.s32 0, %v1255
      %v1257 = vrot.slane %v850, %v1256
      %v1258 = vlaneseq
      %v1259 = vshrl.u32 %v1258, 7
      %v1260 = vsub.s32 1, %v1259
      %v1261 = vrot.slane %v850, %v1260
      %v1262 = vlaneseq
      %v1263 = vshrl.u32 %v1262, 7
      %v1264 = vsub.s32 0, %v1263
      %v1265 = vrot.slane %v864, %v1264
      %v1266 = vlaneseq
      %v1267 = vshrl.u32 %v1266, 7
      %v1268 = vsub.s32 1, %v1267
      %v1269 = vrot.slane %v864, %v1268
      %v1270 = vlaneseq
      %v1271 = vshrl.u32 %v1270, 7
      %v1272 = vsub.s32 0, %v1271
      %v1273 = vrot.slane %v872, %v1272
      %v1274 = vlaneseq
      %v1275 = vshrl.u32 %v1274, 7
      %v1276 = vsub.s32 1, %v1275
      %v1277 = vrot.slane %v872, %v1276
      %v1278 = vlaneseq
      %v1279 = vshrl.u32 %v1278, 7
      %v1280 = vsub.s32 0, %v1279
      %v1281 = vrot.slane %v874, %v1280
      %v1282 = vlaneseq
      %v1283 = vshrl.u32 %v1282, 7
      %v1284 = vsub.s32 1, %v1283
      %v1285 = vrot.slane %v874, %v1284
      %v1286 = vlaneseq
      %v1287 = vshrl.u32 %v1286, 7
      %v1288 = vsub.s32 0, %v1287
      %v1289 = vrot.slane %v857, %v1288
      %v1290 = vlaneseq
      %v1291 = vshrl.u32 %v1290, 7
      %v1292 = vsub.s32 1, %v1291
      %v1293 = vrot.slane %v857, %v1292
      %v1294 = vlaneseq
      %v1295 = vshrl.u32 %v1294, 7
      %v1296 = vsub.s32 0, %v1295
      %v1297 = vrot.slane %v871, %v1296
      %v1298 = vlaneseq
      %v1299 = vshrl.u32 %v1298, 7
      %v1300 = vsub.s32 1, %v1299
      %v1301 = vrot.slane %v871, %v1300
      %v1302 = vlaneseq
      %v1303 = vshrl.u32 %v1302, 7
      %v1304 = vsub.s32 0, %v1303
      %v1305 = vrot.slane %v873, %v1304
      %v1306 = vlaneseq
      %v1307 = vshrl.u32 %v1306, 7
      %v1308 = vsub.s32 1, %v1307
      %v1309 = vrot.slane %v873, %v1308
      %v1310 = vlaneseq
      %v1311 = vshrl.u32 %v1310, 7
      %v1312 = vsub.s32 0, %v1311
      %v1313 = vrot.slane %v875, %v1312
      %v1314 = vlaneseq
      %v1315 = vshrl.u32 %v1314, 7
      %v1316 = vsub.s32 1, %v1315
      %v1317 = vrot.slane %v875, %v1316
      %v1318 = vlaneseq
      %v1319 = vshrl.u32 %v1318, 7
      %v1320 = vsub.s32 0, %v1319
      %v1321 = vrot.slane %v900, %v1320
      %v1322 = vlaneseq
      %v1323 = vshrl.u32 %v1322, 7
      %v1324 = vsub.s32 1, %v1323
      %v1325 = vrot.slane %v900, %v1324
      %v1326 = vlaneseq
      %v1327 = vshrl.u32 %v1326, 7
      %v1328 = vsub.s32 0, %v1327
      %v1329 = vrot.slane %v914, %v1328
      %v1330 = vlaneseq
      %v1331 = vshrl.u32 %v1330, 7
      %v1332 = vsub.s32 1, %v1331
      %v1333 = vrot.slane %v914, %v1332
      %v1334 = vlaneseq
      %v1335 = vshrl.u32 %v1334, 7
      %v1336 = vsub.s32 0, %v1335
      %v1337 = vrot.slane %v922, %v1336
      %v1338 = vlaneseq
      %v1339 = vshrl.u32 %v1338, 7
      %v1340 = vsub.s32 1, %v1339
      %v1341 = vrot.slane %v922, %v1340
      %v1342 = vlaneseq
      %v1343 = vshrl.u32 %v1342, 7
      %v1344 = vsub.s32 0, %v1343
      %v1345 = vrot.slane %v924, %v1344
      %v1346 = vlaneseq
      %v1347 = vshrl.u32 %v1346, 7
      %v1348 = vsub.s32 1, %v1347
      %v1349 = vrot.slane %v924, %v1348
      %v1350 = vlaneseq
      %v1351 = vshrl.u32 %v1350, 7
      %v1352 = vsub.s32 0, %v1351
      %v1353 = vrot.slane %v907, %v1352
      %v1354 = vlaneseq
      %v1355 = vshrl.u32 %v1354, 7
      %v1356 = vsub.s32 1, %v1355
      %v1357 = vrot.slane %v907, %v1356
      %v1358 = vlaneseq
      %v1359 = vshrl.u32 %v1358, 7
      %v1360 = vsub.s32 0, %v1359
      %v1361 = vrot.slane %v921, %v1360
      %v1362 = vlaneseq
      %v1363 = vshrl.u32 %v1362, 7
      %v1364 = vsub.s32 1, %v1363
      %v1365 = vrot.slane %v921, %v1364
      %v1366 = vlaneseq
      %v1367 = vshrl.u32 %v1366, 7
      %v1368 = vsub.s32 0, %v1367
      %v1369 = vrot.slane %v923, %v1368
      %v1370 = vlaneseq
      %v1371 = vshrl.u32 %v1370, 7
      %v1372 = vsub.s32 1, %v1371
      %v1373 = vrot.slane %v923, %v1372
      %v1374 = vlaneseq
      %v1375 = vshrl.u32 %v1374, 7
      %v1376 = vsub.s32 0, %v1375
      %v1377 = vrot.slane %v925, %v1376
      %v1378 = vlaneseq
      %v1379 = vshrl.u32 %v1378, 7
      %v1380 = vsub.s32 1, %v1379
      %v1381 = vrot.slane %v925, %v1380
      %v1382 = vlaneseq
      %v1383 = vshrl.u32 %v1382, 7
      %v1384 = vsub.s32 0, %v1383
      %v1385 = vrot.slane %v950, %v1384
      %v1386 = vlaneseq
      %v1387 = vshrl.u32 %v1386, 7
      %v1388 = vsub.s32 1, %v1387
      %v1389 = vrot.slane %v950, %v1388
      %v1390 = vlaneseq
      %v1391 = vshrl.u32 %v1390, 7
      %v1392 = vsub.s32 0, %v1391
      %v1393 = vrot.slane %v964, %v1392
      %v1394 = vlaneseq
      %v1395 = vshrl.u32 %v1394, 7
      %v1396 = vsub.s32 1, %v1395
      %v1397 = vrot.slane %v964, %v1396
      %v1398 = vlaneseq
      %v1399 = vshrl.u32 %v1398, 7
      %v1400 = vsub.s32 0, %v1399
      %v1401 = vrot.slane %v972, %v1400
      %v1402 = vlaneseq
      %v1403 = vshrl.u32 %v1402, 7
      %v1404 = vsub.s32 1, %v1403
      %v1405 = vrot.slane %v972, %v1404
      %v1406 = vlaneseq
      %v1407 = vshrl.u32 %v1406, 7
      %v1408 = vsub.s32 0, %v1407
      %v1409 = vrot.slane %v974, %v1408
      %v1410 = vlaneseq
      %v1411 = vshrl.u32 %v1410, 7
      %v1412 = vsub.s32 1, %v1411
      %v1413 = vrot.slane %v974, %v1412
      %v1414 = vlaneseq
      %v1415 = vshrl.u32 %v1414, 7
      %v1416 = vsub.s32 0, %v1415
      %v1417 = vrot.slane %v957, %v1416
      %v1418 = vlaneseq
      %v1419 = vshrl.u32 %v1418, 7
      %v1420 = vsub.s32 1, %v1419
      %v1421 = vrot.slane %v957, %v1420
      %v1422 = vlaneseq
      %v1423 = vshrl.u32 %v1422, 7
      %v1424 = vsub.s32 0, %v1423
      %v1425 = vrot.slane %v971, %v1424
      %v1426 = vlaneseq
      %v1427 = vshrl.u32 %v1426, 7
      %v1428 = vsub.s32 1, %v1427
      %v1429 = vrot.slane %v971, %v1428
      %v1430 = vlaneseq
      %v1431 = vshrl.u32 %v1430, 7
      %v1432 = vsub.s32 0, %v1431
      %v1433 = vrot.slane %v973, %v1432
      %v1434 = vlaneseq
      %v1435 = vshrl.u32 %v1434, 7
      %v1436 = vsub.s32 1, %v1435
      %v1437 = vrot.slane %v973, %v1436
      %v1438 = vlaneseq
      %v1439 = vshrl.u32 %v1438, 7
      %v1440 = vsub.s32 0, %v1439
      %v1441 = vrot.slane %v975, %v1440
      %v1442 = vlaneseq
      %v1443 = vshrl.u32 %v1442, 7
      %v1444 = vsub.s32 1, %v1443
      %v1445 = vrot.slane %v975, %v1444
      %v1446 = vlaneseq
      %v1447 = vshrl.u32 %v1446, 7
      %v1448 = vsub.s32 0, %v1447
      %v1449 = vrot.slane %v1000, %v1448
      %v1450 = vlaneseq
      %v1451 = vshrl.u32 %v1450, 7
      %v1452 = vsub.s32 1, %v1451
      %v1453 = vrot.slane %v1000, %v1452
      %v1454 = vlaneseq
      %v1455 = vshrl.u32 %v1454, 7
      %v1456 = vsub.s32 0, %v1455
      %v1457 = vrot.slane %v1014, %v1456
      %v1458 = vlaneseq
      %v1459 = vshrl.u32 %v1458, 7
      %v1460 = vsub.s32 1, %v1459
      %v1461 = vrot.slane %v1014, %v1460
      %v1462 = vlaneseq
      %v1463 = vshrl.u32 %v1462, 7
      %v1464 = vsub.s32 0, %v1463
      %v1465 = vrot.slane %v1022, %v1464
      %v1466 = vlaneseq
      %v1467 = vshrl.u32 %v1466, 7
      %v1468 = vsub.s32 1, %v1467
      %v1469 = vrot.slane %v1022, %v1468
      %v1470 = vlaneseq
      %v1471 = vshrl.u32 %v1470, 7
      %v1472 = vsub.s32 0, %v1471
      %v1473 = vrot.slane %v1024, %v1472
      %v1474 = vlaneseq
      %v1475 = vshrl.u32 %v1474, 7
      %v1476 = vsub.s32 1, %v1475
      %v1477 = vrot.slane %v1024, %v1476
      %v1478 = vlaneseq
      %v1479 = vshrl.u32 %v1478, 7
      %v1480 = vsub.s32 0, %v1479
      %v1481 = vrot.slane %v1007, %v1480
      %v1482 = vlaneseq
      %v1483 = vshrl.u32 %v1482, 7
      %v1484 = vsub.s32 1, %v1483
      %v1485 = vrot.slane %v1007, %v1484
      %v1486 = vlaneseq
      %v1487 = vshrl.u32 %v1486, 7
      %v1488 = vsub.s32 0, %v1487
      %v1489 = vrot.slane %v1021, %v1488
      %v1490 = vlaneseq
      %v1491 = vshrl.u32 %v1490, 7
      %v1492 = vsub.s32 1, %v1491
      %v1493 = vrot.slane %v1021, %v1492
      %v1494 = vlaneseq
      %v1495 = vshrl.u32 %v1494, 7
      %v1496 = vsub.s32 0, %v1495
      %v1497 = vrot.slane %v1023, %v1496
      %v1498 = vlaneseq
      %v1499 = vshrl.u32 %v1498, 7
      %v1500 = vsub.s32 1, %v1499
      %v1501 = vrot.slane %v1023, %v1500
      %v1502 = vlaneseq
      %v1503 = vshrl.u32 %v1502, 7
      %v1504 = vsub.s32 0, %v1503
      %v1505 = vrot.slane %v1025, %v1504
      %v1506 = vlaneseq
      %v1507 = vshrl.u32 %v1506, 7
      %v1508 = vsub.s32 1, %v1507
      %v1509 = vrot.slane %v1025, %v1508
      %v1510 = vlaneseq
      %v1511 = vshrl.u32 %v1510, 7
      %v1512 = vsub.s32 0, %v1511
      %v1513 = vrot.slane %v1050, %v1512
      %v1514 = vlaneseq
      %v1515 = vshrl.u32 %v1514, 7
      %v1516 = vsub.s32 1, %v1515
      %v1517 = vrot.slane %v1050, %v1516
      %v1518 = vlaneseq
      %v1519 = vshrl.u32 %v1518, 7
      %v1520 = vsub.s32 0, %v1519
      %v1521 = vrot.slane %v1064, %v1520
      %v1522 = vlaneseq
      %v1523 = vshrl.u32 %v1522, 7
      %v1524 = vsub.s32 1, %v1523
      %v1525 = vrot.slane %v1064, %v1524
      %v1526 = vlaneseq
      %v1527 = vshrl.u32 %v1526, 7
      %v1528 = vsub.s32 0, %v1527
      %v1529 = vrot.slane %v1072, %v1528
      %v1530 = vlaneseq
      %v1531 = vshrl.u32 %v1530, 7
      %v1532 = vsub.s32 1, %v1531
      %v1533 = vrot.slane %v1072, %v1532
      %v1534 = vlaneseq
      %v1535 = vshrl.u32 %v1534, 7
      %v1536 = vsub.s32 0, %v1535
      %v1537 = vrot.slane %v1074, %v1536
      %v1538 = vlaneseq
      %v1539 = vshrl.u32 %v1538, 7
      %v1540 = vsub.s32 1, %v1539
      %v1541 = vrot.slane %v1074, %v1540
      %v1542 = vlaneseq
      %v1543 = vshrl.u32 %v1542, 7
      %v1544 = vsub.s32 0, %v1543
      %v1545 = vrot.slane %v1057, %v1544
      %v1546 = vlaneseq
      %v1547 = vshrl.u32 %v1546, 7
      %v1548 = vsub.s32 1, %v1547
      %v1549 = vrot.slane %v1057, %v1548
      %v1550 = vlaneseq
      %v1551 = vshrl.u32 %v1550, 7
      %v1552 = vsub.s32 0, %v1551
      %v1553 = vrot.slane %v1071, %v1552
      %v1554 = vlaneseq
      %v1555 = vshrl.u32 %v1554, 7
      %v1556 = vsub.s32 1, %v1555
      %v1557 = vrot.slane %v1071, %v1556
      %v1558 = vlaneseq
      %v1559 = vshrl.u32 %v1558, 7
      %v1560 = vsub.s32 0, %v1559
      %v1561 = vrot.slane %v1073, %v1560
      %v1562 = vlaneseq
      %v1563 = vshrl.u32 %v1562, 7
      %v1564 = vsub.s32 1, %v1563
      %v1565 = vrot.slane %v1073, %v1564
      %v1566 = vlaneseq
      %v1567 = vshrl.u32 %v1566, 7
      %v1568 = vsub.s32 0, %v1567
      %v1569 = vrot.slane %v1075, %v1568
      %v1570 = vlaneseq
      %v1571 = vshrl.u32 %v1570, 7
      %v1572 = vsub.s32 1, %v1571
      %v1573 = vrot.slane %v1075, %v1572
      %v1574 = vlaneseq
      %v1575 = vshrl.u32 %v1574, 7
      %v1576 = vsub.s32 0, %v1575
      %v1577 = vrot.slane %v1100, %v1576
      %v1578 = vlaneseq
      %v1579 = vshrl.u32 %v1578, 7
      %v1580 = vsub.s32 1, %v1579
      %v1581 = vrot.slane %v1100, %v1580
      %v1582 = vlaneseq
      %v1583 = vshrl.u32 %v1582, 7
      %v1584 = vsub.s32 0, %v1583
      %v1585 = vrot.slane %v1114, %v1584
      %v1586 = vlaneseq
      %v1587 = vshrl.u32 %v1586, 7
      %v1588 = vsub.s32 1, %v1587
      %v1589 = vrot.slane %v1114, %v1588
      %v1590 = vlaneseq
      %v1591 = vshrl.u32 %v1590, 7
      %v1592 = vsub.s32 0, %v1591
      %v1593 = vrot.slane %v1122, %v1592
      %v1594 = vlaneseq
      %v1595 = vshrl.u32 %v1594, 7
      %v1596 = vsub.s32 1, %v1595
      %v1597 = vrot.slane %v1122, %v1596
      %v1598 = vlaneseq
      %v1599 = vshrl.u32 %v1598, 7
      %v1600 = vsub.s32 0, %v1599
      %v1601 = vrot.slane %v1124, %v1600
      %v1602 = vlaneseq
      %v1603 = vshrl.u32 %v1602, 7
      %v1604 = vsub.s32 1, %v1603
      %v1605 = vrot.slane %v1124, %v1604
      %v1606 = vlaneseq
      %v1607 = vshrl.u32 %v1606, 7
      %v1608 = vsub.s32 0, %v1607
      %v1609 = vrot.slane %v1107, %v1608
      %v1610 = vlaneseq
      %v1611 = vshrl.u32 %v1610, 7
      %v1612 = vsub.s32 1, %v1611
      %v1613 = vrot.slane %v1107, %v1612
      %v1614 = vlaneseq
      %v1615 = vshrl.u32 %v1614, 7
      %v1616 = vsub.s32 0, %v1615
      %v1617 = vrot.slane %v1121, %v1616
      %v1618 = vlaneseq
      %v1619 = vshrl.u32 %v1618, 7
      %v1620 = vsub.s32 1, %v1619
      %v1621 = vrot.slane %v1121, %v1620
      %v1622 = vlaneseq
      %v1623 = vshrl.u32 %v1622, 7
      %v1624 = vsub.s32 0, %v1623
      %v1625 = vrot.slane %v1123, %v1624
      %v1626 = vlaneseq
      %v1627 = vshrl.u32 %v1626, 7
      %v1628 = vsub.s32 1, %v1627
      %v1629 = vrot.slane %v1123, %v1628
      %v1630 = vlaneseq
      %v1631 = vshrl.u32 %v1630, 7
      %v1632 = vsub.s32 0, %v1631
      %v1633 = vrot.slane %v1125, %v1632
      %v1634 = vlaneseq
      %v1635 = vshrl.u32 %v1634, 7
      %v1636 = vsub.s32 1, %v1635
      %v1637 = vrot.slane %v1125, %v1636
      %v1766 = vmul.f32 %v1129, %v706
      %v1767 = vmul.f32 %v1133, %v707
      %v1768 = vmul.f32 %v1129, %v708
      %v1769 = vmul.f32 %v1133, %v709
      %v1770 = vmul.f32 %v1137, %v706
      %v1771 = vmul.f32 %v1141, %v707
      %v1772 = vmul.f32 %v1137, %v708
      %v1773 = vmul.f32 %v1141, %v709
      %v1774 = vmul.f32 %v1145, %v706
      %v1775 = vmul.f32 %v1149, %v707
      %v1776 = vmul.f32 %v1145, %v708
      %v1777 = vmul.f32 %v1149, %v709
      %v1778 = vmul.f32 %v1153, %v706
      %v1779 = vmul.f32 %v1157, %v707
      %v1780 = vmul.f32 %v1153, %v708
      %v1781 = vmul.f32 %v1157, %v709
      %v1782 = vmul.f32 %v1161, %v706
      %v1783 = vmul.f32 %v1165, %v707
      %v1784 = vmul.f32 %v1161, %v708
      %v1785 = vmul.f32 %v1165, %v709
      %v1786 = vmul.f32 %v1169, %v706
      %v1787 = vmul.f32 %v1173, %v707
      %v1788 = vmul.f32 %v1169, %v708
      %v1789 = vmul.f32 %v1173, %v709
      %v1790 = vmul.f32 %v1177, %v706
      %v1791 = vmul.f32 %v1181, %v707
      %v1792 = vmul.f32 %v1177, %v708
      %v1793 = vmul.f32 %v1181, %v709
      %v1794 = vmul.f32 %v1185, %v706
      %v1795 = vmul.f32 %v1189, %v707
      %v1796 = vmul.f32 %v1185, %v708
      %v1797 = vmul.f32 %v1189, %v709
      %v1798 = vmul.f32 %v1193, %v706
      %v1799 = vmul.f32 %v1197, %v707
      %v1800 = vmul.f32 %v1193, %v708
      %v1801 = vmul.f32 %v1197, %v709
      %v1802 = vmul.f32 %v1201, %v706
      %v1803 = vmul.f32 %v1205, %v707
      %v1804 = vmul.f32 %v1201, %v708
      %v1805 = vmul.f32 %v1205, %v709
      %v1806 = vmul.f32 %v1209, %v706
      %v1807 = vmul.f32 %v1213, %v707
      %v1808 = vmul.f32 %v1209, %v708
      %v1809 = vmul.f32 %v1213, %v709
      %v1810 = vmul.f32 %v1217, %v706
      %v1811 = vmul.f32 %v1221, %v707
      %v1812 = vmul.f32 %v1217, %v708
      %v1813 = vmul.f32 %v1221, %v709
      %v1814 = vmul.f32 %v1225, %v706
      %v1815 = vmul.f32 %v1229, %v707
      %v1816 = vmul.f32 %v1225, %v708
      %v1817 = vmul.f32 %v1229, %v709
      %v1818 = vmul.f32 %v1233, %v706
      %v1819 = vmul.f32 %v1237, %v707
      %v1820 = vmul.f32 %v1233, %v708
      %v1821 = vmul.f32 %v1237, %v709
      %v1822 = vmul.f32 %v1241, %v706
      %v1823 = vmul.f32 %v1245, %v707
      %v1824 = vmul.f32 %v1241, %v708
      %v1825 = vmul.f32 %v1245, %v709
      %v1826 = vmul.f32 %v1249, %v706
      %v1827 = vmul.f32 %v1253, %v707
      %v1828 = vmul.f32 %v1249, %v708
      %v1829 = vmul.f32 %v1253, %v709
      %v1830 = vmul.f32 %v1257, %v706
      %v1831 = vmul.f32 %v1261, %v707
      %v1832 = vmul.f32 %v1257, %v708
      %v1833 = vmul.f32 %v1261, %v709
      %v1834 = vmul.f32 %v1265, %v706
      %v1835 = vmul.f32 %v1269, %v707
      %v1836 = vmul.f32 %v1265, %v708
      %v1837 = vmul.f32 %v1269, %v709
      %v1838 = vmul.f32 %v1273, %v706
      %v1839 = vmul.f32 %v1277, %v707
      %v1840 = vmul.f32 %v1273, %v708
      %v1841 = vmul.f32 %v1277, %v709
      %v1842 = vmul.f32 %v1281, %v706
      %v1843 = vmul.f32 %v1285, %v707
      %v1844 = vmul.f32 %v1281, %v708
      %v1845 = vmul.f32 %v1285, %v709
      %v1846 = vmul.f32 %v1289, %v706
      %v1847 = vmul.f32 %v1293, %v707
      %v1848 = vmul.f32 %v1289, %v708
      %v1849 = vmul.f32 %v1293, %v709
      %v1850 = vmul.f32 %v1297, %v706
      %v1851 = vmul.f32 %v1301, %v707
      %v1852 = vmul.f32 %v1297, %v708
      %v1853 = vmul.f32 %v1301, %v709
      %v1854 = vmul.f32 %v1305, %v706
      %v1855 = vmul.f32 %v1309, %v707
      %v1856 = vmul.f32 %v1305, %v708
      %v1857 = vmul.f32 %v1309, %v709
      %v1858 = vmul.f32 %v1313, %v706
      %v1859 = vmul.f32 %v1317, %v707
      %v1860 = vmul.f32 %v1313, %v708
      %v1861 = vmul.f32 %v1317, %v709
      %v1862 = vmul.f32 %v1321, %v706
      %v1863 = vmul.f32 %v1325, %v707
      %v1864 = vmul.f32 %v1321, %v708
      %v1865 = vmul.f32 %v1325, %v709
      %v1866 = vmul.f32 %v1329, %v706
      %v1867 = vmul.f32 %v1333, %v707
      %v1868 = vmul.f32 %v1329, %v708
      %v1869 = vmul.f32 %v1333, %v709
      %v1870 = vmul.f32 %v1337, %v706
      %v1871 = vmul.f32 %v1341, %v707
      %v1872 = vmul.f32 %v1337, %v708
      %v1873 = vmul.f32 %v1341, %v709
      %v1874 = vmul.f32 %v1345, %v706
      %v1875 = vmul.f32 %v1349, %v707
      %v1876 = vmul.f32 %v1345, %v708
      %v1877 = vmul.f32 %v1349, %v709
      %v1878 = vmul.f32 %v1353, %v706
      %v1879 = vmul.f32 %v1357, %v707
      %v1880 = vmul.f32 %v1353, %v708
      %v1881 = vmul.f32 %v1357, %v709
      %v1882 = vmul.f32 %v1361, %v706
      %v1883 = vmul.f32 %v1365, %v707
      %v1884 = vmul.f32 %v1361, %v708
      %v1885 = vmul.f32 %v1365, %v709
      %v1886 = vmul.f32 %v1369, %v706
      %v1887 = vmul.f32 %v1373, %v707
      %v1888 = vmul.f32 %v1369, %v708
      %v1889 = vmul.f32 %v1373, %v709
      %v1890 = vmul.f32 %v1377, %v706
      %v1891 = vmul.f32 %v1381, %v707
      %v1892 = vmul.f32 %v1377, %v708
      %v1893 = vmul.f32 %v1381, %v709
      %v1894 = vmul.f32 %v1385, %v706
      %v1895 = vmul.f32 %v1389, %v707
      %v1896 = vmul.f32 %v1385, %v708
      %v1897 = vmul.f32 %v1389, %v709
      %v1898 = vmul.f32 %v1393, %v706
      %v1899 = vmul.f32 %v1397, %v707
      %v1900 = vmul.f32 %v1393, %v708
      %v1901 = vmul.f32 %v1397, %v709
      %v1902 = vmul.f32 %v1401, %v706
      %v1903 = vmul.f32 %v1405, %v707
      %v1904 = vmul.f32 %v1401, %v708
      %v1905 = vmul.f32 %v1405, %v709
      %v1906 = vmul.f32 %v1409, %v706
      %v1907 = vmul.f32 %v1413, %v707
      %v1908 = vmul.f32 %v1409, %v708
      %v1909 = vmul.f32 %v1413, %v709
      %v1910 = vmul.f32 %v1417, %v706
      %v1911 = vmul.f32 %v1421, %v707
      %v1912 = vmul.f32 %v1417, %v708
      %v1913 = vmul.f32 %v1421, %v709
      %v1914 = vmul.f32 %v1425, %v706
      %v1915 = vmul.f32 %v1429, %v707
      %v1916 = vmul.f32 %v1425, %v708
      %v1917 = vmul.f32 %v1429, %v709
      %v1918 = vmul.f32 %v1433, %v706
      %v1919 = vmul.f32 %v1437, %v707
      %v1920 = vmul.f32 %v1433, %v708
      %v1921 = vmul.f32 %v1437, %v709
      %v1922 = vmul.f32 %v1441, %v706
      %v1923 = vmul.f32 %v1445, %v707
      %v1924 = vmul.f32 %v1441, %v708
      %v1925 = vmul.f32 %v1445, %v709
      %v1926 = vmul.f32 %v1449, %v706
      %v1927 = vmul.f32 %v1453, %v707
      %v1928 = vmul.f32 %v1449, %v708
      %v1929 = vmul.f32 %v1453, %v709
      %v1930 = vmul.f32 %v1457, %v706
      %v1931 = vmul.f32 %v1461, %v707
      %v1932 = vmul.f32 %v1457, %v708
      %v1933 = vmul.f32 %v1461, %v709
      %v1934 = vmul.f32 %v1465, %v706
      %v1935 = vmul.f32 %v1469, %v707
      %v1936 = vmul.f32 %v1465, %v708
      %v1937 = vmul.f32 %v1469, %v709
      %v1938 = vmul.f32 %v1473, %v706
      %v1939 = vmul.f32 %v1477, %v707
      %v1940 = vmul.f32 %v1473, %v708
      %v1941 = vmul.f32 %v1477, %v709
      %v1942 = vmul.f32 %v1481, %v706
      %v1943 = vmul.f32 %v1485, %v707
      %v1944 = vmul.f32 %v1481, %v708
      %v1945 = vmul.f32 %v1485, %v709
      %v1946 = vmul.f32 %v1489, %v706
      %v1947 = vmul.f32 %v1493, %v707
      %v1948 = vmul.f32 %v1489, %v708
      %v1949 = vmul.f32 %v1493, %v709
      %v1950 = vmul.f32 %v1497, %v706
      %v1951 = vmul.f32 %v1501, %v707
      %v1952 = vmul.f32 %v1497, %v708
      %v1953 = vmul.f32 %v1501, %v709
      %v1954 = vmul.f32 %v1505, %v706
      %v1955 = vmul.f32 %v1509, %v707
      %v1956 = vmul.f32 %v1505, %v708
      %v1957 = vmul.f32 %v1509, %v709
      %v1958 = vmul.f32 %v1513, %v706
      %v1959 = vmul.f32 %v1517, %v707
      %v1960 = vmul.f32 %v1513, %v708
      %v1961 = vmul.f32 %v1517, %v709
      %v1962 = vmul.f32 %v1521, %v706
      %v1963 = vmul.f32 %v1525, %v707
      %v1964 = vmul.f32 %v1521, %v708
      %v1965 = vmul.f32 %v1525, %v709
      %v1966 = vmul.f32 %v1529, %v706
      %v1967 = vmul.f32 %v1533, %v707
      %v1968 = vmul.f32 %v1529, %v708
      %v1969 = vmul.f32 %v1533, %v709
      %v1970 = vmul.f32 %v1537, %v706
      %v1971 = vmul.f32 %v1541, %v707
      %v1972 = vmul.f32 %v1537, %v708
      %v1973 = vmul.f32 %v1541, %v709
      %v1974 = vmul.f32 %v1545, %v706
      %v1975 = vmul.f32 %v1549, %v707
      %v1976 = vmul.f32 %v1545, %v708
      %v1977 = vmul.f32 %v1549, %v709
      %v1978 = vmul.f32 %v1553, %v706
      %v1979 = vmul.f32 %v1557, %v707
      %v1980 = vmul.f32 %v1553, %v708
      %v1981 = vmul.f32 %v1557, %v709
      %v1982 = vmul.f32 %v1561, %v706
      %v1983 = vmul.f32 %v1565, %v707
      %v1984 = vmul.f32 %v1561, %v708
      %v1985 = vmul.f32 %v1565, %v709
      %v1986 = vmul.f32 %v1569, %v706
      %v1987 = vmul.f32 %v1573, %v707
      %v1988 = vmul.f32 %v1569, %v708
      %v1989 = vmul.f32 %v1573, %v709
      %v1990 = vmul.f32 %v1577, %v706
      %v1991 = vmul.f32 %v1581, %v707
      %v1992 = vmul.f32 %v1577, %v708
      %v1993 = vmul.f32 %v1581, %v709
      %v1994 = vmul.f32 %v1585, %v706
      %v1995 = vmul.f32 %v1589, %v707
      %v1996 = vmul.f32 %v1585, %v708
      %v1997 = vmul.f32 %v1589, %v709
      %v1998 = vmul.f32 %v1593, %v706
      %v1999 = vmul.f32 %v1597, %v707
      %v2000 = vmul.f32 %v1593, %v708
      %v2001 = vmul.f32 %v1597, %v709
      %v2002 = vmul.f32 %v1601, %v706
      %v2003 = vmul.f32 %v1605, %v707
      %v2004 = vmul.f32 %v1601, %v708
      %v2005 = vmul.f32 %v1605, %v709
      %v2006 = vmul.f32 %v1609, %v706
      %v2007 = vmul.f32 %v1613, %v707
      %v2008 = vmul.f32 %v1609, %v708
      %v2009 = vmul.f32 %v1613, %v709
      %v2010 = vmul.f32 %v1617, %v706
      %v2011 = vmul.f32 %v1621, %v707
      %v2012 = vmul.f32 %v1617, %v708
      %v2013 = vmul.f32 %v1621, %v709
      %v2014 = vmul.f32 %v1625, %v706
      %v2015 = vmul.f32 %v1629, %v707
      %v2016 = vmul.f32 %v1625, %v708
      %v2017 = vmul.f32 %v1629, %v709
      %v2018 = vmul.f32 %v1633, %v706
      %v2019 = vmul.f32 %v1637, %v707
      %v2020 = vmul.f32 %v1633, %v708
      %v2021 = vmul.f32 %v1637, %v709
      %v2022 = vmul.f32 %v1766, 1.442695
      %v2023 = vpow.pop %v2022
      %v2024 = vmul.f32 %v1767, 1.442695
      %v2025 = vpow.pop %v2024
      %v2026 = vmul.f32 %v1768, 1.442695
      %v2027 = vpow.pop %v2026
      %v2028 = vmul.f32 %v1769, 1.442695
      %v2029 = vpow.pop %v2028
      %v2030 = vmul.f32 %v1770, 1.442695
      %v2031 = vpow.pop %v2030
      %v2032 = vmul.f32 %v1771, 1.442695
      %v2033 = vpow.pop %v2032
      %v2034 = vmul.f32 %v1772, 1.442695
      %v2035 = vpow.pop %v2034
      %v2036 = vmul.f32 %v1773, 1.442695
      %v2037 = vpow.pop %v2036
      %v2038 = vmul.f32 %v1774, 1.442695
      %v2039 = vpow.pop %v2038
      %v2040 = vmul.f32 %v1775, 1.442695
      %v2041 = vpow.pop %v2040
      %v2042 = vmul.f32 %v1776, 1.442695
      %v2043 = vpow.pop %v2042
      %v2044 = vmul.f32 %v1777, 1.442695
      %v2045 = vpow.pop %v2044
      %v2046 = vmul.f32 %v1778, 1.442695
      %v2047 = vpow.pop %v2046
      %v2048 = vmul.f32 %v1779, 1.442695
      %v2049 = vpow.pop %v2048
      %v2050 = vmul.f32 %v1780, 1.442695
      %v2051 = vpow.pop %v2050
      %v2052 = vmul.f32 %v1781, 1.442695
      %v2053 = vpow.pop %v2052
      %v2054 = vmul.f32 %v1782, 1.442695
      %v2055 = vpow.pop %v2054
      %v2056 = vmul.f32 %v1783, 1.442695
      %v2057 = vpow.pop %v2056
      %v2058 = vmul.f32 %v1784, 1.442695
      %v2059 = vpow.pop %v2058
      %v2060 = vmul.f32 %v1785, 1.442695
      %v2061 = vpow.pop %v2060
      %v2062 = vmul.f32 %v1786, 1.442695
      %v2063 = vpow.pop %v2062
      %v2064 = vmul.f32 %v1787, 1.442695
      %v2065 = vpow.pop %v2064
      %v2066 = vmul.f32 %v1788, 1.442695
      %v2067 = vpow.pop %v2066
      %v2068 = vmul.f32 %v1789, 1.442695
      %v2069 = vpow.pop %v2068
      %v2070 = vmul.f32 %v1790, 1.442695
      %v2071 = vpow.pop %v2070
      %v2072 = vmul.f32 %v1791, 1.442695
      %v2073 = vpow.pop %v2072
      %v2074 = vmul.f32 %v1792, 1.442695
      %v2075 = vpow.pop %v2074
      %v2076 = vmul.f32 %v1793, 1.442695
      %v2077 = vpow.pop %v2076
      %v2078 = vmul.f32 %v1794, 1.442695
      %v2079 = vpow.pop %v2078
      %v2080 = vmul.f32 %v1795, 1.442695
      %v2081 = vpow.pop %v2080
      %v2082 = vmul.f32 %v1796, 1.442695
      %v2083 = vpow.pop %v2082
      %v2084 = vmul.f32 %v1797, 1.442695
      %v2085 = vpow.pop %v2084
      %v2086 = vmul.f32 %v1798, 1.442695
      %v2087 = vpow.pop %v2086
      %v2088 = vmul.f32 %v1799, 1.442695
      %v2089 = vpow.pop %v2088
      %v2090 = vmul.f32 %v1800, 1.442695
      %v2091 = vpow.pop %v2090
      %v2092 = vmul.f32 %v1801, 1.442695
      %v2093 = vpow.pop %v2092
      %v2094 = vmul.f32 %v1802, 1.442695
      %v2095 = vpow.pop %v2094
      %v2096 = vmul.f32 %v1803, 1.442695
      %v2097 = vpow.pop %v2096
      %v2098 = vmul.f32 %v1804, 1.442695
      %v2099 = vpow.pop %v2098
      %v2100 = vmul.f32 %v1805, 1.442695
      %v2101 = vpow.pop %v2100
      %v2102 = vmul.f32 %v1806, 1.442695
      %v2103 = vpow.pop %v2102
      %v2104 = vmul.f32 %v1807, 1.442695
      %v2105 = vpow.pop %v2104
      %v2106 = vmul.f32 %v1808, 1.442695
      %v2107 = vpow.pop %v2106
      %v2108 = vmul.f32 %v1809, 1.442695
      %v2109 = vpow.pop %v2108
      %v2110 = vmul.f32 %v1810, 1.442695
      %v2111 = vpow.pop %v2110
      %v2112 = vmul.f32 %v1811, 1.442695
      %v2113 = vpow.pop %v2112
      %v2114 = vmul.f32 %v1812, 1.442695
      %v2115 = vpow.pop %v2114
      %v2116 = vmul.f32 %v1813, 1.442695
      %v2117 = vpow.pop %v2116
      %v2118 = vmul.f32 %v1814, 1.442695
      %v2119 = vpow.pop %v2118
      %v2120 = vmul.f32 %v1815, 1.442695
      %v2121 = vpow.pop %v2120
      %v2122 = vmul.f32 %v1816, 1.442695
      %v2123 = vpow.pop %v2122
      %v2124 = vmul.f32 %v1817, 1.442695
      %v2125 = vpow.pop %v2124
      %v2126 = vmul.f32 %v1818, 1.442695
      %v2127 = vpow.pop %v2126
      %v2128 = vmul.f32 %v1819, 1.442695
      %v2129 = vpow.pop %v2128
      %v2130 = vmul.f32 %v1820, 1.442695
      %v2131 = vpow.pop %v2130
      %v2132 = vmul.f32 %v1821, 1.442695
      %v2133 = vpow.pop %v2132
      %v2134 = vmul.f32 %v1822, 1.442695
      %v2135 = vpow.pop %v2134
      %v2136 = vmul.f32 %v1823, 1.442695
      %v2137 = vpow.pop %v2136
      %v2138 = vmul.f32 %v1824, 1.442695
      %v2139 = vpow.pop %v2138
      %v2140 = vmul.f32 %v1825, 1.442695
      %v2141 = vpow.pop %v2140
      %v2142 = vmul.f32 %v1826, 1.442695
      %v2143 = vpow.pop %v2142
      %v2144 = vmul.f32 %v1827, 1.442695
      %v2145 = vpow.pop %v2144
      %v2146 = vmul.f32 %v1828, 1.442695
      %v2147 = vpow.pop %v2146
      %v2148 = vmul.f32 %v1829, 1.442695
      %v2149 = vpow.pop %v2148
      %v2150 = vmul.f32 %v1830, 1.442695
      %v2151 = vpow.pop %v2150
      %v2152 = vmul.f32 %v1831, 1.442695
      %v2153 = vpow.pop %v2152
      %v2154 = vmul.f32 %v1832, 1.442695
      %v2155 = vpow.pop %v2154
      %v2156 = vmul.f32 %v1833, 1.442695
      %v2157 = vpow.pop %v2156
      %v2158 = vmul.f32 %v1834, 1.442695
      %v2159 = vpow.pop %v2158
      %v2160 = vmul.f32 %v1835, 1.442695
      %v2161 = vpow.pop %v2160
      %v2162 = vmul.f32 %v1836, 1.442695
      %v2163 = vpow.pop %v2162
      %v2164 = vmul.f32 %v1837, 1.442695
      %v2165 = vpow.pop %v2164
      %v2166 = vmul.f32 %v1838, 1.442695
      %v2167 = vpow.pop %v2166
      %v2168 = vmul.f32 %v1839, 1.442695
      %v2169 = vpow.pop %v2168
      %v2170 = vmul.f32 %v1840, 1.442695
      %v2171 = vpow.pop %v2170
      %v2172 = vmul.f32 %v1841, 1.442695
      %v2173 = vpow.pop %v2172
      %v2174 = vmul.f32 %v1842, 1.442695
      %v2175 = vpow.pop %v2174
      %v2176 = vmul.f32 %v1843, 1.442695
      %v2177 = vpow.pop %v2176
      %v2178 = vmul.f32 %v1844, 1.442695
      %v2179 = vpow.pop %v2178
      %v2180 = vmul.f32 %v1845, 1.442695
      %v2181 = vpow.pop %v2180
      %v2182 = vmul.f32 %v1846, 1.442695
      %v2183 = vpow.pop %v2182
      %v2184 = vmul.f32 %v1847, 1.442695
      %v2185 = vpow.pop %v2184
      %v2186 = vmul.f32 %v1848, 1.442695
      %v2187 = vpow.pop %v2186
      %v2188 = vmul.f32 %v1849, 1.442695
      %v2189 = vpow.pop %v2188
      %v2190 = vmul.f32 %v1850, 1.442695
      %v2191 = vpow.pop %v2190
      %v2192 = vmul.f32 %v1851, 1.442695
      %v2193 = vpow.pop %v2192
      %v2194 = vmul.f32 %v1852, 1.442695
      %v2195 = vpow.pop %v2194
      %v2196 = vmul.f32 %v1853, 1.442695
      %v2197 = vpow.pop %v2196
      %v2198 = vmul.f32 %v1854, 1.442695
      %v2199 = vpow.pop %v2198
      %v2200 = vmul.f32 %v1855, 1.442695
      %v2201 = vpow.pop %v2200
      %v2202 = vmul.f32 %v1856, 1.442695
      %v2203 = vpow.pop %v2202
      %v2204 = vmul.f32 %v1857, 1.442695
      %v2205 = vpow.pop %v2204
      %v2206 = vmul.f32 %v1858, 1.442695
      %v2207 = vpow.pop %v2206
      %v2208 = vmul.f32 %v1859, 1.442695
      %v2209 = vpow.pop %v2208
      %v2210 = vmul.f32 %v1860, 1.442695
      %v2211 = vpow.pop %v2210
      %v2212 = vmul.f32 %v1861, 1.442695
      %v2213 = vpow.pop %v2212
      %v2214 = vmul.f32 %v1862, 1.442695
      %v2215 = vpow.pop %v2214
      %v2216 = vmul.f32 %v1863, 1.442695
      %v2217 = vpow.pop %v2216
      %v2218 = vmul.f32 %v1864, 1.442695
      %v2219 = vpow.pop %v2218
      %v2220 = vmul.f32 %v1865, 1.442695
      %v2221 = vpow.pop %v2220
      %v2222 = vmul.f32 %v1866, 1.442695
      %v2223 = vpow.pop %v2222
      %v2224 = vmul.f32 %v1867, 1.442695
      %v2225 = vpow.pop %v2224
      %v2226 = vmul.f32 %v1868, 1.442695
      %v2227 = vpow.pop %v2226
      %v2228 = vmul.f32 %v1869, 1.442695
      %v2229 = vpow.pop %v2228
      %v2230 = vmul.f32 %v1870, 1.442695
      %v2231 = vpow.pop %v2230
      %v2232 = vmul.f32 %v1871, 1.442695
      %v2233 = vpow.pop %v2232
      %v2234 = vmul.f32 %v1872, 1.442695
      %v2235 = vpow.pop %v2234
      %v2236 = vmul.f32 %v1873, 1.442695
      %v2237 = vpow.pop %v2236
      %v2238 = vmul.f32 %v1874, 1.442695
      %v2239 = vpow.pop %v2238
      %v2240 = vmul.f32 %v1875, 1.442695
      %v2241 = vpow.pop %v2240
      %v2242 = vmul.f32 %v1876, 1.442695
      %v2243 = vpow.pop %v2242
      %v2244 = vmul.f32 %v1877, 1.442695
      %v2245 = vpow.pop %v2244
      %v2246 = vmul.f32 %v1878, 1.442695
      %v2247 = vpow.pop %v2246
      %v2248 = vmul.f32 %v1879, 1.442695
      %v2249 = vpow.pop %v2248
      %v2250 = vmul.f32 %v1880, 1.442695
      %v2251 = vpow.pop %v2250
      %v2252 = vmul.f32 %v1881, 1.442695
      %v2253 = vpow.pop %v2252
      %v2254 = vmul.f32 %v1882, 1.442695
      %v2255 = vpow.pop %v2254
      %v2256 = vmul.f32 %v1883, 1.442695
      %v2257 = vpow.pop %v2256
      %v2258 = vmul.f32 %v1884, 1.442695
      %v2259 = vpow.pop %v2258
      %v2260 = vmul.f32 %v1885, 1.442695
      %v2261 = vpow.pop %v2260
      %v2262 = vmul.f32 %v1886, 1.442695
      %v2263 = vpow.pop %v2262
      %v2264 = vmul.f32 %v1887, 1.442695
      %v2265 = vpow.pop %v2264
      %v2266 = vmul.f32 %v1888, 1.442695
      %v2267 = vpow.pop %v2266
      %v2268 = vmul.f32 %v1889, 1.442695
      %v2269 = vpow.pop %v2268
      %v2270 = vmul.f32 %v1890, 1.442695
      %v2271 = vpow.pop %v2270
      %v2272 = vmul.f32 %v1891, 1.442695
      %v2273 = vpow.pop %v2272
      %v2274 = vmul.f32 %v1892, 1.442695
      %v2275 = vpow.pop %v2274
      %v2276 = vmul.f32 %v1893, 1.442695
      %v2277 = vpow.pop %v2276
      %v2278 = vmul.f32 %v1894, 1.442695
      %v2279 = vpow.pop %v2278
      %v2280 = vmul.f32 %v1895, 1.442695
      %v2281 = vpow.pop %v2280
      %v2282 = vmul.f32 %v1896, 1.442695
      %v2283 = vpow.pop %v2282
      %v2284 = vmul.f32 %v1897, 1.442695
      %v2285 = vpow.pop %v2284
      %v2286 = vmul.f32 %v1898, 1.442695
      %v2287 = vpow.pop %v2286
      %v2288 = vmul.f32 %v1899, 1.442695
      %v2289 = vpow.pop %v2288
      %v2290 = vmul.f32 %v1900, 1.442695
      %v2291 = vpow.pop %v2290
      %v2292 = vmul.f32 %v1901, 1.442695
      %v2293 = vpow.pop %v2292
      %v2294 = vmul.f32 %v1902, 1.442695
      %v2295 = vpow.pop %v2294
      %v2296 = vmul.f32 %v1903, 1.442695
      %v2297 = vpow.pop %v2296
      %v2298 = vmul.f32 %v1904, 1.442695
      %v2299 = vpow.pop %v2298
      %v2300 = vmul.f32 %v1905, 1.442695
      %v2301 = vpow.pop %v2300
      %v2302 = vmul.f32 %v1906, 1.442695
      %v2303 = vpow.pop %v2302
      %v2304 = vmul.f32 %v1907, 1.442695
      %v2305 = vpow.pop %v2304
      %v2306 = vmul.f32 %v1908, 1.442695
      %v2307 = vpow.pop %v2306
      %v2308 = vmul.f32 %v1909, 1.442695
      %v2309 = vpow.pop %v2308
      %v2310 = vmul.f32 %v1910, 1.442695
      %v2311 = vpow.pop %v2310
      %v2312 = vmul.f32 %v1911, 1.442695
      %v2313 = vpow.pop %v2312
      %v2314 = vmul.f32 %v1912, 1.442695
      %v2315 = vpow.pop %v2314
      %v2316 = vmul.f32 %v1913, 1.442695
      %v2317 = vpow.pop %v2316
      %v2318 = vmul.f32 %v1914, 1.442695
      %v2319 = vpow.pop %v2318
      %v2320 = vmul.f32 %v1915, 1.442695
      %v2321 = vpow.pop %v2320
      %v2322 = vmul.f32 %v1916, 1.442695
      %v2323 = vpow.pop %v2322
      %v2324 = vmul.f32 %v1917, 1.442695
      %v2325 = vpow.pop %v2324
      %v2326 = vmul.f32 %v1918, 1.442695
      %v2327 = vpow.pop %v2326
      %v2328 = vmul.f32 %v1919, 1.442695
      %v2329 = vpow.pop %v2328
      %v2330 = vmul.f32 %v1920, 1.442695
      %v2331 = vpow.pop %v2330
      %v2332 = vmul.f32 %v1921, 1.442695
      %v2333 = vpow.pop %v2332
      %v2334 = vmul.f32 %v1922, 1.442695
      %v2335 = vpow.pop %v2334
      %v2336 = vmul.f32 %v1923, 1.442695
      %v2337 = vpow.pop %v2336
      %v2338 = vmul.f32 %v1924, 1.442695
      %v2339 = vpow.pop %v2338
      %v2340 = vmul.f32 %v1925, 1.442695
      %v2341 = vpow.pop %v2340
      %v2342 = vmul.f32 %v1926, 1.442695
      %v2343 = vpow.pop %v2342
      %v2344 = vmul.f32 %v1927, 1.442695
      %v2345 = vpow.pop %v2344
      %v2346 = vmul.f32 %v1928, 1.442695
      %v2347 = vpow.pop %v2346
      %v2348 = vmul.f32 %v1929, 1.442695
      %v2349 = vpow.pop %v2348
      %v2350 = vmul.f32 %v1930, 1.442695
      %v2351 = vpow.pop %v2350
      %v2352 = vmul.f32 %v1931, 1.442695
      %v2353 = vpow.pop %v2352
      %v2354 = vmul.f32 %v1932, 1.442695
      %v2355 = vpow.pop %v2354
      %v2356 = vmul.f32 %v1933, 1.442695
      %v2357 = vpow.pop %v2356
      %v2358 = vmul.f32 %v1934, 1.442695
      %v2359 = vpow.pop %v2358
      %v2360 = vmul.f32 %v1935, 1.442695
      %v2361 = vpow.pop %v2360
      %v2362 = vmul.f32 %v1936, 1.442695
      %v2363 = vpow.pop %v2362
      %v2364 = vmul.f32 %v1937, 1.442695
      %v2365 = vpow.pop %v2364
      %v2366 = vmul.f32 %v1938, 1.442695
      %v2367 = vpow.pop %v2366
      %v2368 = vmul.f32 %v1939, 1.442695
      %v2369 = vpow.pop %v2368
      %v2370 = vmul.f32 %v1940, 1.442695
      %v2371 = vpow.pop %v2370
      %v2372 = vmul.f32 %v1941, 1.442695
      %v2373 = vpow.pop %v2372
      %v2374 = vmul.f32 %v1942, 1.442695
      %v2375 = vpow.pop %v2374
      %v2376 = vmul.f32 %v1943, 1.442695
      %v2377 = vpow.pop %v2376
      %v2378 = vmul.f32 %v1944, 1.442695
      %v2379 = vpow.pop %v2378
      %v2380 = vmul.f32 %v1945, 1.442695
      %v2381 = vpow.pop %v2380
      %v2382 = vmul.f32 %v1946, 1.442695
      %v2383 = vpow.pop %v2382
      %v2384 = vmul.f32 %v1947, 1.442695
      %v2385 = vpow.pop %v2384
      %v2386 = vmul.f32 %v1948, 1.442695
      %v2387 = vpow.pop %v2386
      %v2388 = vmul.f32 %v1949, 1.442695
      %v2389 = vpow.pop %v2388
      %v2390 = vmul.f32 %v1950, 1.442695
      %v2391 = vpow.pop %v2390
      %v2392 = vmul.f32 %v1951, 1.442695
      %v2393 = vpow.pop %v2392
      %v2394 = vmul.f32 %v1952, 1.442695
      %v2395 = vpow.pop %v2394
      %v2396 = vmul.f32 %v1953, 1.442695
      %v2397 = vpow.pop %v2396
      %v2398 = vmul.f32 %v1954, 1.442695
      %v2399 = vpow.pop %v2398
      %v2400 = vmul.f32 %v1955, 1.442695
      %v2401 = vpow.pop %v2400
      %v2402 = vmul.f32 %v1956, 1.442695
      %v2403 = vpow.pop %v2402
      %v2404 = vmul.f32 %v1957, 1.442695
      %v2405 = vpow.pop %v2404
      %v2406 = vmul.f32 %v1958, 1.442695
      %v2407 = vpow.pop %v2406
      %v2408 = vmul.f32 %v1959, 1.442695
      %v2409 = vpow.pop %v2408
      %v2410 = vmul.f32 %v1960, 1.442695
      %v2411 = vpow.pop %v2410
      %v2412 = vmul.f32 %v1961, 1.442695
      %v2413 = vpow.pop %v2412
      %v2414 = vmul.f32 %v1962, 1.442695
      %v2415 = vpow.pop %v2414
      %v2416 = vmul.f32 %v1963, 1.442695
      %v2417 = vpow.pop %v2416
      %v2418 = vmul.f32 %v1964, 1.442695
      %v2419 = vpow.pop %v2418
      %v2420 = vmul.f32 %v1965, 1.442695
      %v2421 = vpow.pop %v2420
      %v2422 = vmul.f32 %v1966, 1.442695
      %v2423 = vpow.pop %v2422
      %v2424 = vmul.f32 %v1967, 1.442695
      %v2425 = vpow.pop %v2424
      %v2426 = vmul.f32 %v1968, 1.442695
      %v2427 = vpow.pop %v2426
      %v2428 = vmul.f32 %v1969, 1.442695
      %v2429 = vpow.pop %v2428
      %v2430 = vmul.f32 %v1970, 1.442695
      %v2431 = vpow.pop %v2430
      %v2432 = vmul.f32 %v1971, 1.442695
      %v2433 = vpow.pop %v2432
      %v2434 = vmul.f32 %v1972, 1.442695
      %v2435 = vpow.pop %v2434
      %v2436 = vmul.f32 %v1973, 1.442695
      %v2437 = vpow.pop %v2436
      %v2438 = vmul.f32 %v1974, 1.442695
      %v2439 = vpow.pop %v2438
      %v2440 = vmul.f32 %v1975, 1.442695
      %v2441 = vpow.pop %v2440
      %v2442 = vmul.f32 %v1976, 1.442695
      %v2443 = vpow.pop %v2442
      %v2444 = vmul.f32 %v1977, 1.442695
      %v2445 = vpow.pop %v2444
      %v2446 = vmul.f32 %v1978, 1.442695
      %v2447 = vpow.pop %v2446
      %v2448 = vmul.f32 %v1979, 1.442695
      %v2449 = vpow.pop %v2448
      %v2450 = vmul.f32 %v1980, 1.442695
      %v2451 = vpow.pop %v2450
      %v2452 = vmul.f32 %v1981, 1.442695
      %v2453 = vpow.pop %v2452
      %v2454 = vmul.f32 %v1982, 1.442695
      %v2455 = vpow.pop %v2454
      %v2456 = vmul.f32 %v1983, 1.442695
      %v2457 = vpow.pop %v2456
      %v2458 = vmul.f32 %v1984, 1.442695
      %v2459 = vpow.pop %v2458
      %v2460 = vmul.f32 %v1985, 1.442695
      %v2461 = vpow.pop %v2460
      %v2462 = vmul.f32 %v1986, 1.442695
      %v2463 = vpow.pop %v2462
      %v2464 = vmul.f32 %v1987, 1.442695
      %v2465 = vpow.pop %v2464
      %v2466 = vmul.f32 %v1988, 1.442695
      %v2467 = vpow.pop %v2466
      %v2468 = vmul.f32 %v1989, 1.442695
      %v2469 = vpow.pop %v2468
      %v2470 = vmul.f32 %v1990, 1.442695
      %v2471 = vpow.pop %v2470
      %v2472 = vmul.f32 %v1991, 1.442695
      %v2473 = vpow.pop %v2472
      %v2474 = vmul.f32 %v1992, 1.442695
      %v2475 = vpow.pop %v2474
      %v2476 = vmul.f32 %v1993, 1.442695
      %v2477 = vpow.pop %v2476
      %v2478 = vmul.f32 %v1994, 1.442695
      %v2479 = vpow.pop %v2478
      %v2480 = vmul.f32 %v1995, 1.442695
      %v2481 = vpow.pop %v2480
      %v2482 = vmul.f32 %v1996, 1.442695
      %v2483 = vpow.pop %v2482
      %v2484 = vmul.f32 %v1997, 1.442695
      %v2485 = vpow.pop %v2484
      %v2486 = vmul.f32 %v1998, 1.442695
      %v2487 = vpow.pop %v2486
      %v2488 = vmul.f32 %v1999, 1.442695
      %v2489 = vpow.pop %v2488
      %v2490 = vmul.f32 %v2000, 1.442695
      %v2491 = vpow.pop %v2490
      %v2492 = vmul.f32 %v2001, 1.442695
      %v2493 = vpow.pop %v2492
      %v2494 = vmul.f32 %v2002, 1.442695
      %v2495 = vpow.pop %v2494
      %v2496 = vmul.f32 %v2003, 1.442695
      %v2497 = vpow.pop %v2496
      %v2498 = vmul.f32 %v2004, 1.442695
      %v2499 = vpow.pop %v2498
      %v2500 = vmul.f32 %v2005, 1.442695
      %v2501 = vpow.pop %v2500
      %v2502 = vmul.f32 %v2006, 1.442695
      %v2503 = vpow.pop %v2502
      %v2504 = vmul.f32 %v2007, 1.442695
      %v2505 = vpow.pop %v2504
      %v2506 = vmul.f32 %v2008, 1.442695
      %v2507 = vpow.pop %v2506
      %v2508 = vmul.f32 %v2009, 1.442695
      %v2509 = vpow.pop %v2508
      %v2510 = vmul.f32 %v2010, 1.442695
      %v2511 = vpow.pop %v2510
      %v2512 = vmul.f32 %v2011, 1.442695
      %v2513 = vpow.pop %v2512
      %v2514 = vmul.f32 %v2012, 1.442695
      %v2515 = vpow.pop %v2514
      %v2516 = vmul.f32 %v2013, 1.442695
      %v2517 = vpow.pop %v2516
      %v2518 = vmul.f32 %v2014, 1.442695
      %v2519 = vpow.pop %v2518
      %v2520 = vmul.f32 %v2015, 1.442695
      %v2521 = vpow.pop %v2520
      %v2522 = vmul.f32 %v2016, 1.442695
      %v2523 = vpow.pop %v2522
      %v2524 = vmul.f32 %v2017, 1.442695
      %v2525 = vpow.pop %v2524
      %v2526 = vmul.f32 %v2018, 1.442695
      %v2527 = vpow.pop %v2526
      %v2528 = vmul.f32 %v2019, 1.442695
      %v2529 = vpow.pop %v2528
      %v2530 = vmul.f32 %v2020, 1.442695
      %v2531 = vpow.pop %v2530
      %v2532 = vmul.f32 %v2021, 1.442695
      %v2533 = vpow.pop %v2532
      %2534 = vst [vmem:[#allocation3] sm:$0xff] %v2023
      %2535 = vst [vmem:[#allocation3 + $0x8] sm:$0xff] %v2025
      %2536 = vst [vmem:[#allocation3 + $0x10] sm:$0xff] %v2027
      %2537 = vst [vmem:[#allocation3 + $0x18] sm:$0xff] %v2029
      %2538 = vst [vmem:[#allocation3 + $0x20] sm:$0xff] %v2031
      %2539 = vst [vmem:[#allocation3 + $0x28] sm:$0xff] %v2033
      %2540 = vst [vmem:[#allocation3 + $0x30] sm:$0xff] %v2035
      %2541 = vst [vmem:[#allocation3 + $0x38] sm:$0xff] %v2037
      %2542 = vst [vmem:[#allocation3 + $0x40] sm:$0xff] %v2039
      %2543 = vst [vmem:[#allocation3 + $0x48] sm:$0xff] %v2041
      %2544 = vst [vmem:[#allocation3 + $0x50] sm:$0xff] %v2043
      %2545 = vst [vmem:[#allocation3 + $0x58] sm:$0xff] %v2045
      %2546 = vst [vmem:[#allocation3 + $0x60] sm:$0xff] %v2047
      %2547 = vst [vmem:[#allocation3 + $0x68] sm:$0xff] %v2049
      %2548 = vst [vmem:[#allocation3 + $0x70] sm:$0xff] %v2051
      %2549 = vst [vmem:[#allocation3 + $0x78] sm:$0xff] %v2053
      %2550 = vst [vmem:[#allocation3 + $0x80] sm:$0xff] %v2055
      %2551 = vst [vmem:[#allocation3 + $0x88] sm:$0xff] %v2057
      %2552 = vst [vmem:[#allocation3 + $0x90] sm:$0xff] %v2059
      %2553 = vst [vmem:[#allocation3 + $0x98] sm:$0xff] %v2061
      %2554 = vst [vmem:[#allocation3 + $0xa0] sm:$0xff] %v2063
      %2555 = vst [vmem:[#allocation3 + $0xa8] sm:$0xff] %v2065
      %2556 = vst [vmem:[#allocation3 + $0xb0] sm:$0xff] %v2067
      %2557 = vst [vmem:[#allocation3 + $0xb8] sm:$0xff] %v2069
      %2558 = vst [vmem:[#allocation3 + $0xc0] sm:$0xff] %v2071
      %2559 = vst [vmem:[#allocation3 + $0xc8] sm:$0xff] %v2073
      %2560 = vst [vmem:[#allocation3 + $0xd0] sm:$0xff] %v2075
      %2561 = vst [vmem:[#allocation3 + $0xd8] sm:$0xff] %v2077
      %2562 = vst [vmem:[#allocation3 + $0xe0] sm:$0xff] %v2079
      %2563 = vst [vmem:[#allocation3 + $0xe8] sm:$0xff] %v2081
      %2564 = vst [vmem:[#allocation3 + $0xf0] sm:$0xff] %v2083
      %2565 = vst [vmem:[#allocation3 + $0xf8] sm:$0xff] %v2085
      %2566 = vst [vmem:[#allocation3 + $0x100] sm:$0xff] %v2087
      %2567 = vst [vmem:[#allocation3 + $0x108] sm:$0xff] %v2089
      %2568 = vst [vmem:[#allocation3 + $0x110] sm:$0xff] %v2091
      %2569 = vst [vmem:[#allocation3 + $0x118] sm:$0xff] %v2093
      %2570 = vst [vmem:[#allocation3 + $0x120] sm:$0xff] %v2095
      %2571 = vst [vmem:[#allocation3 + $0x128] sm:$0xff] %v2097
      %2572 = vst [vmem:[#allocation3 + $0x130] sm:$0xff] %v2099
      %2573 = vst [vmem:[#allocation3 + $0x138] sm:$0xff] %v2101
      %2574 = vst [vmem:[#allocation3 + $0x140] sm:$0xff] %v2103
      %2575 = vst [vmem:[#allocation3 + $0x148] sm:$0xff] %v2105
      %2576 = vst [vmem:[#allocation3 + $0x150] sm:$0xff] %v2107
      %2577 = vst [vmem:[#allocation3 + $0x158] sm:$0xff] %v2109
      %2578 = vst [vmem:[#allocation3 + $0x160] sm:$0xff] %v2111
      %2579 = vst [vmem:[#allocation3 + $0x168] sm:$0xff] %v2113
      %2580 = vst [vmem:[#allocation3 + $0x170] sm:$0xff] %v2115
      %2581 = vst [vmem:[#allocation3 + $0x178] sm:$0xff] %v2117
      %2582 = vst [vmem:[#allocation3 + $0x180] sm:$0xff] %v2119
      %2583 = vst [vmem:[#allocation3 + $0x188] sm:$0xff] %v2121
      %2584 = vst [vmem:[#allocation3 + $0x190] sm:$0xff] %v2123
      %2585 = vst [vmem:[#allocation3 + $0x198] sm:$0xff] %v2125
      %2586 = vst [vmem:[#allocation3 + $0x1a0] sm:$0xff] %v2127
      %2587 = vst [vmem:[#allocation3 + $0x1a8] sm:$0xff] %v2129
      %2588 = vst [vmem:[#allocation3 + $0x1b0] sm:$0xff] %v2131
      %2589 = vst [vmem:[#allocation3 + $0x1b8] sm:$0xff] %v2133
      %2590 = vst [vmem:[#allocation3 + $0x1c0] sm:$0xff] %v2135
      %2591 = vst [vmem:[#allocation3 + $0x1c8] sm:$0xff] %v2137
      %2592 = vst [vmem:[#allocation3 + $0x1d0] sm:$0xff] %v2139
      %2593 = vst [vmem:[#allocation3 + $0x1d8] sm:$0xff] %v2141
      %2594 = vst [vmem:[#allocation3 + $0x1e0] sm:$0xff] %v2143
      %2595 = vst [vmem:[#allocation3 + $0x1e8] sm:$0xff] %v2145
      %2596 = vst [vmem:[#allocation3 + $0x1f0] sm:$0xff] %v2147
      %2597 = vst [vmem:[#allocation3 + $0x1f8] sm:$0xff] %v2149
      %2598 = vst [vmem:[#allocation3 + $0x200] sm:$0xff] %v2151
      %2599 = vst [vmem:[#allocation3 + $0x208] sm:$0xff] %v2153
      %2600 = vst [vmem:[#allocation3 + $0x210] sm:$0xff] %v2155
      %2601 = vst [vmem:[#allocation3 + $0x218] sm:$0xff] %v2157
      %2602 = vst [vmem:[#allocation3 + $0x220] sm:$0xff] %v2159
      %2603 = vst [vmem:[#allocation3 + $0x228] sm:$0xff] %v2161
      %2604 = vst [vmem:[#allocation3 + $0x230] sm:$0xff] %v2163
      %2605 = vst [vmem:[#allocation3 + $0x238] sm:$0xff] %v2165
      %2606 = vst [vmem:[#allocation3 + $0x240] sm:$0xff] %v2167
      %2607 = vst [vmem:[#allocation3 + $0x248] sm:$0xff] %v2169
      %2608 = vst [vmem:[#allocation3 + $0x250] sm:$0xff] %v2171
      %2609 = vst [vmem:[#allocation3 + $0x258] sm:$0xff] %v2173
      %2610 = vst [vmem:[#allocation3 + $0x260] sm:$0xff] %v2175
      %2611 = vst [vmem:[#allocation3 + $0x268] sm:$0xff] %v2177
      %2612 = vst [vmem:[#allocation3 + $0x270] sm:$0xff] %v2179
      %2613 = vst [vmem:[#allocation3 + $0x278] sm:$0xff] %v2181
      %2614 = vst [vmem:[#allocation3 + $0x280] sm:$0xff] %v2183
      %2615 = vst [vmem:[#allocation3 + $0x288] sm:$0xff] %v2185
      %2616 = vst [vmem:[#allocation3 + $0x290] sm:$0xff] %v2187
      %2617 = vst [vmem:[#allocation3 + $0x298] sm:$0xff] %v2189
      %2618 = vst [vmem:[#allocation3 + $0x2a0] sm:$0xff] %v2191
      %2619 = vst [vmem:[#allocation3 + $0x2a8] sm:$0xff] %v2193
      %2620 = vst [vmem:[#allocation3 + $0x2b0] sm:$0xff] %v2195
      %2621 = vst [vmem:[#allocation3 + $0x2b8] sm:$0xff] %v2197
      %2622 = vst [vmem:[#allocation3 + $0x2c0] sm:$0xff] %v2199
      %2623 = vst [vmem:[#allocation3 + $0x2c8] sm:$0xff] %v2201
      %2624 = vst [vmem:[#allocation3 + $0x2d0] sm:$0xff] %v2203
      %2625 = vst [vmem:[#allocation3 + $0x2d8] sm:$0xff] %v2205
      %2626 = vst [vmem:[#allocation3 + $0x2e0] sm:$0xff] %v2207
      %2627 = vst [vmem:[#allocation3 + $0x2e8] sm:$0xff] %v2209
      %2628 = vst [vmem:[#allocation3 + $0x2f0] sm:$0xff] %v2211
      %2629 = vst [vmem:[#allocation3 + $0x2f8] sm:$0xff] %v2213
      %2630 = vst [vmem:[#allocation3 + $0x300] sm:$0xff] %v2215
      %2631 = vst [vmem:[#allocation3 + $0x308] sm:$0xff] %v2217
      %2632 = vst [vmem:[#allocation3 + $0x310] sm:$0xff] %v2219
      %2633 = vst [vmem:[#allocation3 + $0x318] sm:$0xff] %v2221
      %2634 = vst [vmem:[#allocation3 + $0x320] sm:$0xff] %v2223
      %2635 = vst [vmem:[#allocation3 + $0x328] sm:$0xff] %v2225
      %2636 = vst [vmem:[#allocation3 + $0x330] sm:$0xff] %v2227
      %2637 = vst [vmem:[#allocation3 + $0x338] sm:$0xff] %v2229
      %2638 = vst [vmem:[#allocation3 + $0x340] sm:$0xff] %v2231
      %2639 = vst [vmem:[#allocation3 + $0x348] sm:$0xff] %v2233
      %2640 = vst [vmem:[#allocation3 + $0x350] sm:$0xff] %v2235
      %2641 = vst [vmem:[#allocation3 + $0x358] sm:$0xff] %v2237
      %2642 = vst [vmem:[#allocation3 + $0x360] sm:$0xff] %v2239
      %2643 = vst [vmem:[#allocation3 + $0x368] sm:$0xff] %v2241
      %2644 = vst [vmem:[#allocation3 + $0x370] sm:$0xff] %v2243
      %2645 = vst [vmem:[#allocation3 + $0x378] sm:$0xff] %v2245
      %2646 = vst [vmem:[#allocation3 + $0x380] sm:$0xff] %v2247
      %2647 = vst [vmem:[#allocation3 + $0x388] sm:$0xff] %v2249
      %2648 = vst [vmem:[#allocation3 + $0x390] sm:$0xff] %v2251
      %2649 = vst [vmem:[#allocation3 + $0x398] sm:$0xff] %v2253
      %2650 = vst [vmem:[#allocation3 + $0x3a0] sm:$0xff] %v2255
      %2651 = vst [vmem:[#allocation3 + $0x3a8] sm:$0xff] %v2257
      %2652 = vst [vmem:[#allocation3 + $0x3b0] sm:$0xff] %v2259
      %2653 = vst [vmem:[#allocation3 + $0x3b8] sm:$0xff] %v2261
      %2654 = vst [vmem:[#allocation3 + $0x3c0] sm:$0xff] %v2263
      %2655 = vst [vmem:[#allocation3 + $0x3c8] sm:$0xff] %v2265
      %2656 = vst [vmem:[#allocation3 + $0x3d0] sm:$0xff] %v2267
      %2657 = vst [vmem:[#allocation3 + $0x3d8] sm:$0xff] %v2269
      %2658 = vst [vmem:[#allocation3 + $0x3e0] sm:$0xff] %v2271
      %2659 = vst [vmem:[#allocation3 + $0x3e8] sm:$0xff] %v2273
      %2660 = vst [vmem:[#allocation3 + $0x3f0] sm:$0xff] %v2275
      %2661 = vst [vmem:[#allocation3 + $0x3f8] sm:$0xff] %v2277
      %2662 = vst [vmem:[#allocation3 + $0x400] sm:$0xff] %v2279
      %2663 = vst [vmem:[#allocation3 + $0x408] sm:$0xff] %v2281
      %2664 = vst [vmem:[#allocation3 + $0x410] sm:$0xff] %v2283
      %2665 = vst [vmem:[#allocation3 + $0x418] sm:$0xff] %v2285
      %2666 = vst [vmem:[#allocation3 + $0x420] sm:$0xff] %v2287
      %2667 = vst [vmem:[#allocation3 + $0x428] sm:$0xff] %v2289
      %2668 = vst [vmem:[#allocation3 + $0x430] sm:$0xff] %v2291
      %2669 = vst [vmem:[#allocation3 + $0x438] sm:$0xff] %v2293
      %2670 = vst [vmem:[#allocation3 + $0x440] sm:$0xff] %v2295
      %2671 = vst [vmem:[#allocation3 + $0x448] sm:$0xff] %v2297
      %2672 = vst [vmem:[#allocation3 + $0x450] sm:$0xff] %v2299
      %2673 = vst [vmem:[#allocation3 + $0x458] sm:$0xff] %v2301
      %2674 = vst [vmem:[#allocation3 + $0x460] sm:$0xff] %v2303
      %2675 = vst [vmem:[#allocation3 + $0x468] sm:$0xff] %v2305
      %2676 = vst [vmem:[#allocation3 + $0x470] sm:$0xff] %v2307
      %2677 = vst [vmem:[#allocation3 + $0x478] sm:$0xff] %v2309
      %2678 = vst [vmem:[#allocation3 + $0x480] sm:$0xff] %v2311
      %2679 = vst [vmem:[#allocation3 + $0x488] sm:$0xff] %v2313
      %2680 = vst [vmem:[#allocation3 + $0x490] sm:$0xff] %v2315
      %2681 = vst [vmem:[#allocation3 + $0x498] sm:$0xff] %v2317
      %2682 = vst [vmem:[#allocation3 + $0x4a0] sm:$0xff] %v2319
      %2683 = vst [vmem:[#allocation3 + $0x4a8] sm:$0xff] %v2321
      %2684 = vst [vmem:[#allocation3 + $0x4b0] sm:$0xff] %v2323
      %2685 = vst [vmem:[#allocation3 + $0x4b8] sm:$0xff] %v2325
      %2686 = vst [vmem:[#allocation3 + $0x4c0] sm:$0xff] %v2327
      %2687 = vst [vmem:[#allocation3 + $0x4c8] sm:$0xff] %v2329
      %2688 = vst [vmem:[#allocation3 + $0x4d0] sm:$0xff] %v2331
      %2689 = vst [vmem:[#allocation3 + $0x4d8] sm:$0xff] %v2333
      %2690 = vst [vmem:[#allocation3 + $0x4e0] sm:$0xff] %v2335
      %2691 = vst [vmem:[#allocation3 + $0x4e8] sm:$0xff] %v2337
      %2692 = vst [vmem:[#allocation3 + $0x4f0] sm:$0xff] %v2339
      %2693 = vst [vmem:[#allocation3 + $0x4f8] sm:$0xff] %v2341
      %2694 = vst [vmem:[#allocation3 + $0x500] sm:$0xff] %v2343
      %2695 = vst [vmem:[#allocation3 + $0x508] sm:$0xff] %v2345
      %2696 = vst [vmem:[#allocation3 + $0x510] sm:$0xff] %v2347
      %2697 = vst [vmem:[#allocation3 + $0x518] sm:$0xff] %v2349
      %2698 = vst [vmem:[#allocation3 + $0x520] sm:$0xff] %v2351
      %2699 = vst [vmem:[#allocation3 + $0x528] sm:$0xff] %v2353
      %2700 = vst [vmem:[#allocation3 + $0x530] sm:$0xff] %v2355
      %2701 = vst [vmem:[#allocation3 + $0x538] sm:$0xff] %v2357
      %2702 = vst [vmem:[#allocation3 + $0x540] sm:$0xff] %v2359
      %2703 = vst [vmem:[#allocation3 + $0x548] sm:$0xff] %v2361
      %2704 = vst [vmem:[#allocation3 + $0x550] sm:$0xff] %v2363
      %2705 = vst [vmem:[#allocation3 + $0x558] sm:$0xff] %v2365
      %2706 = vst [vmem:[#allocation3 + $0x560] sm:$0xff] %v2367
      %2707 = vst [vmem:[#allocation3 + $0x568] sm:$0xff] %v2369
      %2708 = vst [vmem:[#allocation3 + $0x570] sm:$0xff] %v2371
      %2709 = vst [vmem:[#allocation3 + $0x578] sm:$0xff] %v2373
      %2710 = vst [vmem:[#allocation3 + $0x580] sm:$0xff] %v2375
      %2711 = vst [vmem:[#allocation3 + $0x588] sm:$0xff] %v2377
      %2712 = vst [vmem:[#allocation3 + $0x590] sm:$0xff] %v2379
      %2713 = vst [vmem:[#allocation3 + $0x598] sm:$0xff] %v2381
      %2714 = vst [vmem:[#allocation3 + $0x5a0] sm:$0xff] %v2383
      %2715 = vst [vmem:[#allocation3 + $0x5a8] sm:$0xff] %v2385
      %2716 = vst [vmem:[#allocation3 + $0x5b0] sm:$0xff] %v2387
      %2717 = vst [vmem:[#allocation3 + $0x5b8] sm:$0xff] %v2389
      %2718 = vst [vmem:[#allocation3 + $0x5c0] sm:$0xff] %v2391
      %2719 = vst [vmem:[#allocation3 + $0x5c8] sm:$0xff] %v2393
      %2720 = vst [vmem:[#allocation3 + $0x5d0] sm:$0xff] %v2395
      %2721 = vst [vmem:[#allocation3 + $0x5d8] sm:$0xff] %v2397
      %2722 = vst [vmem:[#allocation3 + $0x5e0] sm:$0xff] %v2399
      %2723 = vst [vmem:[#allocation3 + $0x5e8] sm:$0xff] %v2401
      %2724 = vst [vmem:[#allocation3 + $0x5f0] sm:$0xff] %v2403
      %2725 = vst [vmem:[#allocation3 + $0x5f8] sm:$0xff] %v2405
      %2726 = vst [vmem:[#allocation3 + $0x600] sm:$0xff] %v2407
      %2727 = vst [vmem:[#allocation3 + $0x608] sm:$0xff] %v2409
      %2728 = vst [vmem:[#allocation3 + $0x610] sm:$0xff] %v2411
      %2729 = vst [vmem:[#allocation3 + $0x618] sm:$0xff] %v2413
      %2730 = vst [vmem:[#allocation3 + $0x620] sm:$0xff] %v2415
      %2731 = vst [vmem:[#allocation3 + $0x628] sm:$0xff] %v2417
      %2732 = vst [vmem:[#allocation3 + $0x630] sm:$0xff] %v2419
      %2733 = vst [vmem:[#allocation3 + $0x638] sm:$0xff] %v2421
      %2734 = vst [vmem:[#allocation3 + $0x640] sm:$0xff] %v2423
      %2735 = vst [vmem:[#allocation3 + $0x648] sm:$0xff] %v2425
      %2736 = vst [vmem:[#allocation3 + $0x650] sm:$0xff] %v2427
      %2737 = vst [vmem:[#allocation3 + $0x658] sm:$0xff] %v2429
      %2738 = vst [vmem:[#allocation3 + $0x660] sm:$0xff] %v2431
      %2739 = vst [vmem:[#allocation3 + $0x668] sm:$0xff] %v2433
      %2740 = vst [vmem:[#allocation3 + $0x670] sm:$0xff] %v2435
      %2741 = vst [vmem:[#allocation3 + $0x678] sm:$0xff] %v2437
      %2742 = vst [vmem:[#allocation3 + $0x680] sm:$0xff] %v2439
      %2743 = vst [vmem:[#allocation3 + $0x688] sm:$0xff] %v2441
      %2744 = vst [vmem:[#allocation3 + $0x690] sm:$0xff] %v2443
      %2745 = vst [vmem:[#allocation3 + $0x698] sm:$0xff] %v2445
      %2746 = vst [vmem:[#allocation3 + $0x6a0] sm:$0xff] %v2447
      %2747 = vst [vmem:[#allocation3 + $0x6a8] sm:$0xff] %v2449
      %2748 = vst [vmem:[#allocation3 + $0x6b0] sm:$0xff] %v2451
      %2749 = vst [vmem:[#allocation3 + $0x6b8] sm:$0xff] %v2453
      %2750 = vst [vmem:[#allocation3 + $0x6c0] sm:$0xff] %v2455
      %2751 = vst [vmem:[#allocation3 + $0x6c8] sm:$0xff] %v2457
      %2752 = vst [vmem:[#allocation3 + $0x6d0] sm:$0xff] %v2459
      %2753 = vst [vmem:[#allocation3 + $0x6d8] sm:$0xff] %v2461
      %2754 = vst [vmem:[#allocation3 + $0x6e0] sm:$0xff] %v2463
      %2755 = vst [vmem:[#allocation3 + $0x6e8] sm:$0xff] %v2465
      %2756 = vst [vmem:[#allocation3 + $0x6f0] sm:$0xff] %v2467
      %2757 = vst [vmem:[#allocation3 + $0x6f8] sm:$0xff] %v2469
      %2758 = vst [vmem:[#allocation3 + $0x700] sm:$0xff] %v2471
      %2759 = vst [vmem:[#allocation3 + $0x708] sm:$0xff] %v2473
      %2760 = vst [vmem:[#allocation3 + $0x710] sm:$0xff] %v2475
      %2761 = vst [vmem:[#allocation3 + $0x718] sm:$0xff] %v2477
      %2762 = vst [vmem:[#allocation3 + $0x720] sm:$0xff] %v2479
      %2763 = vst [vmem:[#allocation3 + $0x728] sm:$0xff] %v2481
      %2764 = vst [vmem:[#allocation3 + $0x730] sm:$0xff] %v2483
      %2765 = vst [vmem:[#allocation3 + $0x738] sm:$0xff] %v2485
      %2766 = vst [vmem:[#allocation3 + $0x740] sm:$0xff] %v2487
      %2767 = vst [vmem:[#allocation3 + $0x748] sm:$0xff] %v2489
      %2768 = vst [vmem:[#allocation3 + $0x750] sm:$0xff] %v2491
      %2769 = vst [vmem:[#allocation3 + $0x758] sm:$0xff] %v2493
      %2770 = vst [vmem:[#allocation3 + $0x760] sm:$0xff] %v2495
      %2771 = vst [vmem:[#allocation3 + $0x768] sm:$0xff] %v2497
      %2772 = vst [vmem:[#allocation3 + $0x770] sm:$0xff] %v2499
      %2773 = vst [vmem:[#allocation3 + $0x778] sm:$0xff] %v2501
      %2774 = vst [vmem:[#allocation3 + $0x780] sm:$0xff] %v2503
      %2775 = vst [vmem:[#allocation3 + $0x788] sm:$0xff] %v2505
      %2776 = vst [vmem:[#allocation3 + $0x790] sm:$0xff] %v2507
      %2777 = vst [vmem:[#allocation3 + $0x798] sm:$0xff] %v2509
      %2778 = vst [vmem:[#allocation3 + $0x7a0] sm:$0xff] %v2511
      %2779 = vst [vmem:[#allocation3 + $0x7a8] sm:$0xff] %v2513
      %2780 = vst [vmem:[#allocation3 + $0x7b0] sm:$0xff] %v2515
      %2781 = vst [vmem:[#allocation3 + $0x7b8] sm:$0xff] %v2517
      %2782 = vst [vmem:[#allocation3 + $0x7c0] sm:$0xff] %v2519
      %2783 = vst [vmem:[#allocation3 + $0x7c8] sm:$0xff] %v2521
      %2784 = vst [vmem:[#allocation3 + $0x7d0] sm:$0xff] %v2523
      %2785 = vst [vmem:[#allocation3 + $0x7d8] sm:$0xff] %v2525
      %2786 = vst [vmem:[#allocation3 + $0x7e0] sm:$0xff] %v2527
      %2787 = vst [vmem:[#allocation3 + $0x7e8] sm:$0xff] %v2529
      %2788 = vst [vmem:[#allocation3 + $0x7f0] sm:$0xff] %v2531
      %2789 = vst [vmem:[#allocation3 + $0x7f8] sm:$0xff] %v2533
      %v2790 = vld [vmem:[%s6] sm:$0xff]
      %v2791 = vld [vmem:[%s6 + $0x8] sm:$0xff]
      %v2792 = vld [vmem:[%s6 + $0x10] sm:$0xff]
      %v2793 = vld [vmem:[%s6 + $0x18] sm:$0xff]
      %v2794 = vld [vmem:[%s385] sm:$0xff]
      %v2795 = vld [vmem:[%s385 + $0x8] sm:$0xff]
      %v2796 = vld [vmem:[%s385 + $0x10] sm:$0xff]
      %v2797 = vld [vmem:[%s385 + $0x18] sm:$0xff]
      %v2798 = vld [vmem:[%s385 + $0x20] sm:$0xff]
      %v2799 = vld [vmem:[%s385 + $0x28] sm:$0xff]
      %v2800 = vld [vmem:[%s385 + $0x30] sm:$0xff]
      %v2801 = vld [vmem:[%s385 + $0x38] sm:$0xff]
      %v2802 = vld [vmem:[%s385 + $0x40] sm:$0xff]
      %v2803 = vld [vmem:[%s385 + $0x48] sm:$0xff]
      %v2804 = vld [vmem:[%s385 + $0x50] sm:$0xff]
      %v2805 = vld [vmem:[%s385 + $0x58] sm:$0xff]
      %v2806 = vld [vmem:[%s385 + $0x60] sm:$0xff]
      %v2807 = vld [vmem:[%s385 + $0x68] sm:$0xff]
      %v2808 = vld [vmem:[%s385 + $0x70] sm:$0xff]
      %v2809 = vld [vmem:[%s385 + $0x78] sm:$0xff]
      %v2810 = vld [vmem:[%s385 + $0x80] sm:$0xff]
      %v2811 = vld [vmem:[%s385 + $0x88] sm:$0xff]
      %v2812 = vld [vmem:[%s385 + $0x90] sm:$0xff]
      %v2813 = vld [vmem:[%s385 + $0x98] sm:$0xff]
      %v2814 = vld [vmem:[%s385 + $0xa0] sm:$0xff]
      %v2815 = vld [vmem:[%s385 + $0xa8] sm:$0xff]
      %v2816 = vld [vmem:[%s385 + $0xb0] sm:$0xff]
      %v2817 = vld [vmem:[%s385 + $0xb8] sm:$0xff]
      %v2818 = vld [vmem:[%s385 + $0xc0] sm:$0xff]
      %v2819 = vld [vmem:[%s385 + $0xc8] sm:$0xff]
      %v2820 = vld [vmem:[%s385 + $0xd0] sm:$0xff]
      %v2821 = vld [vmem:[%s385 + $0xd8] sm:$0xff]
      %v2822 = vld [vmem:[%s385 + $0xe0] sm:$0xff]
      %v2823 = vld [vmem:[%s385 + $0xe8] sm:$0xff]
      %v2824 = vld [vmem:[%s385 + $0xf0] sm:$0xff]
      %v2825 = vld [vmem:[%s385 + $0xf8] sm:$0xff]
      %v2826 = vld [vmem:[%s385 + $0x100] sm:$0xff]
      %v2827 = vld [vmem:[%s385 + $0x108] sm:$0xff]
      %v2828 = vld [vmem:[%s385 + $0x110] sm:$0xff]
      %v2829 = vld [vmem:[%s385 + $0x118] sm:$0xff]
      %v2830 = vld [vmem:[%s385 + $0x120] sm:$0xff]
      %v2831 = vld [vmem:[%s385 + $0x128] sm:$0xff]
      %v2832 = vld [vmem:[%s385 + $0x130] sm:$0xff]
      %v2833 = vld [vmem:[%s385 + $0x138] sm:$0xff]
      %v2834 = vld [vmem:[%s385 + $0x140] sm:$0xff]
      %v2835 = vld [vmem:[%s385 + $0x148] sm:$0xff]
      %v2836 = vld [vmem:[%s385 + $0x150] sm:$0xff]
      %v2837 = vld [vmem:[%s385 + $0x158] sm:$0xff]
      %v2838 = vld [vmem:[%s385 + $0x160] sm:$0xff]
      %v2839 = vld [vmem:[%s385 + $0x168] sm:$0xff]
      %v2840 = vld [vmem:[%s385 + $0x170] sm:$0xff]
      %v2841 = vld [vmem:[%s385 + $0x178] sm:$0xff]
      %v2842 = vld [vmem:[%s385 + $0x180] sm:$0xff]
      %v2843 = vld [vmem:[%s385 + $0x188] sm:$0xff]
      %v2844 = vld [vmem:[%s385 + $0x190] sm:$0xff]
      %v2845 = vld [vmem:[%s385 + $0x198] sm:$0xff]
      %v2846 = vld [vmem:[%s385 + $0x1a0] sm:$0xff]
      %v2847 = vld [vmem:[%s385 + $0x1a8] sm:$0xff]
      %v2848 = vld [vmem:[%s385 + $0x1b0] sm:$0xff]
      %v2849 = vld [vmem:[%s385 + $0x1b8] sm:$0xff]
      %v2850 = vld [vmem:[%s385 + $0x1c0] sm:$0xff]
      %v2851 = vld [vmem:[%s385 + $0x1c8] sm:$0xff]
      %v2852 = vld [vmem:[%s385 + $0x1d0] sm:$0xff]
      %v2853 = vld [vmem:[%s385 + $0x1d8] sm:$0xff]
      %v2854 = vld [vmem:[%s385 + $0x1e0] sm:$0xff]
      %v2855 = vld [vmem:[%s385 + $0x1e8] sm:$0xff]
      %v2856 = vld [vmem:[%s385 + $0x1f0] sm:$0xff]
      %v2857 = vld [vmem:[%s385 + $0x1f8] sm:$0xff]
      %v2858 = vld [vmem:[%s385 + $0x200] sm:$0xff]
      %v2859 = vld [vmem:[%s385 + $0x208] sm:$0xff]
      %v2860 = vld [vmem:[%s385 + $0x210] sm:$0xff]
      %v2861 = vld [vmem:[%s385 + $0x218] sm:$0xff]
      %v2862 = vld [vmem:[%s385 + $0x220] sm:$0xff]
      %v2863 = vld [vmem:[%s385 + $0x228] sm:$0xff]
      %v2864 = vld [vmem:[%s385 + $0x230] sm:$0xff]
      %v2865 = vld [vmem:[%s385 + $0x238] sm:$0xff]
      %v2866 = vld [vmem:[%s385 + $0x240] sm:$0xff]
      %v2867 = vld [vmem:[%s385 + $0x248] sm:$0xff]
      %v2868 = vld [vmem:[%s385 + $0x250] sm:$0xff]
      %v2869 = vld [vmem:[%s385 + $0x258] sm:$0xff]
      %v2870 = vld [vmem:[%s385 + $0x260] sm:$0xff]
      %v2871 = vld [vmem:[%s385 + $0x268] sm:$0xff]
      %v2872 = vld [vmem:[%s385 + $0x270] sm:$0xff]
      %v2873 = vld [vmem:[%s385 + $0x278] sm:$0xff]
      %v2874 = vld [vmem:[%s385 + $0x280] sm:$0xff]
      %v2875 = vld [vmem:[%s385 + $0x288] sm:$0xff]
      %v2876 = vld [vmem:[%s385 + $0x290] sm:$0xff]
      %v2877 = vld [vmem:[%s385 + $0x298] sm:$0xff]
      %v2878 = vld [vmem:[%s385 + $0x2a0] sm:$0xff]
      %v2879 = vld [vmem:[%s385 + $0x2a8] sm:$0xff]
      %v2880 = vld [vmem:[%s385 + $0x2b0] sm:$0xff]
      %v2881 = vld [vmem:[%s385 + $0x2b8] sm:$0xff]
      %v2882 = vld [vmem:[%s385 + $0x2c0] sm:$0xff]
      %v2883 = vld [vmem:[%s385 + $0x2c8] sm:$0xff]
      %v2884 = vld [vmem:[%s385 + $0x2d0] sm:$0xff]
      %v2885 = vld [vmem:[%s385 + $0x2d8] sm:$0xff]
      %v2886 = vld [vmem:[%s385 + $0x2e0] sm:$0xff]
      %v2887 = vld [vmem:[%s385 + $0x2e8] sm:$0xff]
      %v2888 = vld [vmem:[%s385 + $0x2f0] sm:$0xff]
      %v2889 = vld [vmem:[%s385 + $0x2f8] sm:$0xff]
      %v2890 = vld [vmem:[%s385 + $0x300] sm:$0xff]
      %v2891 = vld [vmem:[%s385 + $0x308] sm:$0xff]
      %v2892 = vld [vmem:[%s385 + $0x310] sm:$0xff]
      %v2893 = vld [vmem:[%s385 + $0x318] sm:$0xff]
      %v2894 = vld [vmem:[%s385 + $0x320] sm:$0xff]
      %v2895 = vld [vmem:[%s385 + $0x328] sm:$0xff]
      %v2896 = vld [vmem:[%s385 + $0x330] sm:$0xff]
      %v2897 = vld [vmem:[%s385 + $0x338] sm:$0xff]
      %v2898 = vld [vmem:[%s385 + $0x340] sm:$0xff]
      %v2899 = vld [vmem:[%s385 + $0x348] sm:$0xff]
      %v2900 = vld [vmem:[%s385 + $0x350] sm:$0xff]
      %v2901 = vld [vmem:[%s385 + $0x358] sm:$0xff]
      %v2902 = vld [vmem:[%s385 + $0x360] sm:$0xff]
      %v2903 = vld [vmem:[%s385 + $0x368] sm:$0xff]
      %v2904 = vld [vmem:[%s385 + $0x370] sm:$0xff]
      %v2905 = vld [vmem:[%s385 + $0x378] sm:$0xff]
      %v2906 = vld [vmem:[%s385 + $0x380] sm:$0xff]
      %v2907 = vld [vmem:[%s385 + $0x388] sm:$0xff]
      %v2908 = vld [vmem:[%s385 + $0x390] sm:$0xff]
      %v2909 = vld [vmem:[%s385 + $0x398] sm:$0xff]
      %v2910 = vld [vmem:[%s385 + $0x3a0] sm:$0xff]
      %v2911 = vld [vmem:[%s385 + $0x3a8] sm:$0xff]
      %v2912 = vld [vmem:[%s385 + $0x3b0] sm:$0xff]
      %v2913 = vld [vmem:[%s385 + $0x3b8] sm:$0xff]
      %v2914 = vld [vmem:[%s385 + $0x3c0] sm:$0xff]
      %v2915 = vld [vmem:[%s385 + $0x3c8] sm:$0xff]
      %v2916 = vld [vmem:[%s385 + $0x3d0] sm:$0xff]
      %v2917 = vld [vmem:[%s385 + $0x3d8] sm:$0xff]
      %v2918 = vld [vmem:[%s385 + $0x3e0] sm:$0xff]
      %v2919 = vld [vmem:[%s385 + $0x3e8] sm:$0xff]
      %v2920 = vld [vmem:[%s385 + $0x3f0] sm:$0xff]
      %v2921 = vld [vmem:[%s385 + $0x3f8] sm:$0xff]
      %vm2922 = vcmask 64512
      %v2924 = vsel %vm2922, %v2794, 0
      %v2927 = vsel %vm2922, %v2795, 0
      %v2930 = vsel %vm2922, %v2796, 0
      %v2933 = vsel %vm2922, %v2797, 0
      %v2936 = vsel %vm2922, %v2798, 0
      %v2939 = vsel %vm2922, %v2799, 0
      %v2942 = vsel %vm2922, %v2800, 0
      %v2945 = vsel %vm2922, %v2801, 0
      %v2948 = vsel %vm2922, %v2802, 0
      %v2951 = vsel %vm2922, %v2803, 0
      %v2954 = vsel %vm2922, %v2804, 0
      %v2957 = vsel %vm2922, %v2805, 0
      %v2960 = vsel %vm2922, %v2806, 0
      %v2963 = vsel %vm2922, %v2807, 0
      %v2966 = vsel %vm2922, %v2808, 0
      %v2969 = vsel %vm2922, %v2809, 0
      %v2972 = vsel %vm2922, %v2810, 0
      %v2975 = vsel %vm2922, %v2811, 0
      %v2978 = vsel %vm2922, %v2812, 0
      %v2981 = vsel %vm2922, %v2813, 0
      %v2984 = vsel %vm2922, %v2814, 0
      %v2987 = vsel %vm2922, %v2815, 0
      %v2990 = vsel %vm2922, %v2816, 0
      %v2993 = vsel %vm2922, %v2817, 0
      %v2996 = vsel %vm2922, %v2818, 0
      %v2999 = vsel %vm2922, %v2819, 0
      %v3002 = vsel %vm2922, %v2820, 0
      %v3005 = vsel %vm2922, %v2821, 0
      %v3008 = vsel %vm2922, %v2822, 0
      %v3011 = vsel %vm2922, %v2823, 0
      %v3014 = vsel %vm2922, %v2824, 0
      %v3017 = vsel %vm2922, %v2825, 0
      %v3020 = vsel %vm2922, %v2826, 0
      %v3023 = vsel %vm2922, %v2827, 0
      %v3026 = vsel %vm2922, %v2828, 0
      %v3029 = vsel %vm2922, %v2829, 0
      %v3032 = vsel %vm2922, %v2830, 0
      %v3035 = vsel %vm2922, %v2831, 0
      %v3038 = vsel %vm2922, %v2832, 0
      %v3041 = vsel %vm2922, %v2833, 0
      %v3044 = vsel %vm2922, %v2834, 0
      %v3047 = vsel %vm2922, %v2835, 0
      %v3050 = vsel %vm2922, %v2836, 0
      %v3053 = vsel %vm2922, %v2837, 0
      %v3056 = vsel %vm2922, %v2838, 0
      %v3059 = vsel %vm2922, %v2839, 0
      %v3062 = vsel %vm2922, %v2840, 0
      %v3065 = vsel %vm2922, %v2841, 0
      %v3068 = vsel %vm2922, %v2842, 0
      %v3071 = vsel %vm2922, %v2843, 0
      %v3074 = vsel %vm2922, %v2844, 0
      %v3077 = vsel %vm2922, %v2845, 0
      %v3080 = vsel %vm2922, %v2846, 0
      %v3083 = vsel %vm2922, %v2847, 0
      %v3086 = vsel %vm2922, %v2848, 0
      %v3089 = vsel %vm2922, %v2849, 0
      %v3092 = vsel %vm2922, %v2850, 0
      %v3095 = vsel %vm2922, %v2851, 0
      %v3098 = vsel %vm2922, %v2852, 0
      %v3101 = vsel %vm2922, %v2853, 0
      %v3104 = vsel %vm2922, %v2854, 0
      %v3107 = vsel %vm2922, %v2855, 0
      %v3110 = vsel %vm2922, %v2856, 0
      %v3113 = vsel %vm2922, %v2857, 0
      %v3116 = vsel %vm2922, %v2858, 0
      %v3119 = vsel %vm2922, %v2859, 0
      %v3122 = vsel %vm2922, %v2860, 0
      %v3125 = vsel %vm2922, %v2861, 0
      %v3128 = vsel %vm2922, %v2862, 0
      %v3131 = vsel %vm2922, %v2863, 0
      %v3134 = vsel %vm2922, %v2864, 0
      %v3137 = vsel %vm2922, %v2865, 0
      %v3140 = vsel %vm2922, %v2866, 0
      %v3143 = vsel %vm2922, %v2867, 0
      %v3146 = vsel %vm2922, %v2868, 0
      %v3149 = vsel %vm2922, %v2869, 0
      %v3152 = vsel %vm2922, %v2870, 0
      %v3155 = vsel %vm2922, %v2871, 0
      %v3158 = vsel %vm2922, %v2872, 0
      %v3161 = vsel %vm2922, %v2873, 0
      %v3164 = vsel %vm2922, %v2874, 0
      %v3167 = vsel %vm2922, %v2875, 0
      %v3170 = vsel %vm2922, %v2876, 0
      %v3173 = vsel %vm2922, %v2877, 0
      %v3176 = vsel %vm2922, %v2878, 0
      %v3179 = vsel %vm2922, %v2879, 0
      %v3182 = vsel %vm2922, %v2880, 0
      %v3185 = vsel %vm2922, %v2881, 0
      %v3188 = vsel %vm2922, %v2882, 0
      %v3191 = vsel %vm2922, %v2883, 0
      %v3194 = vsel %vm2922, %v2884, 0
      %v3197 = vsel %vm2922, %v2885, 0
      %v3200 = vsel %vm2922, %v2886, 0
      %v3203 = vsel %vm2922, %v2887, 0
      %v3206 = vsel %vm2922, %v2888, 0
      %v3209 = vsel %vm2922, %v2889, 0
      %v3212 = vsel %vm2922, %v2890, 0
      %v3215 = vsel %vm2922, %v2891, 0
      %v3218 = vsel %vm2922, %v2892, 0
      %v3221 = vsel %vm2922, %v2893, 0
      %v3224 = vsel %vm2922, %v2894, 0
      %v3227 = vsel %vm2922, %v2895, 0
      %v3230 = vsel %vm2922, %v2896, 0
      %v3233 = vsel %vm2922, %v2897, 0
      %v3236 = vsel %vm2922, %v2898, 0
      %v3239 = vsel %vm2922, %v2899, 0
      %v3242 = vsel %vm2922, %v2900, 0
      %v3245 = vsel %vm2922, %v2901, 0
      %v3248 = vsel %vm2922, %v2902, 0
      %v3251 = vsel %vm2922, %v2903, 0
      %v3254 = vsel %vm2922, %v2904, 0
      %v3257 = vsel %vm2922, %v2905, 0
      %v3260 = vsel %vm2922, %v2906, 0
      %v3263 = vsel %vm2922, %v2907, 0
      %v3266 = vsel %vm2922, %v2908, 0
      %v3269 = vsel %vm2922, %v2909, 0
      %v3272 = vsel %vm2922, %v2910, 0
      %v3275 = vsel %vm2922, %v2911, 0
      %v3278 = vsel %vm2922, %v2912, 0
      %v3281 = vsel %vm2922, %v2913, 0
      %v3284 = vsel %vm2922, %v2914, 0
      %v3287 = vsel %vm2922, %v2915, 0
      %v3290 = vsel %vm2922, %v2916, 0
      %v3293 = vsel %vm2922, %v2917, 0
      %v3296 = vsel %vm2922, %v2918, 0
      %v3299 = vsel %vm2922, %v2919, 0
      %v3302 = vsel %vm2922, %v2920, 0
      %v3305 = vsel %vm2922, %v2921, 0
      %3307 = vmatprep.subr.mxu0 %v2791
      %3308 = vmatpush1.msra.mxu0 %v2790
      %3309 = vmatprep.subr.mxu0 0.0
      %3310 = vmatpush1.msra.mxu0 0.0
      %3311 = vmatprep.subr.mxu0 0.0
      %3312 = vmatpush1.msra.mxu0 0.0
      %3313 = vmatprep.subr.mxu0 0.0
      %3314 = vmatpush1.msra.mxu0 0.0
      %3315 = vmatprep.subr.mxu0 0.0
      %3316 = vmatpush1.msra.mxu0 0.0
      %3317 = vmatprep.subr.mxu0 0.0
      %3318 = vmatpush1.msra.mxu0 0.0
      %3319 = vmatprep.subr.mxu0 0.0
      %3320 = vmatpush1.msra.mxu0 0.0
      %3321 = vmatprep.subr.mxu0 0.0
      %3322 = vmatpush1.msra.mxu0 0.0
      %3323 = vmatprep.subr.mxu0 0.0
      %3324 = vmatpush1.msra.mxu0 0.0
      %3325 = vmatprep.subr.mxu0 0.0
      %3326 = vmatpush1.msra.mxu0 0.0
      %3327 = vmatprep.subr.mxu0 0.0
      %3328 = vmatpush1.msra.mxu0 0.0
      %3329 = vmatprep.subr.mxu0 0.0
      %3330 = vmatpush1.msra.mxu0 0.0
      %3331 = vmatprep.subr.mxu0 0.0
      %3332 = vmatpush1.msra.mxu0 0.0
      %3333 = vmatprep.subr.mxu0 0.0
      %3334 = vmatpush1.msra.mxu0 0.0
      %3335 = vmatprep.subr.mxu0 0.0
      %3336 = vmatpush1.msra.mxu0 0.0
      %3337 = vmatprep.subr.mxu0 0.0
      %3338 = vmatpush1.msra.mxu0 0.0
      %3339 = vmatprep.subr.mxu0 0.0
      %3340 = vmatpush1.msra.mxu0 0.0
      %3341 = vmatprep.subr.mxu0 0.0
      %3342 = vmatpush1.msra.mxu0 0.0
      %3343 = vmatprep.subr.mxu0 0.0
      %3344 = vmatpush1.msra.mxu0 0.0
      %3345 = vmatprep.subr.mxu0 0.0
      %3346 = vmatpush1.msra.mxu0 0.0
      %3347 = vmatprep.subr.mxu0 0.0
      %3348 = vmatpush1.msra.mxu0 0.0
      %3349 = vmatprep.subr.mxu0 0.0
      %3350 = vmatpush1.msra.mxu0 0.0
      %3351 = vmatprep.subr.mxu0 0.0
      %3352 = vmatpush1.msra.mxu0 0.0
      %3353 = vmatprep.subr.mxu0 0.0
      %3354 = vmatpush1.msra.mxu0 0.0
      %3355 = vmatprep.subr.mxu0 0.0
      %3356 = vmatpush1.msra.mxu0 0.0
      %3357 = vmatprep.subr.mxu0 0.0
      %3358 = vmatpush1.msra.mxu0 0.0
      %3359 = vmatprep.subr.mxu0 0.0
      %3360 = vmatpush1.msra.mxu0 0.0
      %3361 = vmatprep.subr.mxu0 0.0
      %3362 = vmatpush1.msra.mxu0 0.0
      %3363 = vmatprep.subr.mxu0 0.0
      %3364 = vmatpush1.msra.mxu0 0.0
      %3365 = vmatprep.subr.mxu0 0.0
      %3366 = vmatpush1.msra.mxu0 0.0
      %3367 = vmatprep.subr.mxu0 0.0
      %3368 = vmatpush1.msra.mxu0 0.0
      %3369 = vmatprep.subr.mxu0 0.0
      %3370 = vmatpush1.msra.mxu0 0.0
      %3371 = vmatprep.mubr.f32.mxu0 0.0
      %3372 = vmatmul.mubr.f32.gmra.mrb[0].mxu0 %v2924
      %v3373 = vpop.f32.mrb[0].mxu0
      %v3374 = vadd.f32 0.0, %v3373
      %v3375 = vpop.f32.mrb[0].mxu0
      %v3376 = vadd.f32 0.0, %v3375
      %3377 = vmatprep.mubr.f32.mxu0 0.0
      %3378 = vmatmul.mubr.f32.gmra.mrb[0].mxu0 %v2927
      %v3379 = vpop.f32.mrb[0].mxu0
      %v3380 = vadd.f32 0.0, %v3379
      %v3381 = vpop.f32.mrb[0].mxu0
      %v3382 = vadd.f32 0.0, %v3381
      %3383 = vmatprep.mubr.f32.mxu0 0.0
      %3384 = vmatmul.mubr.f32.gmra.mrb[0].mxu0 %v2930
      %v3385 = vpop.f32.mrb[0].mxu0
      %v3386 = vadd.f32 0.0, %v3385
      %v3387 = vpop.f32.mrb[0].mxu0
      %v3388 = vadd.f32 0.0, %v3387
      %3389 = vmatprep.mubr.f32.mxu0 0.0
      %3390 = vmatmul.mubr.f32.gmra.mrb[0].mxu0 %v2933
      %v3391 = vpop.f32.mrb[0].mxu0
      %v3392 = vadd.f32 0.0, %v3391
      %v3393 = vpop.f32.mrb[0].mxu0
      %v3394 = vadd.f32 0.0, %v3393
      %3395 = vmatprep.mubr.f32.mxu0 0.0
      %3396 = vmatmul.mubr.f32.gmra.mrb[0].mxu0 %v2936
      %v3397 = vpop.f32.mrb[0].mxu0
      %v3398 = vadd.f32 0.0, %v3397
      %v3399 = vpop.f32.mrb[0].mxu0
      %v3400 = vadd.f32 0.0, %v3399
      %3401 = vmatprep.mubr.f32.mxu0 0.0
      %3402 = vmatmul.mubr.f32.gmra.mrb[0].mxu0 %v2939
      %v3403 = vpop.f32.mrb[0].mxu0
      %v3404 = vadd.f32 0.0, %v3403
      %v3405 = vpop.f32.mrb[0].mxu0
      %v3406 = vadd.f32 0.0, %v3405
      %3407 = vmatprep.mubr.f32.mxu0 0.0
      %3408 = vmatmul.mubr.f32.gmra.mrb[0].mxu0 %v2942
      %v3409 = vpop.f32.mrb[0].mxu0
      %v3410 = vadd.f32 0.0, %v3409
      %v3411 = vpop.f32.mrb[0].mxu0
      %v3412 = vadd.f32 0.0, %v3411
      %3413 = vmatprep.mubr.f32.mxu0 0.0
      %3414 = vmatmul.mubr.f32.gmra.mrb[0].mxu0 %v2945
      %v3415 = vpop.f32.mrb[0].mxu0
      %v3416 = vadd.f32 0.0, %v3415
      %v3417 = vpop.f32.mrb[0].mxu0
      %v3418 = vadd.f32 0.0, %v3417
      %3419 = vmatprep.mubr.f32.mxu0 0.0
      %3420 = vmatmul.mubr.f32.gmra.mrb[0].mxu0 %v2948
      %v3421 = vpop.f32.mrb[0].mxu0
      %v3422 = vadd.f32 0.0, %v3421
      %v3423 = vpop.f32.mrb[0].mxu0
      %v3424 = vadd.f32 0.0, %v3423
      %3425 = vmatprep.mubr.f32.mxu0 0.0
      %3426 = vmatmul.mubr.f32.gmra.mrb[0].mxu0 %v2951
      %v3427 = vpop.f32.mrb[0].mxu0
      %v3428 = vadd.f32 0.0, %v3427
      %v3429 = vpop.f32.mrb[0].mxu0
      %v3430 = vadd.f32 0.0, %v3429
      %3431 = vmatprep.mubr.f32.mxu0 0.0
      %3432 = vmatmul.mubr.f32.gmra.mrb[0].mxu0 %v2954
      %v3433 = vpop.f32.mrb[0].mxu0
      %v3434 = vadd.f32 0.0, %v3433
      %v3435 = vpop.f32.mrb[0].mxu0
      %v3436 = vadd.f32 0.0, %v3435
      %3437 = vmatprep.mubr.f32.mxu0 0.0
      %3438 = vmatmul.mubr.f32.gmra.mrb[0].mxu0 %v2957
      %v3439 = vpop.f32.mrb[0].mxu0
      %v3440 = vadd.f32 0.0, %v3439
      %v3441 = vpop.f32.mrb[0].mxu0
      %v3442 = vadd.f32 0.0, %v3441
      %3443 = vmatprep.mubr.f32.mxu0 0.0
      %3444 = vmatmul.mubr.f32.gmra.mrb[0].mxu0 %v2960
      %v3445 = vpop.f32.mrb[0].mxu0
      %v3446 = vadd.f32 0.0, %v3445
      %v3447 = vpop.f32.mrb[0].mxu0
      %v3448 = vadd.f32 0.0, %v3447
      %3449 = vmatprep.mubr.f32.mxu0 0.0
      %3450 = vmatmul.mubr.f32.gmra.mrb[0].mxu0 %v2963
      %v3451 = vpop.f32.mrb[0].mxu0
      %v3452 = vadd.f32 0.0, %v3451
      %v3453 = vpop.f32.mrb[0].mxu0
      %v3454 = vadd.f32 0.0, %v3453
      %3455 = vmatprep.mubr.f32.mxu0 0.0
      %3456 = vmatmul.mubr.f32.gmra.mrb[0].mxu0 %v2966
      %v3457 = vpop.f32.mrb[0].mxu0
      %v3458 = vadd.f32 0.0, %v3457
      %v3459 = vpop.f32.mrb[0].mxu0
      %v3460 = vadd.f32 0.0, %v3459
      %3461 = vmatprep.mubr.f32.mxu0 0.0
      %3462 = vmatmul.mubr.f32.gmra.mrb[0].mxu0 %v2969
      %v3463 = vpop.f32.mrb[0].mxu0
      %v3464 = vadd.f32 0.0, %v3463
      %v3465 = vpop.f32.mrb[0].mxu0
      %v3466 = vadd.f32 0.0, %v3465
      %3467 = vmatprep.mubr.f32.mxu0 0.0
      %3468 = vmatmul.mubr.f32.gmra.mrb[0].mxu0 %v2972
      %v3469 = vpop.f32.mrb[0].mxu0
      %v3470 = vadd.f32 0.0, %v3469
      %v3471 = vpop.f32.mrb[0].mxu0
      %v3472 = vadd.f32 0.0, %v3471
      %3473 = vmatprep.mubr.f32.mxu0 0.0
      %3474 = vmatmul.mubr.f32.gmra.mrb[0].mxu0 %v2975
      %v3475 = vpop.f32.mrb[0].mxu0
      %v3476 = vadd.f32 0.0, %v3475
      %v3477 = vpop.f32.mrb[0].mxu0
      %v3478 = vadd.f32 0.0, %v3477
      %3479 = vmatprep.mubr.f32.mxu0 0.0
      %3480 = vmatmul.mubr.f32.gmra.mrb[0].mxu0 %v2978
      %v3481 = vpop.f32.mrb[0].mxu0
      %v3482 = vadd.f32 0.0, %v3481
      %v3483 = vpop.f32.mrb[0].mxu0
      %v3484 = vadd.f32 0.0, %v3483
      %3485 = vmatprep.mubr.f32.mxu0 0.0
      %3486 = vmatmul.mubr.f32.gmra.mrb[0].mxu0 %v2981
      %v3487 = vpop.f32.mrb[0].mxu0
      %v3488 = vadd.f32 0.0, %v3487
      %v3489 = vpop.f32.mrb[0].mxu0
      %v3490 = vadd.f32 0.0, %v3489
      %3491 = vmatprep.mubr.f32.mxu0 0.0
      %3492 = vmatmul.mubr.f32.gmra.mrb[0].mxu0 %v2984
      %v3493 = vpop.f32.mrb[0].mxu0
      %v3494 = vadd.f32 0.0, %v3493
      %v3495 = vpop.f32.mrb[0].mxu0
      %v3496 = vadd.f32 0.0, %v3495
      %3497 = vmatprep.mubr.f32.mxu0 0.0
      %3498 = vmatmul.mubr.f32.gmra.mrb[0].mxu0 %v2987
      %v3499 = vpop.f32.mrb[0].mxu0
      %v3500 = vadd.f32 0.0, %v3499
      %v3501 = vpop.f32.mrb[0].mxu0
      %v3502 = vadd.f32 0.0, %v3501
      %3503 = vmatprep.mubr.f32.mxu0 0.0
      %3504 = vmatmul.mubr.f32.gmra.mrb[0].mxu0 %v2990
      %v3505 = vpop.f32.mrb[0].mxu0
      %v3506 = vadd.f32 0.0, %v3505
      %v3507 = vpop.f32.mrb[0].mxu0
      %v3508 = vadd.f32 0.0, %v3507
      %3509 = vmatprep.mubr.f32.mxu0 0.0
      %3510 = vmatmul.mubr.f32.gmra.mrb[0].mxu0 %v2993
      %v3511 = vpop.f32.mrb[0].mxu0
      %v3512 = vadd.f32 0.0, %v3511
      %v3513 = vpop.f32.mrb[0].mxu0
      %v3514 = vadd.f32 0.0, %v3513
      %3515 = vmatprep.mubr.f32.mxu0 0.0
      %3516 = vmatmul.mubr.f32.gmra.mrb[0].mxu0 %v2996
      %v3517 = vpop.f32.mrb[0].mxu0
      %v3518 = vadd.f32 0.0, %v3517
      %v3519 = vpop.f32.mrb[0].mxu0
      %v3520 = vadd.f32 0.0, %v3519
      %3521 = vmatprep.mubr.f32.mxu0 0.0
      %3522 = vmatmul.mubr.f32.gmra.mrb[0].mxu0 %v2999
      %v3523 = vpop.f32.mrb[0].mxu0
      %v3524 = vadd.f32 0.0, %v3523
      %v3525 = vpop.f32.mrb[0].mxu0
      %v3526 = vadd.f32 0.0, %v3525
      %3527 = vmatprep.mubr.f32.mxu0 0.0
      %3528 = vmatmul.mubr.f32.gmra.mrb[0].mxu0 %v3002
      %v3529 = vpop.f32.mrb[0].mxu0
      %v3530 = vadd.f32 0.0, %v3529
      %v3531 = vpop.f32.mrb[0].mxu0
      %v3532 = vadd.f32 0.0, %v3531
      %3533 = vmatprep.mubr.f32.mxu0 0.0
      %3534 = vmatmul.mubr.f32.gmra.mrb[0].mxu0 %v3005
      %v3535 = vpop.f32.mrb[0].mxu0
      %v3536 = vadd.f32 0.0, %v3535
      %v3537 = vpop.f32.mrb[0].mxu0
      %v3538 = vadd.f32 0.0, %v3537
      %3539 = vmatprep.mubr.f32.mxu0 0.0
      %3540 = vmatmul.mubr.f32.gmra.mrb[0].mxu0 %v3008
      %v3541 = vpop.f32.mrb[0].mxu0
      %v3542 = vadd.f32 0.0, %v3541
      %v3543 = vpop.f32.mrb[0].mxu0
      %v3544 = vadd.f32 0.0, %v3543
      %3545 = vmatprep.mubr.f32.mxu0 0.0
      %3546 = vmatmul.mubr.f32.gmra.mrb[0].mxu0 %v3011
      %v3547 = vpop.f32.mrb[0].mxu0
      %v3548 = vadd.f32 0.0, %v3547
      %v3549 = vpop.f32.mrb[0].mxu0
      %v3550 = vadd.f32 0.0, %v3549
      %3551 = vmatprep.mubr.f32.mxu0 0.0
      %3552 = vmatmul.mubr.f32.gmra.mrb[0].mxu0 %v3014
      %v3553 = vpop.f32.mrb[0].mxu0
      %v3554 = vadd.f32 0.0, %v3553
      %v3555 = vpop.f32.mrb[0].mxu0
      %v3556 = vadd.f32 0.0, %v3555
      %3557 = vmatprep.mubr.f32.mxu0 0.0
      %3558 = vmatmul.mubr.f32.gmra.mrb[0].mxu0 %v3017
      %v3559 = vpop.f32.mrb[0].mxu0
      %v3560 = vadd.f32 0.0, %v3559
      %v3561 = vpop.f32.mrb[0].mxu0
      %v3562 = vadd.f32 0.0, %v3561
      %3563 = vmatprep.mubr.f32.mxu0 0.0
      %3564 = vmatmul.mubr.f32.gmra.mrb[0].mxu0 %v3020
      %v3565 = vpop.f32.mrb[0].mxu0
      %v3566 = vadd.f32 0.0, %v3565
      %v3567 = vpop.f32.mrb[0].mxu0
      %v3568 = vadd.f32 0.0, %v3567
      %3569 = vmatprep.mubr.f32.mxu0 0.0
      %3570 = vmatmul.mubr.f32.gmra.mrb[0].mxu0 %v3023
      %v3571 = vpop.f32.mrb[0].mxu0
      %v3572 = vadd.f32 0.0, %v3571
      %v3573 = vpop.f32.mrb[0].mxu0
      %v3574 = vadd.f32 0.0, %v3573
      %3575 = vmatprep.mubr.f32.mxu0 0.0
      %3576 = vmatmul.mubr.f32.gmra.mrb[0].mxu0 %v3026
      %v3577 = vpop.f32.mrb[0].mxu0
      %v3578 = vadd.f32 0.0, %v3577
      %v3579 = vpop.f32.mrb[0].mxu0
      %v3580 = vadd.f32 0.0, %v3579
      %3581 = vmatprep.mubr.f32.mxu0 0.0
      %3582 = vmatmul.mubr.f32.gmra.mrb[0].mxu0 %v3029
      %v3583 = vpop.f32.mrb[0].mxu0
      %v3584 = vadd.f32 0.0, %v3583
      %v3585 = vpop.f32.mrb[0].mxu0
      %v3586 = vadd.f32 0.0, %v3585
      %3587 = vmatprep.mubr.f32.mxu0 0.0
      %3588 = vmatmul.mubr.f32.gmra.mrb[0].mxu0 %v3032
      %v3589 = vpop.f32.mrb[0].mxu0
      %v3590 = vadd.f32 0.0, %v3589
      %v3591 = vpop.f32.mrb[0].mxu0
      %v3592 = vadd.f32 0.0, %v3591
      %3593 = vmatprep.mubr.f32.mxu0 0.0
      %3594 = vmatmul.mubr.f32.gmra.mrb[0].mxu0 %v3035
      %v3595 = vpop.f32.mrb[0].mxu0
      %v3596 = vadd.f32 0.0, %v3595
      %v3597 = vpop.f32.mrb[0].mxu0
      %v3598 = vadd.f32 0.0, %v3597
      %3599 = vmatprep.mubr.f32.mxu0 0.0
      %3600 = vmatmul.mubr.f32.gmra.mrb[0].mxu0 %v3038
      %v3601 = vpop.f32.mrb[0].mxu0
      %v3602 = vadd.f32 0.0, %v3601
      %v3603 = vpop.f32.mrb[0].mxu0
      %v3604 = vadd.f32 0.0, %v3603
      %3605 = vmatprep.mubr.f32.mxu0 0.0
      %3606 = vmatmul.mubr.f32.gmra.mrb[0].mxu0 %v3041
      %v3607 = vpop.f32.mrb[0].mxu0
      %v3608 = vadd.f32 0.0, %v3607
      %v3609 = vpop.f32.mrb[0].mxu0
      %v3610 = vadd.f32 0.0, %v3609
      %3611 = vmatprep.mubr.f32.mxu0 0.0
      %3612 = vmatmul.mubr.f32.gmra.mrb[0].mxu0 %v3044
      %v3613 = vpop.f32.mrb[0].mxu0
      %v3614 = vadd.f32 0.0, %v3613
      %v3615 = vpop.f32.mrb[0].mxu0
      %v3616 = vadd.f32 0.0, %v3615
      %3617 = vmatprep.mubr.f32.mxu0 0.0
      %3618 = vmatmul.mubr.f32.gmra.mrb[0].mxu0 %v3047
      %v3619 = vpop.f32.mrb[0].mxu0
      %v3620 = vadd.f32 0.0, %v3619
      %v3621 = vpop.f32.mrb[0].mxu0
      %v3622 = vadd.f32 0.0, %v3621
      %3623 = vmatprep.mubr.f32.mxu0 0.0
      %3624 = vmatmul.mubr.f32.gmra.mrb[0].mxu0 %v3050
      %v3625 = vpop.f32.mrb[0].mxu0
      %v3626 = vadd.f32 0.0, %v3625
      %v3627 = vpop.f32.mrb[0].mxu0
      %v3628 = vadd.f32 0.0, %v3627
      %3629 = vmatprep.mubr.f32.mxu0 0.0
      %3630 = vmatmul.mubr.f32.gmra.mrb[0].mxu0 %v3053
      %v3631 = vpop.f32.mrb[0].mxu0
      %v3632 = vadd.f32 0.0, %v3631
      %v3633 = vpop.f32.mrb[0].mxu0
      %v3634 = vadd.f32 0.0, %v3633
      %3635 = vmatprep.mubr.f32.mxu0 0.0
      %3636 = vmatmul.mubr.f32.gmra.mrb[0].mxu0 %v3056
      %v3637 = vpop.f32.mrb[0].mxu0
      %v3638 = vadd.f32 0.0, %v3637
      %v3639 = vpop.f32.mrb[0].mxu0
      %v3640 = vadd.f32 0.0, %v3639
      %3641 = vmatprep.mubr.f32.mxu0 0.0
      %3642 = vmatmul.mubr.f32.gmra.mrb[0].mxu0 %v3059
      %v3643 = vpop.f32.mrb[0].mxu0
      %v3644 = vadd.f32 0.0, %v3643
      %v3645 = vpop.f32.mrb[0].mxu0
      %v3646 = vadd.f32 0.0, %v3645
      %3647 = vmatprep.mubr.f32.mxu0 0.0
      %3648 = vmatmul.mubr.f32.gmra.mrb[0].mxu0 %v3062
      %v3649 = vpop.f32.mrb[0].mxu0
      %v3650 = vadd.f32 0.0, %v3649
      %v3651 = vpop.f32.mrb[0].mxu0
      %v3652 = vadd.f32 0.0, %v3651
      %3653 = vmatprep.mubr.f32.mxu0 0.0
      %3654 = vmatmul.mubr.f32.gmra.mrb[0].mxu0 %v3065
      %v3655 = vpop.f32.mrb[0].mxu0
      %v3656 = vadd.f32 0.0, %v3655
      %v3657 = vpop.f32.mrb[0].mxu0
      %v3658 = vadd.f32 0.0, %v3657
      %3659 = vmatprep.mubr.f32.mxu0 0.0
      %3660 = vmatmul.mubr.f32.gmra.mrb[0].mxu0 %v3068
      %v3661 = vpop.f32.mrb[0].mxu0
      %v3662 = vadd.f32 0.0, %v3661
      %v3663 = vpop.f32.mrb[0].mxu0
      %v3664 = vadd.f32 0.0, %v3663
      %3665 = vmatprep.mubr.f32.mxu0 0.0
      %3666 = vmatmul.mubr.f32.gmra.mrb[0].mxu0 %v3071
      %v3667 = vpop.f32.mrb[0].mxu0
      %v3668 = vadd.f32 0.0, %v3667
      %v3669 = vpop.f32.mrb[0].mxu0
      %v3670 = vadd.f32 0.0, %v3669
      %3671 = vmatprep.mubr.f32.mxu0 0.0
      %3672 = vmatmul.mubr.f32.gmra.mrb[0].mxu0 %v3074
      %v3673 = vpop.f32.mrb[0].mxu0
      %v3674 = vadd.f32 0.0, %v3673
      %v3675 = vpop.f32.mrb[0].mxu0
      %v3676 = vadd.f32 0.0, %v3675
      %3677 = vmatprep.mubr.f32.mxu0 0.0
      %3678 = vmatmul.mubr.f32.gmra.mrb[0].mxu0 %v3077
      %v3679 = vpop.f32.mrb[0].mxu0
      %v3680 = vadd.f32 0.0, %v3679
      %v3681 = vpop.f32.mrb[0].mxu0
      %v3682 = vadd.f32 0.0, %v3681
      %3683 = vmatprep.mubr.f32.mxu0 0.0
      %3684 = vmatmul.mubr.f32.gmra.mrb[0].mxu0 %v3080
      %v3685 = vpop.f32.mrb[0].mxu0
      %v3686 = vadd.f32 0.0, %v3685
      %v3687 = vpop.f32.mrb[0].mxu0
      %v3688 = vadd.f32 0.0, %v3687
      %3689 = vmatprep.mubr.f32.mxu0 0.0
      %3690 = vmatmul.mubr.f32.gmra.mrb[0].mxu0 %v3083
      %v3691 = vpop.f32.mrb[0].mxu0
      %v3692 = vadd.f32 0.0, %v3691
      %v3693 = vpop.f32.mrb[0].mxu0
      %v3694 = vadd.f32 0.0, %v3693
      %3695 = vmatprep.mubr.f32.mxu0 0.0
      %3696 = vmatmul.mubr.f32.gmra.mrb[0].mxu0 %v3086
      %v3697 = vpop.f32.mrb[0].mxu0
      %v3698 = vadd.f32 0.0, %v3697
      %v3699 = vpop.f32.mrb[0].mxu0
      %v3700 = vadd.f32 0.0, %v3699
      %3701 = vmatprep.mubr.f32.mxu0 0.0
      %3702 = vmatmul.mubr.f32.gmra.mrb[0].mxu0 %v3089
      %v3703 = vpop.f32.mrb[0].mxu0
      %v3704 = vadd.f32 0.0, %v3703
      %v3705 = vpop.f32.mrb[0].mxu0
      %v3706 = vadd.f32 0.0, %v3705
      %3707 = vmatprep.mubr.f32.mxu0 0.0
      %3708 = vmatmul.mubr.f32.gmra.mrb[0].mxu0 %v3092
      %v3709 = vpop.f32.mrb[0].mxu0
      %v3710 = vadd.f32 0.0, %v3709
      %v3711 = vpop.f32.mrb[0].mxu0
      %v3712 = vadd.f32 0.0, %v3711
      %3713 = vmatprep.mubr.f32.mxu0 0.0
      %3714 = vmatmul.mubr.f32.gmra.mrb[0].mxu0 %v3095
      %v3715 = vpop.f32.mrb[0].mxu0
      %v3716 = vadd.f32 0.0, %v3715
      %v3717 = vpop.f32.mrb[0].mxu0
      %v3718 = vadd.f32 0.0, %v3717
      %3719 = vmatprep.mubr.f32.mxu0 0.0
      %3720 = vmatmul.mubr.f32.gmra.mrb[0].mxu0 %v3098
      %v3721 = vpop.f32.mrb[0].mxu0
      %v3722 = vadd.f32 0.0, %v3721
      %v3723 = vpop.f32.mrb[0].mxu0
      %v3724 = vadd.f32 0.0, %v3723
      %3725 = vmatprep.mubr.f32.mxu0 0.0
      %3726 = vmatmul.mubr.f32.gmra.mrb[0].mxu0 %v3101
      %v3727 = vpop.f32.mrb[0].mxu0
      %v3728 = vadd.f32 0.0, %v3727
      %v3729 = vpop.f32.mrb[0].mxu0
      %v3730 = vadd.f32 0.0, %v3729
      %3731 = vmatprep.mubr.f32.mxu0 0.0
      %3732 = vmatmul.mubr.f32.gmra.mrb[0].mxu0 %v3104
      %v3733 = vpop.f32.mrb[0].mxu0
      %v3734 = vadd.f32 0.0, %v3733
      %v3735 = vpop.f32.mrb[0].mxu0
      %v3736 = vadd.f32 0.0, %v3735
      %3737 = vmatprep.mubr.f32.mxu0 0.0
      %3738 = vmatmul.mubr.f32.gmra.mrb[0].mxu0 %v3107
      %v3739 = vpop.f32.mrb[0].mxu0
      %v3740 = vadd.f32 0.0, %v3739
      %v3741 = vpop.f32.mrb[0].mxu0
      %v3742 = vadd.f32 0.0, %v3741
      %3743 = vmatprep.mubr.f32.mxu0 0.0
      %3744 = vmatmul.mubr.f32.gmra.mrb[0].mxu0 %v3110
      %v3745 = vpop.f32.mrb[0].mxu0
      %v3746 = vadd.f32 0.0, %v3745
      %v3747 = vpop.f32.mrb[0].mxu0
      %v3748 = vadd.f32 0.0, %v3747
      %3749 = vmatprep.mubr.f32.mxu0 0.0
      %3750 = vmatmul.mubr.f32.gmra.mrb[0].mxu0 %v3113
      %v3751 = vpop.f32.mrb[0].mxu0
      %v3752 = vadd.f32 0.0, %v3751
      %v3753 = vpop.f32.mrb[0].mxu0
      %v3754 = vadd.f32 0.0, %v3753
      %3755 = vmatprep.mubr.f32.mxu0 0.0
      %3756 = vmatmul.mubr.f32.gmra.mrb[0].mxu0 %v3116
      %v3757 = vpop.f32.mrb[0].mxu0
      %v3758 = vadd.f32 0.0, %v3757
      %v3759 = vpop.f32.mrb[0].mxu0
      %v3760 = vadd.f32 0.0, %v3759
      %3761 = vmatprep.mubr.f32.mxu0 0.0
      %3762 = vmatmul.mubr.f32.gmra.mrb[0].mxu0 %v3119
      %v3763 = vpop.f32.mrb[0].mxu0
      %v3764 = vadd.f32 0.0, %v3763
      %v3765 = vpop.f32.mrb[0].mxu0
      %v3766 = vadd.f32 0.0, %v3765
      %3767 = vmatprep.mubr.f32.mxu0 0.0
      %3768 = vmatmul.mubr.f32.gmra.mrb[0].mxu0 %v3122
      %v3769 = vpop.f32.mrb[0].mxu0
      %v3770 = vadd.f32 0.0, %v3769
      %v3771 = vpop.f32.mrb[0].mxu0
      %v3772 = vadd.f32 0.0, %v3771
      %3773 = vmatprep.mubr.f32.mxu0 0.0
      %3774 = vmatmul.mubr.f32.gmra.mrb[0].mxu0 %v3125
      %v3775 = vpop.f32.mrb[0].mxu0
      %v3776 = vadd.f32 0.0, %v3775
      %v3777 = vpop.f32.mrb[0].mxu0
      %v3778 = vadd.f32 0.0, %v3777
      %3779 = vmatprep.mubr.f32.mxu0 0.0
      %3780 = vmatmul.mubr.f32.gmra.mrb[0].mxu0 %v3128
      %v3781 = vpop.f32.mrb[0].mxu0
      %v3782 = vadd.f32 0.0, %v3781
      %v3783 = vpop.f32.mrb[0].mxu0
      %v3784 = vadd.f32 0.0, %v3783
      %3785 = vmatprep.mubr.f32.mxu0 0.0
      %3786 = vmatmul.mubr.f32.gmra.mrb[0].mxu0 %v3131
      %v3787 = vpop.f32.mrb[0].mxu0
      %v3788 = vadd.f32 0.0, %v3787
      %v3789 = vpop.f32.mrb[0].mxu0
      %v3790 = vadd.f32 0.0, %v3789
      %3791 = vmatprep.mubr.f32.mxu0 0.0
      %3792 = vmatmul.mubr.f32.gmra.mrb[0].mxu0 %v3134
      %v3793 = vpop.f32.mrb[0].mxu0
      %v3794 = vadd.f32 0.0, %v3793
      %v3795 = vpop.f32.mrb[0].mxu0
      %v3796 = vadd.f32 0.0, %v3795
      %3797 = vmatprep.mubr.f32.mxu0 0.0
      %3798 = vmatmul.mubr.f32.gmra.mrb[0].mxu0 %v3137
      %v3799 = vpop.f32.mrb[0].mxu0
      %v3800 = vadd.f32 0.0, %v3799
      %v3801 = vpop.f32.mrb[0].mxu0
      %v3802 = vadd.f32 0.0, %v3801
      %3803 = vmatprep.mubr.f32.mxu0 0.0
      %3804 = vmatmul.mubr.f32.gmra.mrb[0].mxu0 %v3140
      %v3805 = vpop.f32.mrb[0].mxu0
      %v3806 = vadd.f32 0.0, %v3805
      %v3807 = vpop.f32.mrb[0].mxu0
      %v3808 = vadd.f32 0.0, %v3807
      %3809 = vmatprep.mubr.f32.mxu0 0.0
      %3810 = vmatmul.mubr.f32.gmra.mrb[0].mxu0 %v3143
      %v3811 = vpop.f32.mrb[0].mxu0
      %v3812 = vadd.f32 0.0, %v3811
      %v3813 = vpop.f32.mrb[0].mxu0
      %v3814 = vadd.f32 0.0, %v3813
      %3815 = vmatprep.mubr.f32.mxu0 0.0
      %3816 = vmatmul.mubr.f32.gmra.mrb[0].mxu0 %v3146
      %v3817 = vpop.f32.mrb[0].mxu0
      %v3818 = vadd.f32 0.0, %v3817
      %v3819 = vpop.f32.mrb[0].mxu0
      %v3820 = vadd.f32 0.0, %v3819
      %3821 = vmatprep.mubr.f32.mxu0 0.0
      %3822 = vmatmul.mubr.f32.gmra.mrb[0].mxu0 %v3149
      %v3823 = vpop.f32.mrb[0].mxu0
      %v3824 = vadd.f32 0.0, %v3823
      %v3825 = vpop.f32.mrb[0].mxu0
      %v3826 = vadd.f32 0.0, %v3825
      %3827 = vmatprep.mubr.f32.mxu0 0.0
      %3828 = vmatmul.mubr.f32.gmra.mrb[0].mxu0 %v3152
      %v3829 = vpop.f32.mrb[0].mxu0
      %v3830 = vadd.f32 0.0, %v3829
      %v3831 = vpop.f32.mrb[0].mxu0
      %v3832 = vadd.f32 0.0, %v3831
      %3833 = vmatprep.mubr.f32.mxu0 0.0
      %3834 = vmatmul.mubr.f32.gmra.mrb[0].mxu0 %v3155
      %v3835 = vpop.f32.mrb[0].mxu0
      %v3836 = vadd.f32 0.0, %v3835
      %v3837 = vpop.f32.mrb[0].mxu0
      %v3838 = vadd.f32 0.0, %v3837
      %3839 = vmatprep.mubr.f32.mxu0 0.0
      %3840 = vmatmul.mubr.f32.gmra.mrb[0].mxu0 %v3158
      %v3841 = vpop.f32.mrb[0].mxu0
      %v3842 = vadd.f32 0.0, %v3841
      %v3843 = vpop.f32.mrb[0].mxu0
      %v3844 = vadd.f32 0.0, %v3843
      %3845 = vmatprep.mubr.f32.mxu0 0.0
      %3846 = vmatmul.mubr.f32.gmra.mrb[0].mxu0 %v3161
      %v3847 = vpop.f32.mrb[0].mxu0
      %v3848 = vadd.f32 0.0, %v3847
      %v3849 = vpop.f32.mrb[0].mxu0
      %v3850 = vadd.f32 0.0, %v3849
      %3851 = vmatprep.mubr.f32.mxu0 0.0
      %3852 = vmatmul.mubr.f32.gmra.mrb[0].mxu0 %v3164
      %v3853 = vpop.f32.mrb[0].mxu0
      %v3854 = vadd.f32 0.0, %v3853
      %v3855 = vpop.f32.mrb[0].mxu0
      %v3856 = vadd.f32 0.0, %v3855
      %3857 = vmatprep.mubr.f32.mxu0 0.0
      %3858 = vmatmul.mubr.f32.gmra.mrb[0].mxu0 %v3167
      %v3859 = vpop.f32.mrb[0].mxu0
      %v3860 = vadd.f32 0.0, %v3859
      %v3861 = vpop.f32.mrb[0].mxu0
      %v3862 = vadd.f32 0.0, %v3861
      %3863 = vmatprep.mubr.f32.mxu0 0.0
      %3864 = vmatmul.mubr.f32.gmra.mrb[0].mxu0 %v3170
      %v3865 = vpop.f32.mrb[0].mxu0
      %v3866 = vadd.f32 0.0, %v3865
      %v3867 = vpop.f32.mrb[0].mxu0
      %v3868 = vadd.f32 0.0, %v3867
      %3869 = vmatprep.mubr.f32.mxu0 0.0
      %3870 = vmatmul.mubr.f32.gmra.mrb[0].mxu0 %v3173
      %v3871 = vpop.f32.mrb[0].mxu0
      %v3872 = vadd.f32 0.0, %v3871
      %v3873 = vpop.f32.mrb[0].mxu0
      %v3874 = vadd.f32 0.0, %v3873
      %3875 = vmatprep.mubr.f32.mxu0 0.0
      %3876 = vmatmul.mubr.f32.gmra.mrb[0].mxu0 %v3176
      %v3877 = vpop.f32.mrb[0].mxu0
      %v3878 = vadd.f32 0.0, %v3877
      %v3879 = vpop.f32.mrb[0].mxu0
      %v3880 = vadd.f32 0.0, %v3879
      %3881 = vmatprep.mubr.f32.mxu0 0.0
      %3882 = vmatmul.mubr.f32.gmra.mrb[0].mxu0 %v3179
      %v3883 = vpop.f32.mrb[0].mxu0
      %v3884 = vadd.f32 0.0, %v3883
      %v3885 = vpop.f32.mrb[0].mxu0
      %v3886 = vadd.f32 0.0, %v3885
      %3887 = vmatprep.mubr.f32.mxu0 0.0
      %3888 = vmatmul.mubr.f32.gmra.mrb[0].mxu0 %v3182
      %v3889 = vpop.f32.mrb[0].mxu0
      %v3890 = vadd.f32 0.0, %v3889
      %v3891 = vpop.f32.mrb[0].mxu0
      %v3892 = vadd.f32 0.0, %v3891
      %3893 = vmatprep.mubr.f32.mxu0 0.0
      %3894 = vmatmul.mubr.f32.gmra.mrb[0].mxu0 %v3185
      %v3895 = vpop.f32.mrb[0].mxu0
      %v3896 = vadd.f32 0.0, %v3895
      %v3897 = vpop.f32.mrb[0].mxu0
      %v3898 = vadd.f32 0.0, %v3897
      %3899 = vmatprep.mubr.f32.mxu0 0.0
      %3900 = vmatmul.mubr.f32.gmra.mrb[0].mxu0 %v3188
      %v3901 = vpop.f32.mrb[0].mxu0
      %v3902 = vadd.f32 0.0, %v3901
      %v3903 = vpop.f32.mrb[0].mxu0
      %v3904 = vadd.f32 0.0, %v3903
      %3905 = vmatprep.mubr.f32.mxu0 0.0
      %3906 = vmatmul.mubr.f32.gmra.mrb[0].mxu0 %v3191
      %v3907 = vpop.f32.mrb[0].mxu0
      %v3908 = vadd.f32 0.0, %v3907
      %v3909 = vpop.f32.mrb[0].mxu0
      %v3910 = vadd.f32 0.0, %v3909
      %3911 = vmatprep.mubr.f32.mxu0 0.0
      %3912 = vmatmul.mubr.f32.gmra.mrb[0].mxu0 %v3194
      %v3913 = vpop.f32.mrb[0].mxu0
      %v3914 = vadd.f32 0.0, %v3913
      %v3915 = vpop.f32.mrb[0].mxu0
      %v3916 = vadd.f32 0.0, %v3915
      %3917 = vmatprep.mubr.f32.mxu0 0.0
      %3918 = vmatmul.mubr.f32.gmra.mrb[0].mxu0 %v3197
      %v3919 = vpop.f32.mrb[0].mxu0
      %v3920 = vadd.f32 0.0, %v3919
      %v3921 = vpop.f32.mrb[0].mxu0
      %v3922 = vadd.f32 0.0, %v3921
      %3923 = vmatprep.mubr.f32.mxu0 0.0
      %3924 = vmatmul.mubr.f32.gmra.mrb[0].mxu0 %v3200
      %v3925 = vpop.f32.mrb[0].mxu0
      %v3926 = vadd.f32 0.0, %v3925
      %v3927 = vpop.f32.mrb[0].mxu0
      %v3928 = vadd.f32 0.0, %v3927
      %3929 = vmatprep.mubr.f32.mxu0 0.0
      %3930 = vmatmul.mubr.f32.gmra.mrb[0].mxu0 %v3203
      %v3931 = vpop.f32.mrb[0].mxu0
      %v3932 = vadd.f32 0.0, %v3931
      %v3933 = vpop.f32.mrb[0].mxu0
      %v3934 = vadd.f32 0.0, %v3933
      %3935 = vmatprep.mubr.f32.mxu0 0.0
      %3936 = vmatmul.mubr.f32.gmra.mrb[0].mxu0 %v3206
      %v3937 = vpop.f32.mrb[0].mxu0
      %v3938 = vadd.f32 0.0, %v3937
      %v3939 = vpop.f32.mrb[0].mxu0
      %v3940 = vadd.f32 0.0, %v3939
      %3941 = vmatprep.mubr.f32.mxu0 0.0
      %3942 = vmatmul.mubr.f32.gmra.mrb[0].mxu0 %v3209
      %v3943 = vpop.f32.mrb[0].mxu0
      %v3944 = vadd.f32 0.0, %v3943
      %v3945 = vpop.f32.mrb[0].mxu0
      %v3946 = vadd.f32 0.0, %v3945
      %3947 = vmatprep.mubr.f32.mxu0 0.0
      %3948 = vmatmul.mubr.f32.gmra.mrb[0].mxu0 %v3212
      %v3949 = vpop.f32.mrb[0].mxu0
      %v3950 = vadd.f32 0.0, %v3949
      %v3951 = vpop.f32.mrb[0].mxu0
      %v3952 = vadd.f32 0.0, %v3951
      %3953 = vmatprep.mubr.f32.mxu0 0.0
      %3954 = vmatmul.mubr.f32.gmra.mrb[0].mxu0 %v3215
      %v3955 = vpop.f32.mrb[0].mxu0
      %v3956 = vadd.f32 0.0, %v3955
      %v3957 = vpop.f32.mrb[0].mxu0
      %v3958 = vadd.f32 0.0, %v3957
      %3959 = vmatprep.mubr.f32.mxu0 0.0
      %3960 = vmatmul.mubr.f32.gmra.mrb[0].mxu0 %v3218
      %v3961 = vpop.f32.mrb[0].mxu0
      %v3962 = vadd.f32 0.0, %v3961
      %v3963 = vpop.f32.mrb[0].mxu0
      %v3964 = vadd.f32 0.0, %v3963
      %3965 = vmatprep.mubr.f32.mxu0 0.0
      %3966 = vmatmul.mubr.f32.gmra.mrb[0].mxu0 %v3221
      %v3967 = vpop.f32.mrb[0].mxu0
      %v3968 = vadd.f32 0.0, %v3967
      %v3969 = vpop.f32.mrb[0].mxu0
      %v3970 = vadd.f32 0.0, %v3969
      %3971 = vmatprep.mubr.f32.mxu0 0.0
      %3972 = vmatmul.mubr.f32.gmra.mrb[0].mxu0 %v3224
      %v3973 = vpop.f32.mrb[0].mxu0
      %v3974 = vadd.f32 0.0, %v3973
      %v3975 = vpop.f32.mrb[0].mxu0
      %v3976 = vadd.f32 0.0, %v3975
      %3977 = vmatprep.mubr.f32.mxu0 0.0
      %3978 = vmatmul.mubr.f32.gmra.mrb[0].mxu0 %v3227
      %v3979 = vpop.f32.mrb[0].mxu0
      %v3980 = vadd.f32 0.0, %v3979
      %v3981 = vpop.f32.mrb[0].mxu0
      %v3982 = vadd.f32 0.0, %v3981
      %3983 = vmatprep.mubr.f32.mxu0 0.0
      %3984 = vmatmul.mubr.f32.gmra.mrb[0].mxu0 %v3230
      %v3985 = vpop.f32.mrb[0].mxu0
      %v3986 = vadd.f32 0.0, %v3985
      %v3987 = vpop.f32.mrb[0].mxu0
      %v3988 = vadd.f32 0.0, %v3987
      %3989 = vmatprep.mubr.f32.mxu0 0.0
      %3990 = vmatmul.mubr.f32.gmra.mrb[0].mxu0 %v3233
      %v3991 = vpop.f32.mrb[0].mxu0
      %v3992 = vadd.f32 0.0, %v3991
      %v3993 = vpop.f32.mrb[0].mxu0
      %v3994 = vadd.f32 0.0, %v3993
      %3995 = vmatprep.mubr.f32.mxu0 0.0
      %3996 = vmatmul.mubr.f32.gmra.mrb[0].mxu0 %v3236
      %v3997 = vpop.f32.mrb[0].mxu0
      %v3998 = vadd.f32 0.0, %v3997
      %v3999 = vpop.f32.mrb[0].mxu0
      %v4000 = vadd.f32 0.0, %v3999
      %4001 = vmatprep.mubr.f32.mxu0 0.0
      %4002 = vmatmul.mubr.f32.gmra.mrb[0].mxu0 %v3239
      %v4003 = vpop.f32.mrb[0].mxu0
      %v4004 = vadd.f32 0.0, %v4003
      %v4005 = vpop.f32.mrb[0].mxu0
      %v4006 = vadd.f32 0.0, %v4005
      %4007 = vmatprep.mubr.f32.mxu0 0.0
      %4008 = vmatmul.mubr.f32.gmra.mrb[0].mxu0 %v3242
      %v4009 = vpop.f32.mrb[0].mxu0
      %v4010 = vadd.f32 0.0, %v4009
      %v4011 = vpop.f32.mrb[0].mxu0
      %v4012 = vadd.f32 0.0, %v4011
      %4013 = vmatprep.mubr.f32.mxu0 0.0
      %4014 = vmatmul.mubr.f32.gmra.mrb[0].mxu0 %v3245
      %v4015 = vpop.f32.mrb[0].mxu0
      %v4016 = vadd.f32 0.0, %v4015
      %v4017 = vpop.f32.mrb[0].mxu0
      %v4018 = vadd.f32 0.0, %v4017
      %4019 = vmatprep.mubr.f32.mxu0 0.0
      %4020 = vmatmul.mubr.f32.gmra.mrb[0].mxu0 %v3248
      %v4021 = vpop.f32.mrb[0].mxu0
      %v4022 = vadd.f32 0.0, %v4021
      %v4023 = vpop.f32.mrb[0].mxu0
      %v4024 = vadd.f32 0.0, %v4023
      %4025 = vmatprep.mubr.f32.mxu0 0.0
      %4026 = vmatmul.mubr.f32.gmra.mrb[0].mxu0 %v3251
      %v4027 = vpop.f32.mrb[0].mxu0
      %v4028 = vadd.f32 0.0, %v4027
      %v4029 = vpop.f32.mrb[0].mxu0
      %v4030 = vadd.f32 0.0, %v4029
      %4031 = vmatprep.mubr.f32.mxu0 0.0
      %4032 = vmatmul.mubr.f32.gmra.mrb[0].mxu0 %v3254
      %v4033 = vpop.f32.mrb[0].mxu0
      %v4034 = vadd.f32 0.0, %v4033
      %v4035 = vpop.f32.mrb[0].mxu0
      %v4036 = vadd.f32 0.0, %v4035
      %4037 = vmatprep.mubr.f32.mxu0 0.0
      %4038 = vmatmul.mubr.f32.gmra.mrb[0].mxu0 %v3257
      %v4039 = vpop.f32.mrb[0].mxu0
      %v4040 = vadd.f32 0.0, %v4039
      %v4041 = vpop.f32.mrb[0].mxu0
      %v4042 = vadd.f32 0.0, %v4041
      %4043 = vmatprep.mubr.f32.mxu0 0.0
      %4044 = vmatmul.mubr.f32.gmra.mrb[0].mxu0 %v3260
      %v4045 = vpop.f32.mrb[0].mxu0
      %v4046 = vadd.f32 0.0, %v4045
      %v4047 = vpop.f32.mrb[0].mxu0
      %v4048 = vadd.f32 0.0, %v4047
      %4049 = vmatprep.mubr.f32.mxu0 0.0
      %4050 = vmatmul.mubr.f32.gmra.mrb[0].mxu0 %v3263
      %v4051 = vpop.f32.mrb[0].mxu0
      %v4052 = vadd.f32 0.0, %v4051
      %v4053 = vpop.f32.mrb[0].mxu0
      %v4054 = vadd.f32 0.0, %v4053
      %4055 = vmatprep.mubr.f32.mxu0 0.0
      %4056 = vmatmul.mubr.f32.gmra.mrb[0].mxu0 %v3266
      %v4057 = vpop.f32.mrb[0].mxu0
      %v4058 = vadd.f32 0.0, %v4057
      %v4059 = vpop.f32.mrb[0].mxu0
      %v4060 = vadd.f32 0.0, %v4059
      %4061 = vmatprep.mubr.f32.mxu0 0.0
      %4062 = vmatmul.mubr.f32.gmra.mrb[0].mxu0 %v3269
      %v4063 = vpop.f32.mrb[0].mxu0
      %v4064 = vadd.f32 0.0, %v4063
      %v4065 = vpop.f32.mrb[0].mxu0
      %v4066 = vadd.f32 0.0, %v4065
      %4067 = vmatprep.mubr.f32.mxu0 0.0
      %4068 = vmatmul.mubr.f32.gmra.mrb[0].mxu0 %v3272
      %v4069 = vpop.f32.mrb[0].mxu0
      %v4070 = vadd.f32 0.0, %v4069
      %v4071 = vpop.f32.mrb[0].mxu0
      %v4072 = vadd.f32 0.0, %v4071
      %4073 = vmatprep.mubr.f32.mxu0 0.0
      %4074 = vmatmul.mubr.f32.gmra.mrb[0].mxu0 %v3275
      %v4075 = vpop.f32.mrb[0].mxu0
      %v4076 = vadd.f32 0.0, %v4075
      %v4077 = vpop.f32.mrb[0].mxu0
      %v4078 = vadd.f32 0.0, %v4077
      %4079 = vmatprep.mubr.f32.mxu0 0.0
      %4080 = vmatmul.mubr.f32.gmra.mrb[0].mxu0 %v3278
      %v4081 = vpop.f32.mrb[0].mxu0
      %v4082 = vadd.f32 0.0, %v4081
      %v4083 = vpop.f32.mrb[0].mxu0
      %v4084 = vadd.f32 0.0, %v4083
      %4085 = vmatprep.mubr.f32.mxu0 0.0
      %4086 = vmatmul.mubr.f32.gmra.mrb[0].mxu0 %v3281
      %v4087 = vpop.f32.mrb[0].mxu0
      %v4088 = vadd.f32 0.0, %v4087
      %v4089 = vpop.f32.mrb[0].mxu0
      %v4090 = vadd.f32 0.0, %v4089
      %4091 = vmatprep.mubr.f32.mxu0 0.0
      %4092 = vmatmul.mubr.f32.gmra.mrb[0].mxu0 %v3284
      %v4093 = vpop.f32.mrb[0].mxu0
      %v4094 = vadd.f32 0.0, %v4093
      %v4095 = vpop.f32.mrb[0].mxu0
      %v4096 = vadd.f32 0.0, %v4095
      %4097 = vmatprep.mubr.f32.mxu0 0.0
      %4098 = vmatmul.mubr.f32.gmra.mrb[0].mxu0 %v3287
      %v4099 = vpop.f32.mrb[0].mxu0
      %v4100 = vadd.f32 0.0, %v4099
      %v4101 = vpop.f32.mrb[0].mxu0
      %v4102 = vadd.f32 0.0, %v4101
      %4103 = vmatprep.mubr.f32.mxu0 0.0
      %4104 = vmatmul.mubr.f32.gmra.mrb[0].mxu0 %v3290
      %v4105 = vpop.f32.mrb[0].mxu0
      %v4106 = vadd.f32 0.0, %v4105
      %v4107 = vpop.f32.mrb[0].mxu0
      %v4108 = vadd.f32 0.0, %v4107
      %4109 = vmatprep.mubr.f32.mxu0 0.0
      %4110 = vmatmul.mubr.f32.gmra.mrb[0].mxu0 %v3293
      %v4111 = vpop.f32.mrb[0].mxu0
      %v4112 = vadd.f32 0.0, %v4111
      %v4113 = vpop.f32.mrb[0].mxu0
      %v4114 = vadd.f32 0.0, %v4113
      %4115 = vmatprep.mubr.f32.mxu0 0.0
      %4116 = vmatmul.mubr.f32.gmra.mrb[0].mxu0 %v3296
      %v4117 = vpop.f32.mrb[0].mxu0
      %v4118 = vadd.f32 0.0, %v4117
      %v4119 = vpop.f32.mrb[0].mxu0
      %v4120 = vadd.f32 0.0, %v4119
      %4121 = vmatprep.mubr.f32.mxu0 0.0
      %4122 = vmatmul.mubr.f32.gmra.mrb[0].mxu0 %v3299
      %v4123 = vpop.f32.mrb[0].mxu0
      %v4124 = vadd.f32 0.0, %v4123
      %v4125 = vpop.f32.mrb[0].mxu0
      %v4126 = vadd.f32 0.0, %v4125
      %4127 = vmatprep.mubr.f32.mxu0 0.0
      %4128 = vmatmul.mubr.f32.gmra.mrb[0].mxu0 %v3302
      %v4129 = vpop.f32.mrb[0].mxu0
      %v4130 = vadd.f32 0.0, %v4129
      %v4131 = vpop.f32.mrb[0].mxu0
      %v4132 = vadd.f32 0.0, %v4131
      %4133 = vmatprep.mubr.f32.mxu0 0.0
      %4134 = vmatmul.mubr.f32.gmra.mrb[0].mxu0 %v3305
      %v4135 = vpop.f32.mrb[0].mxu0
      %v4136 = vadd.f32 0.0, %v4135
      %v4137 = vpop.f32.mrb[0].mxu0
      %v4138 = vadd.f32 0.0, %v4137
      %4139 = vdwg.mxu0
      %v4156 = vcombine.low %v690, %v691
      %v4157 = vcombine.high %v690, %v691
      %v4159 = vunpack.c.l.s4 1966171168
      %v4160 = vunpack.c.0.s8 %v4159
      %v4161 = vlaneseq
      %v4162 = vshrl.u32 %v4161, 7
      %v4163 = vsub.s32 %v4160, %v4162
      %v4164 = vrot.slane %v4156, %v4163
      %v4166 = vunpack.c.l.s4 1966171168
      %v4167 = vunpack.c.0.s8 %v4166
      %v4168 = vlaneseq
      %v4169 = vshrl.u32 %v4168, 7
      %v4170 = vsub.s32 %v4167, %v4169
      %v4171 = vrot.slane %v4157, %v4170
      %v4172 = vcombine.high %v4164, %v4164
      %v4173 = vcombine.high %v4171, %v4171
      %v4175 = vunpack.c.l.s4 1966171168
      %v4176 = vunpack.c.0.s8 %v4175
      %v4177 = vlaneseq
      %v4178 = vshrl.u32 %v4177, 7
      %v4179 = vsub.s32 %v4176, %v4178
      %v4180 = vrot.slane %v4164, %v4179
      %v4182 = vunpack.c.l.s4 1966171168
      %v4183 = vunpack.c.0.s8 %v4182
      %v4184 = vlaneseq
      %v4185 = vshrl.u32 %v4184, 7
      %v4186 = vsub.s32 %v4183, %v4185
      %v4187 = vrot.slane %v4171, %v4186
      %v4189 = vunpack.c.l.s4 1966171168
      %v4190 = vunpack.c.0.s8 %v4189
      %v4191 = vlaneseq
      %v4192 = vshrl.u32 %v4191, 7
      %v4193 = vsub.s32 %v4190, %v4192
      %v4194 = vrot.slane %v4172, %v4193
      %v4196 = vunpack.c.l.s4 1966171168
      %v4197 = vunpack.c.0.s8 %v4196
      %v4198 = vlaneseq
      %v4199 = vshrl.u32 %v4198, 7
      %v4200 = vsub.s32 %v4197, %v4199
      %v4201 = vrot.slane %v4173, %v4200
      %v4202 = vcombine.high %v4180, %v4180
      %v4203 = vcombine.high %v4187, %v4187
      %v4204 = vcombine.high %v4194, %v4194
      %v4205 = vcombine.high %v4201, %v4201
      %v4206 = vcombine.low %v692, %v693
      %v4207 = vcombine.high %v692, %v693
      %v4209 = vunpack.c.l.s4 1966171168
      %v4210 = vunpack.c.0.s8 %v4209
      %v4211 = vlaneseq
      %v4212 = vshrl.u32 %v4211, 7
      %v4213 = vsub.s32 %v4210, %v4212
      %v4214 = vrot.slane %v4206, %v4213
      %v4216 = vunpack.c.l.s4 1966171168
      %v4217 = vunpack.c.0.s8 %v4216
      %v4218 = vlaneseq
      %v4219 = vshrl.u32 %v4218, 7
      %v4220 = vsub.s32 %v4217, %v4219
      %v4221 = vrot.slane %v4207, %v4220
      %v4222 = vcombine.high %v4214, %v4214
      %v4223 = vcombine.high %v4221, %v4221
      %v4225 = vunpack.c.l.s4 1966171168
      %v4226 = vunpack.c.0.s8 %v4225
      %v4227 = vlaneseq
      %v4228 = vshrl.u32 %v4227, 7
      %v4229 = vsub.s32 %v4226, %v4228
      %v4230 = vrot.slane %v4214, %v4229
      %v4232 = vunpack.c.l.s4 1966171168
      %v4233 = vunpack.c.0.s8 %v4232
      %v4234 = vlaneseq
      %v4235 = vshrl.u32 %v4234, 7
      %v4236 = vsub.s32 %v4233, %v4235
      %v4237 = vrot.slane %v4221, %v4236
      %v4239 = vunpack.c.l.s4 1966171168
      %v4240 = vunpack.c.0.s8 %v4239
      %v4241 = vlaneseq
      %v4242 = vshrl.u32 %v4241, 7
      %v4243 = vsub.s32 %v4240, %v4242
      %v4244 = vrot.slane %v4222, %v4243
      %v4246 = vunpack.c.l.s4 1966171168
      %v4247 = vunpack.c.0.s8 %v4246
      %v4248 = vlaneseq
      %v4249 = vshrl.u32 %v4248, 7
      %v4250 = vsub.s32 %v4247, %v4249
      %v4251 = vrot.slane %v4223, %v4250
      %v4252 = vcombine.high %v4230, %v4230
      %v4253 = vcombine.high %v4237, %v4237
      %v4254 = vcombine.high %v4244, %v4244
      %v4255 = vcombine.high %v4251, %v4251
      %v4256 = vcombine.low %v694, %v695
      %v4257 = vcombine.high %v694, %v695
      %v4259 = vunpack.c.l.s4 1966171168
      %v4260 = vunpack.c.0.s8 %v4259
      %v4261 = vlaneseq
      %v4262 = vshrl.u32 %v4261, 7
      %v4263 = vsub.s32 %v4260, %v4262
      %v4264 = vrot.slane %v4256, %v4263
      %v4266 = vunpack.c.l.s4 1966171168
      %v4267 = vunpack.c.0.s8 %v4266
      %v4268 = vlaneseq
      %v4269 = vshrl.u32 %v4268, 7
      %v4270 = vsub.s32 %v4267, %v4269
      %v4271 = vrot.slane %v4257, %v4270
      %v4272 = vcombine.high %v4264, %v4264
      %v4273 = vcombine.high %v4271, %v4271
      %v4275 = vunpack.c.l.s4 1966171168
      %v4276 = vunpack.c.0.s8 %v4275
      %v4277 = vlaneseq
      %v4278 = vshrl.u32 %v4277, 7
      %v4279 = vsub.s32 %v4276, %v4278
      %v4280 = vrot.slane %v4264, %v4279
      %v4282 = vunpack.c.l.s4 1966171168
      %v4283 = vunpack.c.0.s8 %v4282
      %v4284 = vlaneseq
      %v4285 = vshrl.u32 %v4284, 7
      %v4286 = vsub.s32 %v4283, %v4285
      %v4287 = vrot.slane %v4271, %v4286
      %v4289 = vunpack.c.l.s4 1966171168
      %v4290 = vunpack.c.0.s8 %v4289
      %v4291 = vlaneseq
      %v4292 = vshrl.u32 %v4291, 7
      %v4293 = vsub.s32 %v4290, %v4292
      %v4294 = vrot.slane %v4272, %v4293
      %v4296 = vunpack.c.l.s4 1966171168
      %v4297 = vunpack.c.0.s8 %v4296
      %v4298 = vlaneseq
      %v4299 = vshrl.u32 %v4298, 7
      %v4300 = vsub.s32 %v4297, %v4299
      %v4301 = vrot.slane %v4273, %v4300
      %v4302 = vcombine.high %v4280, %v4280
      %v4303 = vcombine.high %v4287, %v4287
      %v4304 = vcombine.high %v4294, %v4294
      %v4305 = vcombine.high %v4301, %v4301
      %v4306 = vcombine.low %v696, %v697
      %v4307 = vcombine.high %v696, %v697
      %v4309 = vunpack.c.l.s4 1966171168
      %v4310 = vunpack.c.0.s8 %v4309
      %v4311 = vlaneseq
      %v4312 = vshrl.u32 %v4311, 7
      %v4313 = vsub.s32 %v4310, %v4312
      %v4314 = vrot.slane %v4306, %v4313
      %v4316 = vunpack.c.l.s4 1966171168
      %v4317 = vunpack.c.0.s8 %v4316
      %v4318 = vlaneseq
      %v4319 = vshrl.u32 %v4318, 7
      %v4320 = vsub.s32 %v4317, %v4319
      %v4321 = vrot.slane %v4307, %v4320
      %v4322 = vcombine.high %v4314, %v4314
      %v4323 = vcombine.high %v4321, %v4321
      %v4325 = vunpack.c.l.s4 1966171168
      %v4326 = vunpack.c.0.s8 %v4325
      %v4327 = vlaneseq
      %v4328 = vshrl.u32 %v4327, 7
      %v4329 = vsub.s32 %v4326, %v4328
      %v4330 = vrot.slane %v4314, %v4329
      %v4332 = vunpack.c.l.s4 1966171168
      %v4333 = vunpack.c.0.s8 %v4332
      %v4334 = vlaneseq
      %v4335 = vshrl.u32 %v4334, 7
      %v4336 = vsub.s32 %v4333, %v4335
      %v4337 = vrot.slane %v4321, %v4336
      %v4339 = vunpack.c.l.s4 1966171168
      %v4340 = vunpack.c.0.s8 %v4339
      %v4341 = vlaneseq
      %v4342 = vshrl.u32 %v4341, 7
      %v4343 = vsub.s32 %v4340, %v4342
      %v4344 = vrot.slane %v4322, %v4343
      %v4346 = vunpack.c.l.s4 1966171168
      %v4347 = vunpack.c.0.s8 %v4346
      %v4348 = vlaneseq
      %v4349 = vshrl.u32 %v4348, 7
      %v4350 = vsub.s32 %v4347, %v4349
      %v4351 = vrot.slane %v4323, %v4350
      %v4352 = vcombine.high %v4330, %v4330
      %v4353 = vcombine.high %v4337, %v4337
      %v4354 = vcombine.high %v4344, %v4344
      %v4355 = vcombine.high %v4351, %v4351
      %v4356 = vcombine.low %v698, %v699
      %v4357 = vcombine.high %v698, %v699
      %v4359 = vunpack.c.l.s4 1966171168
      %v4360 = vunpack.c.0.s8 %v4359
      %v4361 = vlaneseq
      %v4362 = vshrl.u32 %v4361, 7
      %v4363 = vsub.s32 %v4360, %v4362
      %v4364 = vrot.slane %v4356, %v4363
      %v4366 = vunpack.c.l.s4 1966171168
      %v4367 = vunpack.c.0.s8 %v4366
      %v4368 = vlaneseq
      %v4369 = vshrl.u32 %v4368, 7
      %v4370 = vsub.s32 %v4367, %v4369
      %v4371 = vrot.slane %v4357, %v4370
      %v4372 = vcombine.high %v4364, %v4364
      %v4373 = vcombine.high %v4371, %v4371
      %v4375 = vunpack.c.l.s4 1966171168
      %v4376 = vunpack.c.0.s8 %v4375
      %v4377 = vlaneseq
      %v4378 = vshrl.u32 %v4377, 7
      %v4379 = vsub.s32 %v4376, %v4378
      %v4380 = vrot.slane %v4364, %v4379
      %v4382 = vunpack.c.l.s4 1966171168
      %v4383 = vunpack.c.0.s8 %v4382
      %v4384 = vlaneseq
      %v4385 = vshrl.u32 %v4384, 7
      %v4386 = vsub.s32 %v4383, %v4385
      %v4387 = vrot.slane %v4371, %v4386
      %v4389 = vunpack.c.l.s4 1966171168
      %v4390 = vunpack.c.0.s8 %v4389
      %v4391 = vlaneseq
      %v4392 = vshrl.u32 %v4391, 7
      %v4393 = vsub.s32 %v4390, %v4392
      %v4394 = vrot.slane %v4372, %v4393
      %v4396 = vunpack.c.l.s4 1966171168
      %v4397 = vunpack.c.0.s8 %v4396
      %v4398 = vlaneseq
      %v4399 = vshrl.u32 %v4398, 7
      %v4400 = vsub.s32 %v4397, %v4399
      %v4401 = vrot.slane %v4373, %v4400
      %v4402 = vcombine.high %v4380, %v4380
      %v4403 = vcombine.high %v4387, %v4387
      %v4404 = vcombine.high %v4394, %v4394
      %v4405 = vcombine.high %v4401, %v4401
      %v4406 = vcombine.low %v700, %v701
      %v4407 = vcombine.high %v700, %v701
      %v4409 = vunpack.c.l.s4 1966171168
      %v4410 = vunpack.c.0.s8 %v4409
      %v4411 = vlaneseq
      %v4412 = vshrl.u32 %v4411, 7
      %v4413 = vsub.s32 %v4410, %v4412
      %v4414 = vrot.slane %v4406, %v4413
      %v4416 = vunpack.c.l.s4 1966171168
      %v4417 = vunpack.c.0.s8 %v4416
      %v4418 = vlaneseq
      %v4419 = vshrl.u32 %v4418, 7
      %v4420 = vsub.s32 %v4417, %v4419
      %v4421 = vrot.slane %v4407, %v4420
      %v4422 = vcombine.high %v4414, %v4414
      %v4423 = vcombine.high %v4421, %v4421
      %v4425 = vunpack.c.l.s4 1966171168
      %v4426 = vunpack.c.0.s8 %v4425
      %v4427 = vlaneseq
      %v4428 = vshrl.u32 %v4427, 7
      %v4429 = vsub.s32 %v4426, %v4428
      %v4430 = vrot.slane %v4414, %v4429
      %v4432 = vunpack.c.l.s4 1966171168
      %v4433 = vunpack.c.0.s8 %v4432
      %v4434 = vlaneseq
      %v4435 = vshrl.u32 %v4434, 7
      %v4436 = vsub.s32 %v4433, %v4435
      %v4437 = vrot.slane %v4421, %v4436
      %v4439 = vunpack.c.l.s4 1966171168
      %v4440 = vunpack.c.0.s8 %v4439
      %v4441 = vlaneseq
      %v4442 = vshrl.u32 %v4441, 7
      %v4443 = vsub.s32 %v4440, %v4442
      %v4444 = vrot.slane %v4422, %v4443
      %v4446 = vunpack.c.l.s4 1966171168
      %v4447 = vunpack.c.0.s8 %v4446
      %v4448 = vlaneseq
      %v4449 = vshrl.u32 %v4448, 7
      %v4450 = vsub.s32 %v4447, %v4449
      %v4451 = vrot.slane %v4423, %v4450
      %v4452 = vcombine.high %v4430, %v4430
      %v4453 = vcombine.high %v4437, %v4437
      %v4454 = vcombine.high %v4444, %v4444
      %v4455 = vcombine.high %v4451, %v4451
      %v4456 = vcombine.low %v702, %v703
      %v4457 = vcombine.high %v702, %v703
      %v4459 = vunpack.c.l.s4 1966171168
      %v4460 = vunpack.c.0.s8 %v4459
      %v4461 = vlaneseq
      %v4462 = vshrl.u32 %v4461, 7
      %v4463 = vsub.s32 %v4460, %v4462
      %v4464 = vrot.slane %v4456, %v4463
      %v4466 = vunpack.c.l.s4 1966171168
      %v4467 = vunpack.c.0.s8 %v4466
      %v4468 = vlaneseq
      %v4469 = vshrl.u32 %v4468, 7
      %v4470 = vsub.s32 %v4467, %v4469
      %v4471 = vrot.slane %v4457, %v4470
      %v4472 = vcombine.high %v4464, %v4464
      %v4473 = vcombine.high %v4471, %v4471
      %v4475 = vunpack.c.l.s4 1966171168
      %v4476 = vunpack.c.0.s8 %v4475
      %v4477 = vlaneseq
      %v4478 = vshrl.u32 %v4477, 7
      %v4479 = vsub.s32 %v4476, %v4478
      %v4480 = vrot.slane %v4464, %v4479
      %v4482 = vunpack.c.l.s4 1966171168
      %v4483 = vunpack.c.0.s8 %v4482
      %v4484 = vlaneseq
      %v4485 = vshrl.u32 %v4484, 7
      %v4486 = vsub.s32 %v4483, %v4485
      %v4487 = vrot.slane %v4471, %v4486
      %v4489 = vunpack.c.l.s4 1966171168
      %v4490 = vunpack.c.0.s8 %v4489
      %v4491 = vlaneseq
      %v4492 = vshrl.u32 %v4491, 7
      %v4493 = vsub.s32 %v4490, %v4492
      %v4494 = vrot.slane %v4472, %v4493
      %v4496 = vunpack.c.l.s4 1966171168
      %v4497 = vunpack.c.0.s8 %v4496
      %v4498 = vlaneseq
      %v4499 = vshrl.u32 %v4498, 7
      %v4500 = vsub.s32 %v4497, %v4499
      %v4501 = vrot.slane %v4473, %v4500
      %v4502 = vcombine.high %v4480, %v4480
      %v4503 = vcombine.high %v4487, %v4487
      %v4504 = vcombine.high %v4494, %v4494
      %v4505 = vcombine.high %v4501, %v4501
      %v4506 = vcombine.low %v704, %v705
      %v4507 = vcombine.high %v704, %v705
      %v4509 = vunpack.c.l.s4 1966171168
      %v4510 = vunpack.c.0.s8 %v4509
      %v4511 = vlaneseq
      %v4512 = vshrl.u32 %v4511, 7
      %v4513 = vsub.s32 %v4510, %v4512
      %v4514 = vrot.slane %v4506, %v4513
      %v4516 = vunpack.c.l.s4 1966171168
      %v4517 = vunpack.c.0.s8 %v4516
      %v4518 = vlaneseq
      %v4519 = vshrl.u32 %v4518, 7
      %v4520 = vsub.s32 %v4517, %v4519
      %v4521 = vrot.slane %v4507, %v4520
      %v4522 = vcombine.high %v4514, %v4514
      %v4523 = vcombine.high %v4521, %v4521
      %v4525 = vunpack.c.l.s4 1966171168
      %v4526 = vunpack.c.0.s8 %v4525
      %v4527 = vlaneseq
      %v4528 = vshrl.u32 %v4527, 7
      %v4529 = vsub.s32 %v4526, %v4528
      %v4530 = vrot.slane %v4514, %v4529
      %v4532 = vunpack.c.l.s4 1966171168
      %v4533 = vunpack.c.0.s8 %v4532
      %v4534 = vlaneseq
      %v4535 = vshrl.u32 %v4534, 7
      %v4536 = vsub.s32 %v4533, %v4535
      %v4537 = vrot.slane %v4521, %v4536
      %v4539 = vunpack.c.l.s4 1966171168
      %v4540 = vunpack.c.0.s8 %v4539
      %v4541 = vlaneseq
      %v4542 = vshrl.u32 %v4541, 7
      %v4543 = vsub.s32 %v4540, %v4542
      %v4544 = vrot.slane %v4522, %v4543
      %v4546 = vunpack.c.l.s4 1966171168
      %v4547 = vunpack.c.0.s8 %v4546
      %v4548 = vlaneseq
      %v4549 = vshrl.u32 %v4548, 7
      %v4550 = vsub.s32 %v4547, %v4549
      %v4551 = vrot.slane %v4523, %v4550
      %v4552 = vcombine.high %v4530, %v4530
      %v4553 = vcombine.high %v4537, %v4537
      %v4554 = vcombine.high %v4544, %v4544
      %v4555 = vcombine.high %v4551, %v4551
      %v4556 = vlaneseq
      %v4557 = vshrl.u32 %v4556, 7
      %v4558 = vsub.s32 0, %v4557
      %v4559 = vrot.slane %v4180, %v4558
      %v4560 = vlaneseq
      %v4561 = vshrl.u32 %v4560, 7
      %v4562 = vsub.s32 1, %v4561
      %v4563 = vrot.slane %v4180, %v4562
      %v4564 = vlaneseq
      %v4565 = vshrl.u32 %v4564, 7
      %v4566 = vsub.s32 0, %v4565
      %v4567 = vrot.slane %v4194, %v4566
      %v4568 = vlaneseq
      %v4569 = vshrl.u32 %v4568, 7
      %v4570 = vsub.s32 1, %v4569
      %v4571 = vrot.slane %v4194, %v4570
      %v4572 = vlaneseq
      %v4573 = vshrl.u32 %v4572, 7
      %v4574 = vsub.s32 0, %v4573
      %v4575 = vrot.slane %v4202, %v4574
      %v4576 = vlaneseq
      %v4577 = vshrl.u32 %v4576, 7
      %v4578 = vsub.s32 1, %v4577
      %v4579 = vrot.slane %v4202, %v4578
      %v4580 = vlaneseq
      %v4581 = vshrl.u32 %v4580, 7
      %v4582 = vsub.s32 0, %v4581
      %v4583 = vrot.slane %v4204, %v4582
      %v4584 = vlaneseq
      %v4585 = vshrl.u32 %v4584, 7
      %v4586 = vsub.s32 1, %v4585
      %v4587 = vrot.slane %v4204, %v4586
      %v4588 = vlaneseq
      %v4589 = vshrl.u32 %v4588, 7
      %v4590 = vsub.s32 0, %v4589
      %v4591 = vrot.slane %v4187, %v4590
      %v4592 = vlaneseq
      %v4593 = vshrl.u32 %v4592, 7
      %v4594 = vsub.s32 1, %v4593
      %v4595 = vrot.slane %v4187, %v4594
      %v4596 = vlaneseq
      %v4597 = vshrl.u32 %v4596, 7
      %v4598 = vsub.s32 0, %v4597
      %v4599 = vrot.slane %v4201, %v4598
      %v4600 = vlaneseq
      %v4601 = vshrl.u32 %v4600, 7
      %v4602 = vsub.s32 1, %v4601
      %v4603 = vrot.slane %v4201, %v4602
      %v4604 = vlaneseq
      %v4605 = vshrl.u32 %v4604, 7
      %v4606 = vsub.s32 0, %v4605
      %v4607 = vrot.slane %v4203, %v4606
      %v4608 = vlaneseq
      %v4609 = vshrl.u32 %v4608, 7
      %v4610 = vsub.s32 1, %v4609
      %v4611 = vrot.slane %v4203, %v4610
      %v4612 = vlaneseq
      %v4613 = vshrl.u32 %v4612, 7
      %v4614 = vsub.s32 0, %v4613
      %v4615 = vrot.slane %v4205, %v4614
      %v4616 = vlaneseq
      %v4617 = vshrl.u32 %v4616, 7
      %v4618 = vsub.s32 1, %v4617
      %v4619 = vrot.slane %v4205, %v4618
      %v4620 = vlaneseq
      %v4621 = vshrl.u32 %v4620, 7
      %v4622 = vsub.s32 0, %v4621
      %v4623 = vrot.slane %v4230, %v4622
      %v4624 = vlaneseq
      %v4625 = vshrl.u32 %v4624, 7
      %v4626 = vsub.s32 1, %v4625
      %v4627 = vrot.slane %v4230, %v4626
      %v4628 = vlaneseq
      %v4629 = vshrl.u32 %v4628, 7
      %v4630 = vsub.s32 0, %v4629
      %v4631 = vrot.slane %v4244, %v4630
      %v4632 = vlaneseq
      %v4633 = vshrl.u32 %v4632, 7
      %v4634 = vsub.s32 1, %v4633
      %v4635 = vrot.slane %v4244, %v4634
      %v4636 = vlaneseq
      %v4637 = vshrl.u32 %v4636, 7
      %v4638 = vsub.s32 0, %v4637
      %v4639 = vrot.slane %v4252, %v4638
      %v4640 = vlaneseq
      %v4641 = vshrl.u32 %v4640, 7
      %v4642 = vsub.s32 1, %v4641
      %v4643 = vrot.slane %v4252, %v4642
      %v4644 = vlaneseq
      %v4645 = vshrl.u32 %v4644, 7
      %v4646 = vsub.s32 0, %v4645
      %v4647 = vrot.slane %v4254, %v4646
      %v4648 = vlaneseq
      %v4649 = vshrl.u32 %v4648, 7
      %v4650 = vsub.s32 1, %v4649
      %v4651 = vrot.slane %v4254, %v4650
      %v4652 = vlaneseq
      %v4653 = vshrl.u32 %v4652, 7
      %v4654 = vsub.s32 0, %v4653
      %v4655 = vrot.slane %v4237, %v4654
      %v4656 = vlaneseq
      %v4657 = vshrl.u32 %v4656, 7
      %v4658 = vsub.s32 1, %v4657
      %v4659 = vrot.slane %v4237, %v4658
      %v4660 = vlaneseq
      %v4661 = vshrl.u32 %v4660, 7
      %v4662 = vsub.s32 0, %v4661
      %v4663 = vrot.slane %v4251, %v4662
      %v4664 = vlaneseq
      %v4665 = vshrl.u32 %v4664, 7
      %v4666 = vsub.s32 1, %v4665
      %v4667 = vrot.slane %v4251, %v4666
      %v4668 = vlaneseq
      %v4669 = vshrl.u32 %v4668, 7
      %v4670 = vsub.s32 0, %v4669
      %v4671 = vrot.slane %v4253, %v4670
      %v4672 = vlaneseq
      %v4673 = vshrl.u32 %v4672, 7
      %v4674 = vsub.s32 1, %v4673
      %v4675 = vrot.slane %v4253, %v4674
      %v4676 = vlaneseq
      %v4677 = vshrl.u32 %v4676, 7
      %v4678 = vsub.s32 0, %v4677
      %v4679 = vrot.slane %v4255, %v4678
      %v4680 = vlaneseq
      %v4681 = vshrl.u32 %v4680, 7
      %v4682 = vsub.s32 1, %v4681
      %v4683 = vrot.slane %v4255, %v4682
      %v4684 = vlaneseq
      %v4685 = vshrl.u32 %v4684, 7
      %v4686 = vsub.s32 0, %v4685
      %v4687 = vrot.slane %v4280, %v4686
      %v4688 = vlaneseq
      %v4689 = vshrl.u32 %v4688, 7
      %v4690 = vsub.s32 1, %v4689
      %v4691 = vrot.slane %v4280, %v4690
      %v4692 = vlaneseq
      %v4693 = vshrl.u32 %v4692, 7
      %v4694 = vsub.s32 0, %v4693
      %v4695 = vrot.slane %v4294, %v4694
      %v4696 = vlaneseq
      %v4697 = vshrl.u32 %v4696, 7
      %v4698 = vsub.s32 1, %v4697
      %v4699 = vrot.slane %v4294, %v4698
      %v4700 = vlaneseq
      %v4701 = vshrl.u32 %v4700, 7
      %v4702 = vsub.s32 0, %v4701
      %v4703 = vrot.slane %v4302, %v4702
      %v4704 = vlaneseq
      %v4705 = vshrl.u32 %v4704, 7
      %v4706 = vsub.s32 1, %v4705
      %v4707 = vrot.slane %v4302, %v4706
      %v4708 = vlaneseq
      %v4709 = vshrl.u32 %v4708, 7
      %v4710 = vsub.s32 0, %v4709
      %v4711 = vrot.slane %v4304, %v4710
      %v4712 = vlaneseq
      %v4713 = vshrl.u32 %v4712, 7
      %v4714 = vsub.s32 1, %v4713
      %v4715 = vrot.slane %v4304, %v4714
      %v4716 = vlaneseq
      %v4717 = vshrl.u32 %v4716, 7
      %v4718 = vsub.s32 0, %v4717
      %v4719 = vrot.slane %v4287, %v4718
      %v4720 = vlaneseq
      %v4721 = vshrl.u32 %v4720, 7
      %v4722 = vsub.s32 1, %v4721
      %v4723 = vrot.slane %v4287, %v4722
      %v4724 = vlaneseq
      %v4725 = vshrl.u32 %v4724, 7
      %v4726 = vsub.s32 0, %v4725
      %v4727 = vrot.slane %v4301, %v4726
      %v4728 = vlaneseq
      %v4729 = vshrl.u32 %v4728, 7
      %v4730 = vsub.s32 1, %v4729
      %v4731 = vrot.slane %v4301, %v4730
      %v4732 = vlaneseq
      %v4733 = vshrl.u32 %v4732, 7
      %v4734 = vsub.s32 0, %v4733
      %v4735 = vrot.slane %v4303, %v4734
      %v4736 = vlaneseq
      %v4737 = vshrl.u32 %v4736, 7
      %v4738 = vsub.s32 1, %v4737
      %v4739 = vrot.slane %v4303, %v4738
      %v4740 = vlaneseq
      %v4741 = vshrl.u32 %v4740, 7
      %v4742 = vsub.s32 0, %v4741
      %v4743 = vrot.slane %v4305, %v4742
      %v4744 = vlaneseq
      %v4745 = vshrl.u32 %v4744, 7
      %v4746 = vsub.s32 1, %v4745
      %v4747 = vrot.slane %v4305, %v4746
      %v4748 = vlaneseq
      %v4749 = vshrl.u32 %v4748, 7
      %v4750 = vsub.s32 0, %v4749
      %v4751 = vrot.slane %v4330, %v4750
      %v4752 = vlaneseq
      %v4753 = vshrl.u32 %v4752, 7
      %v4754 = vsub.s32 1, %v4753
      %v4755 = vrot.slane %v4330, %v4754
      %v4756 = vlaneseq
      %v4757 = vshrl.u32 %v4756, 7
      %v4758 = vsub.s32 0, %v4757
      %v4759 = vrot.slane %v4344, %v4758
      %v4760 = vlaneseq
      %v4761 = vshrl.u32 %v4760, 7
      %v4762 = vsub.s32 1, %v4761
      %v4763 = vrot.slane %v4344, %v4762
      %v4764 = vlaneseq
      %v4765 = vshrl.u32 %v4764, 7
      %v4766 = vsub.s32 0, %v4765
      %v4767 = vrot.slane %v4352, %v4766
      %v4768 = vlaneseq
      %v4769 = vshrl.u32 %v4768, 7
      %v4770 = vsub.s32 1, %v4769
      %v4771 = vrot.slane %v4352, %v4770
      %v4772 = vlaneseq
      %v4773 = vshrl.u32 %v4772, 7
      %v4774 = vsub.s32 0, %v4773
      %v4775 = vrot.slane %v4354, %v4774
      %v4776 = vlaneseq
      %v4777 = vshrl.u32 %v4776, 7
      %v4778 = vsub.s32 1, %v4777
      %v4779 = vrot.slane %v4354, %v4778
      %v4780 = vlaneseq
      %v4781 = vshrl.u32 %v4780, 7
      %v4782 = vsub.s32 0, %v4781
      %v4783 = vrot.slane %v4337, %v4782
      %v4784 = vlaneseq
      %v4785 = vshrl.u32 %v4784, 7
      %v4786 = vsub.s32 1, %v4785
      %v4787 = vrot.slane %v4337, %v4786
      %v4788 = vlaneseq
      %v4789 = vshrl.u32 %v4788, 7
      %v4790 = vsub.s32 0, %v4789
      %v4791 = vrot.slane %v4351, %v4790
      %v4792 = vlaneseq
      %v4793 = vshrl.u32 %v4792, 7
      %v4794 = vsub.s32 1, %v4793
      %v4795 = vrot.slane %v4351, %v4794
      %v4796 = vlaneseq
      %v4797 = vshrl.u32 %v4796, 7
      %v4798 = vsub.s32 0, %v4797
      %v4799 = vrot.slane %v4353, %v4798
      %v4800 = vlaneseq
      %v4801 = vshrl.u32 %v4800, 7
      %v4802 = vsub.s32 1, %v4801
      %v4803 = vrot.slane %v4353, %v4802
      %v4804 = vlaneseq
      %v4805 = vshrl.u32 %v4804, 7
      %v4806 = vsub.s32 0, %v4805
      %v4807 = vrot.slane %v4355, %v4806
      %v4808 = vlaneseq
      %v4809 = vshrl.u32 %v4808, 7
      %v4810 = vsub.s32 1, %v4809
      %v4811 = vrot.slane %v4355, %v4810
      %v4812 = vlaneseq
      %v4813 = vshrl.u32 %v4812, 7
      %v4814 = vsub.s32 0, %v4813
      %v4815 = vrot.slane %v4380, %v4814
      %v4816 = vlaneseq
      %v4817 = vshrl.u32 %v4816, 7
      %v4818 = vsub.s32 1, %v4817
      %v4819 = vrot.slane %v4380, %v4818
      %v4820 = vlaneseq
      %v4821 = vshrl.u32 %v4820, 7
      %v4822 = vsub.s32 0, %v4821
      %v4823 = vrot.slane %v4394, %v4822
      %v4824 = vlaneseq
      %v4825 = vshrl.u32 %v4824, 7
      %v4826 = vsub.s32 1, %v4825
      %v4827 = vrot.slane %v4394, %v4826
      %v4828 = vlaneseq
      %v4829 = vshrl.u32 %v4828, 7
      %v4830 = vsub.s32 0, %v4829
      %v4831 = vrot.slane %v4402, %v4830
      %v4832 = vlaneseq
      %v4833 = vshrl.u32 %v4832, 7
      %v4834 = vsub.s32 1, %v4833
      %v4835 = vrot.slane %v4402, %v4834
      %v4836 = vlaneseq
      %v4837 = vshrl.u32 %v4836, 7
      %v4838 = vsub.s32 0, %v4837
      %v4839 = vrot.slane %v4404, %v4838
      %v4840 = vlaneseq
      %v4841 = vshrl.u32 %v4840, 7
      %v4842 = vsub.s32 1, %v4841
      %v4843 = vrot.slane %v4404, %v4842
      %v4844 = vlaneseq
      %v4845 = vshrl.u32 %v4844, 7
      %v4846 = vsub.s32 0, %v4845
      %v4847 = vrot.slane %v4387, %v4846
      %v4848 = vlaneseq
      %v4849 = vshrl.u32 %v4848, 7
      %v4850 = vsub.s32 1, %v4849
      %v4851 = vrot.slane %v4387, %v4850
      %v4852 = vlaneseq
      %v4853 = vshrl.u32 %v4852, 7
      %v4854 = vsub.s32 0, %v4853
      %v4855 = vrot.slane %v4401, %v4854
      %v4856 = vlaneseq
      %v4857 = vshrl.u32 %v4856, 7
      %v4858 = vsub.s32 1, %v4857
      %v4859 = vrot.slane %v4401, %v4858
      %v4860 = vlaneseq
      %v4861 = vshrl.u32 %v4860, 7
      %v4862 = vsub.s32 0, %v4861
      %v4863 = vrot.slane %v4403, %v4862
      %v4864 = vlaneseq
      %v4865 = vshrl.u32 %v4864, 7
      %v4866 = vsub.s32 1, %v4865
      %v4867 = vrot.slane %v4403, %v4866
      %v4868 = vlaneseq
      %v4869 = vshrl.u32 %v4868, 7
      %v4870 = vsub.s32 0, %v4869
      %v4871 = vrot.slane %v4405, %v4870
      %v4872 = vlaneseq
      %v4873 = vshrl.u32 %v4872, 7
      %v4874 = vsub.s32 1, %v4873
      %v4875 = vrot.slane %v4405, %v4874
      %v4876 = vlaneseq
      %v4877 = vshrl.u32 %v4876, 7
      %v4878 = vsub.s32 0, %v4877
      %v4879 = vrot.slane %v4430, %v4878
      %v4880 = vlaneseq
      %v4881 = vshrl.u32 %v4880, 7
      %v4882 = vsub.s32 1, %v4881
      %v4883 = vrot.slane %v4430, %v4882
      %v4884 = vlaneseq
      %v4885 = vshrl.u32 %v4884, 7
      %v4886 = vsub.s32 0, %v4885
      %v4887 = vrot.slane %v4444, %v4886
      %v4888 = vlaneseq
      %v4889 = vshrl.u32 %v4888, 7
      %v4890 = vsub.s32 1, %v4889
      %v4891 = vrot.slane %v4444, %v4890
      %v4892 = vlaneseq
      %v4893 = vshrl.u32 %v4892, 7
      %v4894 = vsub.s32 0, %v4893
      %v4895 = vrot.slane %v4452, %v4894
      %v4896 = vlaneseq
      %v4897 = vshrl.u32 %v4896, 7
      %v4898 = vsub.s32 1, %v4897
      %v4899 = vrot.slane %v4452, %v4898
      %v4900 = vlaneseq
      %v4901 = vshrl.u32 %v4900, 7
      %v4902 = vsub.s32 0, %v4901
      %v4903 = vrot.slane %v4454, %v4902
      %v4904 = vlaneseq
      %v4905 = vshrl.u32 %v4904, 7
      %v4906 = vsub.s32 1, %v4905
      %v4907 = vrot.slane %v4454, %v4906
      %v4908 = vlaneseq
      %v4909 = vshrl.u32 %v4908, 7
      %v4910 = vsub.s32 0, %v4909
      %v4911 = vrot.slane %v4437, %v4910
      %v4912 = vlaneseq
      %v4913 = vshrl.u32 %v4912, 7
      %v4914 = vsub.s32 1, %v4913
      %v4915 = vrot.slane %v4437, %v4914
      %v4916 = vlaneseq
      %v4917 = vshrl.u32 %v4916, 7
      %v4918 = vsub.s32 0, %v4917
      %v4919 = vrot.slane %v4451, %v4918
      %v4920 = vlaneseq
      %v4921 = vshrl.u32 %v4920, 7
      %v4922 = vsub.s32 1, %v4921
      %v4923 = vrot.slane %v4451, %v4922
      %v4924 = vlaneseq
      %v4925 = vshrl.u32 %v4924, 7
      %v4926 = vsub.s32 0, %v4925
      %v4927 = vrot.slane %v4453, %v4926
      %v4928 = vlaneseq
      %v4929 = vshrl.u32 %v4928, 7
      %v4930 = vsub.s32 1, %v4929
      %v4931 = vrot.slane %v4453, %v4930
      %v4932 = vlaneseq
      %v4933 = vshrl.u32 %v4932, 7
      %v4934 = vsub.s32 0, %v4933
      %v4935 = vrot.slane %v4455, %v4934
      %v4936 = vlaneseq
      %v4937 = vshrl.u32 %v4936, 7
      %v4938 = vsub.s32 1, %v4937
      %v4939 = vrot.slane %v4455, %v4938
      %v4940 = vlaneseq
      %v4941 = vshrl.u32 %v4940, 7
      %v4942 = vsub.s32 0, %v4941
      %v4943 = vrot.slane %v4480, %v4942
      %v4944 = vlaneseq
      %v4945 = vshrl.u32 %v4944, 7
      %v4946 = vsub.s32 1, %v4945
      %v4947 = vrot.slane %v4480, %v4946
      %v4948 = vlaneseq
      %v4949 = vshrl.u32 %v4948, 7
      %v4950 = vsub.s32 0, %v4949
      %v4951 = vrot.slane %v4494, %v4950
      %v4952 = vlaneseq
      %v4953 = vshrl.u32 %v4952, 7
      %v4954 = vsub.s32 1, %v4953
      %v4955 = vrot.slane %v4494, %v4954
      %v4956 = vlaneseq
      %v4957 = vshrl.u32 %v4956, 7
      %v4958 = vsub.s32 0, %v4957
      %v4959 = vrot.slane %v4502, %v4958
      %v4960 = vlaneseq
      %v4961 = vshrl.u32 %v4960, 7
      %v4962 = vsub.s32 1, %v4961
      %v4963 = vrot.slane %v4502, %v4962
      %v4964 = vlaneseq
      %v4965 = vshrl.u32 %v4964, 7
      %v4966 = vsub.s32 0, %v4965
      %v4967 = vrot.slane %v4504, %v4966
      %v4968 = vlaneseq
      %v4969 = vshrl.u32 %v4968, 7
      %v4970 = vsub.s32 1, %v4969
      %v4971 = vrot.slane %v4504, %v4970
      %v4972 = vlaneseq
      %v4973 = vshrl.u32 %v4972, 7
      %v4974 = vsub.s32 0, %v4973
      %v4975 = vrot.slane %v4487, %v4974
      %v4976 = vlaneseq
      %v4977 = vshrl.u32 %v4976, 7
      %v4978 = vsub.s32 1, %v4977
      %v4979 = vrot.slane %v4487, %v4978
      %v4980 = vlaneseq
      %v4981 = vshrl.u32 %v4980, 7
      %v4982 = vsub.s32 0, %v4981
      %v4983 = vrot.slane %v4501, %v4982
      %v4984 = vlaneseq
      %v4985 = vshrl.u32 %v4984, 7
      %v4986 = vsub.s32 1, %v4985
      %v4987 = vrot.slane %v4501, %v4986
      %v4988 = vlaneseq
      %v4989 = vshrl.u32 %v4988, 7
      %v4990 = vsub.s32 0, %v4989
      %v4991 = vrot.slane %v4503, %v4990
      %v4992 = vlaneseq
      %v4993 = vshrl.u32 %v4992, 7
      %v4994 = vsub.s32 1, %v4993
      %v4995 = vrot.slane %v4503, %v4994
      %v4996 = vlaneseq
      %v4997 = vshrl.u32 %v4996, 7
      %v4998 = vsub.s32 0, %v4997
      %v4999 = vrot.slane %v4505, %v4998
      %v5000 = vlaneseq
      %v5001 = vshrl.u32 %v5000, 7
      %v5002 = vsub.s32 1, %v5001
      %v5003 = vrot.slane %v4505, %v5002
      %v5004 = vlaneseq
      %v5005 = vshrl.u32 %v5004, 7
      %v5006 = vsub.s32 0, %v5005
      %v5007 = vrot.slane %v4530, %v5006
      %v5008 = vlaneseq
      %v5009 = vshrl.u32 %v5008, 7
      %v5010 = vsub.s32 1, %v5009
      %v5011 = vrot.slane %v4530, %v5010
      %v5012 = vlaneseq
      %v5013 = vshrl.u32 %v5012, 7
      %v5014 = vsub.s32 0, %v5013
      %v5015 = vrot.slane %v4544, %v5014
      %v5016 = vlaneseq
      %v5017 = vshrl.u32 %v5016, 7
      %v5018 = vsub.s32 1, %v5017
      %v5019 = vrot.slane %v4544, %v5018
      %v5020 = vlaneseq
      %v5021 = vshrl.u32 %v5020, 7
      %v5022 = vsub.s32 0, %v5021
      %v5023 = vrot.slane %v4552, %v5022
      %v5024 = vlaneseq
      %v5025 = vshrl.u32 %v5024, 7
      %v5026 = vsub.s32 1, %v5025
      %v5027 = vrot.slane %v4552, %v5026
      %v5028 = vlaneseq
      %v5029 = vshrl.u32 %v5028, 7
      %v5030 = vsub.s32 0, %v5029
      %v5031 = vrot.slane %v4554, %v5030
      %v5032 = vlaneseq
      %v5033 = vshrl.u32 %v5032, 7
      %v5034 = vsub.s32 1, %v5033
      %v5035 = vrot.slane %v4554, %v5034
      %v5036 = vlaneseq
      %v5037 = vshrl.u32 %v5036, 7
      %v5038 = vsub.s32 0, %v5037
      %v5039 = vrot.slane %v4537, %v5038
      %v5040 = vlaneseq
      %v5041 = vshrl.u32 %v5040, 7
      %v5042 = vsub.s32 1, %v5041
      %v5043 = vrot.slane %v4537, %v5042
      %v5044 = vlaneseq
      %v5045 = vshrl.u32 %v5044, 7
      %v5046 = vsub.s32 0, %v5045
      %v5047 = vrot.slane %v4551, %v5046
      %v5048 = vlaneseq
      %v5049 = vshrl.u32 %v5048, 7
      %v5050 = vsub.s32 1, %v5049
      %v5051 = vrot.slane %v4551, %v5050
      %v5052 = vlaneseq
      %v5053 = vshrl.u32 %v5052, 7
      %v5054 = vsub.s32 0, %v5053
      %v5055 = vrot.slane %v4553, %v5054
      %v5056 = vlaneseq
      %v5057 = vshrl.u32 %v5056, 7
      %v5058 = vsub.s32 1, %v5057
      %v5059 = vrot.slane %v4553, %v5058
      %v5060 = vlaneseq
      %v5061 = vshrl.u32 %v5060, 7
      %v5062 = vsub.s32 0, %v5061
      %v5063 = vrot.slane %v4555, %v5062
      %v5064 = vlaneseq
      %v5065 = vshrl.u32 %v5064, 7
      %v5066 = vsub.s32 1, %v5065
      %v5067 = vrot.slane %v4555, %v5066
      %v5196 = vmul.f32 %v4559, %v3374
      %v5197 = vmul.f32 %v4563, %v3376
      %v5198 = vmul.f32 %v4559, %v3380
      %v5199 = vmul.f32 %v4563, %v3382
      %v5200 = vmul.f32 %v4567, %v3386
      %v5201 = vmul.f32 %v4571, %v3388
      %v5202 = vmul.f32 %v4567, %v3392
      %v5203 = vmul.f32 %v4571, %v3394
      %v5204 = vmul.f32 %v4575, %v3398
      %v5205 = vmul.f32 %v4579, %v3400
      %v5206 = vmul.f32 %v4575, %v3404
      %v5207 = vmul.f32 %v4579, %v3406
      %v5208 = vmul.f32 %v4583, %v3410
      %v5209 = vmul.f32 %v4587, %v3412
      %v5210 = vmul.f32 %v4583, %v3416
      %v5211 = vmul.f32 %v4587, %v3418
      %v5212 = vmul.f32 %v4591, %v3422
      %v5213 = vmul.f32 %v4595, %v3424
      %v5214 = vmul.f32 %v4591, %v3428
      %v5215 = vmul.f32 %v4595, %v3430
      %v5216 = vmul.f32 %v4599, %v3434
      %v5217 = vmul.f32 %v4603, %v3436
      %v5218 = vmul.f32 %v4599, %v3440
      %v5219 = vmul.f32 %v4603, %v3442
      %v5220 = vmul.f32 %v4607, %v3446
      %v5221 = vmul.f32 %v4611, %v3448
      %v5222 = vmul.f32 %v4607, %v3452
      %v5223 = vmul.f32 %v4611, %v3454
      %v5224 = vmul.f32 %v4615, %v3458
      %v5225 = vmul.f32 %v4619, %v3460
      %v5226 = vmul.f32 %v4615, %v3464
      %v5227 = vmul.f32 %v4619, %v3466
      %v5228 = vmul.f32 %v4623, %v3470
      %v5229 = vmul.f32 %v4627, %v3472
      %v5230 = vmul.f32 %v4623, %v3476
      %v5231 = vmul.f32 %v4627, %v3478
      %v5232 = vmul.f32 %v4631, %v3482
      %v5233 = vmul.f32 %v4635, %v3484
      %v5234 = vmul.f32 %v4631, %v3488
      %v5235 = vmul.f32 %v4635, %v3490
      %v5236 = vmul.f32 %v4639, %v3494
      %v5237 = vmul.f32 %v4643, %v3496
      %v5238 = vmul.f32 %v4639, %v3500
      %v5239 = vmul.f32 %v4643, %v3502
      %v5240 = vmul.f32 %v4647, %v3506
      %v5241 = vmul.f32 %v4651, %v3508
      %v5242 = vmul.f32 %v4647, %v3512
      %v5243 = vmul.f32 %v4651, %v3514
      %v5244 = vmul.f32 %v4655, %v3518
      %v5245 = vmul.f32 %v4659, %v3520
      %v5246 = vmul.f32 %v4655, %v3524
      %v5247 = vmul.f32 %v4659, %v3526
      %v5248 = vmul.f32 %v4663, %v3530
      %v5249 = vmul.f32 %v4667, %v3532
      %v5250 = vmul.f32 %v4663, %v3536
      %v5251 = vmul.f32 %v4667, %v3538
      %v5252 = vmul.f32 %v4671, %v3542
      %v5253 = vmul.f32 %v4675, %v3544
      %v5254 = vmul.f32 %v4671, %v3548
      %v5255 = vmul.f32 %v4675, %v3550
      %v5256 = vmul.f32 %v4679, %v3554
      %v5257 = vmul.f32 %v4683, %v3556
      %v5258 = vmul.f32 %v4679, %v3560
      %v5259 = vmul.f32 %v4683, %v3562
      %v5260 = vmul.f32 %v4687, %v3566
      %v5261 = vmul.f32 %v4691, %v3568
      %v5262 = vmul.f32 %v4687, %v3572
      %v5263 = vmul.f32 %v4691, %v3574
      %v5264 = vmul.f32 %v4695, %v3578
      %v5265 = vmul.f32 %v4699, %v3580
      %v5266 = vmul.f32 %v4695, %v3584
      %v5267 = vmul.f32 %v4699, %v3586
      %v5268 = vmul.f32 %v4703, %v3590
      %v5269 = vmul.f32 %v4707, %v3592
      %v5270 = vmul.f32 %v4703, %v3596
      %v5271 = vmul.f32 %v4707, %v3598
      %v5272 = vmul.f32 %v4711, %v3602
      %v5273 = vmul.f32 %v4715, %v3604
      %v5274 = vmul.f32 %v4711, %v3608
      %v5275 = vmul.f32 %v4715, %v3610
      %v5276 = vmul.f32 %v4719, %v3614
      %v5277 = vmul.f32 %v4723, %v3616
      %v5278 = vmul.f32 %v4719, %v3620
      %v5279 = vmul.f32 %v4723, %v3622
      %v5280 = vmul.f32 %v4727, %v3626
      %v5281 = vmul.f32 %v4731, %v3628
      %v5282 = vmul.f32 %v4727, %v3632
      %v5283 = vmul.f32 %v4731, %v3634
      %v5284 = vmul.f32 %v4735, %v3638
      %v5285 = vmul.f32 %v4739, %v3640
      %v5286 = vmul.f32 %v4735, %v3644
      %v5287 = vmul.f32 %v4739, %v3646
      %v5288 = vmul.f32 %v4743, %v3650
      %v5289 = vmul.f32 %v4747, %v3652
      %v5290 = vmul.f32 %v4743, %v3656
      %v5291 = vmul.f32 %v4747, %v3658
      %v5292 = vmul.f32 %v4751, %v3662
      %v5293 = vmul.f32 %v4755, %v3664
      %v5294 = vmul.f32 %v4751, %v3668
      %v5295 = vmul.f32 %v4755, %v3670
      %v5296 = vmul.f32 %v4759, %v3674
      %v5297 = vmul.f32 %v4763, %v3676
      %v5298 = vmul.f32 %v4759, %v3680
      %v5299 = vmul.f32 %v4763, %v3682
      %v5300 = vmul.f32 %v4767, %v3686
      %v5301 = vmul.f32 %v4771, %v3688
      %v5302 = vmul.f32 %v4767, %v3692
      %v5303 = vmul.f32 %v4771, %v3694
      %v5304 = vmul.f32 %v4775, %v3698
      %v5305 = vmul.f32 %v4779, %v3700
      %v5306 = vmul.f32 %v4775, %v3704
      %v5307 = vmul.f32 %v4779, %v3706
      %v5308 = vmul.f32 %v4783, %v3710
      %v5309 = vmul.f32 %v4787, %v3712
      %v5310 = vmul.f32 %v4783, %v3716
      %v5311 = vmul.f32 %v4787, %v3718
      %v5312 = vmul.f32 %v4791, %v3722
      %v5313 = vmul.f32 %v4795, %v3724
      %v5314 = vmul.f32 %v4791, %v3728
      %v5315 = vmul.f32 %v4795, %v3730
      %v5316 = vmul.f32 %v4799, %v3734
      %v5317 = vmul.f32 %v4803, %v3736
      %v5318 = vmul.f32 %v4799, %v3740
      %v5319 = vmul.f32 %v4803, %v3742
      %v5320 = vmul.f32 %v4807, %v3746
      %v5321 = vmul.f32 %v4811, %v3748
      %v5322 = vmul.f32 %v4807, %v3752
      %v5323 = vmul.f32 %v4811, %v3754
      %v5324 = vmul.f32 %v4815, %v3758
      %v5325 = vmul.f32 %v4819, %v3760
      %v5326 = vmul.f32 %v4815, %v3764
      %v5327 = vmul.f32 %v4819, %v3766
      %v5328 = vmul.f32 %v4823, %v3770
      %v5329 = vmul.f32 %v4827, %v3772
      %v5330 = vmul.f32 %v4823, %v3776
      %v5331 = vmul.f32 %v4827, %v3778
      %v5332 = vmul.f32 %v4831, %v3782
      %v5333 = vmul.f32 %v4835, %v3784
      %v5334 = vmul.f32 %v4831, %v3788
      %v5335 = vmul.f32 %v4835, %v3790
      %v5336 = vmul.f32 %v4839, %v3794
      %v5337 = vmul.f32 %v4843, %v3796
      %v5338 = vmul.f32 %v4839, %v3800
      %v5339 = vmul.f32 %v4843, %v3802
      %v5340 = vmul.f32 %v4847, %v3806
      %v5341 = vmul.f32 %v4851, %v3808
      %v5342 = vmul.f32 %v4847, %v3812
      %v5343 = vmul.f32 %v4851, %v3814
      %v5344 = vmul.f32 %v4855, %v3818
      %v5345 = vmul.f32 %v4859, %v3820
      %v5346 = vmul.f32 %v4855, %v3824
      %v5347 = vmul.f32 %v4859, %v3826
      %v5348 = vmul.f32 %v4863, %v3830
      %v5349 = vmul.f32 %v4867, %v3832
      %v5350 = vmul.f32 %v4863, %v3836
      %v5351 = vmul.f32 %v4867, %v3838
      %v5352 = vmul.f32 %v4871, %v3842
      %v5353 = vmul.f32 %v4875, %v3844
      %v5354 = vmul.f32 %v4871, %v3848
      %v5355 = vmul.f32 %v4875, %v3850
      %v5356 = vmul.f32 %v4879, %v3854
      %v5357 = vmul.f32 %v4883, %v3856
      %v5358 = vmul.f32 %v4879, %v3860
      %v5359 = vmul.f32 %v4883, %v3862
      %v5360 = vmul.f32 %v4887, %v3866
      %v5361 = vmul.f32 %v4891, %v3868
      %v5362 = vmul.f32 %v4887, %v3872
      %v5363 = vmul.f32 %v4891, %v3874
      %v5364 = vmul.f32 %v4895, %v3878
      %v5365 = vmul.f32 %v4899, %v3880
      %v5366 = vmul.f32 %v4895, %v3884
      %v5367 = vmul.f32 %v4899, %v3886
      %v5368 = vmul.f32 %v4903, %v3890
      %v5369 = vmul.f32 %v4907, %v3892
      %v5370 = vmul.f32 %v4903, %v3896
      %v5371 = vmul.f32 %v4907, %v3898
      %v5372 = vmul.f32 %v4911, %v3902
      %v5373 = vmul.f32 %v4915, %v3904
      %v5374 = vmul.f32 %v4911, %v3908
      %v5375 = vmul.f32 %v4915, %v3910
      %v5376 = vmul.f32 %v4919, %v3914
      %v5377 = vmul.f32 %v4923, %v3916
      %v5378 = vmul.f32 %v4919, %v3920
      %v5379 = vmul.f32 %v4923, %v3922
      %v5380 = vmul.f32 %v4927, %v3926
      %v5381 = vmul.f32 %v4931, %v3928
      %v5382 = vmul.f32 %v4927, %v3932
      %v5383 = vmul.f32 %v4931, %v3934
      %v5384 = vmul.f32 %v4935, %v3938
      %v5385 = vmul.f32 %v4939, %v3940
      %v5386 = vmul.f32 %v4935, %v3944
      %v5387 = vmul.f32 %v4939, %v3946
      %v5388 = vmul.f32 %v4943, %v3950
      %v5389 = vmul.f32 %v4947, %v3952
      %v5390 = vmul.f32 %v4943, %v3956
      %v5391 = vmul.f32 %v4947, %v3958
      %v5392 = vmul.f32 %v4951, %v3962
      %v5393 = vmul.f32 %v4955, %v3964
      %v5394 = vmul.f32 %v4951, %v3968
      %v5395 = vmul.f32 %v4955, %v3970
      %v5396 = vmul.f32 %v4959, %v3974
      %v5397 = vmul.f32 %v4963, %v3976
      %v5398 = vmul.f32 %v4959, %v3980
      %v5399 = vmul.f32 %v4963, %v3982
      %v5400 = vmul.f32 %v4967, %v3986
      %v5401 = vmul.f32 %v4971, %v3988
      %v5402 = vmul.f32 %v4967, %v3992
      %v5403 = vmul.f32 %v4971, %v3994
      %v5404 = vmul.f32 %v4975, %v3998
      %v5405 = vmul.f32 %v4979, %v4000
      %v5406 = vmul.f32 %v4975, %v4004
      %v5407 = vmul.f32 %v4979, %v4006
      %v5408 = vmul.f32 %v4983, %v4010
      %v5409 = vmul.f32 %v4987, %v4012
      %v5410 = vmul.f32 %v4983, %v4016
      %v5411 = vmul.f32 %v4987, %v4018
      %v5412 = vmul.f32 %v4991, %v4022
      %v5413 = vmul.f32 %v4995, %v4024
      %v5414 = vmul.f32 %v4991, %v4028
      %v5415 = vmul.f32 %v4995, %v4030
      %v5416 = vmul.f32 %v4999, %v4034
      %v5417 = vmul.f32 %v5003, %v4036
      %v5418 = vmul.f32 %v4999, %v4040
      %v5419 = vmul.f32 %v5003, %v4042
      %v5420 = vmul.f32 %v5007, %v4046
      %v5421 = vmul.f32 %v5011, %v4048
      %v5422 = vmul.f32 %v5007, %v4052
      %v5423 = vmul.f32 %v5011, %v4054
      %v5424 = vmul.f32 %v5015, %v4058
      %v5425 = vmul.f32 %v5019, %v4060
      %v5426 = vmul.f32 %v5015, %v4064
      %v5427 = vmul.f32 %v5019, %v4066
      %v5428 = vmul.f32 %v5023, %v4070
      %v5429 = vmul.f32 %v5027, %v4072
      %v5430 = vmul.f32 %v5023, %v4076
      %v5431 = vmul.f32 %v5027, %v4078
      %v5432 = vmul.f32 %v5031, %v4082
      %v5433 = vmul.f32 %v5035, %v4084
      %v5434 = vmul.f32 %v5031, %v4088
      %v5435 = vmul.f32 %v5035, %v4090
      %v5436 = vmul.f32 %v5039, %v4094
      %v5437 = vmul.f32 %v5043, %v4096
      %v5438 = vmul.f32 %v5039, %v4100
      %v5439 = vmul.f32 %v5043, %v4102
      %v5440 = vmul.f32 %v5047, %v4106
      %v5441 = vmul.f32 %v5051, %v4108
      %v5442 = vmul.f32 %v5047, %v4112
      %v5443 = vmul.f32 %v5051, %v4114
      %v5444 = vmul.f32 %v5055, %v4118
      %v5445 = vmul.f32 %v5059, %v4120
      %v5446 = vmul.f32 %v5055, %v4124
      %v5447 = vmul.f32 %v5059, %v4126
      %v5448 = vmul.f32 %v5063, %v4130
      %v5449 = vmul.f32 %v5067, %v4132
      %v5450 = vmul.f32 %v5063, %v4136
      %v5451 = vmul.f32 %v5067, %v4138
      %5452 = vst [vmem:[#allocation4] sm:$0xff] %v5196
      %5453 = vst [vmem:[#allocation4 + $0x8] sm:$0xff] %v5197
      %5454 = vst [vmem:[#allocation4 + $0x10] sm:$0xff] %v5198
      %5455 = vst [vmem:[#allocation4 + $0x18] sm:$0xff] %v5199
      %5456 = vst [vmem:[#allocation4 + $0x20] sm:$0xff] %v5200
      %5457 = vst [vmem:[#allocation4 + $0x28] sm:$0xff] %v5201
      %5458 = vst [vmem:[#allocation4 + $0x30] sm:$0xff] %v5202
      %5459 = vst [vmem:[#allocation4 + $0x38] sm:$0xff] %v5203
      %5460 = vst [vmem:[#allocation4 + $0x40] sm:$0xff] %v5204
      %5461 = vst [vmem:[#allocation4 + $0x48] sm:$0xff] %v5205
      %5462 = vst [vmem:[#allocation4 + $0x50] sm:$0xff] %v5206
      %5463 = vst [vmem:[#allocation4 + $0x58] sm:$0xff] %v5207
      %5464 = vst [vmem:[#allocation4 + $0x60] sm:$0xff] %v5208
      %5465 = vst [vmem:[#allocation4 + $0x68] sm:$0xff] %v5209
      %5466 = vst [vmem:[#allocation4 + $0x70] sm:$0xff] %v5210
      %5467 = vst [vmem:[#allocation4 + $0x78] sm:$0xff] %v5211
      %5468 = vst [vmem:[#allocation4 + $0x80] sm:$0xff] %v5212
      %5469 = vst [vmem:[#allocation4 + $0x88] sm:$0xff] %v5213
      %5470 = vst [vmem:[#allocation4 + $0x90] sm:$0xff] %v5214
      %5471 = vst [vmem:[#allocation4 + $0x98] sm:$0xff] %v5215
      %5472 = vst [vmem:[#allocation4 + $0xa0] sm:$0xff] %v5216
      %5473 = vst [vmem:[#allocation4 + $0xa8] sm:$0xff] %v5217
      %5474 = vst [vmem:[#allocation4 + $0xb0] sm:$0xff] %v5218
      %5475 = vst [vmem:[#allocation4 + $0xb8] sm:$0xff] %v5219
      %5476 = vst [vmem:[#allocation4 + $0xc0] sm:$0xff] %v5220
      %5477 = vst [vmem:[#allocation4 + $0xc8] sm:$0xff] %v5221
      %5478 = vst [vmem:[#allocation4 + $0xd0] sm:$0xff] %v5222
      %5479 = vst [vmem:[#allocation4 + $0xd8] sm:$0xff] %v5223
      %5480 = vst [vmem:[#allocation4 + $0xe0] sm:$0xff] %v5224
      %5481 = vst [vmem:[#allocation4 + $0xe8] sm:$0xff] %v5225
      %5482 = vst [vmem:[#allocation4 + $0xf0] sm:$0xff] %v5226
      %5483 = vst [vmem:[#allocation4 + $0xf8] sm:$0xff] %v5227
      %5484 = vst [vmem:[#allocation4 + $0x100] sm:$0xff] %v5228
      %5485 = vst [vmem:[#allocation4 + $0x108] sm:$0xff] %v5229
      %5486 = vst [vmem:[#allocation4 + $0x110] sm:$0xff] %v5230
      %5487 = vst [vmem:[#allocation4 + $0x118] sm:$0xff] %v5231
      %5488 = vst [vmem:[#allocation4 + $0x120] sm:$0xff] %v5232
      %5489 = vst [vmem:[#allocation4 + $0x128] sm:$0xff] %v5233
      %5490 = vst [vmem:[#allocation4 + $0x130] sm:$0xff] %v5234
      %5491 = vst [vmem:[#allocation4 + $0x138] sm:$0xff] %v5235
      %5492 = vst [vmem:[#allocation4 + $0x140] sm:$0xff] %v5236
      %5493 = vst [vmem:[#allocation4 + $0x148] sm:$0xff] %v5237
      %5494 = vst [vmem:[#allocation4 + $0x150] sm:$0xff] %v5238
      %5495 = vst [vmem:[#allocation4 + $0x158] sm:$0xff] %v5239
      %5496 = vst [vmem:[#allocation4 + $0x160] sm:$0xff] %v5240
      %5497 = vst [vmem:[#allocation4 + $0x168] sm:$0xff] %v5241
      %5498 = vst [vmem:[#allocation4 + $0x170] sm:$0xff] %v5242
      %5499 = vst [vmem:[#allocation4 + $0x178] sm:$0xff] %v5243
      %5500 = vst [vmem:[#allocation4 + $0x180] sm:$0xff] %v5244
      %5501 = vst [vmem:[#allocation4 + $0x188] sm:$0xff] %v5245
      %5502 = vst [vmem:[#allocation4 + $0x190] sm:$0xff] %v5246
      %5503 = vst [vmem:[#allocation4 + $0x198] sm:$0xff] %v5247
      %5504 = vst [vmem:[#allocation4 + $0x1a0] sm:$0xff] %v5248
      %5505 = vst [vmem:[#allocation4 + $0x1a8] sm:$0xff] %v5249
      %5506 = vst [vmem:[#allocation4 + $0x1b0] sm:$0xff] %v5250
      %5507 = vst [vmem:[#allocation4 + $0x1b8] sm:$0xff] %v5251
      %5508 = vst [vmem:[#allocation4 + $0x1c0] sm:$0xff] %v5252
      %5509 = vst [vmem:[#allocation4 + $0x1c8] sm:$0xff] %v5253
      %5510 = vst [vmem:[#allocation4 + $0x1d0] sm:$0xff] %v5254
      %5511 = vst [vmem:[#allocation4 + $0x1d8] sm:$0xff] %v5255
      %5512 = vst [vmem:[#allocation4 + $0x1e0] sm:$0xff] %v5256
      %5513 = vst [vmem:[#allocation4 + $0x1e8] sm:$0xff] %v5257
      %5514 = vst [vmem:[#allocation4 + $0x1f0] sm:$0xff] %v5258
      %5515 = vst [vmem:[#allocation4 + $0x1f8] sm:$0xff] %v5259
      %5516 = vst [vmem:[#allocation4 + $0x200] sm:$0xff] %v5260
      %5517 = vst [vmem:[#allocation4 + $0x208] sm:$0xff] %v5261
      %5518 = vst [vmem:[#allocation4 + $0x210] sm:$0xff] %v5262
      %5519 = vst [vmem:[#allocation4 + $0x218] sm:$0xff] %v5263
      %5520 = vst [vmem:[#allocation4 + $0x220] sm:$0xff] %v5264
      %5521 = vst [vmem:[#allocation4 + $0x228] sm:$0xff] %v5265
      %5522 = vst [vmem:[#allocation4 + $0x230] sm:$0xff] %v5266
      %5523 = vst [vmem:[#allocation4 + $0x238] sm:$0xff] %v5267
      %5524 = vst [vmem:[#allocation4 + $0x240] sm:$0xff] %v5268
      %5525 = vst [vmem:[#allocation4 + $0x248] sm:$0xff] %v5269
      %5526 = vst [vmem:[#allocation4 + $0x250] sm:$0xff] %v5270
      %5527 = vst [vmem:[#allocation4 + $0x258] sm:$0xff] %v5271
      %5528 = vst [vmem:[#allocation4 + $0x260] sm:$0xff] %v5272
      %5529 = vst [vmem:[#allocation4 + $0x268] sm:$0xff] %v5273
      %5530 = vst [vmem:[#allocation4 + $0x270] sm:$0xff] %v5274
      %5531 = vst [vmem:[#allocation4 + $0x278] sm:$0xff] %v5275
      %5532 = vst [vmem:[#allocation4 + $0x280] sm:$0xff] %v5276
      %5533 = vst [vmem:[#allocation4 + $0x288] sm:$0xff] %v5277
      %5534 = vst [vmem:[#allocation4 + $0x290] sm:$0xff] %v5278
      %5535 = vst [vmem:[#allocation4 + $0x298] sm:$0xff] %v5279
      %5536 = vst [vmem:[#allocation4 + $0x2a0] sm:$0xff] %v5280
      %5537 = vst [vmem:[#allocation4 + $0x2a8] sm:$0xff] %v5281
      %5538 = vst [vmem:[#allocation4 + $0x2b0] sm:$0xff] %v5282
      %5539 = vst [vmem:[#allocation4 + $0x2b8] sm:$0xff] %v5283
      %5540 = vst [vmem:[#allocation4 + $0x2c0] sm:$0xff] %v5284
      %5541 = vst [vmem:[#allocation4 + $0x2c8] sm:$0xff] %v5285
      %5542 = vst [vmem:[#allocation4 + $0x2d0] sm:$0xff] %v5286
      %5543 = vst [vmem:[#allocation4 + $0x2d8] sm:$0xff] %v5287
      %5544 = vst [vmem:[#allocation4 + $0x2e0] sm:$0xff] %v5288
      %5545 = vst [vmem:[#allocation4 + $0x2e8] sm:$0xff] %v5289
      %5546 = vst [vmem:[#allocation4 + $0x2f0] sm:$0xff] %v5290
      %5547 = vst [vmem:[#allocation4 + $0x2f8] sm:$0xff] %v5291
      %5548 = vst [vmem:[#allocation4 + $0x300] sm:$0xff] %v5292
      %5549 = vst [vmem:[#allocation4 + $0x308] sm:$0xff] %v5293
      %5550 = vst [vmem:[#allocation4 + $0x310] sm:$0xff] %v5294
      %5551 = vst [vmem:[#allocation4 + $0x318] sm:$0xff] %v5295
      %5552 = vst [vmem:[#allocation4 + $0x320] sm:$0xff] %v5296
      %5553 = vst [vmem:[#allocation4 + $0x328] sm:$0xff] %v5297
      %5554 = vst [vmem:[#allocation4 + $0x330] sm:$0xff] %v5298
      %5555 = vst [vmem:[#allocation4 + $0x338] sm:$0xff] %v5299
      %5556 = vst [vmem:[#allocation4 + $0x340] sm:$0xff] %v5300
      %5557 = vst [vmem:[#allocation4 + $0x348] sm:$0xff] %v5301
      %5558 = vst [vmem:[#allocation4 + $0x350] sm:$0xff] %v5302
      %5559 = vst [vmem:[#allocation4 + $0x358] sm:$0xff] %v5303
      %5560 = vst [vmem:[#allocation4 + $0x360] sm:$0xff] %v5304
      %5561 = vst [vmem:[#allocation4 + $0x368] sm:$0xff] %v5305
      %5562 = vst [vmem:[#allocation4 + $0x370] sm:$0xff] %v5306
      %5563 = vst [vmem:[#allocation4 + $0x378] sm:$0xff] %v5307
      %5564 = vst [vmem:[#allocation4 + $0x380] sm:$0xff] %v5308
      %5565 = vst [vmem:[#allocation4 + $0x388] sm:$0xff] %v5309
      %5566 = vst [vmem:[#allocation4 + $0x390] sm:$0xff] %v5310
      %5567 = vst [vmem:[#allocation4 + $0x398] sm:$0xff] %v5311
      %5568 = vst [vmem:[#allocation4 + $0x3a0] sm:$0xff] %v5312
      %5569 = vst [vmem:[#allocation4 + $0x3a8] sm:$0xff] %v5313
      %5570 = vst [vmem:[#allocation4 + $0x3b0] sm:$0xff] %v5314
      %5571 = vst [vmem:[#allocation4 + $0x3b8] sm:$0xff] %v5315
      %5572 = vst [vmem:[#allocation4 + $0x3c0] sm:$0xff] %v5316
      %5573 = vst [vmem:[#allocation4 + $0x3c8] sm:$0xff] %v5317
      %5574 = vst [vmem:[#allocation4 + $0x3d0] sm:$0xff] %v5318
      %5575 = vst [vmem:[#allocation4 + $0x3d8] sm:$0xff] %v5319
      %5576 = vst [vmem:[#allocation4 + $0x3e0] sm:$0xff] %v5320
      %5577 = vst [vmem:[#allocation4 + $0x3e8] sm:$0xff] %v5321
      %5578 = vst [vmem:[#allocation4 + $0x3f0] sm:$0xff] %v5322
      %5579 = vst [vmem:[#allocation4 + $0x3f8] sm:$0xff] %v5323
      %5580 = vst [vmem:[#allocation4 + $0x400] sm:$0xff] %v5324
      %5581 = vst [vmem:[#allocation4 + $0x408] sm:$0xff] %v5325
      %5582 = vst [vmem:[#allocation4 + $0x410] sm:$0xff] %v5326
      %5583 = vst [vmem:[#allocation4 + $0x418] sm:$0xff] %v5327
      %5584 = vst [vmem:[#allocation4 + $0x420] sm:$0xff] %v5328
      %5585 = vst [vmem:[#allocation4 + $0x428] sm:$0xff] %v5329
      %5586 = vst [vmem:[#allocation4 + $0x430] sm:$0xff] %v5330
      %5587 = vst [vmem:[#allocation4 + $0x438] sm:$0xff] %v5331
      %5588 = vst [vmem:[#allocation4 + $0x440] sm:$0xff] %v5332
      %5589 = vst [vmem:[#allocation4 + $0x448] sm:$0xff] %v5333
      %5590 = vst [vmem:[#allocation4 + $0x450] sm:$0xff] %v5334
      %5591 = vst [vmem:[#allocation4 + $0x458] sm:$0xff] %v5335
      %5592 = vst [vmem:[#allocation4 + $0x460] sm:$0xff] %v5336
      %5593 = vst [vmem:[#allocation4 + $0x468] sm:$0xff] %v5337
      %5594 = vst [vmem:[#allocation4 + $0x470] sm:$0xff] %v5338
      %5595 = vst [vmem:[#allocation4 + $0x478] sm:$0xff] %v5339
      %5596 = vst [vmem:[#allocation4 + $0x480] sm:$0xff] %v5340
      %5597 = vst [vmem:[#allocation4 + $0x488] sm:$0xff] %v5341
      %5598 = vst [vmem:[#allocation4 + $0x490] sm:$0xff] %v5342
      %5599 = vst [vmem:[#allocation4 + $0x498] sm:$0xff] %v5343
      %5600 = vst [vmem:[#allocation4 + $0x4a0] sm:$0xff] %v5344
      %5601 = vst [vmem:[#allocation4 + $0x4a8] sm:$0xff] %v5345
      %5602 = vst [vmem:[#allocation4 + $0x4b0] sm:$0xff] %v5346
      %5603 = vst [vmem:[#allocation4 + $0x4b8] sm:$0xff] %v5347
      %5604 = vst [vmem:[#allocation4 + $0x4c0] sm:$0xff] %v5348
      %5605 = vst [vmem:[#allocation4 + $0x4c8] sm:$0xff] %v5349
      %5606 = vst [vmem:[#allocation4 + $0x4d0] sm:$0xff] %v5350
      %5607 = vst [vmem:[#allocation4 + $0x4d8] sm:$0xff] %v5351
      %5608 = vst [vmem:[#allocation4 + $0x4e0] sm:$0xff] %v5352
      %5609 = vst [vmem:[#allocation4 + $0x4e8] sm:$0xff] %v5353
      %5610 = vst [vmem:[#allocation4 + $0x4f0] sm:$0xff] %v5354
      %5611 = vst [vmem:[#allocation4 + $0x4f8] sm:$0xff] %v5355
      %5612 = vst [vmem:[#allocation4 + $0x500] sm:$0xff] %v5356
      %5613 = vst [vmem:[#allocation4 + $0x508] sm:$0xff] %v5357
      %5614 = vst [vmem:[#allocation4 + $0x510] sm:$0xff] %v5358
      %5615 = vst [vmem:[#allocation4 + $0x518] sm:$0xff] %v5359
      %5616 = vst [vmem:[#allocation4 + $0x520] sm:$0xff] %v5360
      %5617 = vst [vmem:[#allocation4 + $0x528] sm:$0xff] %v5361
      %5618 = vst [vmem:[#allocation4 + $0x530] sm:$0xff] %v5362
      %5619 = vst [vmem:[#allocation4 + $0x538] sm:$0xff] %v5363
      %5620 = vst [vmem:[#allocation4 + $0x540] sm:$0xff] %v5364
      %5621 = vst [vmem:[#allocation4 + $0x548] sm:$0xff] %v5365
      %5622 = vst [vmem:[#allocation4 + $0x550] sm:$0xff] %v5366
      %5623 = vst [vmem:[#allocation4 + $0x558] sm:$0xff] %v5367
      %5624 = vst [vmem:[#allocation4 + $0x560] sm:$0xff] %v5368
      %5625 = vst [vmem:[#allocation4 + $0x568] sm:$0xff] %v5369
      %5626 = vst [vmem:[#allocation4 + $0x570] sm:$0xff] %v5370
      %5627 = vst [vmem:[#allocation4 + $0x578] sm:$0xff] %v5371
      %5628 = vst [vmem:[#allocation4 + $0x580] sm:$0xff] %v5372
      %5629 = vst [vmem:[#allocation4 + $0x588] sm:$0xff] %v5373
      %5630 = vst [vmem:[#allocation4 + $0x590] sm:$0xff] %v5374
      %5631 = vst [vmem:[#allocation4 + $0x598] sm:$0xff] %v5375
      %5632 = vst [vmem:[#allocation4 + $0x5a0] sm:$0xff] %v5376
      %5633 = vst [vmem:[#allocation4 + $0x5a8] sm:$0xff] %v5377
      %5634 = vst [vmem:[#allocation4 + $0x5b0] sm:$0xff] %v5378
      %5635 = vst [vmem:[#allocation4 + $0x5b8] sm:$0xff] %v5379
      %5636 = vst [vmem:[#allocation4 + $0x5c0] sm:$0xff] %v5380
      %5637 = vst [vmem:[#allocation4 + $0x5c8] sm:$0xff] %v5381
      %5638 = vst [vmem:[#allocation4 + $0x5d0] sm:$0xff] %v5382
      %5639 = vst [vmem:[#allocation4 + $0x5d8] sm:$0xff] %v5383
      %5640 = vst [vmem:[#allocation4 + $0x5e0] sm:$0xff] %v5384
      %5641 = vst [vmem:[#allocation4 + $0x5e8] sm:$0xff] %v5385
      %5642 = vst [vmem:[#allocation4 + $0x5f0] sm:$0xff] %v5386
      %5643 = vst [vmem:[#allocation4 + $0x5f8] sm:$0xff] %v5387
      %5644 = vst [vmem:[#allocation4 + $0x600] sm:$0xff] %v5388
      %5645 = vst [vmem:[#allocation4 + $0x608] sm:$0xff] %v5389
      %5646 = vst [vmem:[#allocation4 + $0x610] sm:$0xff] %v5390
      %5647 = vst [vmem:[#allocation4 + $0x618] sm:$0xff] %v5391
      %5648 = vst [vmem:[#allocation4 + $0x620] sm:$0xff] %v5392
      %5649 = vst [vmem:[#allocation4 + $0x628] sm:$0xff] %v5393
      %5650 = vst [vmem:[#allocation4 + $0x630] sm:$0xff] %v5394
      %5651 = vst [vmem:[#allocation4 + $0x638] sm:$0xff] %v5395
      %5652 = vst [vmem:[#allocation4 + $0x640] sm:$0xff] %v5396
      %5653 = vst [vmem:[#allocation4 + $0x648] sm:$0xff] %v5397
      %5654 = vst [vmem:[#allocation4 + $0x650] sm:$0xff] %v5398
      %5655 = vst [vmem:[#allocation4 + $0x658] sm:$0xff] %v5399
      %5656 = vst [vmem:[#allocation4 + $0x660] sm:$0xff] %v5400
      %5657 = vst [vmem:[#allocation4 + $0x668] sm:$0xff] %v5401
      %5658 = vst [vmem:[#allocation4 + $0x670] sm:$0xff] %v5402
      %5659 = vst [vmem:[#allocation4 + $0x678] sm:$0xff] %v5403
      %5660 = vst [vmem:[#allocation4 + $0x680] sm:$0xff] %v5404
      %5661 = vst [vmem:[#allocation4 + $0x688] sm:$0xff] %v5405
      %5662 = vst [vmem:[#allocation4 + $0x690] sm:$0xff] %v5406
      %5663 = vst [vmem:[#allocation4 + $0x698] sm:$0xff] %v5407
      %5664 = vst [vmem:[#allocation4 + $0x6a0] sm:$0xff] %v5408
      %5665 = vst [vmem:[#allocation4 + $0x6a8] sm:$0xff] %v5409
      %5666 = vst [vmem:[#allocation4 + $0x6b0] sm:$0xff] %v5410
      %5667 = vst [vmem:[#allocation4 + $0x6b8] sm:$0xff] %v5411
      %5668 = vst [vmem:[#allocation4 + $0x6c0] sm:$0xff] %v5412
      %5669 = vst [vmem:[#allocation4 + $0x6c8] sm:$0xff] %v5413
      %5670 = vst [vmem:[#allocation4 + $0x6d0] sm:$0xff] %v5414
      %5671 = vst [vmem:[#allocation4 + $0x6d8] sm:$0xff] %v5415
      %5672 = vst [vmem:[#allocation4 + $0x6e0] sm:$0xff] %v5416
      %5673 = vst [vmem:[#allocation4 + $0x6e8] sm:$0xff] %v5417
      %5674 = vst [vmem:[#allocation4 + $0x6f0] sm:$0xff] %v5418
      %5675 = vst [vmem:[#allocation4 + $0x6f8] sm:$0xff] %v5419
      %5676 = vst [vmem:[#allocation4 + $0x700] sm:$0xff] %v5420
      %5677 = vst [vmem:[#allocation4 + $0x708] sm:$0xff] %v5421
      %5678 = vst [vmem:[#allocation4 + $0x710] sm:$0xff] %v5422
      %5679 = vst [vmem:[#allocation4 + $0x718] sm:$0xff] %v5423
      %5680 = vst [vmem:[#allocation4 + $0x720] sm:$0xff] %v5424
      %5681 = vst [vmem:[#allocation4 + $0x728] sm:$0xff] %v5425
      %5682 = vst [vmem:[#allocation4 + $0x730] sm:$0xff] %v5426
      %5683 = vst [vmem:[#allocation4 + $0x738] sm:$0xff] %v5427
      %5684 = vst [vmem:[#allocation4 + $0x740] sm:$0xff] %v5428
      %5685 = vst [vmem:[#allocation4 + $0x748] sm:$0xff] %v5429
      %5686 = vst [vmem:[#allocation4 + $0x750] sm:$0xff] %v5430
      %5687 = vst [vmem:[#allocation4 + $0x758] sm:$0xff] %v5431
      %5688 = vst [vmem:[#allocation4 + $0x760] sm:$0xff] %v5432
      %5689 = vst [vmem:[#allocation4 + $0x768] sm:$0xff] %v5433
      %5690 = vst [vmem:[#allocation4 + $0x770] sm:$0xff] %v5434
      %5691 = vst [vmem:[#allocation4 + $0x778] sm:$0xff] %v5435
      %5692 = vst [vmem:[#allocation4 + $0x780] sm:$0xff] %v5436
      %5693 = vst [vmem:[#allocation4 + $0x788] sm:$0xff] %v5437
      %5694 = vst [vmem:[#allocation4 + $0x790] sm:$0xff] %v5438
      %5695 = vst [vmem:[#allocation4 + $0x798] sm:$0xff] %v5439
      %5696 = vst [vmem:[#allocation4 + $0x7a0] sm:$0xff] %v5440
      %5697 = vst [vmem:[#allocation4 + $0x7a8] sm:$0xff] %v5441
      %5698 = vst [vmem:[#allocation4 + $0x7b0] sm:$0xff] %v5442
      %5699 = vst [vmem:[#allocation4 + $0x7b8] sm:$0xff] %v5443
      %5700 = vst [vmem:[#allocation4 + $0x7c0] sm:$0xff] %v5444
      %5701 = vst [vmem:[#allocation4 + $0x7c8] sm:$0xff] %v5445
      %5702 = vst [vmem:[#allocation4 + $0x7d0] sm:$0xff] %v5446
      %5703 = vst [vmem:[#allocation4 + $0x7d8] sm:$0xff] %v5447
      %5704 = vst [vmem:[#allocation4 + $0x7e0] sm:$0xff] %v5448
      %5705 = vst [vmem:[#allocation4 + $0x7e8] sm:$0xff] %v5449
      %5706 = vst [vmem:[#allocation4 + $0x7f0] sm:$0xff] %v5450
      %5707 = vst [vmem:[#allocation4 + $0x7f8] sm:$0xff] %v5451
      %5708 = vmatprep.subr.mxu0 %v2793
      %5709 = vmatpush1.msra.mxu0 %v2792
      %5710 = vmatprep.subr.mxu0 0.0
      %5711 = vmatpush1.msra.mxu0 0.0
      %5712 = vmatprep.subr.mxu0 0.0
      %5713 = vmatpush1.msra.mxu0 0.0
      %5714 = vmatprep.subr.mxu0 0.0
      %5715 = vmatpush1.msra.mxu0 0.0
      %5716 = vmatprep.subr.mxu0 0.0
      %5717 = vmatpush1.msra.mxu0 0.0
      %5718 = vmatprep.subr.mxu0 0.0
      %5719 = vmatpush1.msra.mxu0 0.0
      %5720 = vmatprep.subr.mxu0 0.0
      %5721 = vmatpush1.msra.mxu0 0.0
      %5722 = vmatprep.subr.mxu0 0.0
      %5723 = vmatpush1.msra.mxu0 0.0
      %5724 = vmatprep.subr.mxu0 0.0
      %5725 = vmatpush1.msra.mxu0 0.0
      %5726 = vmatprep.subr.mxu0 0.0
      %5727 = vmatpush1.msra.mxu0 0.0
      %5728 = vmatprep.subr.mxu0 0.0
      %5729 = vmatpush1.msra.mxu0 0.0
      %5730 = vmatprep.subr.mxu0 0.0
      %5731 = vmatpush1.msra.mxu0 0.0
      %5732 = vmatprep.subr.mxu0 0.0
      %5733 = vmatpush1.msra.mxu0 0.0
      %5734 = vmatprep.subr.mxu0 0.0
      %5735 = vmatpush1.msra.mxu0 0.0
      %5736 = vmatprep.subr.mxu0 0.0
      %5737 = vmatpush1.msra.mxu0 0.0
      %5738 = vmatprep.subr.mxu0 0.0
      %5739 = vmatpush1.msra.mxu0 0.0
      %5740 = vmatprep.subr.mxu0 0.0
      %5741 = vmatpush1.msra.mxu0 0.0
      %5742 = vmatprep.subr.mxu0 0.0
      %5743 = vmatpush1.msra.mxu0 0.0
      %5744 = vmatprep.subr.mxu0 0.0
      %5745 = vmatpush1.msra.mxu0 0.0
      %5746 = vmatprep.subr.mxu0 0.0
      %5747 = vmatpush1.msra.mxu0 0.0
      %5748 = vmatprep.subr.mxu0 0.0
      %5749 = vmatpush1.msra.mxu0 0.0
      %5750 = vmatprep.subr.mxu0 0.0
      %5751 = vmatpush1.msra.mxu0 0.0
      %5752 = vmatprep.subr.mxu0 0.0
      %5753 = vmatpush1.msra.mxu0 0.0
      %5754 = vmatprep.subr.mxu0 0.0
      %5755 = vmatpush1.msra.mxu0 0.0
      %5756 = vmatprep.subr.mxu0 0.0
      %5757 = vmatpush1.msra.mxu0 0.0
      %5758 = vmatprep.subr.mxu0 0.0
      %5759 = vmatpush1.msra.mxu0 0.0
      %5760 = vmatprep.subr.mxu0 0.0
      %5761 = vmatpush1.msra.mxu0 0.0
      %5762 = vmatprep.subr.mxu0 0.0
      %5763 = vmatpush1.msra.mxu0 0.0
      %5764 = vmatprep.subr.mxu0 0.0
      %5765 = vmatpush1.msra.mxu0 0.0
      %5766 = vmatprep.subr.mxu0 0.0
      %5767 = vmatpush1.msra.mxu0 0.0
      %5768 = vmatprep.subr.mxu0 0.0
      %5769 = vmatpush1.msra.mxu0 0.0
      %5770 = vmatprep.subr.mxu0 0.0
      %5771 = vmatpush1.msra.mxu0 0.0
      %5772 = vmatprep.mubr.f32.mxu0 0.0
      %5773 = vmatmul.mubr.f32.gmra.mrb[0].mxu0 %v2924
      %v5774 = vpop.f32.mrb[0].mxu0
      %v5775 = vadd.f32 0.0, %v5774
      %v5776 = vpop.f32.mrb[0].mxu0
      %v5777 = vadd.f32 0.0, %v5776
      %5778 = vmatprep.mubr.f32.mxu0 0.0
      %5779 = vmatmul.mubr.f32.gmra.mrb[0].mxu0 %v2927
      %v5780 = vpop.f32.mrb[0].mxu0
      %v5781 = vadd.f32 0.0, %v5780
      %v5782 = vpop.f32.mrb[0].mxu0
      %v5783 = vadd.f32 0.0, %v5782
      %5784 = vmatprep.mubr.f32.mxu0 0.0
      %5785 = vmatmul.mubr.f32.gmra.mrb[0].mxu0 %v2930
      %v5786 = vpop.f32.mrb[0].mxu0
      %v5787 = vadd.f32 0.0, %v5786
      %v5788 = vpop.f32.mrb[0].mxu0
      %v5789 = vadd.f32 0.0, %v5788
      %5790 = vmatprep.mubr.f32.mxu0 0.0
      %5791 = vmatmul.mubr.f32.gmra.mrb[0].mxu0 %v2933
      %v5792 = vpop.f32.mrb[0].mxu0
      %v5793 = vadd.f32 0.0, %v5792
      %v5794 = vpop.f32.mrb[0].mxu0
      %v5795 = vadd.f32 0.0, %v5794
      %5796 = vmatprep.mubr.f32.mxu0 0.0
      %5797 = vmatmul.mubr.f32.gmra.mrb[0].mxu0 %v2936
      %v5798 = vpop.f32.mrb[0].mxu0
      %v5799 = vadd.f32 0.0, %v5798
      %v5800 = vpop.f32.mrb[0].mxu0
      %v5801 = vadd.f32 0.0, %v5800
      %5802 = vmatprep.mubr.f32.mxu0 0.0
      %5803 = vmatmul.mubr.f32.gmra.mrb[0].mxu0 %v2939
      %v5804 = vpop.f32.mrb[0].mxu0
      %v5805 = vadd.f32 0.0, %v5804
      %v5806 = vpop.f32.mrb[0].mxu0
      %v5807 = vadd.f32 0.0, %v5806
      %5808 = vmatprep.mubr.f32.mxu0 0.0
      %5809 = vmatmul.mubr.f32.gmra.mrb[0].mxu0 %v2942
      %v5810 = vpop.f32.mrb[0].mxu0
      %v5811 = vadd.f32 0.0, %v5810
      %v5812 = vpop.f32.mrb[0].mxu0
      %v5813 = vadd.f32 0.0, %v5812
      %5814 = vmatprep.mubr.f32.mxu0 0.0
      %5815 = vmatmul.mubr.f32.gmra.mrb[0].mxu0 %v2945
      %v5816 = vpop.f32.mrb[0].mxu0
      %v5817 = vadd.f32 0.0, %v5816
      %v5818 = vpop.f32.mrb[0].mxu0
      %v5819 = vadd.f32 0.0, %v5818
      %5820 = vmatprep.mubr.f32.mxu0 0.0
      %5821 = vmatmul.mubr.f32.gmra.mrb[0].mxu0 %v2948
      %v5822 = vpop.f32.mrb[0].mxu0
      %v5823 = vadd.f32 0.0, %v5822
      %v5824 = vpop.f32.mrb[0].mxu0
      %v5825 = vadd.f32 0.0, %v5824
      %5826 = vmatprep.mubr.f32.mxu0 0.0
      %5827 = vmatmul.mubr.f32.gmra.mrb[0].mxu0 %v2951
      %v5828 = vpop.f32.mrb[0].mxu0
      %v5829 = vadd.f32 0.0, %v5828
      %v5830 = vpop.f32.mrb[0].mxu0
      %v5831 = vadd.f32 0.0, %v5830
      %5832 = vmatprep.mubr.f32.mxu0 0.0
      %5833 = vmatmul.mubr.f32.gmra.mrb[0].mxu0 %v2954
      %v5834 = vpop.f32.mrb[0].mxu0
      %v5835 = vadd.f32 0.0, %v5834
      %v5836 = vpop.f32.mrb[0].mxu0
      %v5837 = vadd.f32 0.0, %v5836
      %5838 = vmatprep.mubr.f32.mxu0 0.0
      %5839 = vmatmul.mubr.f32.gmra.mrb[0].mxu0 %v2957
      %v5840 = vpop.f32.mrb[0].mxu0
      %v5841 = vadd.f32 0.0, %v5840
      %v5842 = vpop.f32.mrb[0].mxu0
      %v5843 = vadd.f32 0.0, %v5842
      %5844 = vmatprep.mubr.f32.mxu0 0.0
      %5845 = vmatmul.mubr.f32.gmra.mrb[0].mxu0 %v2960
      %v5846 = vpop.f32.mrb[0].mxu0
      %v5847 = vadd.f32 0.0, %v5846
      %v5848 = vpop.f32.mrb[0].mxu0
      %v5849 = vadd.f32 0.0, %v5848
      %5850 = vmatprep.mubr.f32.mxu0 0.0
      %5851 = vmatmul.mubr.f32.gmra.mrb[0].mxu0 %v2963
      %v5852 = vpop.f32.mrb[0].mxu0
      %v5853 = vadd.f32 0.0, %v5852
      %v5854 = vpop.f32.mrb[0].mxu0
      %v5855 = vadd.f32 0.0, %v5854
      %5856 = vmatprep.mubr.f32.mxu0 0.0
      %5857 = vmatmul.mubr.f32.gmra.mrb[0].mxu0 %v2966
      %v5858 = vpop.f32.mrb[0].mxu0
      %v5859 = vadd.f32 0.0, %v5858
      %v5860 = vpop.f32.mrb[0].mxu0
      %v5861 = vadd.f32 0.0, %v5860
      %5862 = vmatprep.mubr.f32.mxu0 0.0
      %5863 = vmatmul.mubr.f32.gmra.mrb[0].mxu0 %v2969
      %v5864 = vpop.f32.mrb[0].mxu0
      %v5865 = vadd.f32 0.0, %v5864
      %v5866 = vpop.f32.mrb[0].mxu0
      %v5867 = vadd.f32 0.0, %v5866
      %5868 = vmatprep.mubr.f32.mxu0 0.0
      %5869 = vmatmul.mubr.f32.gmra.mrb[0].mxu0 %v2972
      %v5870 = vpop.f32.mrb[0].mxu0
      %v5871 = vadd.f32 0.0, %v5870
      %v5872 = vpop.f32.mrb[0].mxu0
      %v5873 = vadd.f32 0.0, %v5872
      %5874 = vmatprep.mubr.f32.mxu0 0.0
      %5875 = vmatmul.mubr.f32.gmra.mrb[0].mxu0 %v2975
      %v5876 = vpop.f32.mrb[0].mxu0
      %v5877 = vadd.f32 0.0, %v5876
      %v5878 = vpop.f32.mrb[0].mxu0
      %v5879 = vadd.f32 0.0, %v5878
      %5880 = vmatprep.mubr.f32.mxu0 0.0
      %5881 = vmatmul.mubr.f32.gmra.mrb[0].mxu0 %v2978
      %v5882 = vpop.f32.mrb[0].mxu0
      %v5883 = vadd.f32 0.0, %v5882
      %v5884 = vpop.f32.mrb[0].mxu0
      %v5885 = vadd.f32 0.0, %v5884
      %5886 = vmatprep.mubr.f32.mxu0 0.0
      %5887 = vmatmul.mubr.f32.gmra.mrb[0].mxu0 %v2981
      %v5888 = vpop.f32.mrb[0].mxu0
      %v5889 = vadd.f32 0.0, %v5888
      %v5890 = vpop.f32.mrb[0].mxu0
      %v5891 = vadd.f32 0.0, %v5890
      %5892 = vmatprep.mubr.f32.mxu0 0.0
      %5893 = vmatmul.mubr.f32.gmra.mrb[0].mxu0 %v2984
      %v5894 = vpop.f32.mrb[0].mxu0
      %v5895 = vadd.f32 0.0, %v5894
      %v5896 = vpop.f32.mrb[0].mxu0
      %v5897 = vadd.f32 0.0, %v5896
      %5898 = vmatprep.mubr.f32.mxu0 0.0
      %5899 = vmatmul.mubr.f32.gmra.mrb[0].mxu0 %v2987
      %v5900 = vpop.f32.mrb[0].mxu0
      %v5901 = vadd.f32 0.0, %v5900
      %v5902 = vpop.f32.mrb[0].mxu0
      %v5903 = vadd.f32 0.0, %v5902
      %5904 = vmatprep.mubr.f32.mxu0 0.0
      %5905 = vmatmul.mubr.f32.gmra.mrb[0].mxu0 %v2990
      %v5906 = vpop.f32.mrb[0].mxu0
      %v5907 = vadd.f32 0.0, %v5906
      %v5908 = vpop.f32.mrb[0].mxu0
      %v5909 = vadd.f32 0.0, %v5908
      %5910 = vmatprep.mubr.f32.mxu0 0.0
      %5911 = vmatmul.mubr.f32.gmra.mrb[0].mxu0 %v2993
      %v5912 = vpop.f32.mrb[0].mxu0
      %v5913 = vadd.f32 0.0, %v5912
      %v5914 = vpop.f32.mrb[0].mxu0
      %v5915 = vadd.f32 0.0, %v5914
      %5916 = vmatprep.mubr.f32.mxu0 0.0
      %5917 = vmatmul.mubr.f32.gmra.mrb[0].mxu0 %v2996
      %v5918 = vpop.f32.mrb[0].mxu0
      %v5919 = vadd.f32 0.0, %v5918
      %v5920 = vpop.f32.mrb[0].mxu0
      %v5921 = vadd.f32 0.0, %v5920
      %5922 = vmatprep.mubr.f32.mxu0 0.0
      %5923 = vmatmul.mubr.f32.gmra.mrb[0].mxu0 %v2999
      %v5924 = vpop.f32.mrb[0].mxu0
      %v5925 = vadd.f32 0.0, %v5924
      %v5926 = vpop.f32.mrb[0].mxu0
      %v5927 = vadd.f32 0.0, %v5926
      %5928 = vmatprep.mubr.f32.mxu0 0.0
      %5929 = vmatmul.mubr.f32.gmra.mrb[0].mxu0 %v3002
      %v5930 = vpop.f32.mrb[0].mxu0
      %v5931 = vadd.f32 0.0, %v5930
      %v5932 = vpop.f32.mrb[0].mxu0
      %v5933 = vadd.f32 0.0, %v5932
      %5934 = vmatprep.mubr.f32.mxu0 0.0
      %5935 = vmatmul.mubr.f32.gmra.mrb[0].mxu0 %v3005
      %v5936 = vpop.f32.mrb[0].mxu0
      %v5937 = vadd.f32 0.0, %v5936
      %v5938 = vpop.f32.mrb[0].mxu0
      %v5939 = vadd.f32 0.0, %v5938
      %5940 = vmatprep.mubr.f32.mxu0 0.0
      %5941 = vmatmul.mubr.f32.gmra.mrb[0].mxu0 %v3008
      %v5942 = vpop.f32.mrb[0].mxu0
      %v5943 = vadd.f32 0.0, %v5942
      %v5944 = vpop.f32.mrb[0].mxu0
      %v5945 = vadd.f32 0.0, %v5944
      %5946 = vmatprep.mubr.f32.mxu0 0.0
      %5947 = vmatmul.mubr.f32.gmra.mrb[0].mxu0 %v3011
      %v5948 = vpop.f32.mrb[0].mxu0
      %v5949 = vadd.f32 0.0, %v5948
      %v5950 = vpop.f32.mrb[0].mxu0
      %v5951 = vadd.f32 0.0, %v5950
      %5952 = vmatprep.mubr.f32.mxu0 0.0
      %5953 = vmatmul.mubr.f32.gmra.mrb[0].mxu0 %v3014
      %v5954 = vpop.f32.mrb[0].mxu0
      %v5955 = vadd.f32 0.0, %v5954
      %v5956 = vpop.f32.mrb[0].mxu0
      %v5957 = vadd.f32 0.0, %v5956
      %5958 = vmatprep.mubr.f32.mxu0 0.0
      %5959 = vmatmul.mubr.f32.gmra.mrb[0].mxu0 %v3017
      %v5960 = vpop.f32.mrb[0].mxu0
      %v5961 = vadd.f32 0.0, %v5960
      %v5962 = vpop.f32.mrb[0].mxu0
      %v5963 = vadd.f32 0.0, %v5962
      %5964 = vmatprep.mubr.f32.mxu0 0.0
      %5965 = vmatmul.mubr.f32.gmra.mrb[0].mxu0 %v3020
      %v5966 = vpop.f32.mrb[0].mxu0
      %v5967 = vadd.f32 0.0, %v5966
      %v5968 = vpop.f32.mrb[0].mxu0
      %v5969 = vadd.f32 0.0, %v5968
      %5970 = vmatprep.mubr.f32.mxu0 0.0
      %5971 = vmatmul.mubr.f32.gmra.mrb[0].mxu0 %v3023
      %v5972 = vpop.f32.mrb[0].mxu0
      %v5973 = vadd.f32 0.0, %v5972
      %v5974 = vpop.f32.mrb[0].mxu0
      %v5975 = vadd.f32 0.0, %v5974
      %5976 = vmatprep.mubr.f32.mxu0 0.0
      %5977 = vmatmul.mubr.f32.gmra.mrb[0].mxu0 %v3026
      %v5978 = vpop.f32.mrb[0].mxu0
      %v5979 = vadd.f32 0.0, %v5978
      %v5980 = vpop.f32.mrb[0].mxu0
      %v5981 = vadd.f32 0.0, %v5980
      %5982 = vmatprep.mubr.f32.mxu0 0.0
      %5983 = vmatmul.mubr.f32.gmra.mrb[0].mxu0 %v3029
      %v5984 = vpop.f32.mrb[0].mxu0
      %v5985 = vadd.f32 0.0, %v5984
      %v5986 = vpop.f32.mrb[0].mxu0
      %v5987 = vadd.f32 0.0, %v5986
      %5988 = vmatprep.mubr.f32.mxu0 0.0
      %5989 = vmatmul.mubr.f32.gmra.mrb[0].mxu0 %v3032
      %v5990 = vpop.f32.mrb[0].mxu0
      %v5991 = vadd.f32 0.0, %v5990
      %v5992 = vpop.f32.mrb[0].mxu0
      %v5993 = vadd.f32 0.0, %v5992
      %5994 = vmatprep.mubr.f32.mxu0 0.0
      %5995 = vmatmul.mubr.f32.gmra.mrb[0].mxu0 %v3035
      %v5996 = vpop.f32.mrb[0].mxu0
      %v5997 = vadd.f32 0.0, %v5996
      %v5998 = vpop.f32.mrb[0].mxu0
      %v5999 = vadd.f32 0.0, %v5998
      %6000 = vmatprep.mubr.f32.mxu0 0.0
      %6001 = vmatmul.mubr.f32.gmra.mrb[0].mxu0 %v3038
      %v6002 = vpop.f32.mrb[0].mxu0
      %v6003 = vadd.f32 0.0, %v6002
      %v6004 = vpop.f32.mrb[0].mxu0
      %v6005 = vadd.f32 0.0, %v6004
      %6006 = vmatprep.mubr.f32.mxu0 0.0
      %6007 = vmatmul.mubr.f32.gmra.mrb[0].mxu0 %v3041
      %v6008 = vpop.f32.mrb[0].mxu0
      %v6009 = vadd.f32 0.0, %v6008
      %v6010 = vpop.f32.mrb[0].mxu0
      %v6011 = vadd.f32 0.0, %v6010
      %6012 = vmatprep.mubr.f32.mxu0 0.0
      %6013 = vmatmul.mubr.f32.gmra.mrb[0].mxu0 %v3044
      %v6014 = vpop.f32.mrb[0].mxu0
      %v6015 = vadd.f32 0.0, %v6014
      %v6016 = vpop.f32.mrb[0].mxu0
      %v6017 = vadd.f32 0.0, %v6016
      %6018 = vmatprep.mubr.f32.mxu0 0.0
      %6019 = vmatmul.mubr.f32.gmra.mrb[0].mxu0 %v3047
      %v6020 = vpop.f32.mrb[0].mxu0
      %v6021 = vadd.f32 0.0, %v6020
      %v6022 = vpop.f32.mrb[0].mxu0
      %v6023 = vadd.f32 0.0, %v6022
      %6024 = vmatprep.mubr.f32.mxu0 0.0
      %6025 = vmatmul.mubr.f32.gmra.mrb[0].mxu0 %v3050
      %v6026 = vpop.f32.mrb[0].mxu0
      %v6027 = vadd.f32 0.0, %v6026
      %v6028 = vpop.f32.mrb[0].mxu0
      %v6029 = vadd.f32 0.0, %v6028
      %6030 = vmatprep.mubr.f32.mxu0 0.0
      %6031 = vmatmul.mubr.f32.gmra.mrb[0].mxu0 %v3053
      %v6032 = vpop.f32.mrb[0].mxu0
      %v6033 = vadd.f32 0.0, %v6032
      %v6034 = vpop.f32.mrb[0].mxu0
      %v6035 = vadd.f32 0.0, %v6034
      %6036 = vmatprep.mubr.f32.mxu0 0.0
      %6037 = vmatmul.mubr.f32.gmra.mrb[0].mxu0 %v3056
      %v6038 = vpop.f32.mrb[0].mxu0
      %v6039 = vadd.f32 0.0, %v6038
      %v6040 = vpop.f32.mrb[0].mxu0
      %v6041 = vadd.f32 0.0, %v6040
      %6042 = vmatprep.mubr.f32.mxu0 0.0
      %6043 = vmatmul.mubr.f32.gmra.mrb[0].mxu0 %v3059
      %v6044 = vpop.f32.mrb[0].mxu0
      %v6045 = vadd.f32 0.0, %v6044
      %v6046 = vpop.f32.mrb[0].mxu0
      %v6047 = vadd.f32 0.0, %v6046
      %6048 = vmatprep.mubr.f32.mxu0 0.0
      %6049 = vmatmul.mubr.f32.gmra.mrb[0].mxu0 %v3062
      %v6050 = vpop.f32.mrb[0].mxu0
      %v6051 = vadd.f32 0.0, %v6050
      %v6052 = vpop.f32.mrb[0].mxu0
      %v6053 = vadd.f32 0.0, %v6052
      %6054 = vmatprep.mubr.f32.mxu0 0.0
      %6055 = vmatmul.mubr.f32.gmra.mrb[0].mxu0 %v3065
      %v6056 = vpop.f32.mrb[0].mxu0
      %v6057 = vadd.f32 0.0, %v6056
      %v6058 = vpop.f32.mrb[0].mxu0
      %v6059 = vadd.f32 0.0, %v6058
      %6060 = vmatprep.mubr.f32.mxu0 0.0
      %6061 = vmatmul.mubr.f32.gmra.mrb[0].mxu0 %v3068
      %v6062 = vpop.f32.mrb[0].mxu0
      %v6063 = vadd.f32 0.0, %v6062
      %v6064 = vpop.f32.mrb[0].mxu0
      %v6065 = vadd.f32 0.0, %v6064
      %6066 = vmatprep.mubr.f32.mxu0 0.0
      %6067 = vmatmul.mubr.f32.gmra.mrb[0].mxu0 %v3071
      %v6068 = vpop.f32.mrb[0].mxu0
      %v6069 = vadd.f32 0.0, %v6068
      %v6070 = vpop.f32.mrb[0].mxu0
      %v6071 = vadd.f32 0.0, %v6070
      %6072 = vmatprep.mubr.f32.mxu0 0.0
      %6073 = vmatmul.mubr.f32.gmra.mrb[0].mxu0 %v3074
      %v6074 = vpop.f32.mrb[0].mxu0
      %v6075 = vadd.f32 0.0, %v6074
      %v6076 = vpop.f32.mrb[0].mxu0
      %v6077 = vadd.f32 0.0, %v6076
      %6078 = vmatprep.mubr.f32.mxu0 0.0
      %6079 = vmatmul.mubr.f32.gmra.mrb[0].mxu0 %v3077
      %v6080 = vpop.f32.mrb[0].mxu0
      %v6081 = vadd.f32 0.0, %v6080
      %v6082 = vpop.f32.mrb[0].mxu0
      %v6083 = vadd.f32 0.0, %v6082
      %6084 = vmatprep.mubr.f32.mxu0 0.0
      %6085 = vmatmul.mubr.f32.gmra.mrb[0].mxu0 %v3080
      %v6086 = vpop.f32.mrb[0].mxu0
      %v6087 = vadd.f32 0.0, %v6086
      %v6088 = vpop.f32.mrb[0].mxu0
      %v6089 = vadd.f32 0.0, %v6088
      %6090 = vmatprep.mubr.f32.mxu0 0.0
      %6091 = vmatmul.mubr.f32.gmra.mrb[0].mxu0 %v3083
      %v6092 = vpop.f32.mrb[0].mxu0
      %v6093 = vadd.f32 0.0, %v6092
      %v6094 = vpop.f32.mrb[0].mxu0
      %v6095 = vadd.f32 0.0, %v6094
      %6096 = vmatprep.mubr.f32.mxu0 0.0
      %6097 = vmatmul.mubr.f32.gmra.mrb[0].mxu0 %v3086
      %v6098 = vpop.f32.mrb[0].mxu0
      %v6099 = vadd.f32 0.0, %v6098
      %v6100 = vpop.f32.mrb[0].mxu0
      %v6101 = vadd.f32 0.0, %v6100
      %6102 = vmatprep.mubr.f32.mxu0 0.0
      %6103 = vmatmul.mubr.f32.gmra.mrb[0].mxu0 %v3089
      %v6104 = vpop.f32.mrb[0].mxu0
      %v6105 = vadd.f32 0.0, %v6104
      %v6106 = vpop.f32.mrb[0].mxu0
      %v6107 = vadd.f32 0.0, %v6106
      %6108 = vmatprep.mubr.f32.mxu0 0.0
      %6109 = vmatmul.mubr.f32.gmra.mrb[0].mxu0 %v3092
      %v6110 = vpop.f32.mrb[0].mxu0
      %v6111 = vadd.f32 0.0, %v6110
      %v6112 = vpop.f32.mrb[0].mxu0
      %v6113 = vadd.f32 0.0, %v6112
      %6114 = vmatprep.mubr.f32.mxu0 0.0
      %6115 = vmatmul.mubr.f32.gmra.mrb[0].mxu0 %v3095
      %v6116 = vpop.f32.mrb[0].mxu0
      %v6117 = vadd.f32 0.0, %v6116
      %v6118 = vpop.f32.mrb[0].mxu0
      %v6119 = vadd.f32 0.0, %v6118
      %6120 = vmatprep.mubr.f32.mxu0 0.0
      %6121 = vmatmul.mubr.f32.gmra.mrb[0].mxu0 %v3098
      %v6122 = vpop.f32.mrb[0].mxu0
      %v6123 = vadd.f32 0.0, %v6122
      %v6124 = vpop.f32.mrb[0].mxu0
      %v6125 = vadd.f32 0.0, %v6124
      %6126 = vmatprep.mubr.f32.mxu0 0.0
      %6127 = vmatmul.mubr.f32.gmra.mrb[0].mxu0 %v3101
      %v6128 = vpop.f32.mrb[0].mxu0
      %v6129 = vadd.f32 0.0, %v6128
      %v6130 = vpop.f32.mrb[0].mxu0
      %v6131 = vadd.f32 0.0, %v6130
      %6132 = vmatprep.mubr.f32.mxu0 0.0
      %6133 = vmatmul.mubr.f32.gmra.mrb[0].mxu0 %v3104
      %v6134 = vpop.f32.mrb[0].mxu0
      %v6135 = vadd.f32 0.0, %v6134
      %v6136 = vpop.f32.mrb[0].mxu0
      %v6137 = vadd.f32 0.0, %v6136
      %6138 = vmatprep.mubr.f32.mxu0 0.0
      %6139 = vmatmul.mubr.f32.gmra.mrb[0].mxu0 %v3107
      %v6140 = vpop.f32.mrb[0].mxu0
      %v6141 = vadd.f32 0.0, %v6140
      %v6142 = vpop.f32.mrb[0].mxu0
      %v6143 = vadd.f32 0.0, %v6142
      %6144 = vmatprep.mubr.f32.mxu0 0.0
      %6145 = vmatmul.mubr.f32.gmra.mrb[0].mxu0 %v3110
      %v6146 = vpop.f32.mrb[0].mxu0
      %v6147 = vadd.f32 0.0, %v6146
      %v6148 = vpop.f32.mrb[0].mxu0
      %v6149 = vadd.f32 0.0, %v6148
      %6150 = vmatprep.mubr.f32.mxu0 0.0
      %6151 = vmatmul.mubr.f32.gmra.mrb[0].mxu0 %v3113
      %v6152 = vpop.f32.mrb[0].mxu0
      %v6153 = vadd.f32 0.0, %v6152
      %v6154 = vpop.f32.mrb[0].mxu0
      %v6155 = vadd.f32 0.0, %v6154
      %6156 = vmatprep.mubr.f32.mxu0 0.0
      %6157 = vmatmul.mubr.f32.gmra.mrb[0].mxu0 %v3116
      %v6158 = vpop.f32.mrb[0].mxu0
      %v6159 = vadd.f32 0.0, %v6158
      %v6160 = vpop.f32.mrb[0].mxu0
      %v6161 = vadd.f32 0.0, %v6160
      %6162 = vmatprep.mubr.f32.mxu0 0.0
      %6163 = vmatmul.mubr.f32.gmra.mrb[0].mxu0 %v3119
      %v6164 = vpop.f32.mrb[0].mxu0
      %v6165 = vadd.f32 0.0, %v6164
      %v6166 = vpop.f32.mrb[0].mxu0
      %v6167 = vadd.f32 0.0, %v6166
      %6168 = vmatprep.mubr.f32.mxu0 0.0
      %6169 = vmatmul.mubr.f32.gmra.mrb[0].mxu0 %v3122
      %v6170 = vpop.f32.mrb[0].mxu0
      %v6171 = vadd.f32 0.0, %v6170
      %v6172 = vpop.f32.mrb[0].mxu0
      %v6173 = vadd.f32 0.0, %v6172
      %6174 = vmatprep.mubr.f32.mxu0 0.0
      %6175 = vmatmul.mubr.f32.gmra.mrb[0].mxu0 %v3125
      %v6176 = vpop.f32.mrb[0].mxu0
      %v6177 = vadd.f32 0.0, %v6176
      %v6178 = vpop.f32.mrb[0].mxu0
      %v6179 = vadd.f32 0.0, %v6178
      %6180 = vmatprep.mubr.f32.mxu0 0.0
      %6181 = vmatmul.mubr.f32.gmra.mrb[0].mxu0 %v3128
      %v6182 = vpop.f32.mrb[0].mxu0
      %v6183 = vadd.f32 0.0, %v6182
      %v6184 = vpop.f32.mrb[0].mxu0
      %v6185 = vadd.f32 0.0, %v6184
      %6186 = vmatprep.mubr.f32.mxu0 0.0
      %6187 = vmatmul.mubr.f32.gmra.mrb[0].mxu0 %v3131
      %v6188 = vpop.f32.mrb[0].mxu0
      %v6189 = vadd.f32 0.0, %v6188
      %v6190 = vpop.f32.mrb[0].mxu0
      %v6191 = vadd.f32 0.0, %v6190
      %6192 = vmatprep.mubr.f32.mxu0 0.0
      %6193 = vmatmul.mubr.f32.gmra.mrb[0].mxu0 %v3134
      %v6194 = vpop.f32.mrb[0].mxu0
      %v6195 = vadd.f32 0.0, %v6194
      %v6196 = vpop.f32.mrb[0].mxu0
      %v6197 = vadd.f32 0.0, %v6196
      %6198 = vmatprep.mubr.f32.mxu0 0.0
      %6199 = vmatmul.mubr.f32.gmra.mrb[0].mxu0 %v3137
      %v6200 = vpop.f32.mrb[0].mxu0
      %v6201 = vadd.f32 0.0, %v6200
      %v6202 = vpop.f32.mrb[0].mxu0
      %v6203 = vadd.f32 0.0, %v6202
      %6204 = vmatprep.mubr.f32.mxu0 0.0
      %6205 = vmatmul.mubr.f32.gmra.mrb[0].mxu0 %v3140
      %v6206 = vpop.f32.mrb[0].mxu0
      %v6207 = vadd.f32 0.0, %v6206
      %v6208 = vpop.f32.mrb[0].mxu0
      %v6209 = vadd.f32 0.0, %v6208
      %6210 = vmatprep.mubr.f32.mxu0 0.0
      %6211 = vmatmul.mubr.f32.gmra.mrb[0].mxu0 %v3143
      %v6212 = vpop.f32.mrb[0].mxu0
      %v6213 = vadd.f32 0.0, %v6212
      %v6214 = vpop.f32.mrb[0].mxu0
      %v6215 = vadd.f32 0.0, %v6214
      %6216 = vmatprep.mubr.f32.mxu0 0.0
      %6217 = vmatmul.mubr.f32.gmra.mrb[0].mxu0 %v3146
      %v6218 = vpop.f32.mrb[0].mxu0
      %v6219 = vadd.f32 0.0, %v6218
      %v6220 = vpop.f32.mrb[0].mxu0
      %v6221 = vadd.f32 0.0, %v6220
      %6222 = vmatprep.mubr.f32.mxu0 0.0
      %6223 = vmatmul.mubr.f32.gmra.mrb[0].mxu0 %v3149
      %v6224 = vpop.f32.mrb[0].mxu0
      %v6225 = vadd.f32 0.0, %v6224
      %v6226 = vpop.f32.mrb[0].mxu0
      %v6227 = vadd.f32 0.0, %v6226
      %6228 = vmatprep.mubr.f32.mxu0 0.0
      %6229 = vmatmul.mubr.f32.gmra.mrb[0].mxu0 %v3152
      %v6230 = vpop.f32.mrb[0].mxu0
      %v6231 = vadd.f32 0.0, %v6230
      %v6232 = vpop.f32.mrb[0].mxu0
      %v6233 = vadd.f32 0.0, %v6232
      %6234 = vmatprep.mubr.f32.mxu0 0.0
      %6235 = vmatmul.mubr.f32.gmra.mrb[0].mxu0 %v3155
      %v6236 = vpop.f32.mrb[0].mxu0
      %v6237 = vadd.f32 0.0, %v6236
      %v6238 = vpop.f32.mrb[0].mxu0
      %v6239 = vadd.f32 0.0, %v6238
      %6240 = vmatprep.mubr.f32.mxu0 0.0
      %6241 = vmatmul.mubr.f32.gmra.mrb[0].mxu0 %v3158
      %v6242 = vpop.f32.mrb[0].mxu0
      %v6243 = vadd.f32 0.0, %v6242
      %v6244 = vpop.f32.mrb[0].mxu0
      %v6245 = vadd.f32 0.0, %v6244
      %6246 = vmatprep.mubr.f32.mxu0 0.0
      %6247 = vmatmul.mubr.f32.gmra.mrb[0].mxu0 %v3161
      %v6248 = vpop.f32.mrb[0].mxu0
      %v6249 = vadd.f32 0.0, %v6248
      %v6250 = vpop.f32.mrb[0].mxu0
      %v6251 = vadd.f32 0.0, %v6250
      %6252 = vmatprep.mubr.f32.mxu0 0.0
      %6253 = vmatmul.mubr.f32.gmra.mrb[0].mxu0 %v3164
      %v6254 = vpop.f32.mrb[0].mxu0
      %v6255 = vadd.f32 0.0, %v6254
      %v6256 = vpop.f32.mrb[0].mxu0
      %v6257 = vadd.f32 0.0, %v6256
      %6258 = vmatprep.mubr.f32.mxu0 0.0
      %6259 = vmatmul.mubr.f32.gmra.mrb[0].mxu0 %v3167
      %v6260 = vpop.f32.mrb[0].mxu0
      %v6261 = vadd.f32 0.0, %v6260
      %v6262 = vpop.f32.mrb[0].mxu0
      %v6263 = vadd.f32 0.0, %v6262
      %6264 = vmatprep.mubr.f32.mxu0 0.0
      %6265 = vmatmul.mubr.f32.gmra.mrb[0].mxu0 %v3170
      %v6266 = vpop.f32.mrb[0].mxu0
      %v6267 = vadd.f32 0.0, %v6266
      %v6268 = vpop.f32.mrb[0].mxu0
      %v6269 = vadd.f32 0.0, %v6268
      %6270 = vmatprep.mubr.f32.mxu0 0.0
      %6271 = vmatmul.mubr.f32.gmra.mrb[0].mxu0 %v3173
      %v6272 = vpop.f32.mrb[0].mxu0
      %v6273 = vadd.f32 0.0, %v6272
      %v6274 = vpop.f32.mrb[0].mxu0
      %v6275 = vadd.f32 0.0, %v6274
      %6276 = vmatprep.mubr.f32.mxu0 0.0
      %6277 = vmatmul.mubr.f32.gmra.mrb[0].mxu0 %v3176
      %v6278 = vpop.f32.mrb[0].mxu0
      %v6279 = vadd.f32 0.0, %v6278
      %v6280 = vpop.f32.mrb[0].mxu0
      %v6281 = vadd.f32 0.0, %v6280
      %6282 = vmatprep.mubr.f32.mxu0 0.0
      %6283 = vmatmul.mubr.f32.gmra.mrb[0].mxu0 %v3179
      %v6284 = vpop.f32.mrb[0].mxu0
      %v6285 = vadd.f32 0.0, %v6284
      %v6286 = vpop.f32.mrb[0].mxu0
      %v6287 = vadd.f32 0.0, %v6286
      %6288 = vmatprep.mubr.f32.mxu0 0.0
      %6289 = vmatmul.mubr.f32.gmra.mrb[0].mxu0 %v3182
      %v6290 = vpop.f32.mrb[0].mxu0
      %v6291 = vadd.f32 0.0, %v6290
      %v6292 = vpop.f32.mrb[0].mxu0
      %v6293 = vadd.f32 0.0, %v6292
      %6294 = vmatprep.mubr.f32.mxu0 0.0
      %6295 = vmatmul.mubr.f32.gmra.mrb[0].mxu0 %v3185
      %v6296 = vpop.f32.mrb[0].mxu0
      %v6297 = vadd.f32 0.0, %v6296
      %v6298 = vpop.f32.mrb[0].mxu0
      %v6299 = vadd.f32 0.0, %v6298
      %6300 = vmatprep.mubr.f32.mxu0 0.0
      %6301 = vmatmul.mubr.f32.gmra.mrb[0].mxu0 %v3188
      %v6302 = vpop.f32.mrb[0].mxu0
      %v6303 = vadd.f32 0.0, %v6302
      %v6304 = vpop.f32.mrb[0].mxu0
      %v6305 = vadd.f32 0.0, %v6304
      %6306 = vmatprep.mubr.f32.mxu0 0.0
      %6307 = vmatmul.mubr.f32.gmra.mrb[0].mxu0 %v3191
      %v6308 = vpop.f32.mrb[0].mxu0
      %v6309 = vadd.f32 0.0, %v6308
      %v6310 = vpop.f32.mrb[0].mxu0
      %v6311 = vadd.f32 0.0, %v6310
      %6312 = vmatprep.mubr.f32.mxu0 0.0
      %6313 = vmatmul.mubr.f32.gmra.mrb[0].mxu0 %v3194
      %v6314 = vpop.f32.mrb[0].mxu0
      %v6315 = vadd.f32 0.0, %v6314
      %v6316 = vpop.f32.mrb[0].mxu0
      %v6317 = vadd.f32 0.0, %v6316
      %6318 = vmatprep.mubr.f32.mxu0 0.0
      %6319 = vmatmul.mubr.f32.gmra.mrb[0].mxu0 %v3197
      %v6320 = vpop.f32.mrb[0].mxu0
      %v6321 = vadd.f32 0.0, %v6320
      %v6322 = vpop.f32.mrb[0].mxu0
      %v6323 = vadd.f32 0.0, %v6322
      %6324 = vmatprep.mubr.f32.mxu0 0.0
      %6325 = vmatmul.mubr.f32.gmra.mrb[0].mxu0 %v3200
      %v6326 = vpop.f32.mrb[0].mxu0
      %v6327 = vadd.f32 0.0, %v6326
      %v6328 = vpop.f32.mrb[0].mxu0
      %v6329 = vadd.f32 0.0, %v6328
      %6330 = vmatprep.mubr.f32.mxu0 0.0
      %6331 = vmatmul.mubr.f32.gmra.mrb[0].mxu0 %v3203
      %v6332 = vpop.f32.mrb[0].mxu0
      %v6333 = vadd.f32 0.0, %v6332
      %v6334 = vpop.f32.mrb[0].mxu0
      %v6335 = vadd.f32 0.0, %v6334
      %6336 = vmatprep.mubr.f32.mxu0 0.0
      %6337 = vmatmul.mubr.f32.gmra.mrb[0].mxu0 %v3206
      %v6338 = vpop.f32.mrb[0].mxu0
      %v6339 = vadd.f32 0.0, %v6338
      %v6340 = vpop.f32.mrb[0].mxu0
      %v6341 = vadd.f32 0.0, %v6340
      %6342 = vmatprep.mubr.f32.mxu0 0.0
      %6343 = vmatmul.mubr.f32.gmra.mrb[0].mxu0 %v3209
      %v6344 = vpop.f32.mrb[0].mxu0
      %v6345 = vadd.f32 0.0, %v6344
      %v6346 = vpop.f32.mrb[0].mxu0
      %v6347 = vadd.f32 0.0, %v6346
      %6348 = vmatprep.mubr.f32.mxu0 0.0
      %6349 = vmatmul.mubr.f32.gmra.mrb[0].mxu0 %v3212
      %v6350 = vpop.f32.mrb[0].mxu0
      %v6351 = vadd.f32 0.0, %v6350
      %v6352 = vpop.f32.mrb[0].mxu0
      %v6353 = vadd.f32 0.0, %v6352
      %6354 = vmatprep.mubr.f32.mxu0 0.0
      %6355 = vmatmul.mubr.f32.gmra.mrb[0].mxu0 %v3215
      %v6356 = vpop.f32.mrb[0].mxu0
      %v6357 = vadd.f32 0.0, %v6356
      %v6358 = vpop.f32.mrb[0].mxu0
      %v6359 = vadd.f32 0.0, %v6358
      %6360 = vmatprep.mubr.f32.mxu0 0.0
      %6361 = vmatmul.mubr.f32.gmra.mrb[0].mxu0 %v3218
      %v6362 = vpop.f32.mrb[0].mxu0
      %v6363 = vadd.f32 0.0, %v6362
      %v6364 = vpop.f32.mrb[0].mxu0
      %v6365 = vadd.f32 0.0, %v6364
      %6366 = vmatprep.mubr.f32.mxu0 0.0
      %6367 = vmatmul.mubr.f32.gmra.mrb[0].mxu0 %v3221
      %v6368 = vpop.f32.mrb[0].mxu0
      %v6369 = vadd.f32 0.0, %v6368
      %v6370 = vpop.f32.mrb[0].mxu0
      %v6371 = vadd.f32 0.0, %v6370
      %6372 = vmatprep.mubr.f32.mxu0 0.0
      %6373 = vmatmul.mubr.f32.gmra.mrb[0].mxu0 %v3224
      %v6374 = vpop.f32.mrb[0].mxu0
      %v6375 = vadd.f32 0.0, %v6374
      %v6376 = vpop.f32.mrb[0].mxu0
      %v6377 = vadd.f32 0.0, %v6376
      %6378 = vmatprep.mubr.f32.mxu0 0.0
      %6379 = vmatmul.mubr.f32.gmra.mrb[0].mxu0 %v3227
      %v6380 = vpop.f32.mrb[0].mxu0
      %v6381 = vadd.f32 0.0, %v6380
      %v6382 = vpop.f32.mrb[0].mxu0
      %v6383 = vadd.f32 0.0, %v6382
      %6384 = vmatprep.mubr.f32.mxu0 0.0
      %6385 = vmatmul.mubr.f32.gmra.mrb[0].mxu0 %v3230
      %v6386 = vpop.f32.mrb[0].mxu0
      %v6387 = vadd.f32 0.0, %v6386
      %v6388 = vpop.f32.mrb[0].mxu0
      %v6389 = vadd.f32 0.0, %v6388
      %6390 = vmatprep.mubr.f32.mxu0 0.0
      %6391 = vmatmul.mubr.f32.gmra.mrb[0].mxu0 %v3233
      %v6392 = vpop.f32.mrb[0].mxu0
      %v6393 = vadd.f32 0.0, %v6392
      %v6394 = vpop.f32.mrb[0].mxu0
      %v6395 = vadd.f32 0.0, %v6394
      %6396 = vmatprep.mubr.f32.mxu0 0.0
      %6397 = vmatmul.mubr.f32.gmra.mrb[0].mxu0 %v3236
      %v6398 = vpop.f32.mrb[0].mxu0
      %v6399 = vadd.f32 0.0, %v6398
      %v6400 = vpop.f32.mrb[0].mxu0
      %v6401 = vadd.f32 0.0, %v6400
      %6402 = vmatprep.mubr.f32.mxu0 0.0
      %6403 = vmatmul.mubr.f32.gmra.mrb[0].mxu0 %v3239
      %v6404 = vpop.f32.mrb[0].mxu0
      %v6405 = vadd.f32 0.0, %v6404
      %v6406 = vpop.f32.mrb[0].mxu0
      %v6407 = vadd.f32 0.0, %v6406
      %6408 = vmatprep.mubr.f32.mxu0 0.0
      %6409 = vmatmul.mubr.f32.gmra.mrb[0].mxu0 %v3242
      %v6410 = vpop.f32.mrb[0].mxu0
      %v6411 = vadd.f32 0.0, %v6410
      %v6412 = vpop.f32.mrb[0].mxu0
      %v6413 = vadd.f32 0.0, %v6412
      %6414 = vmatprep.mubr.f32.mxu0 0.0
      %6415 = vmatmul.mubr.f32.gmra.mrb[0].mxu0 %v3245
      %v6416 = vpop.f32.mrb[0].mxu0
      %v6417 = vadd.f32 0.0, %v6416
      %v6418 = vpop.f32.mrb[0].mxu0
      %v6419 = vadd.f32 0.0, %v6418
      %6420 = vmatprep.mubr.f32.mxu0 0.0
      %6421 = vmatmul.mubr.f32.gmra.mrb[0].mxu0 %v3248
      %v6422 = vpop.f32.mrb[0].mxu0
      %v6423 = vadd.f32 0.0, %v6422
      %v6424 = vpop.f32.mrb[0].mxu0
      %v6425 = vadd.f32 0.0, %v6424
      %6426 = vmatprep.mubr.f32.mxu0 0.0
      %6427 = vmatmul.mubr.f32.gmra.mrb[0].mxu0 %v3251
      %v6428 = vpop.f32.mrb[0].mxu0
      %v6429 = vadd.f32 0.0, %v6428
      %v6430 = vpop.f32.mrb[0].mxu0
      %v6431 = vadd.f32 0.0, %v6430
      %6432 = vmatprep.mubr.f32.mxu0 0.0
      %6433 = vmatmul.mubr.f32.gmra.mrb[0].mxu0 %v3254
      %v6434 = vpop.f32.mrb[0].mxu0
      %v6435 = vadd.f32 0.0, %v6434
      %v6436 = vpop.f32.mrb[0].mxu0
      %v6437 = vadd.f32 0.0, %v6436
      %6438 = vmatprep.mubr.f32.mxu0 0.0
      %6439 = vmatmul.mubr.f32.gmra.mrb[0].mxu0 %v3257
      %v6440 = vpop.f32.mrb[0].mxu0
      %v6441 = vadd.f32 0.0, %v6440
      %v6442 = vpop.f32.mrb[0].mxu0
      %v6443 = vadd.f32 0.0, %v6442
      %6444 = vmatprep.mubr.f32.mxu0 0.0
      %6445 = vmatmul.mubr.f32.gmra.mrb[0].mxu0 %v3260
      %v6446 = vpop.f32.mrb[0].mxu0
      %v6447 = vadd.f32 0.0, %v6446
      %v6448 = vpop.f32.mrb[0].mxu0
      %v6449 = vadd.f32 0.0, %v6448
      %6450 = vmatprep.mubr.f32.mxu0 0.0
      %6451 = vmatmul.mubr.f32.gmra.mrb[0].mxu0 %v3263
      %v6452 = vpop.f32.mrb[0].mxu0
      %v6453 = vadd.f32 0.0, %v6452
      %v6454 = vpop.f32.mrb[0].mxu0
      %v6455 = vadd.f32 0.0, %v6454
      %6456 = vmatprep.mubr.f32.mxu0 0.0
      %6457 = vmatmul.mubr.f32.gmra.mrb[0].mxu0 %v3266
      %v6458 = vpop.f32.mrb[0].mxu0
      %v6459 = vadd.f32 0.0, %v6458
      %v6460 = vpop.f32.mrb[0].mxu0
      %v6461 = vadd.f32 0.0, %v6460
      %6462 = vmatprep.mubr.f32.mxu0 0.0
      %6463 = vmatmul.mubr.f32.gmra.mrb[0].mxu0 %v3269
      %v6464 = vpop.f32.mrb[0].mxu0
      %v6465 = vadd.f32 0.0, %v6464
      %v6466 = vpop.f32.mrb[0].mxu0
      %v6467 = vadd.f32 0.0, %v6466
      %6468 = vmatprep.mubr.f32.mxu0 0.0
      %6469 = vmatmul.mubr.f32.gmra.mrb[0].mxu0 %v3272
      %v6470 = vpop.f32.mrb[0].mxu0
      %v6471 = vadd.f32 0.0, %v6470
      %v6472 = vpop.f32.mrb[0].mxu0
      %v6473 = vadd.f32 0.0, %v6472
      %6474 = vmatprep.mubr.f32.mxu0 0.0
      %6475 = vmatmul.mubr.f32.gmra.mrb[0].mxu0 %v3275
      %v6476 = vpop.f32.mrb[0].mxu0
      %v6477 = vadd.f32 0.0, %v6476
      %v6478 = vpop.f32.mrb[0].mxu0
      %v6479 = vadd.f32 0.0, %v6478
      %6480 = vmatprep.mubr.f32.mxu0 0.0
      %6481 = vmatmul.mubr.f32.gmra.mrb[0].mxu0 %v3278
      %v6482 = vpop.f32.mrb[0].mxu0
      %v6483 = vadd.f32 0.0, %v6482
      %v6484 = vpop.f32.mrb[0].mxu0
      %v6485 = vadd.f32 0.0, %v6484
      %6486 = vmatprep.mubr.f32.mxu0 0.0
      %6487 = vmatmul.mubr.f32.gmra.mrb[0].mxu0 %v3281
      %v6488 = vpop.f32.mrb[0].mxu0
      %v6489 = vadd.f32 0.0, %v6488
      %v6490 = vpop.f32.mrb[0].mxu0
      %v6491 = vadd.f32 0.0, %v6490
      %6492 = vmatprep.mubr.f32.mxu0 0.0
      %6493 = vmatmul.mubr.f32.gmra.mrb[0].mxu0 %v3284
      %v6494 = vpop.f32.mrb[0].mxu0
      %v6495 = vadd.f32 0.0, %v6494
      %v6496 = vpop.f32.mrb[0].mxu0
      %v6497 = vadd.f32 0.0, %v6496
      %6498 = vmatprep.mubr.f32.mxu0 0.0
      %6499 = vmatmul.mubr.f32.gmra.mrb[0].mxu0 %v3287
      %v6500 = vpop.f32.mrb[0].mxu0
      %v6501 = vadd.f32 0.0, %v6500
      %v6502 = vpop.f32.mrb[0].mxu0
      %v6503 = vadd.f32 0.0, %v6502
      %6504 = vmatprep.mubr.f32.mxu0 0.0
      %6505 = vmatmul.mubr.f32.gmra.mrb[0].mxu0 %v3290
      %v6506 = vpop.f32.mrb[0].mxu0
      %v6507 = vadd.f32 0.0, %v6506
      %v6508 = vpop.f32.mrb[0].mxu0
      %v6509 = vadd.f32 0.0, %v6508
      %6510 = vmatprep.mubr.f32.mxu0 0.0
      %6511 = vmatmul.mubr.f32.gmra.mrb[0].mxu0 %v3293
      %v6512 = vpop.f32.mrb[0].mxu0
      %v6513 = vadd.f32 0.0, %v6512
      %v6514 = vpop.f32.mrb[0].mxu0
      %v6515 = vadd.f32 0.0, %v6514
      %6516 = vmatprep.mubr.f32.mxu0 0.0
      %6517 = vmatmul.mubr.f32.gmra.mrb[0].mxu0 %v3296
      %v6518 = vpop.f32.mrb[0].mxu0
      %v6519 = vadd.f32 0.0, %v6518
      %v6520 = vpop.f32.mrb[0].mxu0
      %v6521 = vadd.f32 0.0, %v6520
      %6522 = vmatprep.mubr.f32.mxu0 0.0
      %6523 = vmatmul.mubr.f32.gmra.mrb[0].mxu0 %v3299
      %v6524 = vpop.f32.mrb[0].mxu0
      %v6525 = vadd.f32 0.0, %v6524
      %v6526 = vpop.f32.mrb[0].mxu0
      %v6527 = vadd.f32 0.0, %v6526
      %6528 = vmatprep.mubr.f32.mxu0 0.0
      %6529 = vmatmul.mubr.f32.gmra.mrb[0].mxu0 %v3302
      %v6530 = vpop.f32.mrb[0].mxu0
      %v6531 = vadd.f32 0.0, %v6530
      %v6532 = vpop.f32.mrb[0].mxu0
      %v6533 = vadd.f32 0.0, %v6532
      %6534 = vmatprep.mubr.f32.mxu0 0.0
      %6535 = vmatmul.mubr.f32.gmra.mrb[0].mxu0 %v3305
      %v6536 = vpop.f32.mrb[0].mxu0
      %v6537 = vadd.f32 0.0, %v6536
      %v6538 = vpop.f32.mrb[0].mxu0
      %v6539 = vadd.f32 0.0, %v6538
      %6540 = vdwg.mxu0
      %6541 = vst [vmem:[#allocation5] sm:$0xff] %v5775
      %6542 = vst [vmem:[#allocation5 + $0x8] sm:$0xff] %v5777
      %6543 = vst [vmem:[#allocation5 + $0x10] sm:$0xff] %v5781
      %6544 = vst [vmem:[#allocation5 + $0x18] sm:$0xff] %v5783
      %6545 = vst [vmem:[#allocation5 + $0x20] sm:$0xff] %v5787
      %6546 = vst [vmem:[#allocation5 + $0x28] sm:$0xff] %v5789
      %6547 = vst [vmem:[#allocation5 + $0x30] sm:$0xff] %v5793
      %6548 = vst [vmem:[#allocation5 + $0x38] sm:$0xff] %v5795
      %6549 = vst [vmem:[#allocation5 + $0x40] sm:$0xff] %v5799
      %6550 = vst [vmem:[#allocation5 + $0x48] sm:$0xff] %v5801
      %6551 = vst [vmem:[#allocation5 + $0x50] sm:$0xff] %v5805
      %6552 = vst [vmem:[#allocation5 + $0x58] sm:$0xff] %v5807
      %6553 = vst [vmem:[#allocation5 + $0x60] sm:$0xff] %v5811
      %6554 = vst [vmem:[#allocation5 + $0x68] sm:$0xff] %v5813
      %6555 = vst [vmem:[#allocation5 + $0x70] sm:$0xff] %v5817
      %6556 = vst [vmem:[#allocation5 + $0x78] sm:$0xff] %v5819
      %6557 = vst [vmem:[#allocation5 + $0x80] sm:$0xff] %v5823
      %6558 = vst [vmem:[#allocation5 + $0x88] sm:$0xff] %v5825
      %6559 = vst [vmem:[#allocation5 + $0x90] sm:$0xff] %v5829
      %6560 = vst [vmem:[#allocation5 + $0x98] sm:$0xff] %v5831
      %6561 = vst [vmem:[#allocation5 + $0xa0] sm:$0xff] %v5835
      %6562 = vst [vmem:[#allocation5 + $0xa8] sm:$0xff] %v5837
      %6563 = vst [vmem:[#allocation5 + $0xb0] sm:$0xff] %v5841
      %6564 = vst [vmem:[#allocation5 + $0xb8] sm:$0xff] %v5843
      %6565 = vst [vmem:[#allocation5 + $0xc0] sm:$0xff] %v5847
      %6566 = vst [vmem:[#allocation5 + $0xc8] sm:$0xff] %v5849
      %6567 = vst [vmem:[#allocation5 + $0xd0] sm:$0xff] %v5853
      %6568 = vst [vmem:[#allocation5 + $0xd8] sm:$0xff] %v5855
      %6569 = vst [vmem:[#allocation5 + $0xe0] sm:$0xff] %v5859
      %6570 = vst [vmem:[#allocation5 + $0xe8] sm:$0xff] %v5861
      %6571 = vst [vmem:[#allocation5 + $0xf0] sm:$0xff] %v5865
      %6572 = vst [vmem:[#allocation5 + $0xf8] sm:$0xff] %v5867
      %6573 = vst [vmem:[#allocation5 + $0x100] sm:$0xff] %v5871
      %6574 = vst [vmem:[#allocation5 + $0x108] sm:$0xff] %v5873
      %6575 = vst [vmem:[#allocation5 + $0x110] sm:$0xff] %v5877
      %6576 = vst [vmem:[#allocation5 + $0x118] sm:$0xff] %v5879
      %6577 = vst [vmem:[#allocation5 + $0x120] sm:$0xff] %v5883
      %6578 = vst [vmem:[#allocation5 + $0x128] sm:$0xff] %v5885
      %6579 = vst [vmem:[#allocation5 + $0x130] sm:$0xff] %v5889
      %6580 = vst [vmem:[#allocation5 + $0x138] sm:$0xff] %v5891
      %6581 = vst [vmem:[#allocation5 + $0x140] sm:$0xff] %v5895
      %6582 = vst [vmem:[#allocation5 + $0x148] sm:$0xff] %v5897
      %6583 = vst [vmem:[#allocation5 + $0x150] sm:$0xff] %v5901
      %6584 = vst [vmem:[#allocation5 + $0x158] sm:$0xff] %v5903
      %6585 = vst [vmem:[#allocation5 + $0x160] sm:$0xff] %v5907
      %6586 = vst [vmem:[#allocation5 + $0x168] sm:$0xff] %v5909
      %6587 = vst [vmem:[#allocation5 + $0x170] sm:$0xff] %v5913
      %6588 = vst [vmem:[#allocation5 + $0x178] sm:$0xff] %v5915
      %6589 = vst [vmem:[#allocation5 + $0x180] sm:$0xff] %v5919
      %6590 = vst [vmem:[#allocation5 + $0x188] sm:$0xff] %v5921
      %6591 = vst [vmem:[#allocation5 + $0x190] sm:$0xff] %v5925
      %6592 = vst [vmem:[#allocation5 + $0x198] sm:$0xff] %v5927
      %6593 = vst [vmem:[#allocation5 + $0x1a0] sm:$0xff] %v5931
      %6594 = vst [vmem:[#allocation5 + $0x1a8] sm:$0xff] %v5933
      %6595 = vst [vmem:[#allocation5 + $0x1b0] sm:$0xff] %v5937
      %6596 = vst [vmem:[#allocation5 + $0x1b8] sm:$0xff] %v5939
      %6597 = vst [vmem:[#allocation5 + $0x1c0] sm:$0xff] %v5943
      %6598 = vst [vmem:[#allocation5 + $0x1c8] sm:$0xff] %v5945
      %6599 = vst [vmem:[#allocation5 + $0x1d0] sm:$0xff] %v5949
      %6600 = vst [vmem:[#allocation5 + $0x1d8] sm:$0xff] %v5951
      %6601 = vst [vmem:[#allocation5 + $0x1e0] sm:$0xff] %v5955
      %6602 = vst [vmem:[#allocation5 + $0x1e8] sm:$0xff] %v5957
      %6603 = vst [vmem:[#allocation5 + $0x1f0] sm:$0xff] %v5961
      %6604 = vst [vmem:[#allocation5 + $0x1f8] sm:$0xff] %v5963
      %6605 = vst [vmem:[#allocation5 + $0x200] sm:$0xff] %v5967
      %6606 = vst [vmem:[#allocation5 + $0x208] sm:$0xff] %v5969
      %6607 = vst [vmem:[#allocation5 + $0x210] sm:$0xff] %v5973
      %6608 = vst [vmem:[#allocation5 + $0x218] sm:$0xff] %v5975
      %6609 = vst [vmem:[#allocation5 + $0x220] sm:$0xff] %v5979
      %6610 = vst [vmem:[#allocation5 + $0x228] sm:$0xff] %v5981
      %6611 = vst [vmem:[#allocation5 + $0x230] sm:$0xff] %v5985
      %6612 = vst [vmem:[#allocation5 + $0x238] sm:$0xff] %v5987
      %6613 = vst [vmem:[#allocation5 + $0x240] sm:$0xff] %v5991
      %6614 = vst [vmem:[#allocation5 + $0x248] sm:$0xff] %v5993
      %6615 = vst [vmem:[#allocation5 + $0x250] sm:$0xff] %v5997
      %6616 = vst [vmem:[#allocation5 + $0x258] sm:$0xff] %v5999
      %6617 = vst [vmem:[#allocation5 + $0x260] sm:$0xff] %v6003
      %6618 = vst [vmem:[#allocation5 + $0x268] sm:$0xff] %v6005
      %6619 = vst [vmem:[#allocation5 + $0x270] sm:$0xff] %v6009
      %6620 = vst [vmem:[#allocation5 + $0x278] sm:$0xff] %v6011
      %6621 = vst [vmem:[#allocation5 + $0x280] sm:$0xff] %v6015
      %6622 = vst [vmem:[#allocation5 + $0x288] sm:$0xff] %v6017
      %6623 = vst [vmem:[#allocation5 + $0x290] sm:$0xff] %v6021
      %6624 = vst [vmem:[#allocation5 + $0x298] sm:$0xff] %v6023
      %6625 = vst [vmem:[#allocation5 + $0x2a0] sm:$0xff] %v6027
      %6626 = vst [vmem:[#allocation5 + $0x2a8] sm:$0xff] %v6029
      %6627 = vst [vmem:[#allocation5 + $0x2b0] sm:$0xff] %v6033
      %6628 = vst [vmem:[#allocation5 + $0x2b8] sm:$0xff] %v6035
      %6629 = vst [vmem:[#allocation5 + $0x2c0] sm:$0xff] %v6039
      %6630 = vst [vmem:[#allocation5 + $0x2c8] sm:$0xff] %v6041
      %6631 = vst [vmem:[#allocation5 + $0x2d0] sm:$0xff] %v6045
      %6632 = vst [vmem:[#allocation5 + $0x2d8] sm:$0xff] %v6047
      %6633 = vst [vmem:[#allocation5 + $0x2e0] sm:$0xff] %v6051
      %6634 = vst [vmem:[#allocation5 + $0x2e8] sm:$0xff] %v6053
      %6635 = vst [vmem:[#allocation5 + $0x2f0] sm:$0xff] %v6057
      %6636 = vst [vmem:[#allocation5 + $0x2f8] sm:$0xff] %v6059
      %6637 = vst [vmem:[#allocation5 + $0x300] sm:$0xff] %v6063
      %6638 = vst [vmem:[#allocation5 + $0x308] sm:$0xff] %v6065
      %6639 = vst [vmem:[#allocation5 + $0x310] sm:$0xff] %v6069
      %6640 = vst [vmem:[#allocation5 + $0x318] sm:$0xff] %v6071
      %6641 = vst [vmem:[#allocation5 + $0x320] sm:$0xff] %v6075
      %6642 = vst [vmem:[#allocation5 + $0x328] sm:$0xff] %v6077
      %6643 = vst [vmem:[#allocation5 + $0x330] sm:$0xff] %v6081
      %6644 = vst [vmem:[#allocation5 + $0x338] sm:$0xff] %v6083
      %6645 = vst [vmem:[#allocation5 + $0x340] sm:$0xff] %v6087
      %6646 = vst [vmem:[#allocation5 + $0x348] sm:$0xff] %v6089
      %6647 = vst [vmem:[#allocation5 + $0x350] sm:$0xff] %v6093
      %6648 = vst [vmem:[#allocation5 + $0x358] sm:$0xff] %v6095
      %6649 = vst [vmem:[#allocation5 + $0x360] sm:$0xff] %v6099
      %6650 = vst [vmem:[#allocation5 + $0x368] sm:$0xff] %v6101
      %6651 = vst [vmem:[#allocation5 + $0x370] sm:$0xff] %v6105
      %6652 = vst [vmem:[#allocation5 + $0x378] sm:$0xff] %v6107
      %6653 = vst [vmem:[#allocation5 + $0x380] sm:$0xff] %v6111
      %6654 = vst [vmem:[#allocation5 + $0x388] sm:$0xff] %v6113
      %6655 = vst [vmem:[#allocation5 + $0x390] sm:$0xff] %v6117
      %6656 = vst [vmem:[#allocation5 + $0x398] sm:$0xff] %v6119
      %6657 = vst [vmem:[#allocation5 + $0x3a0] sm:$0xff] %v6123
      %6658 = vst [vmem:[#allocation5 + $0x3a8] sm:$0xff] %v6125
      %6659 = vst [vmem:[#allocation5 + $0x3b0] sm:$0xff] %v6129
      %6660 = vst [vmem:[#allocation5 + $0x3b8] sm:$0xff] %v6131
      %6661 = vst [vmem:[#allocation5 + $0x3c0] sm:$0xff] %v6135
      %6662 = vst [vmem:[#allocation5 + $0x3c8] sm:$0xff] %v6137
      %6663 = vst [vmem:[#allocation5 + $0x3d0] sm:$0xff] %v6141
      %6664 = vst [vmem:[#allocation5 + $0x3d8] sm:$0xff] %v6143
      %6665 = vst [vmem:[#allocation5 + $0x3e0] sm:$0xff] %v6147
      %6666 = vst [vmem:[#allocation5 + $0x3e8] sm:$0xff] %v6149
      %6667 = vst [vmem:[#allocation5 + $0x3f0] sm:$0xff] %v6153
      %6668 = vst [vmem:[#allocation5 + $0x3f8] sm:$0xff] %v6155
      %6669 = vst [vmem:[#allocation5 + $0x400] sm:$0xff] %v6159
      %6670 = vst [vmem:[#allocation5 + $0x408] sm:$0xff] %v6161
      %6671 = vst [vmem:[#allocation5 + $0x410] sm:$0xff] %v6165
      %6672 = vst [vmem:[#allocation5 + $0x418] sm:$0xff] %v6167
      %6673 = vst [vmem:[#allocation5 + $0x420] sm:$0xff] %v6171
      %6674 = vst [vmem:[#allocation5 + $0x428] sm:$0xff] %v6173
      %6675 = vst [vmem:[#allocation5 + $0x430] sm:$0xff] %v6177
      %6676 = vst [vmem:[#allocation5 + $0x438] sm:$0xff] %v6179
      %6677 = vst [vmem:[#allocation5 + $0x440] sm:$0xff] %v6183
      %6678 = vst [vmem:[#allocation5 + $0x448] sm:$0xff] %v6185
      %6679 = vst [vmem:[#allocation5 + $0x450] sm:$0xff] %v6189
      %6680 = vst [vmem:[#allocation5 + $0x458] sm:$0xff] %v6191
      %6681 = vst [vmem:[#allocation5 + $0x460] sm:$0xff] %v6195
      %6682 = vst [vmem:[#allocation5 + $0x468] sm:$0xff] %v6197
      %6683 = vst [vmem:[#allocation5 + $0x470] sm:$0xff] %v6201
      %6684 = vst [vmem:[#allocation5 + $0x478] sm:$0xff] %v6203
      %6685 = vst [vmem:[#allocation5 + $0x480] sm:$0xff] %v6207
      %6686 = vst [vmem:[#allocation5 + $0x488] sm:$0xff] %v6209
      %6687 = vst [vmem:[#allocation5 + $0x490] sm:$0xff] %v6213
      %6688 = vst [vmem:[#allocation5 + $0x498] sm:$0xff] %v6215
      %6689 = vst [vmem:[#allocation5 + $0x4a0] sm:$0xff] %v6219
      %6690 = vst [vmem:[#allocation5 + $0x4a8] sm:$0xff] %v6221
      %6691 = vst [vmem:[#allocation5 + $0x4b0] sm:$0xff] %v6225
      %6692 = vst [vmem:[#allocation5 + $0x4b8] sm:$0xff] %v6227
      %6693 = vst [vmem:[#allocation5 + $0x4c0] sm:$0xff] %v6231
      %6694 = vst [vmem:[#allocation5 + $0x4c8] sm:$0xff] %v6233
      %6695 = vst [vmem:[#allocation5 + $0x4d0] sm:$0xff] %v6237
      %6696 = vst [vmem:[#allocation5 + $0x4d8] sm:$0xff] %v6239
      %6697 = vst [vmem:[#allocation5 + $0x4e0] sm:$0xff] %v6243
      %6698 = vst [vmem:[#allocation5 + $0x4e8] sm:$0xff] %v6245
      %6699 = vst [vmem:[#allocation5 + $0x4f0] sm:$0xff] %v6249
      %6700 = vst [vmem:[#allocation5 + $0x4f8] sm:$0xff] %v6251
      %6701 = vst [vmem:[#allocation5 + $0x500] sm:$0xff] %v6255
      %6702 = vst [vmem:[#allocation5 + $0x508] sm:$0xff] %v6257
      %6703 = vst [vmem:[#allocation5 + $0x510] sm:$0xff] %v6261
      %6704 = vst [vmem:[#allocation5 + $0x518] sm:$0xff] %v6263
      %6705 = vst [vmem:[#allocation5 + $0x520] sm:$0xff] %v6267
      %6706 = vst [vmem:[#allocation5 + $0x528] sm:$0xff] %v6269
      %6707 = vst [vmem:[#allocation5 + $0x530] sm:$0xff] %v6273
      %6708 = vst [vmem:[#allocation5 + $0x538] sm:$0xff] %v6275
      %6709 = vst [vmem:[#allocation5 + $0x540] sm:$0xff] %v6279
      %6710 = vst [vmem:[#allocation5 + $0x548] sm:$0xff] %v6281
      %6711 = vst [vmem:[#allocation5 + $0x550] sm:$0xff] %v6285
      %6712 = vst [vmem:[#allocation5 + $0x558] sm:$0xff] %v6287
      %6713 = vst [vmem:[#allocation5 + $0x560] sm:$0xff] %v6291
      %6714 = vst [vmem:[#allocation5 + $0x568] sm:$0xff] %v6293
      %6715 = vst [vmem:[#allocation5 + $0x570] sm:$0xff] %v6297
      %6716 = vst [vmem:[#allocation5 + $0x578] sm:$0xff] %v6299
      %6717 = vst [vmem:[#allocation5 + $0x580] sm:$0xff] %v6303
      %6718 = vst [vmem:[#allocation5 + $0x588] sm:$0xff] %v6305
      %6719 = vst [vmem:[#allocation5 + $0x590] sm:$0xff] %v6309
      %6720 = vst [vmem:[#allocation5 + $0x598] sm:$0xff] %v6311
      %6721 = vst [vmem:[#allocation5 + $0x5a0] sm:$0xff] %v6315
      %6722 = vst [vmem:[#allocation5 + $0x5a8] sm:$0xff] %v6317
      %6723 = vst [vmem:[#allocation5 + $0x5b0] sm:$0xff] %v6321
      %6724 = vst [vmem:[#allocation5 + $0x5b8] sm:$0xff] %v6323
      %6725 = vst [vmem:[#allocation5 + $0x5c0] sm:$0xff] %v6327
      %6726 = vst [vmem:[#allocation5 + $0x5c8] sm:$0xff] %v6329
      %6727 = vst [vmem:[#allocation5 + $0x5d0] sm:$0xff] %v6333
      %6728 = vst [vmem:[#allocation5 + $0x5d8] sm:$0xff] %v6335
      %6729 = vst [vmem:[#allocation5 + $0x5e0] sm:$0xff] %v6339
      %6730 = vst [vmem:[#allocation5 + $0x5e8] sm:$0xff] %v6341
      %6731 = vst [vmem:[#allocation5 + $0x5f0] sm:$0xff] %v6345
      %6732 = vst [vmem:[#allocation5 + $0x5f8] sm:$0xff] %v6347
      %6733 = vst [vmem:[#allocation5 + $0x600] sm:$0xff] %v6351
      %6734 = vst [vmem:[#allocation5 + $0x608] sm:$0xff] %v6353
      %6735 = vst [vmem:[#allocation5 + $0x610] sm:$0xff] %v6357
      %6736 = vst [vmem:[#allocation5 + $0x618] sm:$0xff] %v6359
      %6737 = vst [vmem:[#allocation5 + $0x620] sm:$0xff] %v6363
      %6738 = vst [vmem:[#allocation5 + $0x628] sm:$0xff] %v6365
      %6739 = vst [vmem:[#allocation5 + $0x630] sm:$0xff] %v6369
      %6740 = vst [vmem:[#allocation5 + $0x638] sm:$0xff] %v6371
      %6741 = vst [vmem:[#allocation5 + $0x640] sm:$0xff] %v6375
      %6742 = vst [vmem:[#allocation5 + $0x648] sm:$0xff] %v6377
      %6743 = vst [vmem:[#allocation5 + $0x650] sm:$0xff] %v6381
      %6744 = vst [vmem:[#allocation5 + $0x658] sm:$0xff] %v6383
      %6745 = vst [vmem:[#allocation5 + $0x660] sm:$0xff] %v6387
      %6746 = vst [vmem:[#allocation5 + $0x668] sm:$0xff] %v6389
      %6747 = vst [vmem:[#allocation5 + $0x670] sm:$0xff] %v6393
      %6748 = vst [vmem:[#allocation5 + $0x678] sm:$0xff] %v6395
      %6749 = vst [vmem:[#allocation5 + $0x680] sm:$0xff] %v6399
      %6750 = vst [vmem:[#allocation5 + $0x688] sm:$0xff] %v6401
      %6751 = vst [vmem:[#allocation5 + $0x690] sm:$0xff] %v6405
      %6752 = vst [vmem:[#allocation5 + $0x698] sm:$0xff] %v6407
      %6753 = vst [vmem:[#allocation5 + $0x6a0] sm:$0xff] %v6411
      %6754 = vst [vmem:[#allocation5 + $0x6a8] sm:$0xff] %v6413
      %6755 = vst [vmem:[#allocation5 + $0x6b0] sm:$0xff] %v6417
      %6756 = vst [vmem:[#allocation5 + $0x6b8] sm:$0xff] %v6419
      %6757 = vst [vmem:[#allocation5 + $0x6c0] sm:$0xff] %v6423
      %6758 = vst [vmem:[#allocation5 + $0x6c8] sm:$0xff] %v6425
      %6759 = vst [vmem:[#allocation5 + $0x6d0] sm:$0xff] %v6429
      %6760 = vst [vmem:[#allocation5 + $0x6d8] sm:$0xff] %v6431
      %6761 = vst [vmem:[#allocation5 + $0x6e0] sm:$0xff] %v6435
      %6762 = vst [vmem:[#allocation5 + $0x6e8] sm:$0xff] %v6437
      %6763 = vst [vmem:[#allocation5 + $0x6f0] sm:$0xff] %v6441
      %6764 = vst [vmem:[#allocation5 + $0x6f8] sm:$0xff] %v6443
      %6765 = vst [vmem:[#allocation5 + $0x700] sm:$0xff] %v6447
      %6766 = vst [vmem:[#allocation5 + $0x708] sm:$0xff] %v6449
      %6767 = vst [vmem:[#allocation5 + $0x710] sm:$0xff] %v6453
      %6768 = vst [vmem:[#allocation5 + $0x718] sm:$0xff] %v6455
      %6769 = vst [vmem:[#allocation5 + $0x720] sm:$0xff] %v6459
      %6770 = vst [vmem:[#allocation5 + $0x728] sm:$0xff] %v6461
      %6771 = vst [vmem:[#allocation5 + $0x730] sm:$0xff] %v6465
      %6772 = vst [vmem:[#allocation5 + $0x738] sm:$0xff] %v6467
      %6773 = vst [vmem:[#allocation5 + $0x740] sm:$0xff] %v6471
      %6774 = vst [vmem:[#allocation5 + $0x748] sm:$0xff] %v6473
      %6775 = vst [vmem:[#allocation5 + $0x750] sm:$0xff] %v6477
      %6776 = vst [vmem:[#allocation5 + $0x758] sm:$0xff] %v6479
      %6777 = vst [vmem:[#allocation5 + $0x760] sm:$0xff] %v6483
      %6778 = vst [vmem:[#allocation5 + $0x768] sm:$0xff] %v6485
      %6779 = vst [vmem:[#allocation5 + $0x770] sm:$0xff] %v6489
      %6780 = vst [vmem:[#allocation5 + $0x778] sm:$0xff] %v6491
      %6781 = vst [vmem:[#allocation5 + $0x780] sm:$0xff] %v6495
      %6782 = vst [vmem:[#allocation5 + $0x788] sm:$0xff] %v6497
      %6783 = vst [vmem:[#allocation5 + $0x790] sm:$0xff] %v6501
      %6784 = vst [vmem:[#allocation5 + $0x798] sm:$0xff] %v6503
      %6785 = vst [vmem:[#allocation5 + $0x7a0] sm:$0xff] %v6507
      %6786 = vst [vmem:[#allocation5 + $0x7a8] sm:$0xff] %v6509
      %6787 = vst [vmem:[#allocation5 + $0x7b0] sm:$0xff] %v6513
      %6788 = vst [vmem:[#allocation5 + $0x7b8] sm:$0xff] %v6515
      %6789 = vst [vmem:[#allocation5 + $0x7c0] sm:$0xff] %v6519
      %6790 = vst [vmem:[#allocation5 + $0x7c8] sm:$0xff] %v6521
      %6791 = vst [vmem:[#allocation5 + $0x7d0] sm:$0xff] %v6525
      %6792 = vst [vmem:[#allocation5 + $0x7d8] sm:$0xff] %v6527
      %6793 = vst [vmem:[#allocation5 + $0x7e0] sm:$0xff] %v6531
      %6794 = vst [vmem:[#allocation5 + $0x7e8] sm:$0xff] %v6533
      %6795 = vst [vmem:[#allocation5 + $0x7f0] sm:$0xff] %v6537
      %6796 = vst [vmem:[#allocation5 + $0x7f8] sm:$0xff] %v6539
      %v6797 = vld [vmem:[%s4] sm:$0x3]
      %v6798 = vld [vmem:[#allocation2] sm:$0xff]
      %v6799 = vld [vmem:[#allocation2 + $0x8] sm:$0xff]
      %v6800 = vld [vmem:[#allocation2 + $0x10] sm:$0xff]
      %v6801 = vld [vmem:[#allocation2 + $0x18] sm:$0xff]
      loop: start=0, step=1, limit=8
      $region53: #{_lambda_.8} parent=47 // loop_pre_header
        _
      $region54: #{_lambda_.8} parent=47 // loop_header
        %s6803 = sphi 0, %s6807
        %p6804 = scmp.ge.s32.totalorder %s6803, 8
        %v6808 = vphi %v6798, %v7110
        %v6809 = vphi %v6799, %v7111
        %v6810 = vphi %v6800, %v7112
        %v6811 = vphi %v6801, %v7113
      $region55: #{_lambda_.8} parent=47 // loop_header_branch
        %6806 = sbr.rel (%p6804) target = $region59
      $region56: #{_lambda_.8} parent=47 // loop_body
        %s6812 = smul.u32 %s6803, 8
        %s6813 = smul.u32 %s6812, 4
        %s6814 = smul.addr %s6813, 8
        %s6815 = scalar_lea.vmem [#allocation3], %s6814
        %v6816 = vld [vmem:[%s6815] sm:$0xff]
        %v6817 = vld [vmem:[%s6815 + $0x8] sm:$0xff]
        %v6818 = vld [vmem:[%s6815 + $0x10] sm:$0xff]
        %v6819 = vld [vmem:[%s6815 + $0x18] sm:$0xff]
        %v6820 = vmul.f32 %v6816, %v6808
        %v6821 = vmul.f32 %v6817, %v6809
        %v6822 = vmul.f32 %v6818, %v6810
        %v6823 = vmul.f32 %v6819, %v6811
        %s6824 = smul.addr %s6813, 8
        %s6825 = scalar_lea.vmem [#allocation4], %s6824
        %v6826 = vld [vmem:[%s6825] sm:$0xff]
        %v6827 = vld [vmem:[%s6825 + $0x8] sm:$0xff]
        %v6828 = vld [vmem:[%s6825 + $0x10] sm:$0xff]
        %v6829 = vld [vmem:[%s6825 + $0x18] sm:$0xff]
        %v6830 = vadd.f32 %v6820, %v6826
        %v6831 = vadd.f32 %v6821, %v6827
        %v6832 = vadd.f32 %v6822, %v6828
        %v6833 = vadd.f32 %v6823, %v6829
        %s6834 = smul.addr %s6813, 8
        %s6835 = scalar_lea.vmem [#allocation5], %s6834
        %v6836 = vld [vmem:[%s6835] sm:$0xff]
        %v6837 = vld [vmem:[%s6835 + $0x8] sm:$0xff]
        %v6838 = vld [vmem:[%s6835 + $0x10] sm:$0xff]
        %v6839 = vld [vmem:[%s6835 + $0x18] sm:$0xff]
        %v6840 = vmul.f32 %v6836, %v6830
        %v6841 = vmul.f32 %v6837, %v6831
        %v6842 = vmul.f32 %v6838, %v6832
        %v6843 = vmul.f32 %v6839, %v6833
        %s6844 = sadd.s32 %s6812, 1
        %s6845 = smul.u32 %s6844, 4
        %s6846 = smul.addr %s6845, 8
        %s6847 = scalar_lea.vmem [#allocation3], %s6846
        %v6848 = vld [vmem:[%s6847] sm:$0xff]
        %v6849 = vld [vmem:[%s6847 + $0x8] sm:$0xff]
        %v6850 = vld [vmem:[%s6847 + $0x10] sm:$0xff]
        %v6851 = vld [vmem:[%s6847 + $0x18] sm:$0xff]
        %v6852 = vmul.f32 %v6848, %v6830
        %v6853 = vmul.f32 %v6849, %v6831
        %v6854 = vmul.f32 %v6850, %v6832
        %v6855 = vmul.f32 %v6851, %v6833
        %s6856 = smul.addr %s6845, 8
        %s6857 = scalar_lea.vmem [#allocation4], %s6856
        %v6858 = vld [vmem:[%s6857] sm:$0xff]
        %v6859 = vld [vmem:[%s6857 + $0x8] sm:$0xff]
        %v6860 = vld [vmem:[%s6857 + $0x10] sm:$0xff]
        %v6861 = vld [vmem:[%s6857 + $0x18] sm:$0xff]
        %v6862 = vadd.f32 %v6852, %v6858
        %v6863 = vadd.f32 %v6853, %v6859
        %v6864 = vadd.f32 %v6854, %v6860
        %v6865 = vadd.f32 %v6855, %v6861
        %s6866 = smul.addr %s6845, 8
        %s6867 = scalar_lea.vmem [#allocation5], %s6866
        %v6868 = vld [vmem:[%s6867] sm:$0xff]
        %v6869 = vld [vmem:[%s6867 + $0x8] sm:$0xff]
        %v6870 = vld [vmem:[%s6867 + $0x10] sm:$0xff]
        %v6871 = vld [vmem:[%s6867 + $0x18] sm:$0xff]
        %v6872 = vmul.f32 %v6868, %v6862
        %v6873 = vmul.f32 %v6869, %v6863
        %v6874 = vmul.f32 %v6870, %v6864
        %v6875 = vmul.f32 %v6871, %v6865
        %s6876 = sadd.s32 %s6812, 2
        %s6877 = smul.u32 %s6876, 4
        %s6878 = smul.addr %s6877, 8
        %s6879 = scalar_lea.vmem [#allocation3], %s6878
        %v6880 = vld [vmem:[%s6879] sm:$0xff]
        %v6881 = vld [vmem:[%s6879 + $0x8] sm:$0xff]
        %v6882 = vld [vmem:[%s6879 + $0x10] sm:$0xff]
        %v6883 = vld [vmem:[%s6879 + $0x18] sm:$0xff]
        %v6884 = vmul.f32 %v6880, %v6862
        %v6885 = vmul.f32 %v6881, %v6863
        %v6886 = vmul.f32 %v6882, %v6864
        %v6887 = vmul.f32 %v6883, %v6865
        %s6888 = smul.addr %s6877, 8
        %s6889 = scalar_lea.vmem [#allocation4], %s6888
        %v6890 = vld [vmem:[%s6889] sm:$0xff]
        %v6891 = vld [vmem:[%s6889 + $0x8] sm:$0xff]
        %v6892 = vld [vmem:[%s6889 + $0x10] sm:$0xff]
        %v6893 = vld [vmem:[%s6889 + $0x18] sm:$0xff]
        %v6894 = vadd.f32 %v6884, %v6890
        %v6895 = vadd.f32 %v6885, %v6891
        %v6896 = vadd.f32 %v6886, %v6892
        %v6897 = vadd.f32 %v6887, %v6893
        %s6898 = smul.addr %s6877, 8
        %s6899 = scalar_lea.vmem [#allocation5], %s6898
        %v6900 = vld [vmem:[%s6899] sm:$0xff]
        %v6901 = vld [vmem:[%s6899 + $0x8] sm:$0xff]
        %v6902 = vld [vmem:[%s6899 + $0x10] sm:$0xff]
        %v6903 = vld [vmem:[%s6899 + $0x18] sm:$0xff]
        %v6904 = vmul.f32 %v6900, %v6894
        %v6905 = vmul.f32 %v6901, %v6895
        %v6906 = vmul.f32 %v6902, %v6896
        %v6907 = vmul.f32 %v6903, %v6897
        %s6908 = sadd.s32 %s6812, 3
        %s6909 = smul.u32 %s6908, 4
        %s6910 = smul.addr %s6909, 8
        %s6911 = scalar_lea.vmem [#allocation3], %s6910
        %v6912 = vld [vmem:[%s6911] sm:$0xff]
        %v6913 = vld [vmem:[%s6911 + $0x8] sm:$0xff]
        %v6914 = vld [vmem:[%s6911 + $0x10] sm:$0xff]
        %v6915 = vld [vmem:[%s6911 + $0x18] sm:$0xff]
        %v6916 = vmul.f32 %v6912, %v6894
        %v6917 = vmul.f32 %v6913, %v6895
        %v6918 = vmul.f32 %v6914, %v6896
        %v6919 = vmul.f32 %v6915, %v6897
        %s6920 = smul.addr %s6909, 8
        %s6921 = scalar_lea.vmem [#allocation4], %s6920
        %v6922 = vld [vmem:[%s6921] sm:$0xff]
        %v6923 = vld [vmem:[%s6921 + $0x8] sm:$0xff]
        %v6924 = vld [vmem:[%s6921 + $0x10] sm:$0xff]
        %v6925 = vld [vmem:[%s6921 + $0x18] sm:$0xff]
        %v6926 = vadd.f32 %v6916, %v6922
        %v6927 = vadd.f32 %v6917, %v6923
        %v6928 = vadd.f32 %v6918, %v6924
        %v6929 = vadd.f32 %v6919, %v6925
        %s6930 = smul.addr %s6909, 8
        %s6931 = scalar_lea.vmem [#allocation5], %s6930
        %v6932 = vld [vmem:[%s6931] sm:$0xff]
        %v6933 = vld [vmem:[%s6931 + $0x8] sm:$0xff]
        %v6934 = vld [vmem:[%s6931 + $0x10] sm:$0xff]
        %v6935 = vld [vmem:[%s6931 + $0x18] sm:$0xff]
        %v6936 = vmul.f32 %v6932, %v6926
        %v6937 = vmul.f32 %v6933, %v6927
        %v6938 = vmul.f32 %v6934, %v6928
        %v6939 = vmul.f32 %v6935, %v6929
        %v6940 = vadd.f32 %v6840, %v6842
        %v6941 = vrot.slane %v6940, 4
        %v6942 = vadd.f32 %v6940, %v6941
        %v6943 = vrot.slane %v6942, 2
        %v6944 = vadd.f32 %v6942, %v6943
        %v6945 = vrot.slane %v6944, 1
        %v6946 = vadd.f32 %v6944, %v6945
        %v6947 = vadd.f32 %v6841, %v6843
        %v6948 = vrot.slane %v6947, 4
        %v6949 = vadd.f32 %v6947, %v6948
        %v6950 = vrot.slane %v6949, 2
        %v6951 = vadd.f32 %v6949, %v6950
        %v6952 = vrot.slane %v6951, 1
        %v6953 = vadd.f32 %v6951, %v6952
        %v6954 = vadd.f32 %v6872, %v6874
        %v6955 = vrot.slane %v6954, 4
        %v6956 = vadd.f32 %v6954, %v6955
        %v6957 = vrot.slane %v6956, 2
        %v6958 = vadd.f32 %v6956, %v6957
        %v6959 = vrot.slane %v6958, 1
        %v6960 = vadd.f32 %v6958, %v6959
        %v6961 = vadd.f32 %v6873, %v6875
        %v6962 = vrot.slane %v6961, 4
        %v6963 = vadd.f32 %v6961, %v6962
        %v6964 = vrot.slane %v6963, 2
        %v6965 = vadd.f32 %v6963, %v6964
        %v6966 = vrot.slane %v6965, 1
        %v6967 = vadd.f32 %v6965, %v6966
        %v6968 = vadd.f32 %v6904, %v6906
        %v6969 = vrot.slane %v6968, 4
        %v6970 = vadd.f32 %v6968, %v6969
        %v6971 = vrot.slane %v6970, 2
        %v6972 = vadd.f32 %v6970, %v6971
        %v6973 = vrot.slane %v6972, 1
        %v6974 = vadd.f32 %v6972, %v6973
        %v6975 = vadd.f32 %v6905, %v6907
        %v6976 = vrot.slane %v6975, 4
        %v6977 = vadd.f32 %v6975, %v6976
        %v6978 = vrot.slane %v6977, 2
        %v6979 = vadd.f32 %v6977, %v6978
        %v6980 = vrot.slane %v6979, 1
        %v6981 = vadd.f32 %v6979, %v6980
        %v6982 = vadd.f32 %v6936, %v6938
        %v6983 = vrot.slane %v6982, 4
        %v6984 = vadd.f32 %v6982, %v6983
        %v6985 = vrot.slane %v6984, 2
        %v6986 = vadd.f32 %v6984, %v6985
        %v6987 = vrot.slane %v6986, 1
        %v6988 = vadd.f32 %v6986, %v6987
        %v6989 = vadd.f32 %v6937, %v6939
        %v6990 = vrot.slane %v6989, 4
        %v6991 = vadd.f32 %v6989, %v6990
        %v6992 = vrot.slane %v6991, 2
        %v6993 = vadd.f32 %v6991, %v6992
        %v6994 = vrot.slane %v6993, 1
        %v6995 = vadd.f32 %v6993, %v6994
        %s6996 = sadd.s32 %s6812, 4
        %s6997 = smul.u32 %s6996, 4
        %s6998 = smul.addr %s6997, 8
        %s6999 = scalar_lea.vmem [#allocation3], %s6998
        %v7000 = vld [vmem:[%s6999] sm:$0xff]
        %v7001 = vld [vmem:[%s6999 + $0x8] sm:$0xff]
        %v7002 = vld [vmem:[%s6999 + $0x10] sm:$0xff]
        %v7003 = vld [vmem:[%s6999 + $0x18] sm:$0xff]
        %v7004 = vmul.f32 %v7000, %v6926
        %v7005 = vmul.f32 %v7001, %v6927
        %v7006 = vmul.f32 %v7002, %v6928
        %v7007 = vmul.f32 %v7003, %v6929
        %s7008 = smul.addr %s6997, 8
        %s7009 = scalar_lea.vmem [#allocation4], %s7008
        %v7010 = vld [vmem:[%s7009] sm:$0xff]
        %v7011 = vld [vmem:[%s7009 + $0x8] sm:$0xff]
        %v7012 = vld [vmem:[%s7009 + $0x10] sm:$0xff]
        %v7013 = vld [vmem:[%s7009 + $0x18] sm:$0xff]
        %v7014 = vadd.f32 %v7004, %v7010
        %v7015 = vadd.f32 %v7005, %v7011
        %v7016 = vadd.f32 %v7006, %v7012
        %v7017 = vadd.f32 %v7007, %v7013
        %s7018 = smul.addr %s6997, 8
        %s7019 = scalar_lea.vmem [#allocation5], %s7018
        %v7020 = vld [vmem:[%s7019] sm:$0xff]
        %v7021 = vld [vmem:[%s7019 + $0x8] sm:$0xff]
        %v7022 = vld [vmem:[%s7019 + $0x10] sm:$0xff]
        %v7023 = vld [vmem:[%s7019 + $0x18] sm:$0xff]
        %v7024 = vmul.f32 %v7020, %v7014
        %v7025 = vmul.f32 %v7021, %v7015
        %v7026 = vmul.f32 %v7022, %v7016
        %v7027 = vmul.f32 %v7023, %v7017
        %s7028 = sadd.s32 %s6812, 5
        %s7029 = smul.u32 %s7028, 4
        %s7030 = smul.addr %s7029, 8
        %s7031 = scalar_lea.vmem [#allocation3], %s7030
        %v7032 = vld [vmem:[%s7031] sm:$0xff]
        %v7033 = vld [vmem:[%s7031 + $0x8] sm:$0xff]
        %v7034 = vld [vmem:[%s7031 + $0x10] sm:$0xff]
        %v7035 = vld [vmem:[%s7031 + $0x18] sm:$0xff]
        %v7036 = vmul.f32 %v7032, %v7014
        %v7037 = vmul.f32 %v7033, %v7015
        %v7038 = vmul.f32 %v7034, %v7016
        %v7039 = vmul.f32 %v7035, %v7017
        %s7040 = smul.addr %s7029, 8
        %s7041 = scalar_lea.vmem [#allocation4], %s7040
        %v7042 = vld [vmem:[%s7041] sm:$0xff]
        %v7043 = vld [vmem:[%s7041 + $0x8] sm:$0xff]
        %v7044 = vld [vmem:[%s7041 + $0x10] sm:$0xff]
        %v7045 = vld [vmem:[%s7041 + $0x18] sm:$0xff]
        %v7046 = vadd.f32 %v7036, %v7042
        %v7047 = vadd.f32 %v7037, %v7043
        %v7048 = vadd.f32 %v7038, %v7044
        %v7049 = vadd.f32 %v7039, %v7045
        %s7050 = smul.addr %s7029, 8
        %s7051 = scalar_lea.vmem [#allocation5], %s7050
        %v7052 = vld [vmem:[%s7051] sm:$0xff]
        %v7053 = vld [vmem:[%s7051 + $0x8] sm:$0xff]
        %v7054 = vld [vmem:[%s7051 + $0x10] sm:$0xff]
        %v7055 = vld [vmem:[%s7051 + $0x18] sm:$0xff]
        %v7056 = vmul.f32 %v7052, %v7046
        %v7057 = vmul.f32 %v7053, %v7047
        %v7058 = vmul.f32 %v7054, %v7048
        %v7059 = vmul.f32 %v7055, %v7049
        %s7060 = sadd.s32 %s6812, 6
        %s7061 = smul.u32 %s7060, 4
        %s7062 = smul.addr %s7061, 8
        %s7063 = scalar_lea.vmem [#allocation3], %s7062
        %v7064 = vld [vmem:[%s7063] sm:$0xff]
        %v7065 = vld [vmem:[%s7063 + $0x8] sm:$0xff]
        %v7066 = vld [vmem:[%s7063 + $0x10] sm:$0xff]
        %v7067 = vld [vmem:[%s7063 + $0x18] sm:$0xff]
        %v7068 = vmul.f32 %v7064, %v7046
        %v7069 = vmul.f32 %v7065, %v7047
        %v7070 = vmul.f32 %v7066, %v7048
        %v7071 = vmul.f32 %v7067, %v7049
        %s7072 = smul.addr %s7061, 8
        %s7073 = scalar_lea.vmem [#allocation4], %s7072
        %v7074 = vld [vmem:[%s7073] sm:$0xff]
        %v7075 = vld [vmem:[%s7073 + $0x8] sm:$0xff]
        %v7076 = vld [vmem:[%s7073 + $0x10] sm:$0xff]
        %v7077 = vld [vmem:[%s7073 + $0x18] sm:$0xff]
        %v7078 = vadd.f32 %v7068, %v7074
        %v7079 = vadd.f32 %v7069, %v7075
        %v7080 = vadd.f32 %v7070, %v7076
        %v7081 = vadd.f32 %v7071, %v7077
        %s7082 = smul.addr %s7061, 8
        %s7083 = scalar_lea.vmem [#allocation5], %s7082
        %v7084 = vld [vmem:[%s7083] sm:$0xff]
        %v7085 = vld [vmem:[%s7083 + $0x8] sm:$0xff]
        %v7086 = vld [vmem:[%s7083 + $0x10] sm:$0xff]
        %v7087 = vld [vmem:[%s7083 + $0x18] sm:$0xff]
        %v7088 = vmul.f32 %v7084, %v7078
        %v7089 = vmul.f32 %v7085, %v7079
        %v7090 = vmul.f32 %v7086, %v7080
        %v7091 = vmul.f32 %v7087, %v7081
        %s7092 = sadd.s32 %s6812, 7
        %s7093 = smul.u32 %s7092, 4
        %s7094 = smul.addr %s7093, 8
        %s7095 = scalar_lea.vmem [#allocation3], %s7094
        %v7096 = vld [vmem:[%s7095] sm:$0xff]
        %v7097 = vld [vmem:[%s7095 + $0x8] sm:$0xff]
        %v7098 = vld [vmem:[%s7095 + $0x10] sm:$0xff]
        %v7099 = vld [vmem:[%s7095 + $0x18] sm:$0xff]
        %v7100 = vmul.f32 %v7096, %v7078
        %v7101 = vmul.f32 %v7097, %v7079
        %v7102 = vmul.f32 %v7098, %v7080
        %v7103 = vmul.f32 %v7099, %v7081
        %s7104 = smul.addr %s7093, 8
        %s7105 = scalar_lea.vmem [#allocation4], %s7104
        %v7106 = vld [vmem:[%s7105] sm:$0xff]
        %v7107 = vld [vmem:[%s7105 + $0x8] sm:$0xff]
        %v7108 = vld [vmem:[%s7105 + $0x10] sm:$0xff]
        %v7109 = vld [vmem:[%s7105 + $0x18] sm:$0xff]
        %v7110 = vadd.f32 %v7100, %v7106
        %v7111 = vadd.f32 %v7101, %v7107
        %v7112 = vadd.f32 %v7102, %v7108
        %v7113 = vadd.f32 %v7103, %v7109
        %s7114 = smul.addr %s7093, 8
        %s7115 = scalar_lea.vmem [#allocation5], %s7114
        %v7116 = vld [vmem:[%s7115] sm:$0xff]
        %v7117 = vld [vmem:[%s7115 + $0x8] sm:$0xff]
        %v7118 = vld [vmem:[%s7115 + $0x10] sm:$0xff]
        %v7119 = vld [vmem:[%s7115 + $0x18] sm:$0xff]
        %v7120 = vmul.f32 %v7116, %v7110
        %v7121 = vmul.f32 %v7117, %v7111
        %v7122 = vmul.f32 %v7118, %v7112
        %v7123 = vmul.f32 %v7119, %v7113
        %v7124 = vadd.f32 %v7024, %v7026
        %v7125 = vrot.slane %v7124, 4
        %v7126 = vadd.f32 %v7124, %v7125
        %v7127 = vrot.slane %v7126, 2
        %v7128 = vadd.f32 %v7126, %v7127
        %v7129 = vrot.slane %v7128, 1
        %v7130 = vadd.f32 %v7128, %v7129
        %v7131 = vadd.f32 %v7025, %v7027
        %v7132 = vrot.slane %v7131, 4
        %v7133 = vadd.f32 %v7131, %v7132
        %v7134 = vrot.slane %v7133, 2
        %v7135 = vadd.f32 %v7133, %v7134
        %v7136 = vrot.slane %v7135, 1
        %v7137 = vadd.f32 %v7135, %v7136
        %v7138 = vadd.f32 %v7056, %v7058
        %v7139 = vrot.slane %v7138, 4
        %v7140 = vadd.f32 %v7138, %v7139
        %v7141 = vrot.slane %v7140, 2
        %v7142 = vadd.f32 %v7140, %v7141
        %v7143 = vrot.slane %v7142, 1
        %v7144 = vadd.f32 %v7142, %v7143
        %v7145 = vadd.f32 %v7057, %v7059
        %v7146 = vrot.slane %v7145, 4
        %v7147 = vadd.f32 %v7145, %v7146
        %v7148 = vrot.slane %v7147, 2
        %v7149 = vadd.f32 %v7147, %v7148
        %v7150 = vrot.slane %v7149, 1
        %v7151 = vadd.f32 %v7149, %v7150
        %v7152 = vadd.f32 %v7088, %v7090
        %v7153 = vrot.slane %v7152, 4
        %v7154 = vadd.f32 %v7152, %v7153
        %v7155 = vrot.slane %v7154, 2
        %v7156 = vadd.f32 %v7154, %v7155
        %v7157 = vrot.slane %v7156, 1
        %v7158 = vadd.f32 %v7156, %v7157
        %v7159 = vadd.f32 %v7089, %v7091
        %v7160 = vrot.slane %v7159, 4
        %v7161 = vadd.f32 %v7159, %v7160
        %v7162 = vrot.slane %v7161, 2
        %v7163 = vadd.f32 %v7161, %v7162
        %v7164 = vrot.slane %v7163, 1
        %v7165 = vadd.f32 %v7163, %v7164
        %v7166 = vadd.f32 %v7120, %v7122
        %v7167 = vrot.slane %v7166, 4
        %v7168 = vadd.f32 %v7166, %v7167
        %v7169 = vrot.slane %v7168, 2
        %v7170 = vadd.f32 %v7168, %v7169
        %v7171 = vrot.slane %v7170, 1
        %v7172 = vadd.f32 %v7170, %v7171
        %v7173 = vadd.f32 %v7121, %v7123
        %v7174 = vrot.slane %v7173, 4
        %v7175 = vadd.f32 %v7173, %v7174
        %v7176 = vrot.slane %v7175, 2
        %v7177 = vadd.f32 %v7175, %v7176
        %v7178 = vrot.slane %v7177, 1
        %v7179 = vadd.f32 %v7177, %v7178
        %vm7188 = vcmask 1041409
        %v7189 = vsel %vm7188, %v6960, %v6946
        %vm7190 = vcmask 1042434
        %v7191 = vsel %vm7190, %v6974, %v7189
        %vm7192 = vcmask 1043459
        %v7193 = vsel %vm7192, %v6988, %v7191
        %v7194 = vsel %vm7188, %v6967, %v6953
        %v7195 = vsel %vm7190, %v6981, %v7194
        %v7196 = vsel %vm7192, %v6995, %v7195
        %vm7207 = vcmask 1045509
        %v7208 = vsel %vm7207, %v7144, %v7130
        %vm7209 = vcmask 1046534
        %v7210 = vsel %vm7209, %v7158, %v7208
        %vm7211 = vcmask 1047559
        %v7212 = vsel %vm7211, %v7172, %v7210
        %v7213 = vsel %vm7207, %v7151, %v7137
        %v7214 = vsel %vm7209, %v7165, %v7213
        %v7215 = vsel %vm7211, %v7179, %v7214
        %vm7218 = vcmask 1043456
        %v7219 = vsel %vm7218, %v7193, %v7212
        %v7220 = vsel %vm7218, %v7196, %v7215
        %s7221 = sshra.s32 %s6812, 3
        %s7222 = sand.u32 %s6812, 7
        %s7223 = smul.u32 %s7221, 2
        %s7224 = smul.addr %s7223, 8
        %s7225 = scalar_lea.vmem %s364, %s7224
        %v7226 = vld [vmem:[%s7225] sm:$0xff]
        %v7227 = vld [vmem:[%s7225 + $0x8] sm:$0xff]
        %v7229 = vlaneseq
        %v7230 = vshrl.u32 %v7229, 7
        %v7231 = vsub.s32 0, %v7230
        %v7232 = vrot.slane %v6797, %v7231
        %v7233 = vlaneseq
        %v7234 = vshrl.u32 %v7233, 7
        %v7235 = vsub.s32 1, %v7234
        %v7236 = vrot.slane %v6797, %v7235
        %v7239 = vmul.f32 %v7232, %v7226
        %v7240 = vmul.f32 %v7236, %v7227
        %v7241 = vadd.f32 %v7219, %v7239
        %v7242 = vadd.f32 %v7220, %v7240
        %s7243 = smul.addr %s7223, 8
        %s7244 = scalar_lea.vmem %s396, %s7243
        %7245 = vst [vmem:[%s7244] sm:$0xff] %v7241
        %7246 = vst [vmem:[%s7244 + $0x8] sm:$0xff] %v7242
      $region57: #{_lambda_.8} parent=47 // loop_footer
        %s6807 = sadd.s32 1, %s6803
      $region58: #{_lambda_.8} parent=47 // loop_footer_branch
        %6802 = sbr.rel target = $region54
      $region59: #{_lambda_.8} parent=47 // loop_exit
        _
      %7247 = vst [vmem:[#allocation2] sm:$0xff] %v6808
      %7248 = vst [vmem:[#allocation2 + $0x8] sm:$0xff] %v6809
      %7249 = vst [vmem:[#allocation2 + $0x10] sm:$0xff] %v6810
      %7250 = vst [vmem:[#allocation2 + $0x18] sm:$0xff] %v6811
      %s7251 = smul.u32 8, %s23
      %p7252 = scmp.lt.s32.totalorder %s22, 1
      %s7253 = scalar_select %p7252, %s22, 1
      %p7254 = scmp.lt.s32.totalorder %s7251, 7
      %s7255 = scalar_select %p7254, %s7251, 7
      %s7256 = smul.addr %s7255, 2
      %s7257 = smul.addr %s7253, 16
      %s7258 = sadd.s32 %s7256, %s7257
      %s7259 = smul.addr %s7258, 8
      %s7260 = scalar_lea.vmem %s7, %s7259
      // Predicated region
      $region60: #{_lambda_.8} parent=47 // pred_check
        %p7261 = pneg %p218
      $region61: #{_lambda_.8} parent=47 // pred_check_branch
        %7263 = sbr.rel (%p7261) target = $region63
      $region62: #{_lambda_.8} parent=47 // pred_region
        %s7264 = smul.u32 8, %s23
      $region63: #{_lambda_.8} parent=47 // pred_fallthru
        _
    $region48: #{_lambda_.8} parent=5 // pred_fallthru
      _
    %p7265 = scmp.le.s32.totalorder 2, %s13
    // Predicated region
    $region64: #{_lambda_.8} parent=5 // pred_check
      %p7266 = pneg %p7265
    $region65: #{_lambda_.8} parent=5 // pred_check_branch
      %7268 = sbr.rel (%p7266) target = $region67
    $region66: #{_lambda_.8} parent=5 // pred_region
      %s7269 = ssub.s32 %s13, 2
      // Predicated region
      $region68: #{_lambda_.8} parent=66 // pred_check
        %p7270 = pneg %p224
      $region69: #{_lambda_.8} parent=66 // pred_check_branch
        %7272 = sbr.rel (%p7270) target = $region71
      $region70: #{_lambda_.8} parent=66 // pred_region
        %s7273 = smul.u32 8, %s25
        %p7274 = scmp.lt.s32.totalorder %s24, 1
        %s7275 = scalar_select %p7274, %s24, 1
        %p7276 = scmp.lt.s32.totalorder %s7273, 7
        %s7277 = scalar_select %p7276, %s7273, 7
        %s7278 = smul.addr %s7277, 2
        %s7279 = smul.addr %s7275, 16
        %s7280 = sadd.s32 %s7278, %s7279
        %s7281 = smul.addr %s7280, 8
        %s7282 = scalar_lea.vmem %s7, %s7281
      $region71: #{_lambda_.8} parent=66 // pred_fallthru
        _
    $region67: #{_lambda_.8} parent=5 // pred_fallthru
      _
  $region6: #{_lambda_.8} parent=0 // loop_footer
    %s17 = sadd.s32 1, %s13
  $region7: #{_lambda_.8} parent=0 // loop_footer_branch
    %12 = sbr.rel target = $region3
  $region8: #{_lambda_.8} parent=0 // loop_exit
    _

</llo_original>
